<compile_context>
chip_gen: v6e
topology: v6e:2x2x1
jax: 0.10.0
libtpu: 0.0.40
codegen_flags: <defaults>
</compile_context>

<pallas_src>
import jax
import jax.numpy as jnp
from jax.experimental import pallas as pl
from jax.experimental.pallas import tpu as pltpu


# ----------------------------- Pallas kernel --------------------------------
def stn_kernel(x_ref,
               w1_ref, s1_ref, c1_ref,
               w2_ref, s2_ref, c2_ref,
               w3_ref, s3_ref, c3_ref,
               fw1_ref, fs1_ref, fc1_ref,
               fw2_ref, fs2_ref, fc2_ref,
               fw3_ref, fb3_ref,
               out_ref, gmax_ref):
    n_blk = pl.program_id(1)

    @pl.when(n_blk == 0)
    def _():
        gmax_ref[...] = jnp.full(gmax_ref.shape, -jnp.inf, dtype=gmax_ref.dtype)

    def mm_bn_relu(h_bf16, w_ref, s_ref, c_ref):
        acc = jnp.dot(h_bf16, w_ref[...], preferred_element_type=jnp.float32)
        return jnp.maximum(acc * s_ref[...] + c_ref[...], 0.0)   # f32 epilogue

    # Flatten (B_TILE, N_TILE) -> M rows; exact for 1x1 convs.
    bt, nt, k = x_ref.shape
    x = x_ref[...].reshape(bt * nt, k).astype(jnp.bfloat16)

    h = mm_bn_relu(x, w1_ref, s1_ref, c1_ref)                           # (M, 64)
    h = mm_bn_relu(h.astype(jnp.bfloat16), w2_ref, s2_ref, c2_ref)      # (M, 128)
    h = mm_bn_relu(h.astype(jnp.bfloat16), w3_ref, s3_ref, c3_ref)      # (M, 1024)

    # Per-sample running max over the point axis (torch.max(x, 2)).
    chunk_max = jnp.max(h.reshape(bt, nt, h.shape[-1]), axis=1)         # (bt, 1024)
    gmax_ref[...] = jnp.maximum(gmax_ref[...], chunk_max)

    @pl.when(n_blk == pl.num_programs(1) - 1)
    def _():
        g = gmax_ref[...].astype(jnp.bfloat16)                          # (bt, 1024)
        f = mm_bn_relu(g, fw1_ref, fs1_ref, fc1_ref)                    # (bt, 512)
        f = mm_bn_relu(f.astype(jnp.bfloat16), fw2_ref, fs2_ref, fc2_ref)  # (bt, 256)
        out = (jnp.dot(f.astype(jnp.bfloat16), fw3_ref[...],
                       preferred_element_type=jnp.float32)
               + fb3_ref[...])                                          # bias + identity folded
        out_ref[...] = out


# ------------------------------- wrapper -------------------------------------
def stnkd_forward(x_bkn, params, k, b_tile=8, n_tile=None):
    """x_bkn: (B, k, N) float32 (PyTorch NCW).  Returns (B, k, k) float32."""
    B, K, N = x_bkn.shape
    assert K == k
    assert b_tile % 8 == 0, "b_tile must be a multiple of 8 (sublane tiling)"
    KK = K * K

    # Pad batch to a multiple of b_tile (samples are independent; padded rows
    # are discarded after the call).
    B_pad = -(-B // b_tile) * b_tile
    if B_pad != B:
        pad = jnp.zeros((B_pad - B, K, N), x_bkn.dtype)
        x_bkn = jnp.concatenate([x_bkn, pad], axis=0)

    # Point-axis tile: must divide N exactly (no masking of padded points) and
    # be a multiple of 8; otherwise process all points in a single block.
    if n_tile is None or N % n_tile != 0 or n_tile % 8 != 0:
        n_tile = N

    # Channels-last so every 1x1 conv / linear is a plain MXU matmul.
    # (At large N this transpose could be fused into the kernel producer.)
    x_t = jnp.transpose(x_bkn, (0, 2, 1))            # (B_pad, N, K)

    grid = (B_pad // b_tile, N // n_tile)
    in_specs = [pl.BlockSpec((b_tile, n_tile, K), lambda b, n: (b, n, 0))]
    # All params are 2D and grid-invariant (constant block index -> no re-DMA).
    in_specs += [pl.BlockSpec(p.shape, lambda b, n: (0, 0)) for p in params]

    out = pl.pallas_call(
        stn_kernel,
        out_shape=jax.ShapeDtypeStruct((B_pad, KK), jnp.float32),
        grid=grid,
        in_specs=in_specs,
        out_specs=pl.BlockSpec((b_tile, KK), lambda b, n: (b, 0)),
        scratch_shapes=[pltpu.VMEM((b_tile, 1024), jnp.float32)],
        compiler_params=pltpu.CompilerParams(
            dimension_semantics=("parallel", "arbitrary"),
            vmem_limit_bytes=48 * 1024 * 1024),
    )(x_t, *params)

    return out[:B].reshape(B, K, K)


# -------------------------- deterministic params ------------------------------
def _fold_layer(key, cin, cout):
    """Conv1d(k=1)/Linear + BatchNorm1d (eval) folded to (W^T bf16, scale, bias)."""
    kw, kb, kg, kbe, km, kv = jax.random.split(key, 6)
    w = jax.random.normal(kw, (cout, cin), jnp.float32) * (float(cin) ** -0.5)
    b = 0.1 * jax.random.normal(kb, (cout,), jnp.float32)
    gamma = 1.0 + 0.1 * jax.random.normal(kg, (cout,), jnp.float32)
    beta = 0.1 * jax.random.normal(kbe, (cout,), jnp.float32)
    r_mean = 0.1 * jax.random.normal(km, (cout,), jnp.float32)
    r_var = jnp.abs(1.0 + 0.1 * jax.random.normal(kv, (cout,), jnp.float32))
    eps = 1e-5
    scale = gamma / jnp.sqrt(r_var + eps)
    shift = beta - r_mean * scale
    bias_eff = scale * b + shift
    return (w.T.astype(jnp.bfloat16),            # matmul weight in bf16
            scale.reshape(1, -1),                # f32 epilogue
            bias_eff.reshape(1, -1))             # f32 epilogue


def make_params(key, k):
    keys = jax.random.split(key, 6)
    w1, s1, c1 = _fold_layer(keys[0], k, 64)
    w2, s2, c2 = _fold_layer(keys[1], 64, 128)
    w3, s3, c3 = _fold_layer(keys[2], 128, 1024)
    fw1, fs1, fc1 = _fold_layer(keys[3], 1024, 512)
    fw2, fs2, fc2 = _fold_layer(keys[4], 512, 256)
    kw, kb = jax.random.split(keys[5])
    fw3 = (jax.random.normal(kw, (k * k, 256), jnp.float32) / 16.0).T.astype(jnp.bfloat16)
    fb3 = 0.1 * jax.random.normal(kb, (k * k,), jnp.float32)
    eye = jnp.eye(k, dtype=jnp.float32).reshape(-1)
    fb3_eye = (fb3 + eye).reshape(1, -1)         # fold identity into fc3 bias
    return (w1, s1, c1, w2, s2, c2, w3, s3, c3,
            fw1, fs1, fc1, fw2, fs2, fc2, fw3, fb3_eye)


# --------------------------- pure-JAX reference -------------------------------
def ref_forward(x_bkn, params, k):
    (w1, s1, c1, w2, s2, c2, w3, s3, c3,
     fw1, fs1, fc1, fw2, fs2, fc2, fw3, fb3_eye) = params
    B = x_bkn.shape[0]

    def layer(h, w, s, c):
        acc = jnp.dot(h.astype(jnp.bfloat16), w,
                      preferred_element_type=jnp.float32)
        return jnp.maximum(acc * s + c, 0.0)

    x = jnp.transpose(x_bkn, (0, 2, 1))          # (B, N, K) channels-last
    h = layer(x, w1, s1, c1)
    h = layer(h, w2, s2, c2)
    h = layer(h, w3, s3, c3)
    g = jnp.max(h, axis=1)                       # (B, 1024)
    f = layer(g, fw1, fs1, fc1)
    f = layer(f, fw2, fs2, fc2)
    out = jnp.dot(f.astype(jnp.bfloat16), fw3,
                  preferred_element_type=jnp.float32) + fb3_eye
    return out.reshape(B, k, k)


# ----------------------------------- main -------------------------------------
if __name__ == "__main__":
    # Small but MXU-friendly test shapes: 16 samples x 128 points, k=16.
    B, N, K = 16, 128, 16
    key = jax.random.PRNGKey(0)
    kx, kp = jax.random.split(key)
    x = jax.random.normal(kx, (B, K, N), jnp.float32)   # PyTorch NCW input
    params = make_params(kp, K)

    out = stnkd_forward(x, params, K, b_tile=8, n_tile=64)
    out = jax.block_until_ready(out)

    ref = ref_forward(x, params, K)
    assert out.shape == (B, K, K), out.shape
    err = float(jnp.max(jnp.abs(out - ref)))
    assert err < 1e-2, err
    print("KERNEL_OK")
</pallas_src>

<mosaic_0001>
module attributes {stable_mosaic.version = 11 : i64} {
  func.func @stn_kernel(%arg0: i32, %arg1: i32, %arg2: memref<8x64x16xf32, #tpu.memory_space<vmem>>, %arg3: memref<16x64xbf16, #tpu.memory_space<vmem>>, %arg4: memref<1x64xf32, #tpu.memory_space<vmem>>, %arg5: memref<1x64xf32, #tpu.memory_space<vmem>>, %arg6: memref<64x128xbf16, #tpu.memory_space<vmem>>, %arg7: memref<1x128xf32, #tpu.memory_space<vmem>>, %arg8: memref<1x128xf32, #tpu.memory_space<vmem>>, %arg9: memref<128x1024xbf16, #tpu.memory_space<vmem>>, %arg10: memref<1x1024xf32, #tpu.memory_space<vmem>>, %arg11: memref<1x1024xf32, #tpu.memory_space<vmem>>, %arg12: memref<1024x512xbf16, #tpu.memory_space<vmem>>, %arg13: memref<1x512xf32, #tpu.memory_space<vmem>>, %arg14: memref<1x512xf32, #tpu.memory_space<vmem>>, %arg15: memref<512x256xbf16, #tpu.memory_space<vmem>>, %arg16: memref<1x256xf32, #tpu.memory_space<vmem>>, %arg17: memref<1x256xf32, #tpu.memory_space<vmem>>, %arg18: memref<256x256xbf16, #tpu.memory_space<vmem>>, %arg19: memref<1x256xf32, #tpu.memory_space<vmem>>, %arg20: memref<8x256xf32, #tpu.memory_space<vmem>>, %arg21: memref<8x1024xf32, #tpu.memory_space<vmem>>) attributes {dimension_semantics = [#tpu.dimension_semantics<parallel>, #tpu.dimension_semantics<arbitrary>], iteration_bounds = array<i64: 2, 2>, scalar_prefetch = 0 : i64, scratch_operands = 1 : i64, tpu.core_type = #tpu.core_type<tc>, window_params = [{transform_indices = @transform_0, window_bounds = array<i64: 8, 64, 16>}, {pipeline_mode = #tpu.pipeline_mode<synchronous>, transform_indices = @transform_1, window_bounds = array<i64: 16, 64>}, {pipeline_mode = #tpu.pipeline_mode<synchronous>, transform_indices = @transform_2, window_bounds = array<i64: 1, 64>}, {pipeline_mode = #tpu.pipeline_mode<synchronous>, transform_indices = @transform_3, window_bounds = array<i64: 1, 64>}, {pipeline_mode = #tpu.pipeline_mode<synchronous>, transform_indices = @transform_4, window_bounds = array<i64: 64, 128>}, {pipeline_mode = #tpu.pipeline_mode<synchronous>, transform_indices = @transform_5, window_bounds = array<i64: 1, 128>}, {pipeline_mode = #tpu.pipeline_mode<synchronous>, transform_indices = @transform_6, window_bounds = array<i64: 1, 128>}, {pipeline_mode = #tpu.pipeline_mode<synchronous>, transform_indices = @transform_7, window_bounds = array<i64: 128, 1024>}, {pipeline_mode = #tpu.pipeline_mode<synchronous>, transform_indices = @transform_8, window_bounds = array<i64: 1, 1024>}, {pipeline_mode = #tpu.pipeline_mode<synchronous>, transform_indices = @transform_9, window_bounds = array<i64: 1, 1024>}, {pipeline_mode = #tpu.pipeline_mode<synchronous>, transform_indices = @transform_10, window_bounds = array<i64: 1024, 512>}, {pipeline_mode = #tpu.pipeline_mode<synchronous>, transform_indices = @transform_11, window_bounds = array<i64: 1, 512>}, {pipeline_mode = #tpu.pipeline_mode<synchronous>, transform_indices = @transform_12, window_bounds = array<i64: 1, 512>}, {pipeline_mode = #tpu.pipeline_mode<synchronous>, transform_indices = @transform_13, window_bounds = array<i64: 512, 256>}, {pipeline_mode = #tpu.pipeline_mode<synchronous>, transform_indices = @transform_14, window_bounds = array<i64: 1, 256>}, {pipeline_mode = #tpu.pipeline_mode<synchronous>, transform_indices = @transform_15, window_bounds = array<i64: 1, 256>}, {pipeline_mode = #tpu.pipeline_mode<synchronous>, transform_indices = @transform_16, window_bounds = array<i64: 256, 256>}, {pipeline_mode = #tpu.pipeline_mode<synchronous>, transform_indices = @transform_17, window_bounds = array<i64: 1, 256>}, {transform_indices = @transform_18, window_bounds = array<i64: 8, 256>}]} {
    %c0_i32 = arith.constant 0 : i32
    %0 = arith.cmpi eq, %arg1, %c0_i32 : i32
    %1 = arith.extui %0 : i1 to i32
    %c0_i32_0 = arith.constant 0 : i32
    %2 = arith.cmpi ne, %1, %c0_i32_0 : i32
    scf.if %2 {
      %cst_32 = arith.constant 0xFF800000 : f32
      %46 = vector.broadcast %cst_32 : f32 to vector<8x1024xf32>
      %c0_33 = arith.constant 0 : index
      %c0_34 = arith.constant 0 : index
      %47 = vector.load %arg21[%c0_33, %c0_34] : memref<8x1024xf32, #tpu.memory_space<vmem>>, vector<8x1024xf32>
      tpu.vector_store %arg21[%c0_33, %c0_34], %46 {strides = array<i32>} : memref<8x1024xf32, #tpu.memory_space<vmem>>, vector<8x1024xf32>,
    } else {
    }
    %c0 = arith.constant 0 : index
    %c0_1 = arith.constant 0 : index
    %c0_2 = arith.constant 0 : index
    %3 = vector.load %arg2[%c0, %c0_1, %c0_2] : memref<8x64x16xf32, #tpu.memory_space<vmem>>, vector<8x64x16xf32>
    %4 = vector.shape_cast %3 : vector<8x64x16xf32> to vector<512x16xf32>
    %5 = arith.truncf %4 : vector<512x16xf32> to vector<512x16xbf16>
    %c0_3 = arith.constant 0 : index
    %c0_4 = arith.constant 0 : index
    %6 = vector.load %arg3[%c0_3, %c0_4] : memref<16x64xbf16, #tpu.memory_space<vmem>>, vector<16x64xbf16>
    %cst = arith.constant dense<0.000000e+00> : vector<512x64xf32>
    %7 = tpu.matmul %5, %6, %cst {dimension_numbers = #tpu.dot_dimension_numbers<[1], [0], [0], [1], [0, 0, 1, 1], [], []>} : vector<512x16xbf16>, vector<16x64xbf16>, vector<512x64xf32> -> vector<512x64xf32>
    %c0_5 = arith.constant 0 : index
    %c0_6 = arith.constant 0 : index
    %8 = vector.load %arg4[%c0_5, %c0_6] : memref<1x64xf32, #tpu.memory_space<vmem>>, vector<1x64xf32>
    %9 = vector.broadcast %8 : vector<1x64xf32> to vector<512x64xf32>
    %10 = arith.mulf %7, %9 : vector<512x64xf32>
    %c0_7 = arith.constant 0 : index
    %c0_8 = arith.constant 0 : index
    %11 = vector.load %arg5[%c0_7, %c0_8] : memref<1x64xf32, #tpu.memory_space<vmem>>, vector<1x64xf32>
    %12 = vector.broadcast %11 : vector<1x64xf32> to vector<512x64xf32>
    %13 = arith.addf %10, %12 : vector<512x64xf32>
    %cst_9 = arith.constant 0.000000e+00 : f32
    %14 = vector.broadcast %cst_9 : f32 to vector<512x64xf32>
    %15 = arith.maximumf %13, %14 : vector<512x64xf32>
    %16 = arith.truncf %15 : vector<512x64xf32> to vector<512x64xbf16>
    %c0_10 = arith.constant 0 : index
    %c0_11 = arith.constant 0 : index
    %17 = vector.load %arg6[%c0_10, %c0_11] : memref<64x128xbf16, #tpu.memory_space<vmem>>, vector<64x128xbf16>
    %cst_12 = arith.constant dense<0.000000e+00> : vector<512x128xf32>
    %18 = tpu.matmul %16, %17, %cst_12 {dimension_numbers = #tpu.dot_dimension_numbers<[1], [0], [0], [1], [0, 0, 1, 1], [], []>} : vector<512x64xbf16>, vector<64x128xbf16>, vector<512x128xf32> -> vector<512x128xf32>
    %c0_13 = arith.constant 0 : index
    %c0_14 = arith.constant 0 : index
    %19 = vector.load %arg7[%c0_13, %c0_14] : memref<1x128xf32, #tpu.memory_space<vmem>>, vector<1x128xf32>
    %20 = vector.broadcast %19 : vector<1x128xf32> to vector<512x128xf32>
    %21 = arith.mulf %18, %20 : vector<512x128xf32>
    %c0_15 = arith.constant 0 : index
    %c0_16 = arith.constant 0 : index
    %22 = vector.load %arg8[%c0_15, %c0_16] : memref<1x128xf32, #tpu.memory_space<vmem>>, vector<1x128xf32>
    %23 = vector.broadcast %22 : vector<1x128xf32> to vector<512x128xf32>
    %24 = arith.addf %21, %23 : vector<512x128xf32>
    %cst_17 = arith.constant 0.000000e+00 : f32
    %25 = vector.broadcast %cst_17 : f32 to vector<512x128xf32>
    %26 = arith.maximumf %24, %25 : vector<512x128xf32>
    %27 = arith.truncf %26 : vector<512x128xf32> to vector<512x128xbf16>
    %c0_18 = arith.constant 0 : index
    %c0_19 = arith.constant 0 : index
    %28 = vector.load %arg9[%c0_18, %c0_19] : memref<128x1024xbf16, #tpu.memory_space<vmem>>, vector<128x1024xbf16>
    %cst_20 = arith.constant dense<0.000000e+00> : vector<512x1024xf32>
    %29 = tpu.matmul %27, %28, %cst_20 {dimension_numbers = #tpu.dot_dimension_numbers<[1], [0], [0], [1], [0, 0, 1, 1], [], []>} : vector<512x128xbf16>, vector<128x1024xbf16>, vector<512x1024xf32> -> vector<512x1024xf32>
    %c0_21 = arith.constant 0 : index
    %c0_22 = arith.constant 0 : index
    %30 = vector.load %arg10[%c0_21, %c0_22] : memref<1x1024xf32, #tpu.memory_space<vmem>>, vector<1x1024xf32>
    %31 = vector.broadcast %30 : vector<1x1024xf32> to vector<512x1024xf32>
    %32 = arith.mulf %29, %31 : vector<512x1024xf32>
    %c0_23 = arith.constant 0 : index
    %c0_24 = arith.constant 0 : index
    %33 = vector.load %arg11[%c0_23, %c0_24] : memref<1x1024xf32, #tpu.memory_space<vmem>>, vector<1x1024xf32>
    %34 = vector.broadcast %33 : vector<1x1024xf32> to vector<512x1024xf32>
    %35 = arith.addf %32, %34 : vector<512x1024xf32>
    %cst_25 = arith.constant 0.000000e+00 : f32
    %36 = vector.broadcast %cst_25 : f32 to vector<512x1024xf32>
    %37 = arith.maximumf %35, %36 : vector<512x1024xf32>
    %38 = vector.shape_cast %37 : vector<512x1024xf32> to vector<8x64x1024xf32>
    %cst_26 = arith.constant dense<0xFF800000> : vector<8x1024xf32>
    %39 = vector.multi_reduction <maximumf>, %38, %cst_26 [1] : vector<8x64x1024xf32> to vector<8x1024xf32>
    %c0_27 = arith.constant 0 : index
    %c0_28 = arith.constant 0 : index
    %40 = vector.load %arg21[%c0_27, %c0_28] : memref<8x1024xf32, #tpu.memory_space<vmem>>, vector<8x1024xf32>
    %41 = arith.maximumf %40, %39 : vector<8x1024xf32>
    %c0_29 = arith.constant 0 : index
    %c0_30 = arith.constant 0 : index
    %42 = vector.load %arg21[%c0_29, %c0_30] : memref<8x1024xf32, #tpu.memory_space<vmem>>, vector<8x1024xf32>
    tpu.vector_store %arg21[%c0_29, %c0_30], %41 {strides = array<i32>} : memref<8x1024xf32, #tpu.memory_space<vmem>>, vector<8x1024xf32>,
    %c1_i32 = arith.constant 1 : i32
    %43 = arith.cmpi eq, %arg1, %c1_i32 : i32
    %44 = arith.extui %43 : i1 to i32
    %c0_i32_31 = arith.constant 0 : i32
    %45 = arith.cmpi ne, %44, %c0_i32_31 : i32
    scf.if %45 {
      %c0_32 = arith.constant 0 : index
      %c0_33 = arith.constant 0 : index
      %46 = vector.load %arg21[%c0_32, %c0_33] : memref<8x1024xf32, #tpu.memory_space<vmem>>, vector<8x1024xf32>
      %47 = arith.truncf %46 : vector<8x1024xf32> to vector<8x1024xbf16>
      %c0_34 = arith.constant 0 : index
      %c0_35 = arith.constant 0 : index
      %48 = vector.load %arg12[%c0_34, %c0_35] : memref<1024x512xbf16, #tpu.memory_space<vmem>>, vector<1024x512xbf16>
      %cst_36 = arith.constant dense<0.000000e+00> : vector<8x512xf32>
      %49 = tpu.matmul %47, %48, %cst_36 {dimension_numbers = #tpu.dot_dimension_numbers<[1], [0], [0], [1], [0, 0, 1, 1], [], []>} : vector<8x1024xbf16>, vector<1024x512xbf16>, vector<8x512xf32> -> vector<8x512xf32>
      %c0_37 = arith.constant 0 : index
      %c0_38 = arith.constant 0 : index
      %50 = vector.load %arg13[%c0_37, %c0_38] : memref<1x512xf32, #tpu.memory_space<vmem>>, vector<1x512xf32>
      %51 = vector.broadcast %50 : vector<1x512xf32> to vector<8x512xf32>
      %52 = arith.mulf %49, %51 : vector<8x512xf32>
      %c0_39 = arith.constant 0 : index
      %c0_40 = arith.constant 0 : index
      %53 = vector.load %arg14[%c0_39, %c0_40] : memref<1x512xf32, #tpu.memory_space<vmem>>, vector<1x512xf32>
      %54 = vector.broadcast %53 : vector<1x512xf32> to vector<8x512xf32>
      %55 = arith.addf %52, %54 : vector<8x512xf32>
      %cst_41 = arith.constant 0.000000e+00 : f32
      %56 = vector.broadcast %cst_41 : f32 to vector<8x512xf32>
      %57 = arith.maximumf %55, %56 : vector<8x512xf32>
      %58 = arith.truncf %57 : vector<8x512xf32> to vector<8x512xbf16>
      %c0_42 = arith.constant 0 : index
      %c0_43 = arith.constant 0 : index
      %59 = vector.load %arg15[%c0_42, %c0_43] : memref<512x256xbf16, #tpu.memory_space<vmem>>, vector<512x256xbf16>
      %cst_44 = arith.constant dense<0.000000e+00> : vector<8x256xf32>
      %60 = tpu.matmul %58, %59, %cst_44 {dimension_numbers = #tpu.dot_dimension_numbers<[1], [0], [0], [1], [0, 0, 1, 1], [], []>} : vector<8x512xbf16>, vector<512x256xbf16>, vector<8x256xf32> -> vector<8x256xf32>
      %c0_45 = arith.constant 0 : index
      %c0_46 = arith.constant 0 : index
      %61 = vector.load %arg16[%c0_45, %c0_46] : memref<1x256xf32, #tpu.memory_space<vmem>>, vector<1x256xf32>
      %62 = vector.broadcast %61 : vector<1x256xf32> to vector<8x256xf32>
      %63 = arith.mulf %60, %62 : vector<8x256xf32>
      %c0_47 = arith.constant 0 : index
      %c0_48 = arith.constant 0 : index
      %64 = vector.load %arg17[%c0_47, %c0_48] : memref<1x256xf32, #tpu.memory_space<vmem>>, vector<1x256xf32>
      %65 = vector.broadcast %64 : vector<1x256xf32> to vector<8x256xf32>
      %66 = arith.addf %63, %65 : vector<8x256xf32>
      %cst_49 = arith.constant 0.000000e+00 : f32
      %67 = vector.broadcast %cst_49 : f32 to vector<8x256xf32>
      %68 = arith.maximumf %66, %67 : vector<8x256xf32>
      %69 = arith.truncf %68 : vector<8x256xf32> to vector<8x256xbf16>
      %c0_50 = arith.constant 0 : index
      %c0_51 = arith.constant 0 : index
      %70 = vector.load %arg18[%c0_50, %c0_51] : memref<256x256xbf16, #tpu.memory_space<vmem>>, vector<256x256xbf16>
      %cst_52 = arith.constant dense<0.000000e+00> : vector<8x256xf32>
      %71 = tpu.matmul %69, %70, %cst_52 {dimension_numbers = #tpu.dot_dimension_numbers<[1], [0], [0], [1], [0, 0, 1, 1], [], []>} : vector<8x256xbf16>, vector<256x256xbf16>, vector<8x256xf32> -> vector<8x256xf32>
      %c0_53 = arith.constant 0 : index
      %c0_54 = arith.constant 0 : index
      %72 = vector.load %arg19[%c0_53, %c0_54] : memref<1x256xf32, #tpu.memory_space<vmem>>, vector<1x256xf32>
      %73 = vector.broadcast %72 : vector<1x256xf32> to vector<8x256xf32>
      %74 = arith.addf %71, %73 : vector<8x256xf32>
      %c0_55 = arith.constant 0 : index
      %c0_56 = arith.constant 0 : index
      %75 = vector.load %arg20[%c0_55, %c0_56] : memref<8x256xf32, #tpu.memory_space<vmem>>, vector<8x256xf32>
      tpu.vector_store %arg20[%c0_55, %c0_56], %74 {strides = array<i32>} : memref<8x256xf32, #tpu.memory_space<vmem>>, vector<8x256xf32>,
    } else {
    }
    return
  }
  func.func @transform_0(%arg0: i32, %arg1: i32) -> (i32, i32, i32) {
    %c0_i32 = arith.constant 0 : i32
    %c0_i32_0 = arith.constant 0 : i32
    return %arg0, %arg1, %c0_i32 : i32, i32, i32
  }
  func.func @transform_1(%arg0: i32, %arg1: i32) -> (i32, i32) {
    %c0_i32 = arith.constant 0 : i32
    %c0_i32_0 = arith.constant 0 : i32
    %c0_i32_1 = arith.constant 0 : i32
    return %c0_i32, %c0_i32_0 : i32, i32
  }
  func.func @transform_2(%arg0: i32, %arg1: i32) -> (i32, i32) {
    %c0_i32 = arith.constant 0 : i32
    %c0_i32_0 = arith.constant 0 : i32
    %c0_i32_1 = arith.constant 0 : i32
    return %c0_i32, %c0_i32_0 : i32, i32
  }
  func.func @transform_3(%arg0: i32, %arg1: i32) -> (i32, i32) {
    %c0_i32 = arith.constant 0 : i32
    %c0_i32_0 = arith.constant 0 : i32
    %c0_i32_1 = arith.constant 0 : i32
    return %c0_i32, %c0_i32_0 : i32, i32
  }
  func.func @transform_4(%arg0: i32, %arg1: i32) -> (i32, i32) {
    %c0_i32 = arith.constant 0 : i32
    %c0_i32_0 = arith.constant 0 : i32
    %c0_i32_1 = arith.constant 0 : i32
    return %c0_i32, %c0_i32_0 : i32, i32
  }
  func.func @transform_5(%arg0: i32, %arg1: i32) -> (i32, i32) {
    %c0_i32 = arith.constant 0 : i32
    %c0_i32_0 = arith.constant 0 : i32
    %c0_i32_1 = arith.constant 0 : i32
    return %c0_i32, %c0_i32_0 : i32, i32
  }
  func.func @transform_6(%arg0: i32, %arg1: i32) -> (i32, i32) {
    %c0_i32 = arith.constant 0 : i32
    %c0_i32_0 = arith.constant 0 : i32
    %c0_i32_1 = arith.constant 0 : i32
    return %c0_i32, %c0_i32_0 : i32, i32
  }
  func.func @transform_7(%arg0: i32, %arg1: i32) -> (i32, i32) {
    %c0_i32 = arith.constant 0 : i32
    %c0_i32_0 = arith.constant 0 : i32
    %c0_i32_1 = arith.constant 0 : i32
    return %c0_i32, %c0_i32_0 : i32, i32
  }
  func.func @transform_8(%arg0: i32, %arg1: i32) -> (i32, i32) {
    %c0_i32 = arith.constant 0 : i32
    %c0_i32_0 = arith.constant 0 : i32
    %c0_i32_1 = arith.constant 0 : i32
    return %c0_i32, %c0_i32_0 : i32, i32
  }
  func.func @transform_9(%arg0: i32, %arg1: i32) -> (i32, i32) {
    %c0_i32 = arith.constant 0 : i32
    %c0_i32_0 = arith.constant 0 : i32
    %c0_i32_1 = arith.constant 0 : i32
    return %c0_i32, %c0_i32_0 : i32, i32
  }
  func.func @transform_10(%arg0: i32, %arg1: i32) -> (i32, i32) {
    %c0_i32 = arith.constant 0 : i32
    %c0_i32_0 = arith.constant 0 : i32
    %c0_i32_1 = arith.constant 0 : i32
    return %c0_i32, %c0_i32_0 : i32, i32
  }
  func.func @transform_11(%arg0: i32, %arg1: i32) -> (i32, i32) {
    %c0_i32 = arith.constant 0 : i32
    %c0_i32_0 = arith.constant 0 : i32
    %c0_i32_1 = arith.constant 0 : i32
    return %c0_i32, %c0_i32_0 : i32, i32
  }
  func.func @transform_12(%arg0: i32, %arg1: i32) -> (i32, i32) {
    %c0_i32 = arith.constant 0 : i32
    %c0_i32_0 = arith.constant 0 : i32
    %c0_i32_1 = arith.constant 0 : i32
    return %c0_i32, %c0_i32_0 : i32, i32
  }
  func.func @transform_13(%arg0: i32, %arg1: i32) -> (i32, i32) {
    %c0_i32 = arith.constant 0 : i32
    %c0_i32_0 = arith.constant 0 : i32
    %c0_i32_1 = arith.constant 0 : i32
    return %c0_i32, %c0_i32_0 : i32, i32
  }
  func.func @transform_14(%arg0: i32, %arg1: i32) -> (i32, i32) {
    %c0_i32 = arith.constant 0 : i32
    %c0_i32_0 = arith.constant 0 : i32
    %c0_i32_1 = arith.constant 0 : i32
    return %c0_i32, %c0_i32_0 : i32, i32
  }
  func.func @transform_15(%arg0: i32, %arg1: i32) -> (i32, i32) {
    %c0_i32 = arith.constant 0 : i32
    %c0_i32_0 = arith.constant 0 : i32
    %c0_i32_1 = arith.constant 0 : i32
    return %c0_i32, %c0_i32_0 : i32, i32
  }
  func.func @transform_16(%arg0: i32, %arg1: i32) -> (i32, i32) {
    %c0_i32 = arith.constant 0 : i32
    %c0_i32_0 = arith.constant 0 : i32
    %c0_i32_1 = arith.constant 0 : i32
    return %c0_i32, %c0_i32_0 : i32, i32
  }
  func.func @transform_17(%arg0: i32, %arg1: i32) -> (i32, i32) {
    %c0_i32 = arith.constant 0 : i32
    %c0_i32_0 = arith.constant 0 : i32
    %c0_i32_1 = arith.constant 0 : i32
    return %c0_i32, %c0_i32_0 : i32, i32
  }
  func.func @transform_18(%arg0: i32, %arg1: i32) -> (i32, i32) {
    %c0_i32 = arith.constant 0 : i32
    %c0_i32_0 = arith.constant 0 : i32
    return %arg0, %c0_i32 : i32, i32
  }
}

</mosaic_0001>

<llo_original>
// kernel: tpu_custom_call.1
$region0: #{tpu_custom_call.1}
  #allocation0 [shape = 'u32[]', space=smem, size = 0x4, offset = 0x4, fixed_abs, tag = 'smem constant byte address 0x4 - core index']
  #allocation1 [shape = 'u32[144,128]{1,0:T(1,128)}', space=vmem, size = 0x12000, scoped, tag = 'internal scratch']
  #allocation2 [shape = 'f32[8,1024]{1,0:T(8,128)}', space=vmem, size = 0x8000, scoped, tag = 'scratch operand']
  %s0 = inlined_call_operand.vmem [shape: f32[16,128,16], index: 0, kind: input, shape index: {}]
  %s1 = inlined_call_operand.vmem [shape: bf16[16,64], index: 1, kind: input, shape index: {}]
  %s2 = inlined_call_operand.hbm [shape: f32[1,64], index: 2, kind: input, shape index: {}]
  %s3 = inlined_call_operand.hbm [shape: f32[1,64], index: 3, kind: input, shape index: {}]
  %s4 = inlined_call_operand.hbm [shape: bf16[64,128], index: 4, kind: input, shape index: {}]
  %s5 = inlined_call_operand.hbm [shape: f32[1,128], index: 5, kind: input, shape index: {}]
  %s6 = inlined_call_operand.hbm [shape: f32[1,128], index: 6, kind: input, shape index: {}]
  %s7 = inlined_call_operand.hbm [shape: bf16[128,1024], index: 7, kind: input, shape index: {}]
  %s8 = inlined_call_operand.vmem [shape: f32[1,1024], index: 8, kind: input, shape index: {}]
  %s9 = inlined_call_operand.hbm [shape: f32[1,1024], index: 9, kind: input, shape index: {}]
  %s10 = inlined_call_operand.vmem [shape: bf16[1024,512], index: 10, kind: input, shape index: {}]
  %s11 = inlined_call_operand.hbm [shape: f32[1,512], index: 11, kind: input, shape index: {}]
  %s12 = inlined_call_operand.hbm [shape: f32[1,512], index: 12, kind: input, shape index: {}]
  %s13 = inlined_call_operand.hbm [shape: bf16[512,256], index: 13, kind: input, shape index: {}]
  %s14 = inlined_call_operand.vmem [shape: f32[1,256], index: 14, kind: input, shape index: {}]
  %s15 = inlined_call_operand.vmem [shape: f32[1,256], index: 15, kind: input, shape index: {}]
  %s16 = inlined_call_operand.vmem [shape: bf16[256,256], index: 16, kind: input, shape index: {}]
  %s17 = inlined_call_operand.vmem [shape: f32[1,256], index: 17, kind: input, shape index: {}]
  %s18 = inlined_call_operand.hbm [shape: f32[16,256], index: 18, kind: output, shape index: {}]
  %s19 = sld [smem:[#allocation0]]
  $region191: #{tpu_custom_call.1} parent=0
    _
  %s21 = ssub.s32 1, %s19
  %s22 = scalar_select 0, %s21, %s19
  $region1: #{tpu_custom_call.1} parent=0
    #allocation3 [shape = 'u8[524288]{0}', space=vmem, size = 0x80000, scoped, tag = 'input window, operand 0']
    #allocation4 [shape = 'u8[512]{0}', space=vmem, size = 0x400, scoped, tag = 'input window, operand 2, single buffered']
    #allocation5 [shape = 's32[2]{0}', space=sflag, size = 0x8, scoped, tag = 'scoped memory for tpu_custom_call.1']
    #allocation6 [shape = 's32[2]{0}', space=sflag, size = 0x8, scoped, tag = 'scoped memory for tpu_custom_call.1']
    #allocation7 [shape = 'u8[512]{0}', space=vmem, size = 0x400, scoped, tag = 'input window, operand 3, single buffered']
    #allocation8 [shape = 's32[1]{0}', space=sflag, size = 0x4, scoped, tag = 'scoped memory for tpu_custom_call.1']
    #allocation9 [shape = 'u8[16384]{0}', space=vmem, size = 0x4000, scoped, tag = 'input window, operand 4, single buffered']
    #allocation10 [shape = 'u8[512]{0}', space=vmem, size = 0x400, scoped, tag = 'input window, operand 5, single buffered']
    #allocation11 [shape = 's32[1]{0}', space=sflag, size = 0x4, scoped, tag = 'scoped memory for tpu_custom_call.1']
    #allocation12 [shape = 'u8[512]{0}', space=vmem, size = 0x400, scoped, tag = 'input window, operand 6, single buffered']
    #allocation13 [shape = 'u8[262144]{0}', space=vmem, size = 0x40000, scoped, tag = 'input window, operand 7, single buffered']
    #allocation14 [shape = 's32[1]{0}', space=sflag, size = 0x4, scoped, tag = 'scoped memory for tpu_custom_call.1']
    #allocation15 [shape = 'u8[4096]{0}', space=vmem, size = 0x1000, scoped, tag = 'input window, operand 9, single buffered']
    #allocation16 [shape = 'u8[2048]{0}', space=vmem, size = 0x800, scoped, tag = 'input window, operand 11, single buffered']
    #allocation17 [shape = 's32[1]{0}', space=sflag, size = 0x4, scoped, tag = 'scoped memory for tpu_custom_call.1']
    #allocation18 [shape = 'u8[2048]{0}', space=vmem, size = 0x800, scoped, tag = 'input window, operand 12, single buffered']
    #allocation19 [shape = 'u8[262144]{0}', space=vmem, size = 0x40000, scoped, tag = 'input window, operand 13, single buffered']
    #allocation20 [shape = 's32[1]{0}', space=sflag, size = 0x4, scoped, tag = 'scoped memory for tpu_custom_call.1']
    #allocation21 [shape = 'u8[16384]{0}', space=vmem, size = 0x4000, scoped, tag = 'output window, operand 0']
    %23 = vsyncpa [#allocation5], 0
    %24 = vsyncpa [#allocation8], 0
    %25 = vsyncpa [#allocation11], 0
    %26 = vsyncpa [#allocation14], 0
    %27 = vsyncpa [#allocation17], 0
    %28 = vsyncpa [#allocation20], 0
    %29 = vsyncpa [#allocation6], 0
    %s30 = scalar_lea.sflag [#allocation6], 1
    %31 = vsyncpa %s30, 0
    loop: start=0, step=1, limit=6
    $region2: #{tpu_custom_call.1} parent=1 // loop_pre_header
      _
    $region3: #{tpu_custom_call.1} parent=1 // loop_header
      %s33 = sphi 0, %s37
      %p34 = scmp.ge.s32.totalorder %s33, 6
      %s40 = sphi 0, %s52
      %s41 = sphi 0, %s48
      %s42 = sphi 0, %s40
      %s43 = sphi 0, %s41
      %s44 = sphi 0, %s42
      %s45 = sphi 0, %s43
      %s57 = sphi 0, %s59
      %s60 = sphi 0, %s57
      %s61 = sphi 0, %s60
      %s77 = sphi 0, %s61
      %s81 = sphi 0, %s81
      %s83 = sphi 0, %s81
      %s84 = sphi 0, %s83
      %s98 = sphi 0, %s84
      %s102 = sphi 0, %s102
      %s104 = sphi 0, %s102
      %s105 = sphi 0, %s104
      %s119 = sphi 0, %s105
      %s123 = sphi 0, %s123
      %s125 = sphi 0, %s123
      %s126 = sphi 0, %s125
      %s140 = sphi 0, %s126
      %s144 = sphi 0, %s144
      %s146 = sphi 0, %s144
      %s147 = sphi 0, %s146
      %s161 = sphi 0, %s147
      %s165 = sphi 0, %s165
      %s167 = sphi 0, %s165
      %s168 = sphi 0, %s167
      %s182 = sphi 0, %s168
      %s186 = sphi 0, %s186
      %s188 = sphi 0, %s186
      %s189 = sphi 0, %s188
      %s203 = sphi 0, %s189
      %s207 = sphi 0, %s207
      %s209 = sphi 0, %s207
      %s210 = sphi 0, %s209
      %s224 = sphi 0, %s210
      %s228 = sphi 0, %s228
      %s230 = sphi 0, %s228
      %s231 = sphi 0, %s230
      %s245 = sphi 0, %s231
      %s249 = sphi 0, %s249
      %s251 = sphi 0, %s249
      %s252 = sphi 0, %s251
      %s266 = sphi 0, %s252
      %s270 = sphi 0, %s270
      %s272 = sphi 0, %s270
      %s273 = sphi 0, %s272
      %s287 = sphi 0, %s273
      %s291 = sphi 0, %s291
      %s293 = sphi 0, %s291
      %s294 = sphi 0, %s293
      %s308 = sphi 0, %s294
      %s312 = sphi 0, %s312
      %s314 = sphi 0, %s312
      %s315 = sphi 0, %s314
      %s329 = sphi 0, %s315
      %s333 = sphi 0, %s333
      %s335 = sphi 0, %s333
      %s336 = sphi 0, %s335
      %s350 = sphi 0, %s336
      %s354 = sphi 0, %s354
      %s356 = sphi 0, %s354
      %s357 = sphi 0, %s356
      %s371 = sphi 0, %s357
      %s375 = sphi 0, %s375
      %s377 = sphi 0, %s375
      %s378 = sphi 0, %s377
      %s392 = sphi 0, %s378
      %s396 = sphi 0, %s396
      %s398 = sphi 0, %s396
      %s399 = sphi 0, %s398
      %s413 = sphi 0, %s399
      %s417 = sphi 0, %s417
      %s419 = sphi 0, %s417
      %s420 = sphi 0, %s419
      %s434 = sphi 0, %s420
      %s440 = sphi 0, %s442
      %s443 = sphi 0, %s440
      %s444 = sphi 0, %s443
      %s460 = sphi 0, %s444
    $region4: #{tpu_custom_call.1} parent=1 // loop_header_branch
      %36 = sbr.rel (%p34) target = $region8
    $region5: #{tpu_custom_call.1} parent=1 // loop_body
      %s38 = ssub.s32 %s33, 1
      %s39 = ssub.s32 %s33, 2
      %s46 = sadd.s32 1, %s41
      %p47 = scmp.ge.s32.totalorder %s46, 2
      %s48 = scalar_select %p47, 0, %s46
      %s49 = sadd.s32 1, %s40
      %s50 = scalar_select %p47, %s49, %s40
      %p51 = scmp.ge.s32.totalorder %s50, 2
      %s52 = scalar_select %p51, 0, %s50
      %s53 = ssub.s32 %s40, %s52
      %s54 = ssub.s32 %s41, %s48
      %s55 = sor.u32 %s53, %s54
      %p56 = scmp.eq.s32.totalorder %s55, 0
      %s58 = sadd.s32 %s57, 1
      %s59 = scalar_select %p56, %s57, %s58
      %p62 = pneg %p56
      %p63 = scmp.eq.s32.totalorder %s33, 3
      %p64 = por %p62, %p63
      %p65 = scmp.ne.s32.totalorder %s57, %s60
      %p66 = scmp.eq.s32.totalorder %s33, 0
      %p67 = por %p65, %p66
      %p68 = scmp.ne.s32.totalorder %s57, %s60
      %p69 = scmp.eq.s32.totalorder %s38, 3
      %p70 = por %p68, %p69
      %p71 = scmp.ne.s32.totalorder %s60, %s61
      %p72 = scmp.eq.s32.totalorder %s38, 0
      %p73 = por %p71, %p72
      %p74 = scmp.ne.s32.totalorder %s60, %s61
      %p75 = scmp.eq.s32.totalorder %s39, 3
      %p76 = por %p74, %p75
      %p78 = scmp.ne.s32.totalorder %s61, %s77
      %p79 = scmp.eq.s32.totalorder %s39, 0
      %p80 = por %p78, %p79
      %s82 = sadd.s32 %s81, 1
      %p85 = scmp.eq.s32.totalorder %s33, 3
      %p86 = scmp.ne.s32.totalorder %s81, %s83
      %p87 = scmp.eq.s32.totalorder %s33, 0
      %p88 = por %p86, %p87
      %p89 = scmp.ne.s32.totalorder %s81, %s83
      %p90 = scmp.eq.s32.totalorder %s38, 3
      %p91 = por %p89, %p90
      %p92 = scmp.ne.s32.totalorder %s83, %s84
      %p93 = scmp.eq.s32.totalorder %s38, 0
      %p94 = por %p92, %p93
      %p95 = scmp.ne.s32.totalorder %s83, %s84
      %p96 = scmp.eq.s32.totalorder %s39, 3
      %p97 = por %p95, %p96
      %p99 = scmp.ne.s32.totalorder %s84, %s98
      %p100 = scmp.eq.s32.totalorder %s39, 0
      %p101 = por %p99, %p100
      %s103 = sadd.s32 %s102, 1
      %p106 = scmp.eq.s32.totalorder %s33, 3
      %p107 = scmp.ne.s32.totalorder %s102, %s104
      %p108 = scmp.eq.s32.totalorder %s33, 0
      %p109 = por %p107, %p108
      %p110 = scmp.ne.s32.totalorder %s102, %s104
      %p111 = scmp.eq.s32.totalorder %s38, 3
      %p112 = por %p110, %p111
      %p113 = scmp.ne.s32.totalorder %s104, %s105
      %p114 = scmp.eq.s32.totalorder %s38, 0
      %p115 = por %p113, %p114
      %p116 = scmp.ne.s32.totalorder %s104, %s105
      %p117 = scmp.eq.s32.totalorder %s39, 3
      %p118 = por %p116, %p117
      %p120 = scmp.ne.s32.totalorder %s105, %s119
      %p121 = scmp.eq.s32.totalorder %s39, 0
      %p122 = por %p120, %p121
      %s124 = sadd.s32 %s123, 1
      %p127 = scmp.eq.s32.totalorder %s33, 3
      %p128 = scmp.ne.s32.totalorder %s123, %s125
      %p129 = scmp.eq.s32.totalorder %s33, 0
      %p130 = por %p128, %p129
      %p131 = scmp.ne.s32.totalorder %s123, %s125
      %p132 = scmp.eq.s32.totalorder %s38, 3
      %p133 = por %p131, %p132
      %p134 = scmp.ne.s32.totalorder %s125, %s126
      %p135 = scmp.eq.s32.totalorder %s38, 0
      %p136 = por %p134, %p135
      %p137 = scmp.ne.s32.totalorder %s125, %s126
      %p138 = scmp.eq.s32.totalorder %s39, 3
      %p139 = por %p137, %p138
      %p141 = scmp.ne.s32.totalorder %s126, %s140
      %p142 = scmp.eq.s32.totalorder %s39, 0
      %p143 = por %p141, %p142
      %s145 = sadd.s32 %s144, 1
      %p148 = scmp.eq.s32.totalorder %s33, 3
      %p149 = scmp.ne.s32.totalorder %s144, %s146
      %p150 = scmp.eq.s32.totalorder %s33, 0
      %p151 = por %p149, %p150
      %p152 = scmp.ne.s32.totalorder %s144, %s146
      %p153 = scmp.eq.s32.totalorder %s38, 3
      %p154 = por %p152, %p153
      %p155 = scmp.ne.s32.totalorder %s146, %s147
      %p156 = scmp.eq.s32.totalorder %s38, 0
      %p157 = por %p155, %p156
      %p158 = scmp.ne.s32.totalorder %s146, %s147
      %p159 = scmp.eq.s32.totalorder %s39, 3
      %p160 = por %p158, %p159
      %p162 = scmp.ne.s32.totalorder %s147, %s161
      %p163 = scmp.eq.s32.totalorder %s39, 0
      %p164 = por %p162, %p163
      %s166 = sadd.s32 %s165, 1
      %p169 = scmp.eq.s32.totalorder %s33, 3
      %p170 = scmp.ne.s32.totalorder %s165, %s167
      %p171 = scmp.eq.s32.totalorder %s33, 0
      %p172 = por %p170, %p171
      %p173 = scmp.ne.s32.totalorder %s165, %s167
      %p174 = scmp.eq.s32.totalorder %s38, 3
      %p175 = por %p173, %p174
      %p176 = scmp.ne.s32.totalorder %s167, %s168
      %p177 = scmp.eq.s32.totalorder %s38, 0
      %p178 = por %p176, %p177
      %p179 = scmp.ne.s32.totalorder %s167, %s168
      %p180 = scmp.eq.s32.totalorder %s39, 3
      %p181 = por %p179, %p180
      %p183 = scmp.ne.s32.totalorder %s168, %s182
      %p184 = scmp.eq.s32.totalorder %s39, 0
      %p185 = por %p183, %p184
      %s187 = sadd.s32 %s186, 1
      %p190 = scmp.eq.s32.totalorder %s33, 3
      %p191 = scmp.ne.s32.totalorder %s186, %s188
      %p192 = scmp.eq.s32.totalorder %s33, 0
      %p193 = por %p191, %p192
      %p194 = scmp.ne.s32.totalorder %s186, %s188
      %p195 = scmp.eq.s32.totalorder %s38, 3
      %p196 = por %p194, %p195
      %p197 = scmp.ne.s32.totalorder %s188, %s189
      %p198 = scmp.eq.s32.totalorder %s38, 0
      %p199 = por %p197, %p198
      %p200 = scmp.ne.s32.totalorder %s188, %s189
      %p201 = scmp.eq.s32.totalorder %s39, 3
      %p202 = por %p200, %p201
      %p204 = scmp.ne.s32.totalorder %s189, %s203
      %p205 = scmp.eq.s32.totalorder %s39, 0
      %p206 = por %p204, %p205
      %s208 = sadd.s32 %s207, 1
      %p211 = scmp.eq.s32.totalorder %s33, 3
      %p212 = scmp.ne.s32.totalorder %s207, %s209
      %p213 = scmp.eq.s32.totalorder %s33, 0
      %p214 = por %p212, %p213
      %p215 = scmp.ne.s32.totalorder %s207, %s209
      %p216 = scmp.eq.s32.totalorder %s38, 3
      %p217 = por %p215, %p216
      %p218 = scmp.ne.s32.totalorder %s209, %s210
      %p219 = scmp.eq.s32.totalorder %s38, 0
      %p220 = por %p218, %p219
      %p221 = scmp.ne.s32.totalorder %s209, %s210
      %p222 = scmp.eq.s32.totalorder %s39, 3
      %p223 = por %p221, %p222
      %p225 = scmp.ne.s32.totalorder %s210, %s224
      %p226 = scmp.eq.s32.totalorder %s39, 0
      %p227 = por %p225, %p226
      %s229 = sadd.s32 %s228, 1
      %p232 = scmp.eq.s32.totalorder %s33, 3
      %p233 = scmp.ne.s32.totalorder %s228, %s230
      %p234 = scmp.eq.s32.totalorder %s33, 0
      %p235 = por %p233, %p234
      %p236 = scmp.ne.s32.totalorder %s228, %s230
      %p237 = scmp.eq.s32.totalorder %s38, 3
      %p238 = por %p236, %p237
      %p239 = scmp.ne.s32.totalorder %s230, %s231
      %p240 = scmp.eq.s32.totalorder %s38, 0
      %p241 = por %p239, %p240
      %p242 = scmp.ne.s32.totalorder %s230, %s231
      %p243 = scmp.eq.s32.totalorder %s39, 3
      %p244 = por %p242, %p243
      %p246 = scmp.ne.s32.totalorder %s231, %s245
      %p247 = scmp.eq.s32.totalorder %s39, 0
      %p248 = por %p246, %p247
      %s250 = sadd.s32 %s249, 1
      %p253 = scmp.eq.s32.totalorder %s33, 3
      %p254 = scmp.ne.s32.totalorder %s249, %s251
      %p255 = scmp.eq.s32.totalorder %s33, 0
      %p256 = por %p254, %p255
      %p257 = scmp.ne.s32.totalorder %s249, %s251
      %p258 = scmp.eq.s32.totalorder %s38, 3
      %p259 = por %p257, %p258
      %p260 = scmp.ne.s32.totalorder %s251, %s252
      %p261 = scmp.eq.s32.totalorder %s38, 0
      %p262 = por %p260, %p261
      %p263 = scmp.ne.s32.totalorder %s251, %s252
      %p264 = scmp.eq.s32.totalorder %s39, 3
      %p265 = por %p263, %p264
      %p267 = scmp.ne.s32.totalorder %s252, %s266
      %p268 = scmp.eq.s32.totalorder %s39, 0
      %p269 = por %p267, %p268
      %s271 = sadd.s32 %s270, 1
      %p274 = scmp.eq.s32.totalorder %s33, 3
      %p275 = scmp.ne.s32.totalorder %s270, %s272
      %p276 = scmp.eq.s32.totalorder %s33, 0
      %p277 = por %p275, %p276
      %p278 = scmp.ne.s32.totalorder %s270, %s272
      %p279 = scmp.eq.s32.totalorder %s38, 3
      %p280 = por %p278, %p279
      %p281 = scmp.ne.s32.totalorder %s272, %s273
      %p282 = scmp.eq.s32.totalorder %s38, 0
      %p283 = por %p281, %p282
      %p284 = scmp.ne.s32.totalorder %s272, %s273
      %p285 = scmp.eq.s32.totalorder %s39, 3
      %p286 = por %p284, %p285
      %p288 = scmp.ne.s32.totalorder %s273, %s287
      %p289 = scmp.eq.s32.totalorder %s39, 0
      %p290 = por %p288, %p289
      %s292 = sadd.s32 %s291, 1
      %p295 = scmp.eq.s32.totalorder %s33, 3
      %p296 = scmp.ne.s32.totalorder %s291, %s293
      %p297 = scmp.eq.s32.totalorder %s33, 0
      %p298 = por %p296, %p297
      %p299 = scmp.ne.s32.totalorder %s291, %s293
      %p300 = scmp.eq.s32.totalorder %s38, 3
      %p301 = por %p299, %p300
      %p302 = scmp.ne.s32.totalorder %s293, %s294
      %p303 = scmp.eq.s32.totalorder %s38, 0
      %p304 = por %p302, %p303
      %p305 = scmp.ne.s32.totalorder %s293, %s294
      %p306 = scmp.eq.s32.totalorder %s39, 3
      %p307 = por %p305, %p306
      %p309 = scmp.ne.s32.totalorder %s294, %s308
      %p310 = scmp.eq.s32.totalorder %s39, 0
      %p311 = por %p309, %p310
      %s313 = sadd.s32 %s312, 1
      %p316 = scmp.eq.s32.totalorder %s33, 3
      %p317 = scmp.ne.s32.totalorder %s312, %s314
      %p318 = scmp.eq.s32.totalorder %s33, 0
      %p319 = por %p317, %p318
      %p320 = scmp.ne.s32.totalorder %s312, %s314
      %p321 = scmp.eq.s32.totalorder %s38, 3
      %p322 = por %p320, %p321
      %p323 = scmp.ne.s32.totalorder %s314, %s315
      %p324 = scmp.eq.s32.totalorder %s38, 0
      %p325 = por %p323, %p324
      %p326 = scmp.ne.s32.totalorder %s314, %s315
      %p327 = scmp.eq.s32.totalorder %s39, 3
      %p328 = por %p326, %p327
      %p330 = scmp.ne.s32.totalorder %s315, %s329
      %p331 = scmp.eq.s32.totalorder %s39, 0
      %p332 = por %p330, %p331
      %s334 = sadd.s32 %s333, 1
      %p337 = scmp.eq.s32.totalorder %s33, 3
      %p338 = scmp.ne.s32.totalorder %s333, %s335
      %p339 = scmp.eq.s32.totalorder %s33, 0
      %p340 = por %p338, %p339
      %p341 = scmp.ne.s32.totalorder %s333, %s335
      %p342 = scmp.eq.s32.totalorder %s38, 3
      %p343 = por %p341, %p342
      %p344 = scmp.ne.s32.totalorder %s335, %s336
      %p345 = scmp.eq.s32.totalorder %s38, 0
      %p346 = por %p344, %p345
      %p347 = scmp.ne.s32.totalorder %s335, %s336
      %p348 = scmp.eq.s32.totalorder %s39, 3
      %p349 = por %p347, %p348
      %p351 = scmp.ne.s32.totalorder %s336, %s350
      %p352 = scmp.eq.s32.totalorder %s39, 0
      %p353 = por %p351, %p352
      %s355 = sadd.s32 %s354, 1
      %p358 = scmp.eq.s32.totalorder %s33, 3
      %p359 = scmp.ne.s32.totalorder %s354, %s356
      %p360 = scmp.eq.s32.totalorder %s33, 0
      %p361 = por %p359, %p360
      %p362 = scmp.ne.s32.totalorder %s354, %s356
      %p363 = scmp.eq.s32.totalorder %s38, 3
      %p364 = por %p362, %p363
      %p365 = scmp.ne.s32.totalorder %s356, %s357
      %p366 = scmp.eq.s32.totalorder %s38, 0
      %p367 = por %p365, %p366
      %p368 = scmp.ne.s32.totalorder %s356, %s357
      %p369 = scmp.eq.s32.totalorder %s39, 3
      %p370 = por %p368, %p369
      %p372 = scmp.ne.s32.totalorder %s357, %s371
      %p373 = scmp.eq.s32.totalorder %s39, 0
      %p374 = por %p372, %p373
      %s376 = sadd.s32 %s375, 1
      %p379 = scmp.eq.s32.totalorder %s33, 3
      %p380 = scmp.ne.s32.totalorder %s375, %s377
      %p381 = scmp.eq.s32.totalorder %s33, 0
      %p382 = por %p380, %p381
      %p383 = scmp.ne.s32.totalorder %s375, %s377
      %p384 = scmp.eq.s32.totalorder %s38, 3
      %p385 = por %p383, %p384
      %p386 = scmp.ne.s32.totalorder %s377, %s378
      %p387 = scmp.eq.s32.totalorder %s38, 0
      %p388 = por %p386, %p387
      %p389 = scmp.ne.s32.totalorder %s377, %s378
      %p390 = scmp.eq.s32.totalorder %s39, 3
      %p391 = por %p389, %p390
      %p393 = scmp.ne.s32.totalorder %s378, %s392
      %p394 = scmp.eq.s32.totalorder %s39, 0
      %p395 = por %p393, %p394
      %s397 = sadd.s32 %s396, 1
      %p400 = scmp.eq.s32.totalorder %s33, 3
      %p401 = scmp.ne.s32.totalorder %s396, %s398
      %p402 = scmp.eq.s32.totalorder %s33, 0
      %p403 = por %p401, %p402
      %p404 = scmp.ne.s32.totalorder %s396, %s398
      %p405 = scmp.eq.s32.totalorder %s38, 3
      %p406 = por %p404, %p405
      %p407 = scmp.ne.s32.totalorder %s398, %s399
      %p408 = scmp.eq.s32.totalorder %s38, 0
      %p409 = por %p407, %p408
      %p410 = scmp.ne.s32.totalorder %s398, %s399
      %p411 = scmp.eq.s32.totalorder %s39, 3
      %p412 = por %p410, %p411
      %p414 = scmp.ne.s32.totalorder %s399, %s413
      %p415 = scmp.eq.s32.totalorder %s39, 0
      %p416 = por %p414, %p415
      %s418 = sadd.s32 %s417, 1
      %p421 = scmp.eq.s32.totalorder %s33, 3
      %p422 = scmp.ne.s32.totalorder %s417, %s419
      %p423 = scmp.eq.s32.totalorder %s33, 0
      %p424 = por %p422, %p423
      %p425 = scmp.ne.s32.totalorder %s417, %s419
      %p426 = scmp.eq.s32.totalorder %s38, 3
      %p427 = por %p425, %p426
      %p428 = scmp.ne.s32.totalorder %s419, %s420
      %p429 = scmp.eq.s32.totalorder %s38, 0
      %p430 = por %p428, %p429
      %p431 = scmp.ne.s32.totalorder %s419, %s420
      %p432 = scmp.eq.s32.totalorder %s39, 3
      %p433 = por %p431, %p432
      %p435 = scmp.ne.s32.totalorder %s420, %s434
      %p436 = scmp.eq.s32.totalorder %s39, 0
      %p437 = por %p435, %p436
      %s438 = ssub.s32 %s40, %s52
      %p439 = scmp.eq.s32.totalorder %s438, 0
      %s441 = sadd.s32 %s440, 1
      %s442 = scalar_select %p439, %s440, %s441
      %p445 = pneg %p439
      %p446 = scmp.eq.s32.totalorder %s33, 3
      %p447 = por %p445, %p446
      %p448 = scmp.ne.s32.totalorder %s440, %s443
      %p449 = scmp.eq.s32.totalorder %s33, 0
      %p450 = por %p448, %p449
      %p451 = scmp.ne.s32.totalorder %s440, %s443
      %p452 = scmp.eq.s32.totalorder %s38, 3
      %p453 = por %p451, %p452
      %p454 = scmp.ne.s32.totalorder %s443, %s444
      %p455 = scmp.eq.s32.totalorder %s38, 0
      %p456 = por %p454, %p455
      %p457 = scmp.ne.s32.totalorder %s443, %s444
      %p458 = scmp.eq.s32.totalorder %s39, 3
      %p459 = por %p457, %p458
      %p461 = scmp.ne.s32.totalorder %s444, %s460
      %p462 = scmp.eq.s32.totalorder %s39, 0
      %p463 = por %p461, %p462
      %p464 = scmp.le.s32.totalorder 1, %s33
      %p465 = scmp.lt.s32.totalorder %s33, 5
      %p466 = pnand %p464, %p465
      %p467 = pneg %p466
      // Predicated region
      $region9: #{tpu_custom_call.1} parent=5 // pred_check
        _
      $region10: #{tpu_custom_call.1} parent=5 // pred_check_branch
        %469 = sbr.rel (%p466) target = $region12
      $region11: #{tpu_custom_call.1} parent=5 // pred_region
        %s470 = ssub.s32 %s33, 1
        // Predicated region
        $region13: #{tpu_custom_call.1} parent=11 // pred_check
          %p471 = pneg %p94
        $region14: #{tpu_custom_call.1} parent=11 // pred_check_branch
          %473 = sbr.rel (%p471) target = $region16
        $region15: #{tpu_custom_call.1} parent=11 // pred_region
          _
        $region16: #{tpu_custom_call.1} parent=11 // pred_fallthru
          _
        // Predicated region
        $region17: #{tpu_custom_call.1} parent=11 // pred_check
          %p474 = pneg %p115
        $region18: #{tpu_custom_call.1} parent=11 // pred_check_branch
          %476 = sbr.rel (%p474) target = $region20
        $region19: #{tpu_custom_call.1} parent=11 // pred_region
          %s478 = ssub.s32 16, 16
          %479 = vsyncadd [#allocation5], %s478
          %s481 = sshll.u32 [#allocation4], 4
          %s482 = int_to_ptr.vmem [resolvable:$true] %s481
          %484 = dma.hbm_to_vmem [thread:$0]  %s2, 16, %s482, [#allocation5]
        $region20: #{tpu_custom_call.1} parent=11 // pred_fallthru
          _
        // Predicated region
        $region21: #{tpu_custom_call.1} parent=11 // pred_check
          %p485 = pneg %p136
        $region22: #{tpu_custom_call.1} parent=11 // pred_check_branch
          %487 = sbr.rel (%p485) target = $region24
        $region23: #{tpu_custom_call.1} parent=11 // pred_region
          %s489 = ssub.s32 16, 16
          %490 = vsyncadd [#allocation8], %s489
          %s492 = sshll.u32 [#allocation7], 4
          %s493 = int_to_ptr.vmem [resolvable:$true] %s492
          %495 = dma.hbm_to_vmem [thread:$0]  %s3, 16, %s493, [#allocation8]
        $region24: #{tpu_custom_call.1} parent=11 // pred_fallthru
          _
        // Predicated region
        $region25: #{tpu_custom_call.1} parent=11 // pred_check
          %p496 = pneg %p157
        $region26: #{tpu_custom_call.1} parent=11 // pred_check_branch
          %498 = sbr.rel (%p496) target = $region28
        $region27: #{tpu_custom_call.1} parent=11 // pred_region
          %s500 = ssub.s32 512, 512
          %501 = vsyncadd [#allocation8], %s500
          %s502 = sshll.u32 [#allocation9], 4
          %s503 = int_to_ptr.vmem [resolvable:$true] %s502
          %508 = dma.hbm_to_vmem [thread:$0]  %s4, 512, %s503, [#allocation8], 64, 64, 4
        $region28: #{tpu_custom_call.1} parent=11 // pred_fallthru
          _
        // Predicated region
        $region29: #{tpu_custom_call.1} parent=11 // pred_check
          %p509 = pneg %p178
        $region30: #{tpu_custom_call.1} parent=11 // pred_check_branch
          %511 = sbr.rel (%p509) target = $region32
        $region31: #{tpu_custom_call.1} parent=11 // pred_region
          %s513 = ssub.s32 16, 16
          %514 = vsyncadd [#allocation11], %s513
          %s516 = sshll.u32 [#allocation10], 4
          %s517 = int_to_ptr.vmem [resolvable:$true] %s516
          %519 = dma.hbm_to_vmem [thread:$0]  %s5, 16, %s517, [#allocation11]
        $region32: #{tpu_custom_call.1} parent=11 // pred_fallthru
          _
        // Predicated region
        $region33: #{tpu_custom_call.1} parent=11 // pred_check
          %p520 = pneg %p199
        $region34: #{tpu_custom_call.1} parent=11 // pred_check_branch
          %522 = sbr.rel (%p520) target = $region36
        $region35: #{tpu_custom_call.1} parent=11 // pred_region
          %s524 = ssub.s32 16, 16
          %525 = vsyncadd [#allocation11], %s524
          %s527 = sshll.u32 [#allocation12], 4
          %s528 = int_to_ptr.vmem [resolvable:$true] %s527
          %530 = dma.hbm_to_vmem [thread:$0]  %s6, 16, %s528, [#allocation11]
        $region36: #{tpu_custom_call.1} parent=11 // pred_fallthru
          _
        // Predicated region
        $region37: #{tpu_custom_call.1} parent=11 // pred_check
          %p531 = pneg %p220
        $region38: #{tpu_custom_call.1} parent=11 // pred_check_branch
          %533 = sbr.rel (%p531) target = $region40
        $region39: #{tpu_custom_call.1} parent=11 // pred_region
          %s535 = ssub.s32 8192, 8192
          %536 = vsyncadd [#allocation14], %s535
          %s537 = sshll.u32 [#allocation13], 4
          %s538 = int_to_ptr.vmem [resolvable:$true] %s537
          %543 = dma.hbm_to_vmem [thread:$0]  %s7, 8192, %s538, [#allocation14], 512, 512, 32
        $region40: #{tpu_custom_call.1} parent=11 // pred_fallthru
          _
        // Predicated region
        $region41: #{tpu_custom_call.1} parent=11 // pred_check
          %p544 = pneg %p241
        $region42: #{tpu_custom_call.1} parent=11 // pred_check_branch
          %546 = sbr.rel (%p544) target = $region44
        $region43: #{tpu_custom_call.1} parent=11 // pred_region
          _
        $region44: #{tpu_custom_call.1} parent=11 // pred_fallthru
          _
        // Predicated region
        $region45: #{tpu_custom_call.1} parent=11 // pred_check
          %p547 = pneg %p262
        $region46: #{tpu_custom_call.1} parent=11 // pred_check_branch
          %549 = sbr.rel (%p547) target = $region48
        $region47: #{tpu_custom_call.1} parent=11 // pred_region
          %s551 = ssub.s32 128, 128
          %552 = vsyncadd [#allocation14], %s551
          %s554 = sshll.u32 [#allocation15], 4
          %s555 = int_to_ptr.vmem [resolvable:$true] %s554
          %557 = dma.hbm_to_vmem [thread:$0]  %s9, 128, %s555, [#allocation14]
        $region48: #{tpu_custom_call.1} parent=11 // pred_fallthru
          _
        // Predicated region
        $region49: #{tpu_custom_call.1} parent=11 // pred_check
          %p558 = pneg %p283
        $region50: #{tpu_custom_call.1} parent=11 // pred_check_branch
          %560 = sbr.rel (%p558) target = $region52
        $region51: #{tpu_custom_call.1} parent=11 // pred_region
          _
        $region52: #{tpu_custom_call.1} parent=11 // pred_fallthru
          _
        // Predicated region
        $region53: #{tpu_custom_call.1} parent=11 // pred_check
          %p561 = pneg %p304
        $region54: #{tpu_custom_call.1} parent=11 // pred_check_branch
          %563 = sbr.rel (%p561) target = $region56
        $region55: #{tpu_custom_call.1} parent=11 // pred_region
          %s565 = ssub.s32 64, 64
          %566 = vsyncadd [#allocation17], %s565
          %s568 = sshll.u32 [#allocation16], 4
          %s569 = int_to_ptr.vmem [resolvable:$true] %s568
          %571 = dma.hbm_to_vmem [thread:$0]  %s11, 64, %s569, [#allocation17]
        $region56: #{tpu_custom_call.1} parent=11 // pred_fallthru
          _
        // Predicated region
        $region57: #{tpu_custom_call.1} parent=11 // pred_check
          %p572 = pneg %p325
        $region58: #{tpu_custom_call.1} parent=11 // pred_check_branch
          %574 = sbr.rel (%p572) target = $region60
        $region59: #{tpu_custom_call.1} parent=11 // pred_region
          %s576 = ssub.s32 64, 64
          %577 = vsyncadd [#allocation17], %s576
          %s579 = sshll.u32 [#allocation18], 4
          %s580 = int_to_ptr.vmem [resolvable:$true] %s579
          %582 = dma.hbm_to_vmem [thread:$0]  %s12, 64, %s580, [#allocation17]
        $region60: #{tpu_custom_call.1} parent=11 // pred_fallthru
          _
        // Predicated region
        $region61: #{tpu_custom_call.1} parent=11 // pred_check
          %p583 = pneg %p346
        $region62: #{tpu_custom_call.1} parent=11 // pred_check_branch
          %585 = sbr.rel (%p583) target = $region64
        $region63: #{tpu_custom_call.1} parent=11 // pred_region
          %s587 = ssub.s32 8192, 8192
          %588 = vsyncadd [#allocation20], %s587
          %s589 = sshll.u32 [#allocation19], 4
          %s590 = int_to_ptr.vmem [resolvable:$true] %s589
          %595 = dma.hbm_to_vmem [thread:$0]  %s13, 8192, %s590, [#allocation20], 128, 128, 8
        $region64: #{tpu_custom_call.1} parent=11 // pred_fallthru
          _
        // Predicated region
        $region65: #{tpu_custom_call.1} parent=11 // pred_check
          %p596 = pneg %p367
        $region66: #{tpu_custom_call.1} parent=11 // pred_check_branch
          %598 = sbr.rel (%p596) target = $region68
        $region67: #{tpu_custom_call.1} parent=11 // pred_region
          _
        $region68: #{tpu_custom_call.1} parent=11 // pred_fallthru
          _
        // Predicated region
        $region69: #{tpu_custom_call.1} parent=11 // pred_check
          %p599 = pneg %p388
        $region70: #{tpu_custom_call.1} parent=11 // pred_check_branch
          %601 = sbr.rel (%p599) target = $region72
        $region71: #{tpu_custom_call.1} parent=11 // pred_region
          _
        $region72: #{tpu_custom_call.1} parent=11 // pred_fallthru
          _
        // Predicated region
        $region73: #{tpu_custom_call.1} parent=11 // pred_check
          %p602 = pneg %p409
        $region74: #{tpu_custom_call.1} parent=11 // pred_check_branch
          %604 = sbr.rel (%p602) target = $region76
        $region75: #{tpu_custom_call.1} parent=11 // pred_region
          _
        $region76: #{tpu_custom_call.1} parent=11 // pred_fallthru
          _
        // Predicated region
        $region77: #{tpu_custom_call.1} parent=11 // pred_check
          %p605 = pneg %p430
        $region78: #{tpu_custom_call.1} parent=11 // pred_check_branch
          %607 = sbr.rel (%p605) target = $region80
        $region79: #{tpu_custom_call.1} parent=11 // pred_region
          _
        $region80: #{tpu_custom_call.1} parent=11 // pred_fallthru
          _
      $region12: #{tpu_custom_call.1} parent=5 // pred_fallthru
        _
      %p608 = scmp.lt.s32.totalorder %s33, 4
      // Predicated region
      $region81: #{tpu_custom_call.1} parent=5 // pred_check
        %p609 = pneg %p608
      $region82: #{tpu_custom_call.1} parent=5 // pred_check_branch
        %611 = sbr.rel (%p609) target = $region84
      $region83: #{tpu_custom_call.1} parent=5 // pred_region
        // Predicated region
        $region85: #{tpu_custom_call.1} parent=83 // pred_check
          %p612 = pneg %p67
        $region86: #{tpu_custom_call.1} parent=83 // pred_check_branch
          %614 = sbr.rel (%p612) target = $region88
        $region87: #{tpu_custom_call.1} parent=83 // pred_region
          %s615 = sand.u32 %s57, 1
          %s616 = sand.u32 %s57, 1
          %s617 = smul.addr %s616, 512
          %s618 = scalar_lea.vmem [#allocation3], %s617
          %s619 = smul.u32 8, %s40
          %s620 = smul.u32 8, %s41
          %s621 = smul.addr %s619, 16
          %s622 = sadd.s32 %s620, %s621
          %s623 = smul.addr %s622, 8
          %s624 = scalar_lea.vmem %s0, %s623
          // Predicated region
          $region89: #{tpu_custom_call.1} parent=87 // pred_check
            _
          $region90: #{tpu_custom_call.1} parent=87 // pred_check_branch
            %626 = sbr.rel (0) target = $region92
          $region91: #{tpu_custom_call.1} parent=87 // pred_region
            // Predicated region
            $region93: #{tpu_custom_call.1} parent=91 // pred_check
              _
            $region94: #{tpu_custom_call.1} parent=91 // pred_check_branch
              %628 = sbr.rel (0) target = $region96
            $region95: #{tpu_custom_call.1} parent=91 // pred_region
              // Predicated region
              $region108: #{tpu_custom_call.1} parent=95 // pred_check
                _
              $region109: #{tpu_custom_call.1} parent=95 // pred_check_branch
                %770 = sbr.rel (0) target = $region111
              $region110: #{tpu_custom_call.1} parent=95 // pred_region
                loop: start=0, step=1, limit=1
                $region112: #{tpu_custom_call.1} parent=110 // loop_pre_header
                  _
                $region113: #{tpu_custom_call.1} parent=110 // loop_header
                  %s772 = sphi 0, %s776
                  %p773 = scmp.ge.s32.totalorder %s772, 1
                  %s777 = sphi %s624, %s624
                  %s778 = sphi %s618, %s618
                $region114: #{tpu_custom_call.1} parent=110 // loop_header_branch
                  %775 = sbr.rel (%p773) target = $region118
                $region115: #{tpu_custom_call.1} parent=110 // loop_body
                  %v779 = vld [vmem:[%s777] sm:$0xff]
                  %780 = vst [vmem:[%s778] sm:$0xff] %v779
                  %v781 = vld [vmem:[%s777 + $0x8] sm:$0xff]
                  %782 = vst [vmem:[%s778 + $0x8] sm:$0xff] %v781
                  %v783 = vld [vmem:[%s777 + $0x10] sm:$0xff]
                  %784 = vst [vmem:[%s778 + $0x10] sm:$0xff] %v783
                  %v785 = vld [vmem:[%s777 + $0x18] sm:$0xff]
                  %786 = vst [vmem:[%s778 + $0x18] sm:$0xff] %v785
                  %v787 = vld [vmem:[%s777 + $0x20] sm:$0xff]
                  %788 = vst [vmem:[%s778 + $0x20] sm:$0xff] %v787
                  %v789 = vld [vmem:[%s777 + $0x28] sm:$0xff]
                  %790 = vst [vmem:[%s778 + $0x28] sm:$0xff] %v789
                  %v791 = vld [vmem:[%s777 + $0x30] sm:$0xff]
                  %792 = vst [vmem:[%s778 + $0x30] sm:$0xff] %v791
                  %v793 = vld [vmem:[%s777 + $0x38] sm:$0xff]
                  %794 = vst [vmem:[%s778 + $0x38] sm:$0xff] %v793
                  %v795 = vld [vmem:[%s777 + $0x80] sm:$0xff]
                  %796 = vst [vmem:[%s778 + $0x40] sm:$0xff] %v795
                  %v797 = vld [vmem:[%s777 + $0x88] sm:$0xff]
                  %798 = vst [vmem:[%s778 + $0x48] sm:$0xff] %v797
                  %v799 = vld [vmem:[%s777 + $0x90] sm:$0xff]
                  %800 = vst [vmem:[%s778 + $0x50] sm:$0xff] %v799
                  %v801 = vld [vmem:[%s777 + $0x98] sm:$0xff]
                  %802 = vst [vmem:[%s778 + $0x58] sm:$0xff] %v801
                  %v803 = vld [vmem:[%s777 + $0xa0] sm:$0xff]
                  %804 = vst [vmem:[%s778 + $0x60] sm:$0xff] %v803
                  %v805 = vld [vmem:[%s777 + $0xa8] sm:$0xff]
                  %806 = vst [vmem:[%s778 + $0x68] sm:$0xff] %v805
                  %v807 = vld [vmem:[%s777 + $0xb0] sm:$0xff]
                  %808 = vst [vmem:[%s778 + $0x70] sm:$0xff] %v807
                  %v809 = vld [vmem:[%s777 + $0xb8] sm:$0xff]
                  %810 = vst [vmem:[%s778 + $0x78] sm:$0xff] %v809
                  %v811 = vld [vmem:[%s777 + $0x100] sm:$0xff]
                  %812 = vst [vmem:[%s778 + $0x80] sm:$0xff] %v811
                  %v813 = vld [vmem:[%s777 + $0x108] sm:$0xff]
                  %814 = vst [vmem:[%s778 + $0x88] sm:$0xff] %v813
                  %v815 = vld [vmem:[%s777 + $0x110] sm:$0xff]
                  %816 = vst [vmem:[%s778 + $0x90] sm:$0xff] %v815
                  %v817 = vld [vmem:[%s777 + $0x118] sm:$0xff]
                  %818 = vst [vmem:[%s778 + $0x98] sm:$0xff] %v817
                  %v819 = vld [vmem:[%s777 + $0x120] sm:$0xff]
                  %820 = vst [vmem:[%s778 + $0xa0] sm:$0xff] %v819
                  %v821 = vld [vmem:[%s777 + $0x128] sm:$0xff]
                  %822 = vst [vmem:[%s778 + $0xa8] sm:$0xff] %v821
                  %v823 = vld [vmem:[%s777 + $0x130] sm:$0xff]
                  %824 = vst [vmem:[%s778 + $0xb0] sm:$0xff] %v823
                  %v825 = vld [vmem:[%s777 + $0x138] sm:$0xff]
                  %826 = vst [vmem:[%s778 + $0xb8] sm:$0xff] %v825
                  %v827 = vld [vmem:[%s777 + $0x180] sm:$0xff]
                  %828 = vst [vmem:[%s778 + $0xc0] sm:$0xff] %v827
                  %v829 = vld [vmem:[%s777 + $0x188] sm:$0xff]
                  %830 = vst [vmem:[%s778 + $0xc8] sm:$0xff] %v829
                  %v831 = vld [vmem:[%s777 + $0x190] sm:$0xff]
                  %832 = vst [vmem:[%s778 + $0xd0] sm:$0xff] %v831
                  %v833 = vld [vmem:[%s777 + $0x198] sm:$0xff]
                  %834 = vst [vmem:[%s778 + $0xd8] sm:$0xff] %v833
                  %v835 = vld [vmem:[%s777 + $0x1a0] sm:$0xff]
                  %836 = vst [vmem:[%s778 + $0xe0] sm:$0xff] %v835
                  %v837 = vld [vmem:[%s777 + $0x1a8] sm:$0xff]
                  %838 = vst [vmem:[%s778 + $0xe8] sm:$0xff] %v837
                  %v839 = vld [vmem:[%s777 + $0x1b0] sm:$0xff]
                  %840 = vst [vmem:[%s778 + $0xf0] sm:$0xff] %v839
                  %v841 = vld [vmem:[%s777 + $0x1b8] sm:$0xff]
                  %842 = vst [vmem:[%s778 + $0xf8] sm:$0xff] %v841
                  %v843 = vld [vmem:[%s777 + $0x200] sm:$0xff]
                  %844 = vst [vmem:[%s778 + $0x100] sm:$0xff] %v843
                  %v845 = vld [vmem:[%s777 + $0x208] sm:$0xff]
                  %846 = vst [vmem:[%s778 + $0x108] sm:$0xff] %v845
                  %v847 = vld [vmem:[%s777 + $0x210] sm:$0xff]
                  %848 = vst [vmem:[%s778 + $0x110] sm:$0xff] %v847
                  %v849 = vld [vmem:[%s777 + $0x218] sm:$0xff]
                  %850 = vst [vmem:[%s778 + $0x118] sm:$0xff] %v849
                  %v851 = vld [vmem:[%s777 + $0x220] sm:$0xff]
                  %852 = vst [vmem:[%s778 + $0x120] sm:$0xff] %v851
                  %v853 = vld [vmem:[%s777 + $0x228] sm:$0xff]
                  %854 = vst [vmem:[%s778 + $0x128] sm:$0xff] %v853
                  %v855 = vld [vmem:[%s777 + $0x230] sm:$0xff]
                  %856 = vst [vmem:[%s778 + $0x130] sm:$0xff] %v855
                  %v857 = vld [vmem:[%s777 + $0x238] sm:$0xff]
                  %858 = vst [vmem:[%s778 + $0x138] sm:$0xff] %v857
                  %v859 = vld [vmem:[%s777 + $0x280] sm:$0xff]
                  %860 = vst [vmem:[%s778 + $0x140] sm:$0xff] %v859
                  %v861 = vld [vmem:[%s777 + $0x288] sm:$0xff]
                  %862 = vst [vmem:[%s778 + $0x148] sm:$0xff] %v861
                  %v863 = vld [vmem:[%s777 + $0x290] sm:$0xff]
                  %864 = vst [vmem:[%s778 + $0x150] sm:$0xff] %v863
                  %v865 = vld [vmem:[%s777 + $0x298] sm:$0xff]
                  %866 = vst [vmem:[%s778 + $0x158] sm:$0xff] %v865
                  %v867 = vld [vmem:[%s777 + $0x2a0] sm:$0xff]
                  %868 = vst [vmem:[%s778 + $0x160] sm:$0xff] %v867
                  %v869 = vld [vmem:[%s777 + $0x2a8] sm:$0xff]
                  %870 = vst [vmem:[%s778 + $0x168] sm:$0xff] %v869
                  %v871 = vld [vmem:[%s777 + $0x2b0] sm:$0xff]
                  %872 = vst [vmem:[%s778 + $0x170] sm:$0xff] %v871
                  %v873 = vld [vmem:[%s777 + $0x2b8] sm:$0xff]
                  %874 = vst [vmem:[%s778 + $0x178] sm:$0xff] %v873
                  %v875 = vld [vmem:[%s777 + $0x300] sm:$0xff]
                  %876 = vst [vmem:[%s778 + $0x180] sm:$0xff] %v875
                  %v877 = vld [vmem:[%s777 + $0x308] sm:$0xff]
                  %878 = vst [vmem:[%s778 + $0x188] sm:$0xff] %v877
                  %v879 = vld [vmem:[%s777 + $0x310] sm:$0xff]
                  %880 = vst [vmem:[%s778 + $0x190] sm:$0xff] %v879
                  %v881 = vld [vmem:[%s777 + $0x318] sm:$0xff]
                  %882 = vst [vmem:[%s778 + $0x198] sm:$0xff] %v881
                  %v883 = vld [vmem:[%s777 + $0x320] sm:$0xff]
                  %884 = vst [vmem:[%s778 + $0x1a0] sm:$0xff] %v883
                  %v885 = vld [vmem:[%s777 + $0x328] sm:$0xff]
                  %886 = vst [vmem:[%s778 + $0x1a8] sm:$0xff] %v885
                  %v887 = vld [vmem:[%s777 + $0x330] sm:$0xff]
                  %888 = vst [vmem:[%s778 + $0x1b0] sm:$0xff] %v887
                  %v889 = vld [vmem:[%s777 + $0x338] sm:$0xff]
                  %890 = vst [vmem:[%s778 + $0x1b8] sm:$0xff] %v889
                  %v891 = vld [vmem:[%s777 + $0x380] sm:$0xff]
                  %892 = vst [vmem:[%s778 + $0x1c0] sm:$0xff] %v891
                  %v893 = vld [vmem:[%s777 + $0x388] sm:$0xff]
                  %894 = vst [vmem:[%s778 + $0x1c8] sm:$0xff] %v893
                  %v895 = vld [vmem:[%s777 + $0x390] sm:$0xff]
                  %896 = vst [vmem:[%s778 + $0x1d0] sm:$0xff] %v895
                  %v897 = vld [vmem:[%s777 + $0x398] sm:$0xff]
                  %898 = vst [vmem:[%s778 + $0x1d8] sm:$0xff] %v897
                  %v899 = vld [vmem:[%s777 + $0x3a0] sm:$0xff]
                  %900 = vst [vmem:[%s778 + $0x1e0] sm:$0xff] %v899
                  %v901 = vld [vmem:[%s777 + $0x3a8] sm:$0xff]
                  %902 = vst [vmem:[%s778 + $0x1e8] sm:$0xff] %v901
                  %v903 = vld [vmem:[%s777 + $0x3b0] sm:$0xff]
                  %904 = vst [vmem:[%s778 + $0x1f0] sm:$0xff] %v903
                  %v905 = vld [vmem:[%s777 + $0x3b8] sm:$0xff]
                  %906 = vst [vmem:[%s778 + $0x1f8] sm:$0xff] %v905
                $region116: #{tpu_custom_call.1} parent=110 // loop_footer
                  %s776 = sadd.s32 1, %s772
                $region117: #{tpu_custom_call.1} parent=110 // loop_footer_branch
                  %771 = sbr.rel target = $region113
                $region118: #{tpu_custom_call.1} parent=110 // loop_exit
                  _
              $region111: #{tpu_custom_call.1} parent=95 // pred_fallthru
                _
              // Predicated region
              $region119: #{tpu_custom_call.1} parent=95 // pred_check
                _
              $region120: #{tpu_custom_call.1} parent=95 // pred_check_branch
                %908 = sbr.rel target = $region122
              $region121: #{tpu_custom_call.1} parent=95 // pred_region
                _
              $region122: #{tpu_custom_call.1} parent=95 // pred_fallthru
                _
            $region96: #{tpu_custom_call.1} parent=91 // pred_fallthru
              _
            // Predicated region
            $region97: #{tpu_custom_call.1} parent=91 // pred_check
              _
            $region98: #{tpu_custom_call.1} parent=91 // pred_check_branch
              %630 = sbr.rel target = $region100
            $region99: #{tpu_custom_call.1} parent=91 // pred_region
              %s632 = ssub.s32 256, 1
              loop: start=0, step=1, limit=1
              $region101: #{tpu_custom_call.1} parent=99 // loop_pre_header
                _
              $region102: #{tpu_custom_call.1} parent=99 // loop_header
                %s634 = sphi 0, %s638
                %p635 = scmp.ge.s32.totalorder %s634, 1
                %s639 = sphi %s624, %s624
                %s640 = sphi %s618, %s618
              $region103: #{tpu_custom_call.1} parent=99 // loop_header_branch
                %637 = sbr.rel (%p635) target = $region107
              $region104: #{tpu_custom_call.1} parent=99 // loop_body
                %v641 = vld [vmem:[%s639] sm:%s632]
                %642 = vst [vmem:[%s640] sm:%s632] %v641
                %v643 = vld [vmem:[%s639 + $0x8] sm:%s632]
                %644 = vst [vmem:[%s640 + $0x8] sm:%s632] %v643
                %v645 = vld [vmem:[%s639 + $0x10] sm:%s632]
                %646 = vst [vmem:[%s640 + $0x10] sm:%s632] %v645
                %v647 = vld [vmem:[%s639 + $0x18] sm:%s632]
                %648 = vst [vmem:[%s640 + $0x18] sm:%s632] %v647
                %v649 = vld [vmem:[%s639 + $0x20] sm:%s632]
                %650 = vst [vmem:[%s640 + $0x20] sm:%s632] %v649
                %v651 = vld [vmem:[%s639 + $0x28] sm:%s632]
                %652 = vst [vmem:[%s640 + $0x28] sm:%s632] %v651
                %v653 = vld [vmem:[%s639 + $0x30] sm:%s632]
                %654 = vst [vmem:[%s640 + $0x30] sm:%s632] %v653
                %v655 = vld [vmem:[%s639 + $0x38] sm:%s632]
                %656 = vst [vmem:[%s640 + $0x38] sm:%s632] %v655
                %v657 = vld [vmem:[%s639 + $0x80] sm:%s632]
                %658 = vst [vmem:[%s640 + $0x40] sm:%s632] %v657
                %v659 = vld [vmem:[%s639 + $0x88] sm:%s632]
                %660 = vst [vmem:[%s640 + $0x48] sm:%s632] %v659
                %v661 = vld [vmem:[%s639 + $0x90] sm:%s632]
                %662 = vst [vmem:[%s640 + $0x50] sm:%s632] %v661
                %v663 = vld [vmem:[%s639 + $0x98] sm:%s632]
                %664 = vst [vmem:[%s640 + $0x58] sm:%s632] %v663
                %v665 = vld [vmem:[%s639 + $0xa0] sm:%s632]
                %666 = vst [vmem:[%s640 + $0x60] sm:%s632] %v665
                %v667 = vld [vmem:[%s639 + $0xa8] sm:%s632]
                %668 = vst [vmem:[%s640 + $0x68] sm:%s632] %v667
                %v669 = vld [vmem:[%s639 + $0xb0] sm:%s632]
                %670 = vst [vmem:[%s640 + $0x70] sm:%s632] %v669
                %v671 = vld [vmem:[%s639 + $0xb8] sm:%s632]
                %672 = vst [vmem:[%s640 + $0x78] sm:%s632] %v671
                %v673 = vld [vmem:[%s639 + $0x100] sm:%s632]
                %674 = vst [vmem:[%s640 + $0x80] sm:%s632] %v673
                %v675 = vld [vmem:[%s639 + $0x108] sm:%s632]
                %676 = vst [vmem:[%s640 + $0x88] sm:%s632] %v675
                %v677 = vld [vmem:[%s639 + $0x110] sm:%s632]
                %678 = vst [vmem:[%s640 + $0x90] sm:%s632] %v677
                %v679 = vld [vmem:[%s639 + $0x118] sm:%s632]
                %680 = vst [vmem:[%s640 + $0x98] sm:%s632] %v679
                %v681 = vld [vmem:[%s639 + $0x120] sm:%s632]
                %682 = vst [vmem:[%s640 + $0xa0] sm:%s632] %v681
                %v683 = vld [vmem:[%s639 + $0x128] sm:%s632]
                %684 = vst [vmem:[%s640 + $0xa8] sm:%s632] %v683
                %v685 = vld [vmem:[%s639 + $0x130] sm:%s632]
                %686 = vst [vmem:[%s640 + $0xb0] sm:%s632] %v685
                %v687 = vld [vmem:[%s639 + $0x138] sm:%s632]
                %688 = vst [vmem:[%s640 + $0xb8] sm:%s632] %v687
                %v689 = vld [vmem:[%s639 + $0x180] sm:%s632]
                %690 = vst [vmem:[%s640 + $0xc0] sm:%s632] %v689
                %v691 = vld [vmem:[%s639 + $0x188] sm:%s632]
                %692 = vst [vmem:[%s640 + $0xc8] sm:%s632] %v691
                %v693 = vld [vmem:[%s639 + $0x190] sm:%s632]
                %694 = vst [vmem:[%s640 + $0xd0] sm:%s632] %v693
                %v695 = vld [vmem:[%s639 + $0x198] sm:%s632]
                %696 = vst [vmem:[%s640 + $0xd8] sm:%s632] %v695
                %v697 = vld [vmem:[%s639 + $0x1a0] sm:%s632]
                %698 = vst [vmem:[%s640 + $0xe0] sm:%s632] %v697
                %v699 = vld [vmem:[%s639 + $0x1a8] sm:%s632]
                %700 = vst [vmem:[%s640 + $0xe8] sm:%s632] %v699
                %v701 = vld [vmem:[%s639 + $0x1b0] sm:%s632]
                %702 = vst [vmem:[%s640 + $0xf0] sm:%s632] %v701
                %v703 = vld [vmem:[%s639 + $0x1b8] sm:%s632]
                %704 = vst [vmem:[%s640 + $0xf8] sm:%s632] %v703
                %v705 = vld [vmem:[%s639 + $0x200] sm:%s632]
                %706 = vst [vmem:[%s640 + $0x100] sm:%s632] %v705
                %v707 = vld [vmem:[%s639 + $0x208] sm:%s632]
                %708 = vst [vmem:[%s640 + $0x108] sm:%s632] %v707
                %v709 = vld [vmem:[%s639 + $0x210] sm:%s632]
                %710 = vst [vmem:[%s640 + $0x110] sm:%s632] %v709
                %v711 = vld [vmem:[%s639 + $0x218] sm:%s632]
                %712 = vst [vmem:[%s640 + $0x118] sm:%s632] %v711
                %v713 = vld [vmem:[%s639 + $0x220] sm:%s632]
                %714 = vst [vmem:[%s640 + $0x120] sm:%s632] %v713
                %v715 = vld [vmem:[%s639 + $0x228] sm:%s632]
                %716 = vst [vmem:[%s640 + $0x128] sm:%s632] %v715
                %v717 = vld [vmem:[%s639 + $0x230] sm:%s632]
                %718 = vst [vmem:[%s640 + $0x130] sm:%s632] %v717
                %v719 = vld [vmem:[%s639 + $0x238] sm:%s632]
                %720 = vst [vmem:[%s640 + $0x138] sm:%s632] %v719
                %v721 = vld [vmem:[%s639 + $0x280] sm:%s632]
                %722 = vst [vmem:[%s640 + $0x140] sm:%s632] %v721
                %v723 = vld [vmem:[%s639 + $0x288] sm:%s632]
                %724 = vst [vmem:[%s640 + $0x148] sm:%s632] %v723
                %v725 = vld [vmem:[%s639 + $0x290] sm:%s632]
                %726 = vst [vmem:[%s640 + $0x150] sm:%s632] %v725
                %v727 = vld [vmem:[%s639 + $0x298] sm:%s632]
                %728 = vst [vmem:[%s640 + $0x158] sm:%s632] %v727
                %v729 = vld [vmem:[%s639 + $0x2a0] sm:%s632]
                %730 = vst [vmem:[%s640 + $0x160] sm:%s632] %v729
                %v731 = vld [vmem:[%s639 + $0x2a8] sm:%s632]
                %732 = vst [vmem:[%s640 + $0x168] sm:%s632] %v731
                %v733 = vld [vmem:[%s639 + $0x2b0] sm:%s632]
                %734 = vst [vmem:[%s640 + $0x170] sm:%s632] %v733
                %v735 = vld [vmem:[%s639 + $0x2b8] sm:%s632]
                %736 = vst [vmem:[%s640 + $0x178] sm:%s632] %v735
                %v737 = vld [vmem:[%s639 + $0x300] sm:%s632]
                %738 = vst [vmem:[%s640 + $0x180] sm:%s632] %v737
                %v739 = vld [vmem:[%s639 + $0x308] sm:%s632]
                %740 = vst [vmem:[%s640 + $0x188] sm:%s632] %v739
                %v741 = vld [vmem:[%s639 + $0x310] sm:%s632]
                %742 = vst [vmem:[%s640 + $0x190] sm:%s632] %v741
                %v743 = vld [vmem:[%s639 + $0x318] sm:%s632]
                %744 = vst [vmem:[%s640 + $0x198] sm:%s632] %v743
                %v745 = vld [vmem:[%s639 + $0x320] sm:%s632]
                %746 = vst [vmem:[%s640 + $0x1a0] sm:%s632] %v745
                %v747 = vld [vmem:[%s639 + $0x328] sm:%s632]
                %748 = vst [vmem:[%s640 + $0x1a8] sm:%s632] %v747
                %v749 = vld [vmem:[%s639 + $0x330] sm:%s632]
                %750 = vst [vmem:[%s640 + $0x1b0] sm:%s632] %v749
                %v751 = vld [vmem:[%s639 + $0x338] sm:%s632]
                %752 = vst [vmem:[%s640 + $0x1b8] sm:%s632] %v751
                %v753 = vld [vmem:[%s639 + $0x380] sm:%s632]
                %754 = vst [vmem:[%s640 + $0x1c0] sm:%s632] %v753
                %v755 = vld [vmem:[%s639 + $0x388] sm:%s632]
                %756 = vst [vmem:[%s640 + $0x1c8] sm:%s632] %v755
                %v757 = vld [vmem:[%s639 + $0x390] sm:%s632]
                %758 = vst [vmem:[%s640 + $0x1d0] sm:%s632] %v757
                %v759 = vld [vmem:[%s639 + $0x398] sm:%s632]
                %760 = vst [vmem:[%s640 + $0x1d8] sm:%s632] %v759
                %v761 = vld [vmem:[%s639 + $0x3a0] sm:%s632]
                %762 = vst [vmem:[%s640 + $0x1e0] sm:%s632] %v761
                %v763 = vld [vmem:[%s639 + $0x3a8] sm:%s632]
                %764 = vst [vmem:[%s640 + $0x1e8] sm:%s632] %v763
                %v765 = vld [vmem:[%s639 + $0x3b0] sm:%s632]
                %766 = vst [vmem:[%s640 + $0x1f0] sm:%s632] %v765
                %v767 = vld [vmem:[%s639 + $0x3b8] sm:%s632]
                %768 = vst [vmem:[%s640 + $0x1f8] sm:%s632] %v767
              $region105: #{tpu_custom_call.1} parent=99 // loop_footer
                %s638 = sadd.s32 1, %s634
              $region106: #{tpu_custom_call.1} parent=99 // loop_footer_branch
                %633 = sbr.rel target = $region102
              $region107: #{tpu_custom_call.1} parent=99 // loop_exit
                _
            $region100: #{tpu_custom_call.1} parent=91 // pred_fallthru
              _
          $region92: #{tpu_custom_call.1} parent=87 // pred_fallthru
            _
          %909 = vnop
        $region88: #{tpu_custom_call.1} parent=83 // pred_fallthru
          _
      $region84: #{tpu_custom_call.1} parent=5 // pred_fallthru
        _
      %p910 = scmp.le.s32.totalorder 1, %s33
      %p911 = scmp.lt.s32.totalorder %s33, 5
      %p912 = pnand %p910, %p911
      %p913 = pneg %p912
      // Predicated region
      $region123: #{tpu_custom_call.1} parent=5 // pred_check
        _
      $region124: #{tpu_custom_call.1} parent=5 // pred_check_branch
        %915 = sbr.rel (%p912) target = $region126
      $region125: #{tpu_custom_call.1} parent=5 // pred_region
        %s916 = ssub.s32 %s33, 1
        %s917 = sand.u32 %s60, 1
        %s918 = sand.u32 %s60, 1
        %s919 = smul.addr %s918, 512
        %s920 = scalar_lea.vmem [#allocation3], %s919
        // Predicated region
        $region127: #{tpu_custom_call.1} parent=125 // pred_check
          %p921 = pneg %p73
        $region128: #{tpu_custom_call.1} parent=125 // pred_check_branch
          %923 = sbr.rel (%p921) target = $region130
        $region129: #{tpu_custom_call.1} parent=125 // pred_region
          _
        $region130: #{tpu_custom_call.1} parent=125 // pred_fallthru
          _
        // Predicated region
        $region131: #{tpu_custom_call.1} parent=125 // pred_check
          %p924 = pneg %p115
        $region132: #{tpu_custom_call.1} parent=125 // pred_check_branch
          %926 = sbr.rel (%p924) target = $region134
        $region133: #{tpu_custom_call.1} parent=125 // pred_region
          %927 = dma.done [#allocation5], 16
        $region134: #{tpu_custom_call.1} parent=125 // pred_fallthru
          _
        // Predicated region
        $region135: #{tpu_custom_call.1} parent=125 // pred_check
          %p928 = pneg %p136
        $region136: #{tpu_custom_call.1} parent=125 // pred_check_branch
          %930 = sbr.rel (%p928) target = $region138
        $region137: #{tpu_custom_call.1} parent=125 // pred_region
          %931 = dma.done [#allocation8], 16
        $region138: #{tpu_custom_call.1} parent=125 // pred_fallthru
          _
        // Predicated region
        $region139: #{tpu_custom_call.1} parent=125 // pred_check
          %p932 = pneg %p157
        $region140: #{tpu_custom_call.1} parent=125 // pred_check_branch
          %934 = sbr.rel (%p932) target = $region142
        $region141: #{tpu_custom_call.1} parent=125 // pred_region
          %935 = dma.done [#allocation8], 512
        $region142: #{tpu_custom_call.1} parent=125 // pred_fallthru
          _
        // Predicated region
        $region143: #{tpu_custom_call.1} parent=125 // pred_check
          %p936 = pneg %p178
        $region144: #{tpu_custom_call.1} parent=125 // pred_check_branch
          %938 = sbr.rel (%p936) target = $region146
        $region145: #{tpu_custom_call.1} parent=125 // pred_region
          %939 = dma.done [#allocation11], 16
        $region146: #{tpu_custom_call.1} parent=125 // pred_fallthru
          _
        // Predicated region
        $region147: #{tpu_custom_call.1} parent=125 // pred_check
          %p940 = pneg %p199
        $region148: #{tpu_custom_call.1} parent=125 // pred_check_branch
          %942 = sbr.rel (%p940) target = $region150
        $region149: #{tpu_custom_call.1} parent=125 // pred_region
          %943 = dma.done [#allocation11], 16
        $region150: #{tpu_custom_call.1} parent=125 // pred_fallthru
          _
        // Predicated region
        $region151: #{tpu_custom_call.1} parent=125 // pred_check
          %p944 = pneg %p220
        $region152: #{tpu_custom_call.1} parent=125 // pred_check_branch
          %946 = sbr.rel (%p944) target = $region154
        $region153: #{tpu_custom_call.1} parent=125 // pred_region
          %947 = dma.done [#allocation14], 8192
        $region154: #{tpu_custom_call.1} parent=125 // pred_fallthru
          _
        // Predicated region
        $region155: #{tpu_custom_call.1} parent=125 // pred_check
          %p948 = pneg %p262
        $region156: #{tpu_custom_call.1} parent=125 // pred_check_branch
          %950 = sbr.rel (%p948) target = $region158
        $region157: #{tpu_custom_call.1} parent=125 // pred_region
          %951 = dma.done [#allocation14], 128
        $region158: #{tpu_custom_call.1} parent=125 // pred_fallthru
          _
        // Predicated region
        $region159: #{tpu_custom_call.1} parent=125 // pred_check
          %p952 = pneg %p304
        $region160: #{tpu_custom_call.1} parent=125 // pred_check_branch
          %954 = sbr.rel (%p952) target = $region162
        $region161: #{tpu_custom_call.1} parent=125 // pred_region
          %955 = dma.done [#allocation17], 64
        $region162: #{tpu_custom_call.1} parent=125 // pred_fallthru
          _
        // Predicated region
        $region163: #{tpu_custom_call.1} parent=125 // pred_check
          %p956 = pneg %p325
        $region164: #{tpu_custom_call.1} parent=125 // pred_check_branch
          %958 = sbr.rel (%p956) target = $region166
        $region165: #{tpu_custom_call.1} parent=125 // pred_region
          %959 = dma.done [#allocation17], 64
        $region166: #{tpu_custom_call.1} parent=125 // pred_fallthru
          _
        // Predicated region
        $region167: #{tpu_custom_call.1} parent=125 // pred_check
          %p960 = pneg %p346
        $region168: #{tpu_custom_call.1} parent=125 // pred_check_branch
          %962 = sbr.rel (%p960) target = $region170
        $region169: #{tpu_custom_call.1} parent=125 // pred_region
          %963 = dma.done [#allocation20], 8192
        $region170: #{tpu_custom_call.1} parent=125 // pred_fallthru
          _
        %s964 = sand.u32 %s60, 1
        %s965 = sand.u32 %s60, 1
        %s966 = smul.addr %s965, 512
        %s967 = scalar_lea.vmem [#allocation3], %s966
        %p968 = pneg %p73
        %p969 = pneg %p70
        %p970 = pneg %p94
        %p971 = pneg %p91
        %p972 = pneg %p115
        %p973 = pneg %p112
        %p974 = pneg %p136
        %p975 = pneg %p133
        %p976 = pneg %p157
        %p977 = pneg %p154
        %p978 = pneg %p178
        %p979 = pneg %p175
        %p980 = pneg %p199
        %p981 = pneg %p196
        %p982 = pneg %p220
        %p983 = pneg %p217
        %p984 = pneg %p241
        %p985 = pneg %p238
        %p986 = pneg %p262
        %p987 = pneg %p259
        %p988 = pneg %p283
        %p989 = pneg %p280
        %p990 = pneg %p304
        %p991 = pneg %p301
        %p992 = pneg %p325
        %p993 = pneg %p322
        %p994 = pneg %p346
        %p995 = pneg %p343
        %p996 = pneg %p367
        %p997 = pneg %p364
        %p998 = pneg %p388
        %p999 = pneg %p385
        %p1000 = pneg %p409
        %p1001 = pneg %p406
        %p1002 = pneg %p430
        %p1003 = pneg %p427
        %p1004 = pneg %p456
        %p1005 = pneg %p453
        %s1006 = sand.u32 %s443, 1
        %s1007 = scalar_lea.sflag [#allocation6], %s1006
        %s1008 = sand.u32 %s443, 1
        %s1009 = smul.addr %s1008, 16
        %s1010 = scalar_lea.vmem [#allocation21], %s1009
        %s1011 = smul.u32 8, %s42
        %s1012 = smul.u32 8, %s43
        %p1014 = scmp.eq.s32.totalorder %s43, 0
        // Predicated region
        $region171: #{tpu_custom_call.1} parent=125 // pred_check
          %p1015 = pneg %p1014
        $region172: #{tpu_custom_call.1} parent=125 // pred_check_branch
          %1017 = sbr.rel (%p1015) target = $region174
        $region173: #{tpu_custom_call.1} parent=125 // pred_region
          %1018 = vst [vmem:[#allocation2] sm:$0xff] -inf
          %1019 = vst [vmem:[#allocation2 + $0x8] sm:$0xff] -inf
          %1020 = vst [vmem:[#allocation2 + $0x10] sm:$0xff] -inf
          %1021 = vst [vmem:[#allocation2 + $0x18] sm:$0xff] -inf
          %1022 = vst [vmem:[#allocation2 + $0x20] sm:$0xff] -inf
          %1023 = vst [vmem:[#allocation2 + $0x28] sm:$0xff] -inf
          %1024 = vst [vmem:[#allocation2 + $0x30] sm:$0xff] -inf
          %1025 = vst [vmem:[#allocation2 + $0x38] sm:$0xff] -inf
        $region174: #{tpu_custom_call.1} parent=125 // pred_fallthru
          _
        %v1026 = vld [vmem:[%s920] sm:$0xff]
        %v1027 = vld [vmem:[%s920 + $0x8] sm:$0xff]
        %v1028 = vld [vmem:[%s920 + $0x10] sm:$0xff]
        %v1029 = vld [vmem:[%s920 + $0x18] sm:$0xff]
        %v1030 = vld [vmem:[%s920 + $0x20] sm:$0xff]
        %v1031 = vld [vmem:[%s920 + $0x28] sm:$0xff]
        %v1032 = vld [vmem:[%s920 + $0x30] sm:$0xff]
        %v1033 = vld [vmem:[%s920 + $0x38] sm:$0xff]
        %v1034 = vld [vmem:[%s920 + $0x40] sm:$0xff]
        %v1035 = vld [vmem:[%s920 + $0x48] sm:$0xff]
        %v1036 = vld [vmem:[%s920 + $0x50] sm:$0xff]
        %v1037 = vld [vmem:[%s920 + $0x58] sm:$0xff]
        %v1038 = vld [vmem:[%s920 + $0x60] sm:$0xff]
        %v1039 = vld [vmem:[%s920 + $0x68] sm:$0xff]
        %v1040 = vld [vmem:[%s920 + $0x70] sm:$0xff]
        %v1041 = vld [vmem:[%s920 + $0x78] sm:$0xff]
        %v1042 = vld [vmem:[%s920 + $0x80] sm:$0xff]
        %v1043 = vld [vmem:[%s920 + $0x88] sm:$0xff]
        %v1044 = vld [vmem:[%s920 + $0x90] sm:$0xff]
        %v1045 = vld [vmem:[%s920 + $0x98] sm:$0xff]
        %v1046 = vld [vmem:[%s920 + $0xa0] sm:$0xff]
        %v1047 = vld [vmem:[%s920 + $0xa8] sm:$0xff]
        %v1048 = vld [vmem:[%s920 + $0xb0] sm:$0xff]
        %v1049 = vld [vmem:[%s920 + $0xb8] sm:$0xff]
        %v1050 = vld [vmem:[%s920 + $0xc0] sm:$0xff]
        %v1051 = vld [vmem:[%s920 + $0xc8] sm:$0xff]
        %v1052 = vld [vmem:[%s920 + $0xd0] sm:$0xff]
        %v1053 = vld [vmem:[%s920 + $0xd8] sm:$0xff]
        %v1054 = vld [vmem:[%s920 + $0xe0] sm:$0xff]
        %v1055 = vld [vmem:[%s920 + $0xe8] sm:$0xff]
        %v1056 = vld [vmem:[%s920 + $0xf0] sm:$0xff]
        %v1057 = vld [vmem:[%s920 + $0xf8] sm:$0xff]
        %v1058 = vld [vmem:[%s920 + $0x100] sm:$0xff]
        %v1059 = vld [vmem:[%s920 + $0x108] sm:$0xff]
        %v1060 = vld [vmem:[%s920 + $0x110] sm:$0xff]
        %v1061 = vld [vmem:[%s920 + $0x118] sm:$0xff]
        %v1062 = vld [vmem:[%s920 + $0x120] sm:$0xff]
        %v1063 = vld [vmem:[%s920 + $0x128] sm:$0xff]
        %v1064 = vld [vmem:[%s920 + $0x130] sm:$0xff]
        %v1065 = vld [vmem:[%s920 + $0x138] sm:$0xff]
        %v1066 = vld [vmem:[%s920 + $0x140] sm:$0xff]
        %v1067 = vld [vmem:[%s920 + $0x148] sm:$0xff]
        %v1068 = vld [vmem:[%s920 + $0x150] sm:$0xff]
        %v1069 = vld [vmem:[%s920 + $0x158] sm:$0xff]
        %v1070 = vld [vmem:[%s920 + $0x160] sm:$0xff]
        %v1071 = vld [vmem:[%s920 + $0x168] sm:$0xff]
        %v1072 = vld [vmem:[%s920 + $0x170] sm:$0xff]
        %v1073 = vld [vmem:[%s920 + $0x178] sm:$0xff]
        %v1074 = vld [vmem:[%s920 + $0x180] sm:$0xff]
        %v1075 = vld [vmem:[%s920 + $0x188] sm:$0xff]
        %v1076 = vld [vmem:[%s920 + $0x190] sm:$0xff]
        %v1077 = vld [vmem:[%s920 + $0x198] sm:$0xff]
        %v1078 = vld [vmem:[%s920 + $0x1a0] sm:$0xff]
        %v1079 = vld [vmem:[%s920 + $0x1a8] sm:$0xff]
        %v1080 = vld [vmem:[%s920 + $0x1b0] sm:$0xff]
        %v1081 = vld [vmem:[%s920 + $0x1b8] sm:$0xff]
        %v1082 = vld [vmem:[%s920 + $0x1c0] sm:$0xff]
        %v1083 = vld [vmem:[%s920 + $0x1c8] sm:$0xff]
        %v1084 = vld [vmem:[%s920 + $0x1d0] sm:$0xff]
        %v1085 = vld [vmem:[%s920 + $0x1d8] sm:$0xff]
        %v1086 = vld [vmem:[%s920 + $0x1e0] sm:$0xff]
        %v1087 = vld [vmem:[%s920 + $0x1e8] sm:$0xff]
        %v1088 = vld [vmem:[%s920 + $0x1f0] sm:$0xff]
        %v1089 = vld [vmem:[%s920 + $0x1f8] sm:$0xff]
        %v1090 = vpack.c.bf16 %v1027, %v1026
        %v1091 = vpack.c.bf16 %v1029, %v1028
        %v1092 = vpack.c.bf16 %v1031, %v1030
        %v1093 = vpack.c.bf16 %v1033, %v1032
        %v1094 = vpack.c.bf16 %v1035, %v1034
        %v1095 = vpack.c.bf16 %v1037, %v1036
        %v1096 = vpack.c.bf16 %v1039, %v1038
        %v1097 = vpack.c.bf16 %v1041, %v1040
        %v1098 = vpack.c.bf16 %v1043, %v1042
        %v1099 = vpack.c.bf16 %v1045, %v1044
        %v1100 = vpack.c.bf16 %v1047, %v1046
        %v1101 = vpack.c.bf16 %v1049, %v1048
        %v1102 = vpack.c.bf16 %v1051, %v1050
        %v1103 = vpack.c.bf16 %v1053, %v1052
        %v1104 = vpack.c.bf16 %v1055, %v1054
        %v1105 = vpack.c.bf16 %v1057, %v1056
        %v1106 = vpack.c.bf16 %v1059, %v1058
        %v1107 = vpack.c.bf16 %v1061, %v1060
        %v1108 = vpack.c.bf16 %v1063, %v1062
        %v1109 = vpack.c.bf16 %v1065, %v1064
        %v1110 = vpack.c.bf16 %v1067, %v1066
        %v1111 = vpack.c.bf16 %v1069, %v1068
        %v1112 = vpack.c.bf16 %v1071, %v1070
        %v1113 = vpack.c.bf16 %v1073, %v1072
        %v1114 = vpack.c.bf16 %v1075, %v1074
        %v1115 = vpack.c.bf16 %v1077, %v1076
        %v1116 = vpack.c.bf16 %v1079, %v1078
        %v1117 = vpack.c.bf16 %v1081, %v1080
        %v1118 = vpack.c.bf16 %v1083, %v1082
        %v1119 = vpack.c.bf16 %v1085, %v1084
        %v1120 = vpack.c.bf16 %v1087, %v1086
        %v1121 = vpack.c.bf16 %v1089, %v1088
        %v1122 = vld [vmem:[%s1] sm:$0xf]
        %v1123 = vld [vmem:[%s1 + $0x4] sm:$0xf]
        %v1126 = vunpack.c.l.b16 %v1122
        %v1127 = vunpack.c.l.b16 %v1123
        %v1128 = vpack.c.b16 %v1127, %v1126
        %vm1130 = vcmask 130048
        %v1132 = vsel %vm1130, %v1090, 0
        %v1135 = vsel %vm1130, %v1091, 0
        %v1138 = vsel %vm1130, %v1092, 0
        %v1141 = vsel %vm1130, %v1093, 0
        %v1144 = vsel %vm1130, %v1094, 0
        %v1147 = vsel %vm1130, %v1095, 0
        %v1150 = vsel %vm1130, %v1096, 0
        %v1153 = vsel %vm1130, %v1097, 0
        %v1156 = vsel %vm1130, %v1098, 0
        %v1159 = vsel %vm1130, %v1099, 0
        %v1162 = vsel %vm1130, %v1100, 0
        %v1165 = vsel %vm1130, %v1101, 0
        %v1168 = vsel %vm1130, %v1102, 0
        %v1171 = vsel %vm1130, %v1103, 0
        %v1174 = vsel %vm1130, %v1104, 0
        %v1177 = vsel %vm1130, %v1105, 0
        %v1180 = vsel %vm1130, %v1106, 0
        %v1183 = vsel %vm1130, %v1107, 0
        %v1186 = vsel %vm1130, %v1108, 0
        %v1189 = vsel %vm1130, %v1109, 0
        %v1192 = vsel %vm1130, %v1110, 0
        %v1195 = vsel %vm1130, %v1111, 0
        %v1198 = vsel %vm1130, %v1112, 0
        %v1201 = vsel %vm1130, %v1113, 0
        %v1204 = vsel %vm1130, %v1114, 0
        %v1207 = vsel %vm1130, %v1115, 0
        %v1210 = vsel %vm1130, %v1116, 0
        %v1213 = vsel %vm1130, %v1117, 0
        %v1216 = vsel %vm1130, %v1118, 0
        %v1219 = vsel %vm1130, %v1119, 0
        %v1222 = vsel %vm1130, %v1120, 0
        %v1225 = vsel %vm1130, %v1121, 0
        %1227 = vmatprep.subr.bf16.mxu0 0
        %1228 = vmatpush1.bf16.msra.mxu0 0
        %1229 = vmatprep.subr.bf16.mxu0 0
        %1230 = vmatpush1.bf16.msra.mxu0 0
        %1231 = vmatprep.subr.bf16.mxu0 0
        %1232 = vmatpush1.bf16.msra.mxu0 0
        %1233 = vmatprep.subr.bf16.mxu0 0
        %1234 = vmatpush1.bf16.msra.mxu0 0
        %1235 = vmatprep.subr.bf16.mxu0 0
        %1236 = vmatpush1.bf16.msra.mxu0 0
        %1237 = vmatprep.subr.bf16.mxu0 0
        %1238 = vmatpush1.bf16.msra.mxu0 0
        %1239 = vmatprep.subr.bf16.mxu0 0
        %1240 = vmatpush1.bf16.msra.mxu0 0
        %1241 = vmatprep.subr.bf16.mxu0 0
        %1242 = vmatpush1.bf16.msra.mxu0 %v1128
        %1243 = vmatprep.subr.bf16.mxu0 0
        %1244 = vmatpush2.bf16.msra.mxu0 0
        %1245 = vmatprep.subr.bf16.mxu0 0
        %1246 = vmatpush2.bf16.msra.mxu0 0
        %1247 = vmatprep.subr.bf16.mxu0 0
        %1248 = vmatpush2.bf16.msra.mxu0 0
        %1249 = vmatprep.subr.bf16.mxu0 0
        %1250 = vmatpush2.bf16.msra.mxu0 0
        %1251 = vmatprep.subr.bf16.mxu0 0
        %1252 = vmatpush2.bf16.msra.mxu0 0
        %1253 = vmatprep.subr.bf16.mxu0 0
        %1254 = vmatpush2.bf16.msra.mxu0 0
        %1255 = vmatprep.subr.bf16.mxu0 0
        %1256 = vmatpush2.bf16.msra.mxu0 0
        %1257 = vmatprep.subr.bf16.mxu0 0
        %1258 = vmatpush2.bf16.msra.mxu0 0
        %1259 = vmatprep.mubr.bf16.mxu0 0
        %1260 = vmatmul.mubr.bf16.gmra.mxu0 %v1132
        %v1261 = vpop.f32.mrf.mxu0
        %v1262 = vadd.f32 0.0, %v1261
        %v1263 = vpop.f32.mrf.mxu0
        %v1264 = vpop.f32.mrf.mxu0
        %v1265 = vadd.f32 0.0, %v1264
        %v1266 = vpop.f32.mrf.mxu0
        %1267 = vmatprep.mubr.bf16.mxu0 0
        %1268 = vmatmul.mubr.bf16.gmra.mxu0 %v1135
        %v1269 = vpop.f32.mrf.mxu0
        %v1270 = vadd.f32 0.0, %v1269
        %v1271 = vpop.f32.mrf.mxu0
        %v1272 = vpop.f32.mrf.mxu0
        %v1273 = vadd.f32 0.0, %v1272
        %v1274 = vpop.f32.mrf.mxu0
        %1275 = vmatprep.mubr.bf16.mxu0 0
        %1276 = vmatmul.mubr.bf16.gmra.mxu0 %v1138
        %v1277 = vpop.f32.mrf.mxu0
        %v1278 = vadd.f32 0.0, %v1277
        %v1279 = vpop.f32.mrf.mxu0
        %v1280 = vpop.f32.mrf.mxu0
        %v1281 = vadd.f32 0.0, %v1280
        %v1282 = vpop.f32.mrf.mxu0
        %1283 = vmatprep.mubr.bf16.mxu0 0
        %1284 = vmatmul.mubr.bf16.gmra.mxu0 %v1141
        %v1285 = vpop.f32.mrf.mxu0
        %v1286 = vadd.f32 0.0, %v1285
        %v1287 = vpop.f32.mrf.mxu0
        %v1288 = vpop.f32.mrf.mxu0
        %v1289 = vadd.f32 0.0, %v1288
        %v1290 = vpop.f32.mrf.mxu0
        %1291 = vmatprep.mubr.bf16.mxu0 0
        %1292 = vmatmul.mubr.bf16.gmra.mxu0 %v1144
        %v1293 = vpop.f32.mrf.mxu0
        %v1294 = vadd.f32 0.0, %v1293
        %v1295 = vpop.f32.mrf.mxu0
        %v1296 = vpop.f32.mrf.mxu0
        %v1297 = vadd.f32 0.0, %v1296
        %v1298 = vpop.f32.mrf.mxu0
        %1299 = vmatprep.mubr.bf16.mxu0 0
        %1300 = vmatmul.mubr.bf16.gmra.mxu0 %v1147
        %v1301 = vpop.f32.mrf.mxu0
        %v1302 = vadd.f32 0.0, %v1301
        %v1303 = vpop.f32.mrf.mxu0
        %v1304 = vpop.f32.mrf.mxu0
        %v1305 = vadd.f32 0.0, %v1304
        %v1306 = vpop.f32.mrf.mxu0
        %1307 = vmatprep.mubr.bf16.mxu0 0
        %1308 = vmatmul.mubr.bf16.gmra.mxu0 %v1150
        %v1309 = vpop.f32.mrf.mxu0
        %v1310 = vadd.f32 0.0, %v1309
        %v1311 = vpop.f32.mrf.mxu0
        %v1312 = vpop.f32.mrf.mxu0
        %v1313 = vadd.f32 0.0, %v1312
        %v1314 = vpop.f32.mrf.mxu0
        %1315 = vmatprep.mubr.bf16.mxu0 0
        %1316 = vmatmul.mubr.bf16.gmra.mxu0 %v1153
        %v1317 = vpop.f32.mrf.mxu0
        %v1318 = vadd.f32 0.0, %v1317
        %v1319 = vpop.f32.mrf.mxu0
        %v1320 = vpop.f32.mrf.mxu0
        %v1321 = vadd.f32 0.0, %v1320
        %v1322 = vpop.f32.mrf.mxu0
        %1323 = vmatprep.mubr.bf16.mxu0 0
        %1324 = vmatmul.mubr.bf16.gmra.mxu0 %v1156
        %v1325 = vpop.f32.mrf.mxu0
        %v1326 = vadd.f32 0.0, %v1325
        %v1327 = vpop.f32.mrf.mxu0
        %v1328 = vpop.f32.mrf.mxu0
        %v1329 = vadd.f32 0.0, %v1328
        %v1330 = vpop.f32.mrf.mxu0
        %1331 = vmatprep.mubr.bf16.mxu0 0
        %1332 = vmatmul.mubr.bf16.gmra.mxu0 %v1159
        %v1333 = vpop.f32.mrf.mxu0
        %v1334 = vadd.f32 0.0, %v1333
        %v1335 = vpop.f32.mrf.mxu0
        %v1336 = vpop.f32.mrf.mxu0
        %v1337 = vadd.f32 0.0, %v1336
        %v1338 = vpop.f32.mrf.mxu0
        %1339 = vmatprep.mubr.bf16.mxu0 0
        %1340 = vmatmul.mubr.bf16.gmra.mxu0 %v1162
        %v1341 = vpop.f32.mrf.mxu0
        %v1342 = vadd.f32 0.0, %v1341
        %v1343 = vpop.f32.mrf.mxu0
        %v1344 = vpop.f32.mrf.mxu0
        %v1345 = vadd.f32 0.0, %v1344
        %v1346 = vpop.f32.mrf.mxu0
        %1347 = vmatprep.mubr.bf16.mxu0 0
        %1348 = vmatmul.mubr.bf16.gmra.mxu0 %v1165
        %v1349 = vpop.f32.mrf.mxu0
        %v1350 = vadd.f32 0.0, %v1349
        %v1351 = vpop.f32.mrf.mxu0
        %v1352 = vpop.f32.mrf.mxu0
        %v1353 = vadd.f32 0.0, %v1352
        %v1354 = vpop.f32.mrf.mxu0
        %1355 = vmatprep.mubr.bf16.mxu0 0
        %1356 = vmatmul.mubr.bf16.gmra.mxu0 %v1168
        %v1357 = vpop.f32.mrf.mxu0
        %v1358 = vadd.f32 0.0, %v1357
        %v1359 = vpop.f32.mrf.mxu0
        %v1360 = vpop.f32.mrf.mxu0
        %v1361 = vadd.f32 0.0, %v1360
        %v1362 = vpop.f32.mrf.mxu0
        %1363 = vmatprep.mubr.bf16.mxu0 0
        %1364 = vmatmul.mubr.bf16.gmra.mxu0 %v1171
        %v1365 = vpop.f32.mrf.mxu0
        %v1366 = vadd.f32 0.0, %v1365
        %v1367 = vpop.f32.mrf.mxu0
        %v1368 = vpop.f32.mrf.mxu0
        %v1369 = vadd.f32 0.0, %v1368
        %v1370 = vpop.f32.mrf.mxu0
        %1371 = vmatprep.mubr.bf16.mxu0 0
        %1372 = vmatmul.mubr.bf16.gmra.mxu0 %v1174
        %v1373 = vpop.f32.mrf.mxu0
        %v1374 = vadd.f32 0.0, %v1373
        %v1375 = vpop.f32.mrf.mxu0
        %v1376 = vpop.f32.mrf.mxu0
        %v1377 = vadd.f32 0.0, %v1376
        %v1378 = vpop.f32.mrf.mxu0
        %1379 = vmatprep.mubr.bf16.mxu0 0
        %1380 = vmatmul.mubr.bf16.gmra.mxu0 %v1177
        %v1381 = vpop.f32.mrf.mxu0
        %v1382 = vadd.f32 0.0, %v1381
        %v1383 = vpop.f32.mrf.mxu0
        %v1384 = vpop.f32.mrf.mxu0
        %v1385 = vadd.f32 0.0, %v1384
        %v1386 = vpop.f32.mrf.mxu0
        %1387 = vmatprep.mubr.bf16.mxu0 0
        %1388 = vmatmul.mubr.bf16.gmra.mxu0 %v1180
        %v1389 = vpop.f32.mrf.mxu0
        %v1390 = vadd.f32 0.0, %v1389
        %v1391 = vpop.f32.mrf.mxu0
        %v1392 = vpop.f32.mrf.mxu0
        %v1393 = vadd.f32 0.0, %v1392
        %v1394 = vpop.f32.mrf.mxu0
        %1395 = vmatprep.mubr.bf16.mxu0 0
        %1396 = vmatmul.mubr.bf16.gmra.mxu0 %v1183
        %v1397 = vpop.f32.mrf.mxu0
        %v1398 = vadd.f32 0.0, %v1397
        %v1399 = vpop.f32.mrf.mxu0
        %v1400 = vpop.f32.mrf.mxu0
        %v1401 = vadd.f32 0.0, %v1400
        %v1402 = vpop.f32.mrf.mxu0
        %1403 = vmatprep.mubr.bf16.mxu0 0
        %1404 = vmatmul.mubr.bf16.gmra.mxu0 %v1186
        %v1405 = vpop.f32.mrf.mxu0
        %v1406 = vadd.f32 0.0, %v1405
        %v1407 = vpop.f32.mrf.mxu0
        %v1408 = vpop.f32.mrf.mxu0
        %v1409 = vadd.f32 0.0, %v1408
        %v1410 = vpop.f32.mrf.mxu0
        %1411 = vmatprep.mubr.bf16.mxu0 0
        %1412 = vmatmul.mubr.bf16.gmra.mxu0 %v1189
        %v1413 = vpop.f32.mrf.mxu0
        %v1414 = vadd.f32 0.0, %v1413
        %v1415 = vpop.f32.mrf.mxu0
        %v1416 = vpop.f32.mrf.mxu0
        %v1417 = vadd.f32 0.0, %v1416
        %v1418 = vpop.f32.mrf.mxu0
        %1419 = vmatprep.mubr.bf16.mxu0 0
        %1420 = vmatmul.mubr.bf16.gmra.mxu0 %v1192
        %v1421 = vpop.f32.mrf.mxu0
        %v1422 = vadd.f32 0.0, %v1421
        %v1423 = vpop.f32.mrf.mxu0
        %v1424 = vpop.f32.mrf.mxu0
        %v1425 = vadd.f32 0.0, %v1424
        %v1426 = vpop.f32.mrf.mxu0
        %1427 = vmatprep.mubr.bf16.mxu0 0
        %1428 = vmatmul.mubr.bf16.gmra.mxu0 %v1195
        %v1429 = vpop.f32.mrf.mxu0
        %v1430 = vadd.f32 0.0, %v1429
        %v1431 = vpop.f32.mrf.mxu0
        %v1432 = vpop.f32.mrf.mxu0
        %v1433 = vadd.f32 0.0, %v1432
        %v1434 = vpop.f32.mrf.mxu0
        %1435 = vmatprep.mubr.bf16.mxu0 0
        %1436 = vmatmul.mubr.bf16.gmra.mxu0 %v1198
        %v1437 = vpop.f32.mrf.mxu0
        %v1438 = vadd.f32 0.0, %v1437
        %v1439 = vpop.f32.mrf.mxu0
        %v1440 = vpop.f32.mrf.mxu0
        %v1441 = vadd.f32 0.0, %v1440
        %v1442 = vpop.f32.mrf.mxu0
        %1443 = vmatprep.mubr.bf16.mxu0 0
        %1444 = vmatmul.mubr.bf16.gmra.mxu0 %v1201
        %v1445 = vpop.f32.mrf.mxu0
        %v1446 = vadd.f32 0.0, %v1445
        %v1447 = vpop.f32.mrf.mxu0
        %v1448 = vpop.f32.mrf.mxu0
        %v1449 = vadd.f32 0.0, %v1448
        %v1450 = vpop.f32.mrf.mxu0
        %1451 = vmatprep.mubr.bf16.mxu0 0
        %1452 = vmatmul.mubr.bf16.gmra.mxu0 %v1204
        %v1453 = vpop.f32.mrf.mxu0
        %v1454 = vadd.f32 0.0, %v1453
        %v1455 = vpop.f32.mrf.mxu0
        %v1456 = vpop.f32.mrf.mxu0
        %v1457 = vadd.f32 0.0, %v1456
        %v1458 = vpop.f32.mrf.mxu0
        %1459 = vmatprep.mubr.bf16.mxu0 0
        %1460 = vmatmul.mubr.bf16.gmra.mxu0 %v1207
        %v1461 = vpop.f32.mrf.mxu0
        %v1462 = vadd.f32 0.0, %v1461
        %v1463 = vpop.f32.mrf.mxu0
        %v1464 = vpop.f32.mrf.mxu0
        %v1465 = vadd.f32 0.0, %v1464
        %v1466 = vpop.f32.mrf.mxu0
        %1467 = vmatprep.mubr.bf16.mxu0 0
        %1468 = vmatmul.mubr.bf16.gmra.mxu0 %v1210
        %v1469 = vpop.f32.mrf.mxu0
        %v1470 = vadd.f32 0.0, %v1469
        %v1471 = vpop.f32.mrf.mxu0
        %v1472 = vpop.f32.mrf.mxu0
        %v1473 = vadd.f32 0.0, %v1472
        %v1474 = vpop.f32.mrf.mxu0
        %1475 = vmatprep.mubr.bf16.mxu0 0
        %1476 = vmatmul.mubr.bf16.gmra.mxu0 %v1213
        %v1477 = vpop.f32.mrf.mxu0
        %v1478 = vadd.f32 0.0, %v1477
        %v1479 = vpop.f32.mrf.mxu0
        %v1480 = vpop.f32.mrf.mxu0
        %v1481 = vadd.f32 0.0, %v1480
        %v1482 = vpop.f32.mrf.mxu0
        %1483 = vmatprep.mubr.bf16.mxu0 0
        %1484 = vmatmul.mubr.bf16.gmra.mxu0 %v1216
        %v1485 = vpop.f32.mrf.mxu0
        %v1486 = vadd.f32 0.0, %v1485
        %v1487 = vpop.f32.mrf.mxu0
        %v1488 = vpop.f32.mrf.mxu0
        %v1489 = vadd.f32 0.0, %v1488
        %v1490 = vpop.f32.mrf.mxu0
        %1491 = vmatprep.mubr.bf16.mxu0 0
        %1492 = vmatmul.mubr.bf16.gmra.mxu0 %v1219
        %v1493 = vpop.f32.mrf.mxu0
        %v1494 = vadd.f32 0.0, %v1493
        %v1495 = vpop.f32.mrf.mxu0
        %v1496 = vpop.f32.mrf.mxu0
        %v1497 = vadd.f32 0.0, %v1496
        %v1498 = vpop.f32.mrf.mxu0
        %1499 = vmatprep.mubr.bf16.mxu0 0
        %1500 = vmatmul.mubr.bf16.gmra.mxu0 %v1222
        %v1501 = vpop.f32.mrf.mxu0
        %v1502 = vadd.f32 0.0, %v1501
        %v1503 = vpop.f32.mrf.mxu0
        %v1504 = vpop.f32.mrf.mxu0
        %v1505 = vadd.f32 0.0, %v1504
        %v1506 = vpop.f32.mrf.mxu0
        %1507 = vmatprep.mubr.bf16.mxu0 0
        %1508 = vmatmul.mubr.bf16.gmra.mxu0 %v1225
        %v1509 = vpop.f32.mrf.mxu0
        %v1510 = vadd.f32 0.0, %v1509
        %v1511 = vpop.f32.mrf.mxu0
        %v1512 = vpop.f32.mrf.mxu0
        %v1513 = vadd.f32 0.0, %v1512
        %v1514 = vpop.f32.mrf.mxu0
        %1515 = vdwg.mxu0
        %v1516 = vld [vmem:[#allocation4] sm:$0x1]
        %v1518 = vlaneseq
        %v1519 = vshrl.u32 %v1518, 7
        %v1520 = vsub.s32 0, %v1519
        %v1521 = vrot.slane %v1516, %v1520
        %v1523 = vmul.f32 %v1262, %v1521
        %v1524 = vmul.f32 %v1265, %v1521
        %v1525 = vmul.f32 %v1270, %v1521
        %v1526 = vmul.f32 %v1273, %v1521
        %v1527 = vmul.f32 %v1278, %v1521
        %v1528 = vmul.f32 %v1281, %v1521
        %v1529 = vmul.f32 %v1286, %v1521
        %v1530 = vmul.f32 %v1289, %v1521
        %v1531 = vmul.f32 %v1294, %v1521
        %v1532 = vmul.f32 %v1297, %v1521
        %v1533 = vmul.f32 %v1302, %v1521
        %v1534 = vmul.f32 %v1305, %v1521
        %v1535 = vmul.f32 %v1310, %v1521
        %v1536 = vmul.f32 %v1313, %v1521
        %v1537 = vmul.f32 %v1318, %v1521
        %v1538 = vmul.f32 %v1321, %v1521
        %v1539 = vmul.f32 %v1326, %v1521
        %v1540 = vmul.f32 %v1329, %v1521
        %v1541 = vmul.f32 %v1334, %v1521
        %v1542 = vmul.f32 %v1337, %v1521
        %v1543 = vmul.f32 %v1342, %v1521
        %v1544 = vmul.f32 %v1345, %v1521
        %v1545 = vmul.f32 %v1350, %v1521
        %v1546 = vmul.f32 %v1353, %v1521
        %v1547 = vmul.f32 %v1358, %v1521
        %v1548 = vmul.f32 %v1361, %v1521
        %v1549 = vmul.f32 %v1366, %v1521
        %v1550 = vmul.f32 %v1369, %v1521
        %v1551 = vmul.f32 %v1374, %v1521
        %v1552 = vmul.f32 %v1377, %v1521
        %v1553 = vmul.f32 %v1382, %v1521
        %v1554 = vmul.f32 %v1385, %v1521
        %v1555 = vmul.f32 %v1390, %v1521
        %v1556 = vmul.f32 %v1393, %v1521
        %v1557 = vmul.f32 %v1398, %v1521
        %v1558 = vmul.f32 %v1401, %v1521
        %v1559 = vmul.f32 %v1406, %v1521
        %v1560 = vmul.f32 %v1409, %v1521
        %v1561 = vmul.f32 %v1414, %v1521
        %v1562 = vmul.f32 %v1417, %v1521
        %v1563 = vmul.f32 %v1422, %v1521
        %v1564 = vmul.f32 %v1425, %v1521
        %v1565 = vmul.f32 %v1430, %v1521
        %v1566 = vmul.f32 %v1433, %v1521
        %v1567 = vmul.f32 %v1438, %v1521
        %v1568 = vmul.f32 %v1441, %v1521
        %v1569 = vmul.f32 %v1446, %v1521
        %v1570 = vmul.f32 %v1449, %v1521
        %v1571 = vmul.f32 %v1454, %v1521
        %v1572 = vmul.f32 %v1457, %v1521
        %v1573 = vmul.f32 %v1462, %v1521
        %v1574 = vmul.f32 %v1465, %v1521
        %v1575 = vmul.f32 %v1470, %v1521
        %v1576 = vmul.f32 %v1473, %v1521
        %v1577 = vmul.f32 %v1478, %v1521
        %v1578 = vmul.f32 %v1481, %v1521
        %v1579 = vmul.f32 %v1486, %v1521
        %v1580 = vmul.f32 %v1489, %v1521
        %v1581 = vmul.f32 %v1494, %v1521
        %v1582 = vmul.f32 %v1497, %v1521
        %v1583 = vmul.f32 %v1502, %v1521
        %v1584 = vmul.f32 %v1505, %v1521
        %v1585 = vmul.f32 %v1510, %v1521
        %v1586 = vmul.f32 %v1513, %v1521
        %v1587 = vld [vmem:[#allocation7] sm:$0x1]
        %v1589 = vlaneseq
        %v1590 = vshrl.u32 %v1589, 7
        %v1591 = vsub.s32 0, %v1590
        %v1592 = vrot.slane %v1587, %v1591
        %v1594 = vadd.f32 %v1523, %v1592
        %v1595 = vadd.f32 %v1524, %v1592
        %v1596 = vadd.f32 %v1525, %v1592
        %v1597 = vadd.f32 %v1526, %v1592
        %v1598 = vadd.f32 %v1527, %v1592
        %v1599 = vadd.f32 %v1528, %v1592
        %v1600 = vadd.f32 %v1529, %v1592
        %v1601 = vadd.f32 %v1530, %v1592
        %v1602 = vadd.f32 %v1531, %v1592
        %v1603 = vadd.f32 %v1532, %v1592
        %v1604 = vadd.f32 %v1533, %v1592
        %v1605 = vadd.f32 %v1534, %v1592
        %v1606 = vadd.f32 %v1535, %v1592
        %v1607 = vadd.f32 %v1536, %v1592
        %v1608 = vadd.f32 %v1537, %v1592
        %v1609 = vadd.f32 %v1538, %v1592
        %v1610 = vadd.f32 %v1539, %v1592
        %v1611 = vadd.f32 %v1540, %v1592
        %v1612 = vadd.f32 %v1541, %v1592
        %v1613 = vadd.f32 %v1542, %v1592
        %v1614 = vadd.f32 %v1543, %v1592
        %v1615 = vadd.f32 %v1544, %v1592
        %v1616 = vadd.f32 %v1545, %v1592
        %v1617 = vadd.f32 %v1546, %v1592
        %v1618 = vadd.f32 %v1547, %v1592
        %v1619 = vadd.f32 %v1548, %v1592
        %v1620 = vadd.f32 %v1549, %v1592
        %v1621 = vadd.f32 %v1550, %v1592
        %v1622 = vadd.f32 %v1551, %v1592
        %v1623 = vadd.f32 %v1552, %v1592
        %v1624 = vadd.f32 %v1553, %v1592
        %v1625 = vadd.f32 %v1554, %v1592
        %v1626 = vadd.f32 %v1555, %v1592
        %v1627 = vadd.f32 %v1556, %v1592
        %v1628 = vadd.f32 %v1557, %v1592
        %v1629 = vadd.f32 %v1558, %v1592
        %v1630 = vadd.f32 %v1559, %v1592
        %v1631 = vadd.f32 %v1560, %v1592
        %v1632 = vadd.f32 %v1561, %v1592
        %v1633 = vadd.f32 %v1562, %v1592
        %v1634 = vadd.f32 %v1563, %v1592
        %v1635 = vadd.f32 %v1564, %v1592
        %v1636 = vadd.f32 %v1565, %v1592
        %v1637 = vadd.f32 %v1566, %v1592
        %v1638 = vadd.f32 %v1567, %v1592
        %v1639 = vadd.f32 %v1568, %v1592
        %v1640 = vadd.f32 %v1569, %v1592
        %v1641 = vadd.f32 %v1570, %v1592
        %v1642 = vadd.f32 %v1571, %v1592
        %v1643 = vadd.f32 %v1572, %v1592
        %v1644 = vadd.f32 %v1573, %v1592
        %v1645 = vadd.f32 %v1574, %v1592
        %v1646 = vadd.f32 %v1575, %v1592
        %v1647 = vadd.f32 %v1576, %v1592
        %v1648 = vadd.f32 %v1577, %v1592
        %v1649 = vadd.f32 %v1578, %v1592
        %v1650 = vadd.f32 %v1579, %v1592
        %v1651 = vadd.f32 %v1580, %v1592
        %v1652 = vadd.f32 %v1581, %v1592
        %v1653 = vadd.f32 %v1582, %v1592
        %v1654 = vadd.f32 %v1583, %v1592
        %v1655 = vadd.f32 %v1584, %v1592
        %v1656 = vadd.f32 %v1585, %v1592
        %v1657 = vadd.f32 %v1586, %v1592
        %v1658 = vmax.f32 %v1594, 0.0
        %v1659 = vmax.f32 %v1595, 0.0
        %v1660 = vmax.f32 %v1596, 0.0
        %v1661 = vmax.f32 %v1597, 0.0
        %v1662 = vmax.f32 %v1598, 0.0
        %v1663 = vmax.f32 %v1599, 0.0
        %v1664 = vmax.f32 %v1600, 0.0
        %v1665 = vmax.f32 %v1601, 0.0
        %v1666 = vmax.f32 %v1602, 0.0
        %v1667 = vmax.f32 %v1603, 0.0
        %v1668 = vmax.f32 %v1604, 0.0
        %v1669 = vmax.f32 %v1605, 0.0
        %v1670 = vmax.f32 %v1606, 0.0
        %v1671 = vmax.f32 %v1607, 0.0
        %v1672 = vmax.f32 %v1608, 0.0
        %v1673 = vmax.f32 %v1609, 0.0
        %v1674 = vmax.f32 %v1610, 0.0
        %v1675 = vmax.f32 %v1611, 0.0
        %v1676 = vmax.f32 %v1612, 0.0
        %v1677 = vmax.f32 %v1613, 0.0
        %v1678 = vmax.f32 %v1614, 0.0
        %v1679 = vmax.f32 %v1615, 0.0
        %v1680 = vmax.f32 %v1616, 0.0
        %v1681 = vmax.f32 %v1617, 0.0
        %v1682 = vmax.f32 %v1618, 0.0
        %v1683 = vmax.f32 %v1619, 0.0
        %v1684 = vmax.f32 %v1620, 0.0
        %v1685 = vmax.f32 %v1621, 0.0
        %v1686 = vmax.f32 %v1622, 0.0
        %v1687 = vmax.f32 %v1623, 0.0
        %v1688 = vmax.f32 %v1624, 0.0
        %v1689 = vmax.f32 %v1625, 0.0
        %v1690 = vmax.f32 %v1626, 0.0
        %v1691 = vmax.f32 %v1627, 0.0
        %v1692 = vmax.f32 %v1628, 0.0
        %v1693 = vmax.f32 %v1629, 0.0
        %v1694 = vmax.f32 %v1630, 0.0
        %v1695 = vmax.f32 %v1631, 0.0
        %v1696 = vmax.f32 %v1632, 0.0
        %v1697 = vmax.f32 %v1633, 0.0
        %v1698 = vmax.f32 %v1634, 0.0
        %v1699 = vmax.f32 %v1635, 0.0
        %v1700 = vmax.f32 %v1636, 0.0
        %v1701 = vmax.f32 %v1637, 0.0
        %v1702 = vmax.f32 %v1638, 0.0
        %v1703 = vmax.f32 %v1639, 0.0
        %v1704 = vmax.f32 %v1640, 0.0
        %v1705 = vmax.f32 %v1641, 0.0
        %v1706 = vmax.f32 %v1642, 0.0
        %v1707 = vmax.f32 %v1643, 0.0
        %v1708 = vmax.f32 %v1644, 0.0
        %v1709 = vmax.f32 %v1645, 0.0
        %v1710 = vmax.f32 %v1646, 0.0
        %v1711 = vmax.f32 %v1647, 0.0
        %v1712 = vmax.f32 %v1648, 0.0
        %v1713 = vmax.f32 %v1649, 0.0
        %v1714 = vmax.f32 %v1650, 0.0
        %v1715 = vmax.f32 %v1651, 0.0
        %v1716 = vmax.f32 %v1652, 0.0
        %v1717 = vmax.f32 %v1653, 0.0
        %v1718 = vmax.f32 %v1654, 0.0
        %v1719 = vmax.f32 %v1655, 0.0
        %v1720 = vmax.f32 %v1656, 0.0
        %v1721 = vmax.f32 %v1657, 0.0
        %v1722 = vpack.c.bf16 %v1659, %v1658
        %v1723 = vpack.c.bf16 %v1661, %v1660
        %v1724 = vpack.c.bf16 %v1663, %v1662
        %v1725 = vpack.c.bf16 %v1665, %v1664
        %v1726 = vpack.c.bf16 %v1667, %v1666
        %v1727 = vpack.c.bf16 %v1669, %v1668
        %v1728 = vpack.c.bf16 %v1671, %v1670
        %v1729 = vpack.c.bf16 %v1673, %v1672
        %v1730 = vpack.c.bf16 %v1675, %v1674
        %v1731 = vpack.c.bf16 %v1677, %v1676
        %v1732 = vpack.c.bf16 %v1679, %v1678
        %v1733 = vpack.c.bf16 %v1681, %v1680
        %v1734 = vpack.c.bf16 %v1683, %v1682
        %v1735 = vpack.c.bf16 %v1685, %v1684
        %v1736 = vpack.c.bf16 %v1687, %v1686
        %v1737 = vpack.c.bf16 %v1689, %v1688
        %v1738 = vpack.c.bf16 %v1691, %v1690
        %v1739 = vpack.c.bf16 %v1693, %v1692
        %v1740 = vpack.c.bf16 %v1695, %v1694
        %v1741 = vpack.c.bf16 %v1697, %v1696
        %v1742 = vpack.c.bf16 %v1699, %v1698
        %v1743 = vpack.c.bf16 %v1701, %v1700
        %v1744 = vpack.c.bf16 %v1703, %v1702
        %v1745 = vpack.c.bf16 %v1705, %v1704
        %v1746 = vpack.c.bf16 %v1707, %v1706
        %v1747 = vpack.c.bf16 %v1709, %v1708
        %v1748 = vpack.c.bf16 %v1711, %v1710
        %v1749 = vpack.c.bf16 %v1713, %v1712
        %v1750 = vpack.c.bf16 %v1715, %v1714
        %v1751 = vpack.c.bf16 %v1717, %v1716
        %v1752 = vpack.c.bf16 %v1719, %v1718
        %v1753 = vpack.c.bf16 %v1721, %v1720
        %v1754 = vld [vmem:[#allocation9] sm:$0xf]
        %v1755 = vld [vmem:[#allocation9 + $0x4] sm:$0xf]
        %v1756 = vld [vmem:[#allocation9 + $0x8] sm:$0xf]
        %v1757 = vld [vmem:[#allocation9 + $0xc] sm:$0xf]
        %v1758 = vld [vmem:[#allocation9 + $0x10] sm:$0xf]
        %v1759 = vld [vmem:[#allocation9 + $0x14] sm:$0xf]
        %v1760 = vld [vmem:[#allocation9 + $0x18] sm:$0xf]
        %v1761 = vld [vmem:[#allocation9 + $0x1c] sm:$0xf]
        %v1770 = vunpack.c.l.b16 %v1754
        %v1771 = vunpack.c.l.b16 %v1755
        %v1772 = vunpack.c.l.b16 %v1756
        %v1773 = vunpack.c.l.b16 %v1757
        %v1774 = vunpack.c.l.b16 %v1758
        %v1775 = vunpack.c.l.b16 %v1759
        %v1776 = vunpack.c.l.b16 %v1760
        %v1777 = vunpack.c.l.b16 %v1761
        %v1778 = vpack.c.b16 %v1771, %v1770
        %v1779 = vpack.c.b16 %v1773, %v1772
        %v1780 = vpack.c.b16 %v1775, %v1774
        %v1781 = vpack.c.b16 %v1777, %v1776
        %vm1786 = vcmask 523264
        %v1788 = vsel %vm1786, %v1722, 0
        %v1791 = vsel %vm1786, %v1723, 0
        %v1794 = vsel %vm1786, %v1724, 0
        %v1797 = vsel %vm1786, %v1725, 0
        %v1800 = vsel %vm1786, %v1726, 0
        %v1803 = vsel %vm1786, %v1727, 0
        %v1806 = vsel %vm1786, %v1728, 0
        %v1809 = vsel %vm1786, %v1729, 0
        %v1812 = vsel %vm1786, %v1730, 0
        %v1815 = vsel %vm1786, %v1731, 0
        %v1818 = vsel %vm1786, %v1732, 0
        %v1821 = vsel %vm1786, %v1733, 0
        %v1824 = vsel %vm1786, %v1734, 0
        %v1827 = vsel %vm1786, %v1735, 0
        %v1830 = vsel %vm1786, %v1736, 0
        %v1833 = vsel %vm1786, %v1737, 0
        %v1836 = vsel %vm1786, %v1738, 0
        %v1839 = vsel %vm1786, %v1739, 0
        %v1842 = vsel %vm1786, %v1740, 0
        %v1845 = vsel %vm1786, %v1741, 0
        %v1848 = vsel %vm1786, %v1742, 0
        %v1851 = vsel %vm1786, %v1743, 0
        %v1854 = vsel %vm1786, %v1744, 0
        %v1857 = vsel %vm1786, %v1745, 0
        %v1860 = vsel %vm1786, %v1746, 0
        %v1863 = vsel %vm1786, %v1747, 0
        %v1866 = vsel %vm1786, %v1748, 0
        %v1869 = vsel %vm1786, %v1749, 0
        %v1872 = vsel %vm1786, %v1750, 0
        %v1875 = vsel %vm1786, %v1751, 0
        %v1878 = vsel %vm1786, %v1752, 0
        %v1881 = vsel %vm1786, %v1753, 0
        %1883 = vmatprep.subr.bf16.mxu0 0
        %1884 = vmatpush1.bf16.msra.mxu0 0
        %1885 = vmatprep.subr.bf16.mxu0 0
        %1886 = vmatpush1.bf16.msra.mxu0 0
        %1887 = vmatprep.subr.bf16.mxu0 0
        %1888 = vmatpush1.bf16.msra.mxu0 0
        %1889 = vmatprep.subr.bf16.mxu0 0
        %1890 = vmatpush1.bf16.msra.mxu0 0
        %1891 = vmatprep.subr.bf16.mxu0 0
        %1892 = vmatpush1.bf16.msra.mxu0 %v1781
        %1893 = vmatprep.subr.bf16.mxu0 0
        %1894 = vmatpush1.bf16.msra.mxu0 %v1780
        %1895 = vmatprep.subr.bf16.mxu0 0
        %1896 = vmatpush1.bf16.msra.mxu0 %v1779
        %1897 = vmatprep.subr.bf16.mxu0 0
        %1898 = vmatpush1.bf16.msra.mxu0 %v1778
        %1899 = vmatprep.subr.bf16.mxu0 0
        %1900 = vmatpush2.bf16.msra.mxu0 0
        %1901 = vmatprep.subr.bf16.mxu0 0
        %1902 = vmatpush2.bf16.msra.mxu0 0
        %1903 = vmatprep.subr.bf16.mxu0 0
        %1904 = vmatpush2.bf16.msra.mxu0 0
        %1905 = vmatprep.subr.bf16.mxu0 0
        %1906 = vmatpush2.bf16.msra.mxu0 0
        %1907 = vmatprep.subr.bf16.mxu0 0
        %1908 = vmatpush2.bf16.msra.mxu0 0
        %1909 = vmatprep.subr.bf16.mxu0 0
        %1910 = vmatpush2.bf16.msra.mxu0 0
        %1911 = vmatprep.subr.bf16.mxu0 0
        %1912 = vmatpush2.bf16.msra.mxu0 0
        %1913 = vmatprep.subr.bf16.mxu0 0
        %1914 = vmatpush2.bf16.msra.mxu0 0
        %1915 = vmatprep.mubr.bf16.mxu0 0
        %1916 = vmatmul.mubr.bf16.gmra.mxu0 %v1788
        %v1917 = vpop.f32.mrf.mxu0
        %v1918 = vadd.f32 0.0, %v1917
        %v1919 = vpop.f32.mrf.mxu0
        %v1920 = vpop.f32.mrf.mxu0
        %v1921 = vadd.f32 0.0, %v1920
        %v1922 = vpop.f32.mrf.mxu0
        %1923 = vmatprep.mubr.bf16.mxu0 0
        %1924 = vmatmul.mubr.bf16.gmra.mxu0 %v1791
        %v1925 = vpop.f32.mrf.mxu0
        %v1926 = vadd.f32 0.0, %v1925
        %v1927 = vpop.f32.mrf.mxu0
        %v1928 = vpop.f32.mrf.mxu0
        %v1929 = vadd.f32 0.0, %v1928
        %v1930 = vpop.f32.mrf.mxu0
        %1931 = vmatprep.mubr.bf16.mxu0 0
        %1932 = vmatmul.mubr.bf16.gmra.mxu0 %v1794
        %v1933 = vpop.f32.mrf.mxu0
        %v1934 = vadd.f32 0.0, %v1933
        %v1935 = vpop.f32.mrf.mxu0
        %v1936 = vpop.f32.mrf.mxu0
        %v1937 = vadd.f32 0.0, %v1936
        %v1938 = vpop.f32.mrf.mxu0
        %1939 = vmatprep.mubr.bf16.mxu0 0
        %1940 = vmatmul.mubr.bf16.gmra.mxu0 %v1797
        %v1941 = vpop.f32.mrf.mxu0
        %v1942 = vadd.f32 0.0, %v1941
        %v1943 = vpop.f32.mrf.mxu0
        %v1944 = vpop.f32.mrf.mxu0
        %v1945 = vadd.f32 0.0, %v1944
        %v1946 = vpop.f32.mrf.mxu0
        %1947 = vmatprep.mubr.bf16.mxu0 0
        %1948 = vmatmul.mubr.bf16.gmra.mxu0 %v1800
        %v1949 = vpop.f32.mrf.mxu0
        %v1950 = vadd.f32 0.0, %v1949
        %v1951 = vpop.f32.mrf.mxu0
        %v1952 = vpop.f32.mrf.mxu0
        %v1953 = vadd.f32 0.0, %v1952
        %v1954 = vpop.f32.mrf.mxu0
        %1955 = vmatprep.mubr.bf16.mxu0 0
        %1956 = vmatmul.mubr.bf16.gmra.mxu0 %v1803
        %v1957 = vpop.f32.mrf.mxu0
        %v1958 = vadd.f32 0.0, %v1957
        %v1959 = vpop.f32.mrf.mxu0
        %v1960 = vpop.f32.mrf.mxu0
        %v1961 = vadd.f32 0.0, %v1960
        %v1962 = vpop.f32.mrf.mxu0
        %1963 = vmatprep.mubr.bf16.mxu0 0
        %1964 = vmatmul.mubr.bf16.gmra.mxu0 %v1806
        %v1965 = vpop.f32.mrf.mxu0
        %v1966 = vadd.f32 0.0, %v1965
        %v1967 = vpop.f32.mrf.mxu0
        %v1968 = vpop.f32.mrf.mxu0
        %v1969 = vadd.f32 0.0, %v1968
        %v1970 = vpop.f32.mrf.mxu0
        %1971 = vmatprep.mubr.bf16.mxu0 0
        %1972 = vmatmul.mubr.bf16.gmra.mxu0 %v1809
        %v1973 = vpop.f32.mrf.mxu0
        %v1974 = vadd.f32 0.0, %v1973
        %v1975 = vpop.f32.mrf.mxu0
        %v1976 = vpop.f32.mrf.mxu0
        %v1977 = vadd.f32 0.0, %v1976
        %v1978 = vpop.f32.mrf.mxu0
        %1979 = vmatprep.mubr.bf16.mxu0 0
        %1980 = vmatmul.mubr.bf16.gmra.mxu0 %v1812
        %v1981 = vpop.f32.mrf.mxu0
        %v1982 = vadd.f32 0.0, %v1981
        %v1983 = vpop.f32.mrf.mxu0
        %v1984 = vpop.f32.mrf.mxu0
        %v1985 = vadd.f32 0.0, %v1984
        %v1986 = vpop.f32.mrf.mxu0
        %1987 = vmatprep.mubr.bf16.mxu0 0
        %1988 = vmatmul.mubr.bf16.gmra.mxu0 %v1815
        %v1989 = vpop.f32.mrf.mxu0
        %v1990 = vadd.f32 0.0, %v1989
        %v1991 = vpop.f32.mrf.mxu0
        %v1992 = vpop.f32.mrf.mxu0
        %v1993 = vadd.f32 0.0, %v1992
        %v1994 = vpop.f32.mrf.mxu0
        %1995 = vmatprep.mubr.bf16.mxu0 0
        %1996 = vmatmul.mubr.bf16.gmra.mxu0 %v1818
        %v1997 = vpop.f32.mrf.mxu0
        %v1998 = vadd.f32 0.0, %v1997
        %v1999 = vpop.f32.mrf.mxu0
        %v2000 = vpop.f32.mrf.mxu0
        %v2001 = vadd.f32 0.0, %v2000
        %v2002 = vpop.f32.mrf.mxu0
        %2003 = vmatprep.mubr.bf16.mxu0 0
        %2004 = vmatmul.mubr.bf16.gmra.mxu0 %v1821
        %v2005 = vpop.f32.mrf.mxu0
        %v2006 = vadd.f32 0.0, %v2005
        %v2007 = vpop.f32.mrf.mxu0
        %v2008 = vpop.f32.mrf.mxu0
        %v2009 = vadd.f32 0.0, %v2008
        %v2010 = vpop.f32.mrf.mxu0
        %2011 = vmatprep.mubr.bf16.mxu0 0
        %2012 = vmatmul.mubr.bf16.gmra.mxu0 %v1824
        %v2013 = vpop.f32.mrf.mxu0
        %v2014 = vadd.f32 0.0, %v2013
        %v2015 = vpop.f32.mrf.mxu0
        %v2016 = vpop.f32.mrf.mxu0
        %v2017 = vadd.f32 0.0, %v2016
        %v2018 = vpop.f32.mrf.mxu0
        %2019 = vmatprep.mubr.bf16.mxu0 0
        %2020 = vmatmul.mubr.bf16.gmra.mxu0 %v1827
        %v2021 = vpop.f32.mrf.mxu0
        %v2022 = vadd.f32 0.0, %v2021
        %v2023 = vpop.f32.mrf.mxu0
        %v2024 = vpop.f32.mrf.mxu0
        %v2025 = vadd.f32 0.0, %v2024
        %v2026 = vpop.f32.mrf.mxu0
        %2027 = vmatprep.mubr.bf16.mxu0 0
        %2028 = vmatmul.mubr.bf16.gmra.mxu0 %v1830
        %v2029 = vpop.f32.mrf.mxu0
        %v2030 = vadd.f32 0.0, %v2029
        %v2031 = vpop.f32.mrf.mxu0
        %v2032 = vpop.f32.mrf.mxu0
        %v2033 = vadd.f32 0.0, %v2032
        %v2034 = vpop.f32.mrf.mxu0
        %2035 = vmatprep.mubr.bf16.mxu0 0
        %2036 = vmatmul.mubr.bf16.gmra.mxu0 %v1833
        %v2037 = vpop.f32.mrf.mxu0
        %v2038 = vadd.f32 0.0, %v2037
        %v2039 = vpop.f32.mrf.mxu0
        %v2040 = vpop.f32.mrf.mxu0
        %v2041 = vadd.f32 0.0, %v2040
        %v2042 = vpop.f32.mrf.mxu0
        %2043 = vmatprep.mubr.bf16.mxu0 0
        %2044 = vmatmul.mubr.bf16.gmra.mxu0 %v1836
        %v2045 = vpop.f32.mrf.mxu0
        %v2046 = vadd.f32 0.0, %v2045
        %v2047 = vpop.f32.mrf.mxu0
        %v2048 = vpop.f32.mrf.mxu0
        %v2049 = vadd.f32 0.0, %v2048
        %v2050 = vpop.f32.mrf.mxu0
        %2051 = vmatprep.mubr.bf16.mxu0 0
        %2052 = vmatmul.mubr.bf16.gmra.mxu0 %v1839
        %v2053 = vpop.f32.mrf.mxu0
        %v2054 = vadd.f32 0.0, %v2053
        %v2055 = vpop.f32.mrf.mxu0
        %v2056 = vpop.f32.mrf.mxu0
        %v2057 = vadd.f32 0.0, %v2056
        %v2058 = vpop.f32.mrf.mxu0
        %2059 = vmatprep.mubr.bf16.mxu0 0
        %2060 = vmatmul.mubr.bf16.gmra.mxu0 %v1842
        %v2061 = vpop.f32.mrf.mxu0
        %v2062 = vadd.f32 0.0, %v2061
        %v2063 = vpop.f32.mrf.mxu0
        %v2064 = vpop.f32.mrf.mxu0
        %v2065 = vadd.f32 0.0, %v2064
        %v2066 = vpop.f32.mrf.mxu0
        %2067 = vmatprep.mubr.bf16.mxu0 0
        %2068 = vmatmul.mubr.bf16.gmra.mxu0 %v1845
        %v2069 = vpop.f32.mrf.mxu0
        %v2070 = vadd.f32 0.0, %v2069
        %v2071 = vpop.f32.mrf.mxu0
        %v2072 = vpop.f32.mrf.mxu0
        %v2073 = vadd.f32 0.0, %v2072
        %v2074 = vpop.f32.mrf.mxu0
        %2075 = vmatprep.mubr.bf16.mxu0 0
        %2076 = vmatmul.mubr.bf16.gmra.mxu0 %v1848
        %v2077 = vpop.f32.mrf.mxu0
        %v2078 = vadd.f32 0.0, %v2077
        %v2079 = vpop.f32.mrf.mxu0
        %v2080 = vpop.f32.mrf.mxu0
        %v2081 = vadd.f32 0.0, %v2080
        %v2082 = vpop.f32.mrf.mxu0
        %2083 = vmatprep.mubr.bf16.mxu0 0
        %2084 = vmatmul.mubr.bf16.gmra.mxu0 %v1851
        %v2085 = vpop.f32.mrf.mxu0
        %v2086 = vadd.f32 0.0, %v2085
        %v2087 = vpop.f32.mrf.mxu0
        %v2088 = vpop.f32.mrf.mxu0
        %v2089 = vadd.f32 0.0, %v2088
        %v2090 = vpop.f32.mrf.mxu0
        %2091 = vmatprep.mubr.bf16.mxu0 0
        %2092 = vmatmul.mubr.bf16.gmra.mxu0 %v1854
        %v2093 = vpop.f32.mrf.mxu0
        %v2094 = vadd.f32 0.0, %v2093
        %v2095 = vpop.f32.mrf.mxu0
        %v2096 = vpop.f32.mrf.mxu0
        %v2097 = vadd.f32 0.0, %v2096
        %v2098 = vpop.f32.mrf.mxu0
        %2099 = vmatprep.mubr.bf16.mxu0 0
        %2100 = vmatmul.mubr.bf16.gmra.mxu0 %v1857
        %v2101 = vpop.f32.mrf.mxu0
        %v2102 = vadd.f32 0.0, %v2101
        %v2103 = vpop.f32.mrf.mxu0
        %v2104 = vpop.f32.mrf.mxu0
        %v2105 = vadd.f32 0.0, %v2104
        %v2106 = vpop.f32.mrf.mxu0
        %2107 = vmatprep.mubr.bf16.mxu0 0
        %2108 = vmatmul.mubr.bf16.gmra.mxu0 %v1860
        %v2109 = vpop.f32.mrf.mxu0
        %v2110 = vadd.f32 0.0, %v2109
        %v2111 = vpop.f32.mrf.mxu0
        %v2112 = vpop.f32.mrf.mxu0
        %v2113 = vadd.f32 0.0, %v2112
        %v2114 = vpop.f32.mrf.mxu0
        %2115 = vmatprep.mubr.bf16.mxu0 0
        %2116 = vmatmul.mubr.bf16.gmra.mxu0 %v1863
        %v2117 = vpop.f32.mrf.mxu0
        %v2118 = vadd.f32 0.0, %v2117
        %v2119 = vpop.f32.mrf.mxu0
        %v2120 = vpop.f32.mrf.mxu0
        %v2121 = vadd.f32 0.0, %v2120
        %v2122 = vpop.f32.mrf.mxu0
        %2123 = vmatprep.mubr.bf16.mxu0 0
        %2124 = vmatmul.mubr.bf16.gmra.mxu0 %v1866
        %v2125 = vpop.f32.mrf.mxu0
        %v2126 = vadd.f32 0.0, %v2125
        %v2127 = vpop.f32.mrf.mxu0
        %v2128 = vpop.f32.mrf.mxu0
        %v2129 = vadd.f32 0.0, %v2128
        %v2130 = vpop.f32.mrf.mxu0
        %2131 = vmatprep.mubr.bf16.mxu0 0
        %2132 = vmatmul.mubr.bf16.gmra.mxu0 %v1869
        %v2133 = vpop.f32.mrf.mxu0
        %v2134 = vadd.f32 0.0, %v2133
        %v2135 = vpop.f32.mrf.mxu0
        %v2136 = vpop.f32.mrf.mxu0
        %v2137 = vadd.f32 0.0, %v2136
        %v2138 = vpop.f32.mrf.mxu0
        %2139 = vmatprep.mubr.bf16.mxu0 0
        %2140 = vmatmul.mubr.bf16.gmra.mxu0 %v1872
        %v2141 = vpop.f32.mrf.mxu0
        %v2142 = vadd.f32 0.0, %v2141
        %v2143 = vpop.f32.mrf.mxu0
        %v2144 = vpop.f32.mrf.mxu0
        %v2145 = vadd.f32 0.0, %v2144
        %v2146 = vpop.f32.mrf.mxu0
        %2147 = vmatprep.mubr.bf16.mxu0 0
        %2148 = vmatmul.mubr.bf16.gmra.mxu0 %v1875
        %v2149 = vpop.f32.mrf.mxu0
        %v2150 = vadd.f32 0.0, %v2149
        %v2151 = vpop.f32.mrf.mxu0
        %v2152 = vpop.f32.mrf.mxu0
        %v2153 = vadd.f32 0.0, %v2152
        %v2154 = vpop.f32.mrf.mxu0
        %2155 = vmatprep.mubr.bf16.mxu0 0
        %2156 = vmatmul.mubr.bf16.gmra.mxu0 %v1878
        %v2157 = vpop.f32.mrf.mxu0
        %v2158 = vadd.f32 0.0, %v2157
        %v2159 = vpop.f32.mrf.mxu0
        %v2160 = vpop.f32.mrf.mxu0
        %v2161 = vadd.f32 0.0, %v2160
        %v2162 = vpop.f32.mrf.mxu0
        %2163 = vmatprep.mubr.bf16.mxu0 0
        %2164 = vmatmul.mubr.bf16.gmra.mxu0 %v1881
        %v2165 = vpop.f32.mrf.mxu0
        %v2166 = vadd.f32 0.0, %v2165
        %v2167 = vpop.f32.mrf.mxu0
        %v2168 = vpop.f32.mrf.mxu0
        %v2169 = vadd.f32 0.0, %v2168
        %v2170 = vpop.f32.mrf.mxu0
        %2171 = vdwg.mxu0
        %v2172 = vld [vmem:[#allocation10] sm:$0x1]
        %v2174 = vlaneseq
        %v2175 = vshrl.u32 %v2174, 7
        %v2176 = vsub.s32 0, %v2175
        %v2177 = vrot.slane %v2172, %v2176
        %v2179 = vmul.f32 %v1918, %v2177
        %v2180 = vmul.f32 %v1921, %v2177
        %v2181 = vmul.f32 %v1926, %v2177
        %v2182 = vmul.f32 %v1929, %v2177
        %v2183 = vmul.f32 %v1934, %v2177
        %v2184 = vmul.f32 %v1937, %v2177
        %v2185 = vmul.f32 %v1942, %v2177
        %v2186 = vmul.f32 %v1945, %v2177
        %v2187 = vmul.f32 %v1950, %v2177
        %v2188 = vmul.f32 %v1953, %v2177
        %v2189 = vmul.f32 %v1958, %v2177
        %v2190 = vmul.f32 %v1961, %v2177
        %v2191 = vmul.f32 %v1966, %v2177
        %v2192 = vmul.f32 %v1969, %v2177
        %v2193 = vmul.f32 %v1974, %v2177
        %v2194 = vmul.f32 %v1977, %v2177
        %v2195 = vmul.f32 %v1982, %v2177
        %v2196 = vmul.f32 %v1985, %v2177
        %v2197 = vmul.f32 %v1990, %v2177
        %v2198 = vmul.f32 %v1993, %v2177
        %v2199 = vmul.f32 %v1998, %v2177
        %v2200 = vmul.f32 %v2001, %v2177
        %v2201 = vmul.f32 %v2006, %v2177
        %v2202 = vmul.f32 %v2009, %v2177
        %v2203 = vmul.f32 %v2014, %v2177
        %v2204 = vmul.f32 %v2017, %v2177
        %v2205 = vmul.f32 %v2022, %v2177
        %v2206 = vmul.f32 %v2025, %v2177
        %v2207 = vmul.f32 %v2030, %v2177
        %v2208 = vmul.f32 %v2033, %v2177
        %v2209 = vmul.f32 %v2038, %v2177
        %v2210 = vmul.f32 %v2041, %v2177
        %v2211 = vmul.f32 %v2046, %v2177
        %v2212 = vmul.f32 %v2049, %v2177
        %v2213 = vmul.f32 %v2054, %v2177
        %v2214 = vmul.f32 %v2057, %v2177
        %v2215 = vmul.f32 %v2062, %v2177
        %v2216 = vmul.f32 %v2065, %v2177
        %v2217 = vmul.f32 %v2070, %v2177
        %v2218 = vmul.f32 %v2073, %v2177
        %v2219 = vmul.f32 %v2078, %v2177
        %v2220 = vmul.f32 %v2081, %v2177
        %v2221 = vmul.f32 %v2086, %v2177
        %v2222 = vmul.f32 %v2089, %v2177
        %v2223 = vmul.f32 %v2094, %v2177
        %v2224 = vmul.f32 %v2097, %v2177
        %v2225 = vmul.f32 %v2102, %v2177
        %v2226 = vmul.f32 %v2105, %v2177
        %v2227 = vmul.f32 %v2110, %v2177
        %v2228 = vmul.f32 %v2113, %v2177
        %v2229 = vmul.f32 %v2118, %v2177
        %v2230 = vmul.f32 %v2121, %v2177
        %v2231 = vmul.f32 %v2126, %v2177
        %v2232 = vmul.f32 %v2129, %v2177
        %v2233 = vmul.f32 %v2134, %v2177
        %v2234 = vmul.f32 %v2137, %v2177
        %v2235 = vmul.f32 %v2142, %v2177
        %v2236 = vmul.f32 %v2145, %v2177
        %v2237 = vmul.f32 %v2150, %v2177
        %v2238 = vmul.f32 %v2153, %v2177
        %v2239 = vmul.f32 %v2158, %v2177
        %v2240 = vmul.f32 %v2161, %v2177
        %v2241 = vmul.f32 %v2166, %v2177
        %v2242 = vmul.f32 %v2169, %v2177
        %v2243 = vld [vmem:[#allocation12] sm:$0x1]
        %v2245 = vlaneseq
        %v2246 = vshrl.u32 %v2245, 7
        %v2247 = vsub.s32 0, %v2246
        %v2248 = vrot.slane %v2243, %v2247
        %v2250 = vadd.f32 %v2179, %v2248
        %v2251 = vadd.f32 %v2180, %v2248
        %v2252 = vadd.f32 %v2181, %v2248
        %v2253 = vadd.f32 %v2182, %v2248
        %v2254 = vadd.f32 %v2183, %v2248
        %v2255 = vadd.f32 %v2184, %v2248
        %v2256 = vadd.f32 %v2185, %v2248
        %v2257 = vadd.f32 %v2186, %v2248
        %v2258 = vadd.f32 %v2187, %v2248
        %v2259 = vadd.f32 %v2188, %v2248
        %v2260 = vadd.f32 %v2189, %v2248
        %v2261 = vadd.f32 %v2190, %v2248
        %v2262 = vadd.f32 %v2191, %v2248
        %v2263 = vadd.f32 %v2192, %v2248
        %v2264 = vadd.f32 %v2193, %v2248
        %v2265 = vadd.f32 %v2194, %v2248
        %v2266 = vadd.f32 %v2195, %v2248
        %v2267 = vadd.f32 %v2196, %v2248
        %v2268 = vadd.f32 %v2197, %v2248
        %v2269 = vadd.f32 %v2198, %v2248
        %v2270 = vadd.f32 %v2199, %v2248
        %v2271 = vadd.f32 %v2200, %v2248
        %v2272 = vadd.f32 %v2201, %v2248
        %v2273 = vadd.f32 %v2202, %v2248
        %v2274 = vadd.f32 %v2203, %v2248
        %v2275 = vadd.f32 %v2204, %v2248
        %v2276 = vadd.f32 %v2205, %v2248
        %v2277 = vadd.f32 %v2206, %v2248
        %v2278 = vadd.f32 %v2207, %v2248
        %v2279 = vadd.f32 %v2208, %v2248
        %v2280 = vadd.f32 %v2209, %v2248
        %v2281 = vadd.f32 %v2210, %v2248
        %v2282 = vadd.f32 %v2211, %v2248
        %v2283 = vadd.f32 %v2212, %v2248
        %v2284 = vadd.f32 %v2213, %v2248
        %v2285 = vadd.f32 %v2214, %v2248
        %v2286 = vadd.f32 %v2215, %v2248
        %v2287 = vadd.f32 %v2216, %v2248
        %v2288 = vadd.f32 %v2217, %v2248
        %v2289 = vadd.f32 %v2218, %v2248
        %v2290 = vadd.f32 %v2219, %v2248
        %v2291 = vadd.f32 %v2220, %v2248
        %v2292 = vadd.f32 %v2221, %v2248
        %v2293 = vadd.f32 %v2222, %v2248
        %v2294 = vadd.f32 %v2223, %v2248
        %v2295 = vadd.f32 %v2224, %v2248
        %v2296 = vadd.f32 %v2225, %v2248
        %v2297 = vadd.f32 %v2226, %v2248
        %v2298 = vadd.f32 %v2227, %v2248
        %v2299 = vadd.f32 %v2228, %v2248
        %v2300 = vadd.f32 %v2229, %v2248
        %v2301 = vadd.f32 %v2230, %v2248
        %v2302 = vadd.f32 %v2231, %v2248
        %v2303 = vadd.f32 %v2232, %v2248
        %v2304 = vadd.f32 %v2233, %v2248
        %v2305 = vadd.f32 %v2234, %v2248
        %v2306 = vadd.f32 %v2235, %v2248
        %v2307 = vadd.f32 %v2236, %v2248
        %v2308 = vadd.f32 %v2237, %v2248
        %v2309 = vadd.f32 %v2238, %v2248
        %v2310 = vadd.f32 %v2239, %v2248
        %v2311 = vadd.f32 %v2240, %v2248
        %v2312 = vadd.f32 %v2241, %v2248
        %v2313 = vadd.f32 %v2242, %v2248
        %v2314 = vmax.f32 %v2250, 0.0
        %v2315 = vmax.f32 %v2251, 0.0
        %v2316 = vmax.f32 %v2252, 0.0
        %v2317 = vmax.f32 %v2253, 0.0
        %v2318 = vmax.f32 %v2254, 0.0
        %v2319 = vmax.f32 %v2255, 0.0
        %v2320 = vmax.f32 %v2256, 0.0
        %v2321 = vmax.f32 %v2257, 0.0
        %v2322 = vmax.f32 %v2258, 0.0
        %v2323 = vmax.f32 %v2259, 0.0
        %v2324 = vmax.f32 %v2260, 0.0
        %v2325 = vmax.f32 %v2261, 0.0
        %v2326 = vmax.f32 %v2262, 0.0
        %v2327 = vmax.f32 %v2263, 0.0
        %v2328 = vmax.f32 %v2264, 0.0
        %v2329 = vmax.f32 %v2265, 0.0
        %v2330 = vmax.f32 %v2266, 0.0
        %v2331 = vmax.f32 %v2267, 0.0
        %v2332 = vmax.f32 %v2268, 0.0
        %v2333 = vmax.f32 %v2269, 0.0
        %v2334 = vmax.f32 %v2270, 0.0
        %v2335 = vmax.f32 %v2271, 0.0
        %v2336 = vmax.f32 %v2272, 0.0
        %v2337 = vmax.f32 %v2273, 0.0
        %v2338 = vmax.f32 %v2274, 0.0
        %v2339 = vmax.f32 %v2275, 0.0
        %v2340 = vmax.f32 %v2276, 0.0
        %v2341 = vmax.f32 %v2277, 0.0
        %v2342 = vmax.f32 %v2278, 0.0
        %v2343 = vmax.f32 %v2279, 0.0
        %v2344 = vmax.f32 %v2280, 0.0
        %v2345 = vmax.f32 %v2281, 0.0
        %v2346 = vmax.f32 %v2282, 0.0
        %v2347 = vmax.f32 %v2283, 0.0
        %v2348 = vmax.f32 %v2284, 0.0
        %v2349 = vmax.f32 %v2285, 0.0
        %v2350 = vmax.f32 %v2286, 0.0
        %v2351 = vmax.f32 %v2287, 0.0
        %v2352 = vmax.f32 %v2288, 0.0
        %v2353 = vmax.f32 %v2289, 0.0
        %v2354 = vmax.f32 %v2290, 0.0
        %v2355 = vmax.f32 %v2291, 0.0
        %v2356 = vmax.f32 %v2292, 0.0
        %v2357 = vmax.f32 %v2293, 0.0
        %v2358 = vmax.f32 %v2294, 0.0
        %v2359 = vmax.f32 %v2295, 0.0
        %v2360 = vmax.f32 %v2296, 0.0
        %v2361 = vmax.f32 %v2297, 0.0
        %v2362 = vmax.f32 %v2298, 0.0
        %v2363 = vmax.f32 %v2299, 0.0
        %v2364 = vmax.f32 %v2300, 0.0
        %v2365 = vmax.f32 %v2301, 0.0
        %v2366 = vmax.f32 %v2302, 0.0
        %v2367 = vmax.f32 %v2303, 0.0
        %v2368 = vmax.f32 %v2304, 0.0
        %v2369 = vmax.f32 %v2305, 0.0
        %v2370 = vmax.f32 %v2306, 0.0
        %v2371 = vmax.f32 %v2307, 0.0
        %v2372 = vmax.f32 %v2308, 0.0
        %v2373 = vmax.f32 %v2309, 0.0
        %v2374 = vmax.f32 %v2310, 0.0
        %v2375 = vmax.f32 %v2311, 0.0
        %v2376 = vmax.f32 %v2312, 0.0
        %v2377 = vmax.f32 %v2313, 0.0
        %v2378 = vpack.c.bf16 %v2315, %v2314
        %v2379 = vpack.c.bf16 %v2317, %v2316
        %v2380 = vpack.c.bf16 %v2319, %v2318
        %v2381 = vpack.c.bf16 %v2321, %v2320
        %v2382 = vpack.c.bf16 %v2323, %v2322
        %v2383 = vpack.c.bf16 %v2325, %v2324
        %v2384 = vpack.c.bf16 %v2327, %v2326
        %v2385 = vpack.c.bf16 %v2329, %v2328
        %v2386 = vpack.c.bf16 %v2331, %v2330
        %v2387 = vpack.c.bf16 %v2333, %v2332
        %v2388 = vpack.c.bf16 %v2335, %v2334
        %v2389 = vpack.c.bf16 %v2337, %v2336
        %v2390 = vpack.c.bf16 %v2339, %v2338
        %v2391 = vpack.c.bf16 %v2341, %v2340
        %v2392 = vpack.c.bf16 %v2343, %v2342
        %v2393 = vpack.c.bf16 %v2345, %v2344
        %v2394 = vpack.c.bf16 %v2347, %v2346
        %v2395 = vpack.c.bf16 %v2349, %v2348
        %v2396 = vpack.c.bf16 %v2351, %v2350
        %v2397 = vpack.c.bf16 %v2353, %v2352
        %v2398 = vpack.c.bf16 %v2355, %v2354
        %v2399 = vpack.c.bf16 %v2357, %v2356
        %v2400 = vpack.c.bf16 %v2359, %v2358
        %v2401 = vpack.c.bf16 %v2361, %v2360
        %v2402 = vpack.c.bf16 %v2363, %v2362
        %v2403 = vpack.c.bf16 %v2365, %v2364
        %v2404 = vpack.c.bf16 %v2367, %v2366
        %v2405 = vpack.c.bf16 %v2369, %v2368
        %v2406 = vpack.c.bf16 %v2371, %v2370
        %v2407 = vpack.c.bf16 %v2373, %v2372
        %v2408 = vpack.c.bf16 %v2375, %v2374
        %v2409 = vpack.c.bf16 %v2377, %v2376
        %v2410 = vld [vmem:[#allocation13] sm:$0xff]
        %v2411 = vld [vmem:[#allocation13 + $0x8] sm:$0xff]
        %v2412 = vld [vmem:[#allocation13 + $0x10] sm:$0xff]
        %v2413 = vld [vmem:[#allocation13 + $0x18] sm:$0xff]
        %v2414 = vld [vmem:[#allocation13 + $0x20] sm:$0xff]
        %v2415 = vld [vmem:[#allocation13 + $0x28] sm:$0xff]
        %v2416 = vld [vmem:[#allocation13 + $0x30] sm:$0xff]
        %v2417 = vld [vmem:[#allocation13 + $0x38] sm:$0xff]
        %v2418 = vld [vmem:[#allocation13 + $0x40] sm:$0xff]
        %v2419 = vld [vmem:[#allocation13 + $0x48] sm:$0xff]
        %v2420 = vld [vmem:[#allocation13 + $0x50] sm:$0xff]
        %v2421 = vld [vmem:[#allocation13 + $0x58] sm:$0xff]
        %v2422 = vld [vmem:[#allocation13 + $0x60] sm:$0xff]
        %v2423 = vld [vmem:[#allocation13 + $0x68] sm:$0xff]
        %v2424 = vld [vmem:[#allocation13 + $0x70] sm:$0xff]
        %v2425 = vld [vmem:[#allocation13 + $0x78] sm:$0xff]
        %v2426 = vld [vmem:[#allocation13 + $0x80] sm:$0xff]
        %v2427 = vld [vmem:[#allocation13 + $0x88] sm:$0xff]
        %v2428 = vld [vmem:[#allocation13 + $0x90] sm:$0xff]
        %v2429 = vld [vmem:[#allocation13 + $0x98] sm:$0xff]
        %v2430 = vld [vmem:[#allocation13 + $0xa0] sm:$0xff]
        %v2431 = vld [vmem:[#allocation13 + $0xa8] sm:$0xff]
        %v2432 = vld [vmem:[#allocation13 + $0xb0] sm:$0xff]
        %v2433 = vld [vmem:[#allocation13 + $0xb8] sm:$0xff]
        %v2434 = vld [vmem:[#allocation13 + $0xc0] sm:$0xff]
        %v2435 = vld [vmem:[#allocation13 + $0xc8] sm:$0xff]
        %v2436 = vld [vmem:[#allocation13 + $0xd0] sm:$0xff]
        %v2437 = vld [vmem:[#allocation13 + $0xd8] sm:$0xff]
        %v2438 = vld [vmem:[#allocation13 + $0xe0] sm:$0xff]
        %v2439 = vld [vmem:[#allocation13 + $0xe8] sm:$0xff]
        %v2440 = vld [vmem:[#allocation13 + $0xf0] sm:$0xff]
        %v2441 = vld [vmem:[#allocation13 + $0xf8] sm:$0xff]
        %v2442 = vld [vmem:[#allocation13 + $0x100] sm:$0xff]
        %v2443 = vld [vmem:[#allocation13 + $0x108] sm:$0xff]
        %v2444 = vld [vmem:[#allocation13 + $0x110] sm:$0xff]
        %v2445 = vld [vmem:[#allocation13 + $0x118] sm:$0xff]
        %v2446 = vld [vmem:[#allocation13 + $0x120] sm:$0xff]
        %v2447 = vld [vmem:[#allocation13 + $0x128] sm:$0xff]
        %v2448 = vld [vmem:[#allocation13 + $0x130] sm:$0xff]
        %v2449 = vld [vmem:[#allocation13 + $0x138] sm:$0xff]
        %v2450 = vld [vmem:[#allocation13 + $0x140] sm:$0xff]
        %v2451 = vld [vmem:[#allocation13 + $0x148] sm:$0xff]
        %v2452 = vld [vmem:[#allocation13 + $0x150] sm:$0xff]
        %v2453 = vld [vmem:[#allocation13 + $0x158] sm:$0xff]
        %v2454 = vld [vmem:[#allocation13 + $0x160] sm:$0xff]
        %v2455 = vld [vmem:[#allocation13 + $0x168] sm:$0xff]
        %v2456 = vld [vmem:[#allocation13 + $0x170] sm:$0xff]
        %v2457 = vld [vmem:[#allocation13 + $0x178] sm:$0xff]
        %v2458 = vld [vmem:[#allocation13 + $0x180] sm:$0xff]
        %v2459 = vld [vmem:[#allocation13 + $0x188] sm:$0xff]
        %v2460 = vld [vmem:[#allocation13 + $0x190] sm:$0xff]
        %v2461 = vld [vmem:[#allocation13 + $0x198] sm:$0xff]
        %v2462 = vld [vmem:[#allocation13 + $0x1a0] sm:$0xff]
        %v2463 = vld [vmem:[#allocation13 + $0x1a8] sm:$0xff]
        %v2464 = vld [vmem:[#allocation13 + $0x1b0] sm:$0xff]
        %v2465 = vld [vmem:[#allocation13 + $0x1b8] sm:$0xff]
        %v2466 = vld [vmem:[#allocation13 + $0x1c0] sm:$0xff]
        %v2467 = vld [vmem:[#allocation13 + $0x1c8] sm:$0xff]
        %v2468 = vld [vmem:[#allocation13 + $0x1d0] sm:$0xff]
        %v2469 = vld [vmem:[#allocation13 + $0x1d8] sm:$0xff]
        %v2470 = vld [vmem:[#allocation13 + $0x1e0] sm:$0xff]
        %v2471 = vld [vmem:[#allocation13 + $0x1e8] sm:$0xff]
        %v2472 = vld [vmem:[#allocation13 + $0x1f0] sm:$0xff]
        %v2473 = vld [vmem:[#allocation13 + $0x1f8] sm:$0xff]
        %v2538 = vunpack.c.l.b16 %v2410
        %v2539 = vunpack.c.h.b16 %v2410
        %v2540 = vunpack.c.l.b16 %v2411
        %v2541 = vunpack.c.h.b16 %v2411
        %v2542 = vunpack.c.l.b16 %v2412
        %v2543 = vunpack.c.h.b16 %v2412
        %v2544 = vunpack.c.l.b16 %v2413
        %v2545 = vunpack.c.h.b16 %v2413
        %v2546 = vunpack.c.l.b16 %v2414
        %v2547 = vunpack.c.h.b16 %v2414
        %v2548 = vunpack.c.l.b16 %v2415
        %v2549 = vunpack.c.h.b16 %v2415
        %v2550 = vunpack.c.l.b16 %v2416
        %v2551 = vunpack.c.h.b16 %v2416
        %v2552 = vunpack.c.l.b16 %v2417
        %v2553 = vunpack.c.h.b16 %v2417
        %v2554 = vunpack.c.l.b16 %v2418
        %v2555 = vunpack.c.h.b16 %v2418
        %v2556 = vunpack.c.l.b16 %v2419
        %v2557 = vunpack.c.h.b16 %v2419
        %v2558 = vunpack.c.l.b16 %v2420
        %v2559 = vunpack.c.h.b16 %v2420
        %v2560 = vunpack.c.l.b16 %v2421
        %v2561 = vunpack.c.h.b16 %v2421
        %v2562 = vunpack.c.l.b16 %v2422
        %v2563 = vunpack.c.h.b16 %v2422
        %v2564 = vunpack.c.l.b16 %v2423
        %v2565 = vunpack.c.h.b16 %v2423
        %v2566 = vunpack.c.l.b16 %v2424
        %v2567 = vunpack.c.h.b16 %v2424
        %v2568 = vunpack.c.l.b16 %v2425
        %v2569 = vunpack.c.h.b16 %v2425
        %v2570 = vunpack.c.l.b16 %v2426
        %v2571 = vunpack.c.h.b16 %v2426
        %v2572 = vunpack.c.l.b16 %v2427
        %v2573 = vunpack.c.h.b16 %v2427
        %v2574 = vunpack.c.l.b16 %v2428
        %v2575 = vunpack.c.h.b16 %v2428
        %v2576 = vunpack.c.l.b16 %v2429
        %v2577 = vunpack.c.h.b16 %v2429
        %v2578 = vunpack.c.l.b16 %v2430
        %v2579 = vunpack.c.h.b16 %v2430
        %v2580 = vunpack.c.l.b16 %v2431
        %v2581 = vunpack.c.h.b16 %v2431
        %v2582 = vunpack.c.l.b16 %v2432
        %v2583 = vunpack.c.h.b16 %v2432
        %v2584 = vunpack.c.l.b16 %v2433
        %v2585 = vunpack.c.h.b16 %v2433
        %v2586 = vunpack.c.l.b16 %v2434
        %v2587 = vunpack.c.h.b16 %v2434
        %v2588 = vunpack.c.l.b16 %v2435
        %v2589 = vunpack.c.h.b16 %v2435
        %v2590 = vunpack.c.l.b16 %v2436
        %v2591 = vunpack.c.h.b16 %v2436
        %v2592 = vunpack.c.l.b16 %v2437
        %v2593 = vunpack.c.h.b16 %v2437
        %v2594 = vunpack.c.l.b16 %v2438
        %v2595 = vunpack.c.h.b16 %v2438
        %v2596 = vunpack.c.l.b16 %v2439
        %v2597 = vunpack.c.h.b16 %v2439
        %v2598 = vunpack.c.l.b16 %v2440
        %v2599 = vunpack.c.h.b16 %v2440
        %v2600 = vunpack.c.l.b16 %v2441
        %v2601 = vunpack.c.h.b16 %v2441
        %v2602 = vunpack.c.l.b16 %v2442
        %v2603 = vunpack.c.h.b16 %v2442
        %v2604 = vunpack.c.l.b16 %v2443
        %v2605 = vunpack.c.h.b16 %v2443
        %v2606 = vunpack.c.l.b16 %v2444
        %v2607 = vunpack.c.h.b16 %v2444
        %v2608 = vunpack.c.l.b16 %v2445
        %v2609 = vunpack.c.h.b16 %v2445
        %v2610 = vunpack.c.l.b16 %v2446
        %v2611 = vunpack.c.h.b16 %v2446
        %v2612 = vunpack.c.l.b16 %v2447
        %v2613 = vunpack.c.h.b16 %v2447
        %v2614 = vunpack.c.l.b16 %v2448
        %v2615 = vunpack.c.h.b16 %v2448
        %v2616 = vunpack.c.l.b16 %v2449
        %v2617 = vunpack.c.h.b16 %v2449
        %v2618 = vunpack.c.l.b16 %v2450
        %v2619 = vunpack.c.h.b16 %v2450
        %v2620 = vunpack.c.l.b16 %v2451
        %v2621 = vunpack.c.h.b16 %v2451
        %v2622 = vunpack.c.l.b16 %v2452
        %v2623 = vunpack.c.h.b16 %v2452
        %v2624 = vunpack.c.l.b16 %v2453
        %v2625 = vunpack.c.h.b16 %v2453
        %v2626 = vunpack.c.l.b16 %v2454
        %v2627 = vunpack.c.h.b16 %v2454
        %v2628 = vunpack.c.l.b16 %v2455
        %v2629 = vunpack.c.h.b16 %v2455
        %v2630 = vunpack.c.l.b16 %v2456
        %v2631 = vunpack.c.h.b16 %v2456
        %v2632 = vunpack.c.l.b16 %v2457
        %v2633 = vunpack.c.h.b16 %v2457
        %v2634 = vunpack.c.l.b16 %v2458
        %v2635 = vunpack.c.h.b16 %v2458
        %v2636 = vunpack.c.l.b16 %v2459
        %v2637 = vunpack.c.h.b16 %v2459
        %v2638 = vunpack.c.l.b16 %v2460
        %v2639 = vunpack.c.h.b16 %v2460
        %v2640 = vunpack.c.l.b16 %v2461
        %v2641 = vunpack.c.h.b16 %v2461
        %v2642 = vunpack.c.l.b16 %v2462
        %v2643 = vunpack.c.h.b16 %v2462
        %v2644 = vunpack.c.l.b16 %v2463
        %v2645 = vunpack.c.h.b16 %v2463
        %v2646 = vunpack.c.l.b16 %v2464
        %v2647 = vunpack.c.h.b16 %v2464
        %v2648 = vunpack.c.l.b16 %v2465
        %v2649 = vunpack.c.h.b16 %v2465
        %v2650 = vunpack.c.l.b16 %v2466
        %v2651 = vunpack.c.h.b16 %v2466
        %v2652 = vunpack.c.l.b16 %v2467
        %v2653 = vunpack.c.h.b16 %v2467
        %v2654 = vunpack.c.l.b16 %v2468
        %v2655 = vunpack.c.h.b16 %v2468
        %v2656 = vunpack.c.l.b16 %v2469
        %v2657 = vunpack.c.h.b16 %v2469
        %v2658 = vunpack.c.l.b16 %v2470
        %v2659 = vunpack.c.h.b16 %v2470
        %v2660 = vunpack.c.l.b16 %v2471
        %v2661 = vunpack.c.h.b16 %v2471
        %v2662 = vunpack.c.l.b16 %v2472
        %v2663 = vunpack.c.h.b16 %v2472
        %v2664 = vunpack.c.l.b16 %v2473
        %v2665 = vunpack.c.h.b16 %v2473
        %v2666 = vpack.c.b16 %v2546, %v2538
        %v2667 = vpack.c.b16 %v2547, %v2539
        %v2668 = vpack.c.b16 %v2548, %v2540
        %v2669 = vpack.c.b16 %v2549, %v2541
        %v2670 = vpack.c.b16 %v2550, %v2542
        %v2671 = vpack.c.b16 %v2551, %v2543
        %v2672 = vpack.c.b16 %v2552, %v2544
        %v2673 = vpack.c.b16 %v2553, %v2545
        %v2674 = vpack.c.b16 %v2562, %v2554
        %v2675 = vpack.c.b16 %v2563, %v2555
        %v2676 = vpack.c.b16 %v2564, %v2556
        %v2677 = vpack.c.b16 %v2565, %v2557
        %v2678 = vpack.c.b16 %v2566, %v2558
        %v2679 = vpack.c.b16 %v2567, %v2559
        %v2680 = vpack.c.b16 %v2568, %v2560
        %v2681 = vpack.c.b16 %v2569, %v2561
        %v2682 = vpack.c.b16 %v2578, %v2570
        %v2683 = vpack.c.b16 %v2579, %v2571
        %v2684 = vpack.c.b16 %v2580, %v2572
        %v2685 = vpack.c.b16 %v2581, %v2573
        %v2686 = vpack.c.b16 %v2582, %v2574
        %v2687 = vpack.c.b16 %v2583, %v2575
        %v2688 = vpack.c.b16 %v2584, %v2576
        %v2689 = vpack.c.b16 %v2585, %v2577
        %v2690 = vpack.c.b16 %v2594, %v2586
        %v2691 = vpack.c.b16 %v2595, %v2587
        %v2692 = vpack.c.b16 %v2596, %v2588
        %v2693 = vpack.c.b16 %v2597, %v2589
        %v2694 = vpack.c.b16 %v2598, %v2590
        %v2695 = vpack.c.b16 %v2599, %v2591
        %v2696 = vpack.c.b16 %v2600, %v2592
        %v2697 = vpack.c.b16 %v2601, %v2593
        %v2698 = vpack.c.b16 %v2610, %v2602
        %v2699 = vpack.c.b16 %v2611, %v2603
        %v2700 = vpack.c.b16 %v2612, %v2604
        %v2701 = vpack.c.b16 %v2613, %v2605
        %v2702 = vpack.c.b16 %v2614, %v2606
        %v2703 = vpack.c.b16 %v2615, %v2607
        %v2704 = vpack.c.b16 %v2616, %v2608
        %v2705 = vpack.c.b16 %v2617, %v2609
        %v2706 = vpack.c.b16 %v2626, %v2618
        %v2707 = vpack.c.b16 %v2627, %v2619
        %v2708 = vpack.c.b16 %v2628, %v2620
        %v2709 = vpack.c.b16 %v2629, %v2621
        %v2710 = vpack.c.b16 %v2630, %v2622
        %v2711 = vpack.c.b16 %v2631, %v2623
        %v2712 = vpack.c.b16 %v2632, %v2624
        %v2713 = vpack.c.b16 %v2633, %v2625
        %v2714 = vpack.c.b16 %v2642, %v2634
        %v2715 = vpack.c.b16 %v2643, %v2635
        %v2716 = vpack.c.b16 %v2644, %v2636
        %v2717 = vpack.c.b16 %v2645, %v2637
        %v2718 = vpack.c.b16 %v2646, %v2638
        %v2719 = vpack.c.b16 %v2647, %v2639
        %v2720 = vpack.c.b16 %v2648, %v2640
        %v2721 = vpack.c.b16 %v2649, %v2641
        %v2722 = vpack.c.b16 %v2658, %v2650
        %v2723 = vpack.c.b16 %v2659, %v2651
        %v2724 = vpack.c.b16 %v2660, %v2652
        %v2725 = vpack.c.b16 %v2661, %v2653
        %v2726 = vpack.c.b16 %v2662, %v2654
        %v2727 = vpack.c.b16 %v2663, %v2655
        %v2728 = vpack.c.b16 %v2664, %v2656
        %v2729 = vpack.c.b16 %v2665, %v2657
        %2794 = vmatprep.subr.bf16.mxu0 %v2723
        %2795 = vmatpush1.bf16.msra.mxu0 %v2722
        %2796 = vmatprep.subr.bf16.mxu0 %v2715
        %2797 = vmatpush1.bf16.msra.mxu0 %v2714
        %2798 = vmatprep.subr.bf16.mxu0 %v2707
        %2799 = vmatpush1.bf16.msra.mxu0 %v2706
        %2800 = vmatprep.subr.bf16.mxu0 %v2699
        %2801 = vmatpush1.bf16.msra.mxu0 %v2698
        %2802 = vmatprep.subr.bf16.mxu0 %v2691
        %2803 = vmatpush1.bf16.msra.mxu0 %v2690
        %2804 = vmatprep.subr.bf16.mxu0 %v2683
        %2805 = vmatpush1.bf16.msra.mxu0 %v2682
        %2806 = vmatprep.subr.bf16.mxu0 %v2675
        %2807 = vmatpush1.bf16.msra.mxu0 %v2674
        %2808 = vmatprep.subr.bf16.mxu0 %v2667
        %2809 = vmatpush1.bf16.msra.mxu0 %v2666
        %2810 = vmatprep.subr.bf16.mxu0 0
        %2811 = vmatpush2.bf16.msra.mxu0 0
        %2812 = vmatprep.subr.bf16.mxu0 0
        %2813 = vmatpush2.bf16.msra.mxu0 0
        %2814 = vmatprep.subr.bf16.mxu0 0
        %2815 = vmatpush2.bf16.msra.mxu0 0
        %2816 = vmatprep.subr.bf16.mxu0 0
        %2817 = vmatpush2.bf16.msra.mxu0 0
        %2818 = vmatprep.subr.bf16.mxu0 0
        %2819 = vmatpush2.bf16.msra.mxu0 0
        %2820 = vmatprep.subr.bf16.mxu0 0
        %2821 = vmatpush2.bf16.msra.mxu0 0
        %2822 = vmatprep.subr.bf16.mxu0 0
        %2823 = vmatpush2.bf16.msra.mxu0 0
        %2824 = vmatprep.subr.bf16.mxu0 0
        %2825 = vmatpush2.bf16.msra.mxu0 0
        %2826 = vmatprep.mubr.bf16.mxu0 0
        %2827 = vmatmul.mubr.bf16.gmra.mxu0 %v2378
        %v2828 = vpop.f32.mrf.mxu0
        %v2829 = vadd.f32 0.0, %v2828
        %v2830 = vpop.f32.mrf.mxu0
        %v2831 = vadd.f32 0.0, %v2830
        %v2832 = vpop.f32.mrf.mxu0
        %v2833 = vadd.f32 0.0, %v2832
        %v2834 = vpop.f32.mrf.mxu0
        %v2835 = vadd.f32 0.0, %v2834
        %2836 = vmatprep.mubr.bf16.mxu0 0
        %2837 = vmatmul.mubr.bf16.gmra.mxu0 %v2379
        %v2838 = vpop.f32.mrf.mxu0
        %v2839 = vadd.f32 0.0, %v2838
        %v2840 = vpop.f32.mrf.mxu0
        %v2841 = vadd.f32 0.0, %v2840
        %v2842 = vpop.f32.mrf.mxu0
        %v2843 = vadd.f32 0.0, %v2842
        %v2844 = vpop.f32.mrf.mxu0
        %v2845 = vadd.f32 0.0, %v2844
        %2846 = vmatprep.mubr.bf16.mxu0 0
        %2847 = vmatmul.mubr.bf16.gmra.mxu0 %v2380
        %v2848 = vpop.f32.mrf.mxu0
        %v2849 = vadd.f32 0.0, %v2848
        %v2850 = vpop.f32.mrf.mxu0
        %v2851 = vadd.f32 0.0, %v2850
        %v2852 = vpop.f32.mrf.mxu0
        %v2853 = vadd.f32 0.0, %v2852
        %v2854 = vpop.f32.mrf.mxu0
        %v2855 = vadd.f32 0.0, %v2854
        %2856 = vmatprep.mubr.bf16.mxu0 0
        %2857 = vmatmul.mubr.bf16.gmra.mxu0 %v2381
        %v2858 = vpop.f32.mrf.mxu0
        %v2859 = vadd.f32 0.0, %v2858
        %v2860 = vpop.f32.mrf.mxu0
        %v2861 = vadd.f32 0.0, %v2860
        %v2862 = vpop.f32.mrf.mxu0
        %v2863 = vadd.f32 0.0, %v2862
        %v2864 = vpop.f32.mrf.mxu0
        %v2865 = vadd.f32 0.0, %v2864
        %2866 = vmatprep.mubr.bf16.mxu0 0
        %2867 = vmatmul.mubr.bf16.gmra.mxu0 %v2382
        %v2868 = vpop.f32.mrf.mxu0
        %v2869 = vadd.f32 0.0, %v2868
        %v2870 = vpop.f32.mrf.mxu0
        %v2871 = vadd.f32 0.0, %v2870
        %v2872 = vpop.f32.mrf.mxu0
        %v2873 = vadd.f32 0.0, %v2872
        %v2874 = vpop.f32.mrf.mxu0
        %v2875 = vadd.f32 0.0, %v2874
        %2876 = vmatprep.mubr.bf16.mxu0 0
        %2877 = vmatmul.mubr.bf16.gmra.mxu0 %v2383
        %v2878 = vpop.f32.mrf.mxu0
        %v2879 = vadd.f32 0.0, %v2878
        %v2880 = vpop.f32.mrf.mxu0
        %v2881 = vadd.f32 0.0, %v2880
        %v2882 = vpop.f32.mrf.mxu0
        %v2883 = vadd.f32 0.0, %v2882
        %v2884 = vpop.f32.mrf.mxu0
        %v2885 = vadd.f32 0.0, %v2884
        %2886 = vmatprep.mubr.bf16.mxu0 0
        %2887 = vmatmul.mubr.bf16.gmra.mxu0 %v2384
        %v2888 = vpop.f32.mrf.mxu0
        %v2889 = vadd.f32 0.0, %v2888
        %v2890 = vpop.f32.mrf.mxu0
        %v2891 = vadd.f32 0.0, %v2890
        %v2892 = vpop.f32.mrf.mxu0
        %v2893 = vadd.f32 0.0, %v2892
        %v2894 = vpop.f32.mrf.mxu0
        %v2895 = vadd.f32 0.0, %v2894
        %2896 = vmatprep.mubr.bf16.mxu0 0
        %2897 = vmatmul.mubr.bf16.gmra.mxu0 %v2385
        %v2898 = vpop.f32.mrf.mxu0
        %v2899 = vadd.f32 0.0, %v2898
        %v2900 = vpop.f32.mrf.mxu0
        %v2901 = vadd.f32 0.0, %v2900
        %v2902 = vpop.f32.mrf.mxu0
        %v2903 = vadd.f32 0.0, %v2902
        %v2904 = vpop.f32.mrf.mxu0
        %v2905 = vadd.f32 0.0, %v2904
        %2906 = vmatprep.mubr.bf16.mxu0 0
        %2907 = vmatmul.mubr.bf16.gmra.mxu0 %v2386
        %v2908 = vpop.f32.mrf.mxu0
        %v2909 = vadd.f32 0.0, %v2908
        %v2910 = vpop.f32.mrf.mxu0
        %v2911 = vadd.f32 0.0, %v2910
        %v2912 = vpop.f32.mrf.mxu0
        %v2913 = vadd.f32 0.0, %v2912
        %v2914 = vpop.f32.mrf.mxu0
        %v2915 = vadd.f32 0.0, %v2914
        %2916 = vmatprep.mubr.bf16.mxu0 0
        %2917 = vmatmul.mubr.bf16.gmra.mxu0 %v2387
        %v2918 = vpop.f32.mrf.mxu0
        %v2919 = vadd.f32 0.0, %v2918
        %v2920 = vpop.f32.mrf.mxu0
        %v2921 = vadd.f32 0.0, %v2920
        %v2922 = vpop.f32.mrf.mxu0
        %v2923 = vadd.f32 0.0, %v2922
        %v2924 = vpop.f32.mrf.mxu0
        %v2925 = vadd.f32 0.0, %v2924
        %2926 = vmatprep.mubr.bf16.mxu0 0
        %2927 = vmatmul.mubr.bf16.gmra.mxu0 %v2388
        %v2928 = vpop.f32.mrf.mxu0
        %v2929 = vadd.f32 0.0, %v2928
        %v2930 = vpop.f32.mrf.mxu0
        %v2931 = vadd.f32 0.0, %v2930
        %v2932 = vpop.f32.mrf.mxu0
        %v2933 = vadd.f32 0.0, %v2932
        %v2934 = vpop.f32.mrf.mxu0
        %v2935 = vadd.f32 0.0, %v2934
        %2936 = vmatprep.mubr.bf16.mxu0 0
        %2937 = vmatmul.mubr.bf16.gmra.mxu0 %v2389
        %v2938 = vpop.f32.mrf.mxu0
        %v2939 = vadd.f32 0.0, %v2938
        %v2940 = vpop.f32.mrf.mxu0
        %v2941 = vadd.f32 0.0, %v2940
        %v2942 = vpop.f32.mrf.mxu0
        %v2943 = vadd.f32 0.0, %v2942
        %v2944 = vpop.f32.mrf.mxu0
        %v2945 = vadd.f32 0.0, %v2944
        %2946 = vmatprep.mubr.bf16.mxu0 0
        %2947 = vmatmul.mubr.bf16.gmra.mxu0 %v2390
        %v2948 = vpop.f32.mrf.mxu0
        %v2949 = vadd.f32 0.0, %v2948
        %v2950 = vpop.f32.mrf.mxu0
        %v2951 = vadd.f32 0.0, %v2950
        %v2952 = vpop.f32.mrf.mxu0
        %v2953 = vadd.f32 0.0, %v2952
        %v2954 = vpop.f32.mrf.mxu0
        %v2955 = vadd.f32 0.0, %v2954
        %2956 = vmatprep.mubr.bf16.mxu0 0
        %2957 = vmatmul.mubr.bf16.gmra.mxu0 %v2391
        %v2958 = vpop.f32.mrf.mxu0
        %v2959 = vadd.f32 0.0, %v2958
        %v2960 = vpop.f32.mrf.mxu0
        %v2961 = vadd.f32 0.0, %v2960
        %v2962 = vpop.f32.mrf.mxu0
        %v2963 = vadd.f32 0.0, %v2962
        %v2964 = vpop.f32.mrf.mxu0
        %v2965 = vadd.f32 0.0, %v2964
        %2966 = vmatprep.mubr.bf16.mxu0 0
        %2967 = vmatmul.mubr.bf16.gmra.mxu0 %v2392
        %v2968 = vpop.f32.mrf.mxu0
        %v2969 = vadd.f32 0.0, %v2968
        %v2970 = vpop.f32.mrf.mxu0
        %v2971 = vadd.f32 0.0, %v2970
        %v2972 = vpop.f32.mrf.mxu0
        %v2973 = vadd.f32 0.0, %v2972
        %v2974 = vpop.f32.mrf.mxu0
        %v2975 = vadd.f32 0.0, %v2974
        %2976 = vmatprep.mubr.bf16.mxu0 0
        %2977 = vmatmul.mubr.bf16.gmra.mxu0 %v2393
        %v2978 = vpop.f32.mrf.mxu0
        %v2979 = vadd.f32 0.0, %v2978
        %v2980 = vpop.f32.mrf.mxu0
        %v2981 = vadd.f32 0.0, %v2980
        %v2982 = vpop.f32.mrf.mxu0
        %v2983 = vadd.f32 0.0, %v2982
        %v2984 = vpop.f32.mrf.mxu0
        %v2985 = vadd.f32 0.0, %v2984
        %2986 = vmatprep.mubr.bf16.mxu0 0
        %2987 = vmatmul.mubr.bf16.gmra.mxu0 %v2394
        %v2988 = vpop.f32.mrf.mxu0
        %v2989 = vadd.f32 0.0, %v2988
        %v2990 = vpop.f32.mrf.mxu0
        %v2991 = vadd.f32 0.0, %v2990
        %v2992 = vpop.f32.mrf.mxu0
        %v2993 = vadd.f32 0.0, %v2992
        %v2994 = vpop.f32.mrf.mxu0
        %v2995 = vadd.f32 0.0, %v2994
        %2996 = vmatprep.mubr.bf16.mxu0 0
        %2997 = vmatmul.mubr.bf16.gmra.mxu0 %v2395
        %v2998 = vpop.f32.mrf.mxu0
        %v2999 = vadd.f32 0.0, %v2998
        %v3000 = vpop.f32.mrf.mxu0
        %v3001 = vadd.f32 0.0, %v3000
        %v3002 = vpop.f32.mrf.mxu0
        %v3003 = vadd.f32 0.0, %v3002
        %v3004 = vpop.f32.mrf.mxu0
        %v3005 = vadd.f32 0.0, %v3004
        %3006 = vmatprep.mubr.bf16.mxu0 0
        %3007 = vmatmul.mubr.bf16.gmra.mxu0 %v2396
        %v3008 = vpop.f32.mrf.mxu0
        %v3009 = vadd.f32 0.0, %v3008
        %v3010 = vpop.f32.mrf.mxu0
        %v3011 = vadd.f32 0.0, %v3010
        %v3012 = vpop.f32.mrf.mxu0
        %v3013 = vadd.f32 0.0, %v3012
        %v3014 = vpop.f32.mrf.mxu0
        %v3015 = vadd.f32 0.0, %v3014
        %3016 = vmatprep.mubr.bf16.mxu0 0
        %3017 = vmatmul.mubr.bf16.gmra.mxu0 %v2397
        %v3018 = vpop.f32.mrf.mxu0
        %v3019 = vadd.f32 0.0, %v3018
        %v3020 = vpop.f32.mrf.mxu0
        %v3021 = vadd.f32 0.0, %v3020
        %v3022 = vpop.f32.mrf.mxu0
        %v3023 = vadd.f32 0.0, %v3022
        %v3024 = vpop.f32.mrf.mxu0
        %v3025 = vadd.f32 0.0, %v3024
        %3026 = vmatprep.mubr.bf16.mxu0 0
        %3027 = vmatmul.mubr.bf16.gmra.mxu0 %v2398
        %v3028 = vpop.f32.mrf.mxu0
        %v3029 = vadd.f32 0.0, %v3028
        %v3030 = vpop.f32.mrf.mxu0
        %v3031 = vadd.f32 0.0, %v3030
        %v3032 = vpop.f32.mrf.mxu0
        %v3033 = vadd.f32 0.0, %v3032
        %v3034 = vpop.f32.mrf.mxu0
        %v3035 = vadd.f32 0.0, %v3034
        %3036 = vmatprep.mubr.bf16.mxu0 0
        %3037 = vmatmul.mubr.bf16.gmra.mxu0 %v2399
        %v3038 = vpop.f32.mrf.mxu0
        %v3039 = vadd.f32 0.0, %v3038
        %v3040 = vpop.f32.mrf.mxu0
        %v3041 = vadd.f32 0.0, %v3040
        %v3042 = vpop.f32.mrf.mxu0
        %v3043 = vadd.f32 0.0, %v3042
        %v3044 = vpop.f32.mrf.mxu0
        %v3045 = vadd.f32 0.0, %v3044
        %3046 = vmatprep.mubr.bf16.mxu0 0
        %3047 = vmatmul.mubr.bf16.gmra.mxu0 %v2400
        %v3048 = vpop.f32.mrf.mxu0
        %v3049 = vadd.f32 0.0, %v3048
        %v3050 = vpop.f32.mrf.mxu0
        %v3051 = vadd.f32 0.0, %v3050
        %v3052 = vpop.f32.mrf.mxu0
        %v3053 = vadd.f32 0.0, %v3052
        %v3054 = vpop.f32.mrf.mxu0
        %v3055 = vadd.f32 0.0, %v3054
        %3056 = vmatprep.mubr.bf16.mxu0 0
        %3057 = vmatmul.mubr.bf16.gmra.mxu0 %v2401
        %v3058 = vpop.f32.mrf.mxu0
        %v3059 = vadd.f32 0.0, %v3058
        %v3060 = vpop.f32.mrf.mxu0
        %v3061 = vadd.f32 0.0, %v3060
        %v3062 = vpop.f32.mrf.mxu0
        %v3063 = vadd.f32 0.0, %v3062
        %v3064 = vpop.f32.mrf.mxu0
        %v3065 = vadd.f32 0.0, %v3064
        %3066 = vmatprep.mubr.bf16.mxu0 0
        %3067 = vmatmul.mubr.bf16.gmra.mxu0 %v2402
        %v3068 = vpop.f32.mrf.mxu0
        %v3069 = vadd.f32 0.0, %v3068
        %v3070 = vpop.f32.mrf.mxu0
        %v3071 = vadd.f32 0.0, %v3070
        %v3072 = vpop.f32.mrf.mxu0
        %v3073 = vadd.f32 0.0, %v3072
        %v3074 = vpop.f32.mrf.mxu0
        %v3075 = vadd.f32 0.0, %v3074
        %3076 = vmatprep.mubr.bf16.mxu0 0
        %3077 = vmatmul.mubr.bf16.gmra.mxu0 %v2403
        %v3078 = vpop.f32.mrf.mxu0
        %v3079 = vadd.f32 0.0, %v3078
        %v3080 = vpop.f32.mrf.mxu0
        %v3081 = vadd.f32 0.0, %v3080
        %v3082 = vpop.f32.mrf.mxu0
        %v3083 = vadd.f32 0.0, %v3082
        %v3084 = vpop.f32.mrf.mxu0
        %v3085 = vadd.f32 0.0, %v3084
        %3086 = vmatprep.mubr.bf16.mxu0 0
        %3087 = vmatmul.mubr.bf16.gmra.mxu0 %v2404
        %v3088 = vpop.f32.mrf.mxu0
        %v3089 = vadd.f32 0.0, %v3088
        %v3090 = vpop.f32.mrf.mxu0
        %v3091 = vadd.f32 0.0, %v3090
        %v3092 = vpop.f32.mrf.mxu0
        %v3093 = vadd.f32 0.0, %v3092
        %v3094 = vpop.f32.mrf.mxu0
        %v3095 = vadd.f32 0.0, %v3094
        %3096 = vmatprep.mubr.bf16.mxu0 0
        %3097 = vmatmul.mubr.bf16.gmra.mxu0 %v2405
        %v3098 = vpop.f32.mrf.mxu0
        %v3099 = vadd.f32 0.0, %v3098
        %v3100 = vpop.f32.mrf.mxu0
        %v3101 = vadd.f32 0.0, %v3100
        %v3102 = vpop.f32.mrf.mxu0
        %v3103 = vadd.f32 0.0, %v3102
        %v3104 = vpop.f32.mrf.mxu0
        %v3105 = vadd.f32 0.0, %v3104
        %3106 = vmatprep.mubr.bf16.mxu0 0
        %3107 = vmatmul.mubr.bf16.gmra.mxu0 %v2406
        %v3108 = vpop.f32.mrf.mxu0
        %v3109 = vadd.f32 0.0, %v3108
        %v3110 = vpop.f32.mrf.mxu0
        %v3111 = vadd.f32 0.0, %v3110
        %v3112 = vpop.f32.mrf.mxu0
        %v3113 = vadd.f32 0.0, %v3112
        %v3114 = vpop.f32.mrf.mxu0
        %v3115 = vadd.f32 0.0, %v3114
        %3116 = vmatprep.mubr.bf16.mxu0 0
        %3117 = vmatmul.mubr.bf16.gmra.mxu0 %v2407
        %v3118 = vpop.f32.mrf.mxu0
        %v3119 = vadd.f32 0.0, %v3118
        %v3120 = vpop.f32.mrf.mxu0
        %v3121 = vadd.f32 0.0, %v3120
        %v3122 = vpop.f32.mrf.mxu0
        %v3123 = vadd.f32 0.0, %v3122
        %v3124 = vpop.f32.mrf.mxu0
        %v3125 = vadd.f32 0.0, %v3124
        %3126 = vmatprep.mubr.bf16.mxu0 0
        %3127 = vmatmul.mubr.bf16.gmra.mxu0 %v2408
        %v3128 = vpop.f32.mrf.mxu0
        %v3129 = vadd.f32 0.0, %v3128
        %v3130 = vpop.f32.mrf.mxu0
        %v3131 = vadd.f32 0.0, %v3130
        %v3132 = vpop.f32.mrf.mxu0
        %v3133 = vadd.f32 0.0, %v3132
        %v3134 = vpop.f32.mrf.mxu0
        %v3135 = vadd.f32 0.0, %v3134
        %3136 = vmatprep.mubr.bf16.mxu0 0
        %3137 = vmatmul.mubr.bf16.gmra.mxu0 %v2409
        %v3138 = vpop.f32.mrf.mxu0
        %v3139 = vadd.f32 0.0, %v3138
        %v3140 = vpop.f32.mrf.mxu0
        %v3141 = vadd.f32 0.0, %v3140
        %v3142 = vpop.f32.mrf.mxu0
        %v3143 = vadd.f32 0.0, %v3142
        %v3144 = vpop.f32.mrf.mxu0
        %v3145 = vadd.f32 0.0, %v3144
        %3146 = vdwg.mxu0
        %3147 = vmatprep.subr.bf16.mxu0 %v2725
        %3148 = vmatpush1.bf16.msra.mxu0 %v2724
        %3149 = vmatprep.subr.bf16.mxu0 %v2717
        %3150 = vmatpush1.bf16.msra.mxu0 %v2716
        %3151 = vmatprep.subr.bf16.mxu0 %v2709
        %3152 = vmatpush1.bf16.msra.mxu0 %v2708
        %3153 = vmatprep.subr.bf16.mxu0 %v2701
        %3154 = vmatpush1.bf16.msra.mxu0 %v2700
        %3155 = vmatprep.subr.bf16.mxu0 %v2693
        %3156 = vmatpush1.bf16.msra.mxu0 %v2692
        %3157 = vmatprep.subr.bf16.mxu0 %v2685
        %3158 = vmatpush1.bf16.msra.mxu0 %v2684
        %3159 = vmatprep.subr.bf16.mxu0 %v2677
        %3160 = vmatpush1.bf16.msra.mxu0 %v2676
        %3161 = vmatprep.subr.bf16.mxu0 %v2669
        %3162 = vmatpush1.bf16.msra.mxu0 %v2668
        %3163 = vmatprep.subr.bf16.mxu0 0
        %3164 = vmatpush2.bf16.msra.mxu0 0
        %3165 = vmatprep.subr.bf16.mxu0 0
        %3166 = vmatpush2.bf16.msra.mxu0 0
        %3167 = vmatprep.subr.bf16.mxu0 0
        %3168 = vmatpush2.bf16.msra.mxu0 0
        %3169 = vmatprep.subr.bf16.mxu0 0
        %3170 = vmatpush2.bf16.msra.mxu0 0
        %3171 = vmatprep.subr.bf16.mxu0 0
        %3172 = vmatpush2.bf16.msra.mxu0 0
        %3173 = vmatprep.subr.bf16.mxu0 0
        %3174 = vmatpush2.bf16.msra.mxu0 0
        %3175 = vmatprep.subr.bf16.mxu0 0
        %3176 = vmatpush2.bf16.msra.mxu0 0
        %3177 = vmatprep.subr.bf16.mxu0 0
        %3178 = vmatpush2.bf16.msra.mxu0 0
        %3179 = vmatprep.mubr.bf16.mxu0 0
        %3180 = vmatmul.mubr.bf16.gmra.mxu0 %v2378
        %v3181 = vpop.f32.mrf.mxu0
        %v3182 = vadd.f32 0.0, %v3181
        %v3183 = vpop.f32.mrf.mxu0
        %v3184 = vadd.f32 0.0, %v3183
        %v3185 = vpop.f32.mrf.mxu0
        %v3186 = vadd.f32 0.0, %v3185
        %v3187 = vpop.f32.mrf.mxu0
        %v3188 = vadd.f32 0.0, %v3187
        %3189 = vmatprep.mubr.bf16.mxu0 0
        %3190 = vmatmul.mubr.bf16.gmra.mxu0 %v2379
        %v3191 = vpop.f32.mrf.mxu0
        %v3192 = vadd.f32 0.0, %v3191
        %v3193 = vpop.f32.mrf.mxu0
        %v3194 = vadd.f32 0.0, %v3193
        %v3195 = vpop.f32.mrf.mxu0
        %v3196 = vadd.f32 0.0, %v3195
        %v3197 = vpop.f32.mrf.mxu0
        %v3198 = vadd.f32 0.0, %v3197
        %3199 = vmatprep.mubr.bf16.mxu0 0
        %3200 = vmatmul.mubr.bf16.gmra.mxu0 %v2380
        %v3201 = vpop.f32.mrf.mxu0
        %v3202 = vadd.f32 0.0, %v3201
        %v3203 = vpop.f32.mrf.mxu0
        %v3204 = vadd.f32 0.0, %v3203
        %v3205 = vpop.f32.mrf.mxu0
        %v3206 = vadd.f32 0.0, %v3205
        %v3207 = vpop.f32.mrf.mxu0
        %v3208 = vadd.f32 0.0, %v3207
        %3209 = vmatprep.mubr.bf16.mxu0 0
        %3210 = vmatmul.mubr.bf16.gmra.mxu0 %v2381
        %v3211 = vpop.f32.mrf.mxu0
        %v3212 = vadd.f32 0.0, %v3211
        %v3213 = vpop.f32.mrf.mxu0
        %v3214 = vadd.f32 0.0, %v3213
        %v3215 = vpop.f32.mrf.mxu0
        %v3216 = vadd.f32 0.0, %v3215
        %v3217 = vpop.f32.mrf.mxu0
        %v3218 = vadd.f32 0.0, %v3217
        %3219 = vmatprep.mubr.bf16.mxu0 0
        %3220 = vmatmul.mubr.bf16.gmra.mxu0 %v2382
        %v3221 = vpop.f32.mrf.mxu0
        %v3222 = vadd.f32 0.0, %v3221
        %v3223 = vpop.f32.mrf.mxu0
        %v3224 = vadd.f32 0.0, %v3223
        %v3225 = vpop.f32.mrf.mxu0
        %v3226 = vadd.f32 0.0, %v3225
        %v3227 = vpop.f32.mrf.mxu0
        %v3228 = vadd.f32 0.0, %v3227
        %3229 = vmatprep.mubr.bf16.mxu0 0
        %3230 = vmatmul.mubr.bf16.gmra.mxu0 %v2383
        %v3231 = vpop.f32.mrf.mxu0
        %v3232 = vadd.f32 0.0, %v3231
        %v3233 = vpop.f32.mrf.mxu0
        %v3234 = vadd.f32 0.0, %v3233
        %v3235 = vpop.f32.mrf.mxu0
        %v3236 = vadd.f32 0.0, %v3235
        %v3237 = vpop.f32.mrf.mxu0
        %v3238 = vadd.f32 0.0, %v3237
        %3239 = vmatprep.mubr.bf16.mxu0 0
        %3240 = vmatmul.mubr.bf16.gmra.mxu0 %v2384
        %v3241 = vpop.f32.mrf.mxu0
        %v3242 = vadd.f32 0.0, %v3241
        %v3243 = vpop.f32.mrf.mxu0
        %v3244 = vadd.f32 0.0, %v3243
        %v3245 = vpop.f32.mrf.mxu0
        %v3246 = vadd.f32 0.0, %v3245
        %v3247 = vpop.f32.mrf.mxu0
        %v3248 = vadd.f32 0.0, %v3247
        %3249 = vmatprep.mubr.bf16.mxu0 0
        %3250 = vmatmul.mubr.bf16.gmra.mxu0 %v2385
        %v3251 = vpop.f32.mrf.mxu0
        %v3252 = vadd.f32 0.0, %v3251
        %v3253 = vpop.f32.mrf.mxu0
        %v3254 = vadd.f32 0.0, %v3253
        %v3255 = vpop.f32.mrf.mxu0
        %v3256 = vadd.f32 0.0, %v3255
        %v3257 = vpop.f32.mrf.mxu0
        %v3258 = vadd.f32 0.0, %v3257
        %3259 = vmatprep.mubr.bf16.mxu0 0
        %3260 = vmatmul.mubr.bf16.gmra.mxu0 %v2386
        %v3261 = vpop.f32.mrf.mxu0
        %v3262 = vadd.f32 0.0, %v3261
        %v3263 = vpop.f32.mrf.mxu0
        %v3264 = vadd.f32 0.0, %v3263
        %v3265 = vpop.f32.mrf.mxu0
        %v3266 = vadd.f32 0.0, %v3265
        %v3267 = vpop.f32.mrf.mxu0
        %v3268 = vadd.f32 0.0, %v3267
        %3269 = vmatprep.mubr.bf16.mxu0 0
        %3270 = vmatmul.mubr.bf16.gmra.mxu0 %v2387
        %v3271 = vpop.f32.mrf.mxu0
        %v3272 = vadd.f32 0.0, %v3271
        %v3273 = vpop.f32.mrf.mxu0
        %v3274 = vadd.f32 0.0, %v3273
        %v3275 = vpop.f32.mrf.mxu0
        %v3276 = vadd.f32 0.0, %v3275
        %v3277 = vpop.f32.mrf.mxu0
        %v3278 = vadd.f32 0.0, %v3277
        %3279 = vmatprep.mubr.bf16.mxu0 0
        %3280 = vmatmul.mubr.bf16.gmra.mxu0 %v2388
        %v3281 = vpop.f32.mrf.mxu0
        %v3282 = vadd.f32 0.0, %v3281
        %v3283 = vpop.f32.mrf.mxu0
        %v3284 = vadd.f32 0.0, %v3283
        %v3285 = vpop.f32.mrf.mxu0
        %v3286 = vadd.f32 0.0, %v3285
        %v3287 = vpop.f32.mrf.mxu0
        %v3288 = vadd.f32 0.0, %v3287
        %3289 = vmatprep.mubr.bf16.mxu0 0
        %3290 = vmatmul.mubr.bf16.gmra.mxu0 %v2389
        %v3291 = vpop.f32.mrf.mxu0
        %v3292 = vadd.f32 0.0, %v3291
        %v3293 = vpop.f32.mrf.mxu0
        %v3294 = vadd.f32 0.0, %v3293
        %v3295 = vpop.f32.mrf.mxu0
        %v3296 = vadd.f32 0.0, %v3295
        %v3297 = vpop.f32.mrf.mxu0
        %v3298 = vadd.f32 0.0, %v3297
        %3299 = vmatprep.mubr.bf16.mxu0 0
        %3300 = vmatmul.mubr.bf16.gmra.mxu0 %v2390
        %v3301 = vpop.f32.mrf.mxu0
        %v3302 = vadd.f32 0.0, %v3301
        %v3303 = vpop.f32.mrf.mxu0
        %v3304 = vadd.f32 0.0, %v3303
        %v3305 = vpop.f32.mrf.mxu0
        %v3306 = vadd.f32 0.0, %v3305
        %v3307 = vpop.f32.mrf.mxu0
        %v3308 = vadd.f32 0.0, %v3307
        %3309 = vmatprep.mubr.bf16.mxu0 0
        %3310 = vmatmul.mubr.bf16.gmra.mxu0 %v2391
        %v3311 = vpop.f32.mrf.mxu0
        %v3312 = vadd.f32 0.0, %v3311
        %v3313 = vpop.f32.mrf.mxu0
        %v3314 = vadd.f32 0.0, %v3313
        %v3315 = vpop.f32.mrf.mxu0
        %v3316 = vadd.f32 0.0, %v3315
        %v3317 = vpop.f32.mrf.mxu0
        %v3318 = vadd.f32 0.0, %v3317
        %3319 = vmatprep.mubr.bf16.mxu0 0
        %3320 = vmatmul.mubr.bf16.gmra.mxu0 %v2392
        %v3321 = vpop.f32.mrf.mxu0
        %v3322 = vadd.f32 0.0, %v3321
        %v3323 = vpop.f32.mrf.mxu0
        %v3324 = vadd.f32 0.0, %v3323
        %v3325 = vpop.f32.mrf.mxu0
        %v3326 = vadd.f32 0.0, %v3325
        %v3327 = vpop.f32.mrf.mxu0
        %v3328 = vadd.f32 0.0, %v3327
        %3329 = vmatprep.mubr.bf16.mxu0 0
        %3330 = vmatmul.mubr.bf16.gmra.mxu0 %v2393
        %v3331 = vpop.f32.mrf.mxu0
        %v3332 = vadd.f32 0.0, %v3331
        %v3333 = vpop.f32.mrf.mxu0
        %v3334 = vadd.f32 0.0, %v3333
        %v3335 = vpop.f32.mrf.mxu0
        %v3336 = vadd.f32 0.0, %v3335
        %v3337 = vpop.f32.mrf.mxu0
        %v3338 = vadd.f32 0.0, %v3337
        %3339 = vmatprep.mubr.bf16.mxu0 0
        %3340 = vmatmul.mubr.bf16.gmra.mxu0 %v2394
        %v3341 = vpop.f32.mrf.mxu0
        %v3342 = vadd.f32 0.0, %v3341
        %v3343 = vpop.f32.mrf.mxu0
        %v3344 = vadd.f32 0.0, %v3343
        %v3345 = vpop.f32.mrf.mxu0
        %v3346 = vadd.f32 0.0, %v3345
        %v3347 = vpop.f32.mrf.mxu0
        %v3348 = vadd.f32 0.0, %v3347
        %3349 = vmatprep.mubr.bf16.mxu0 0
        %3350 = vmatmul.mubr.bf16.gmra.mxu0 %v2395
        %v3351 = vpop.f32.mrf.mxu0
        %v3352 = vadd.f32 0.0, %v3351
        %v3353 = vpop.f32.mrf.mxu0
        %v3354 = vadd.f32 0.0, %v3353
        %v3355 = vpop.f32.mrf.mxu0
        %v3356 = vadd.f32 0.0, %v3355
        %v3357 = vpop.f32.mrf.mxu0
        %v3358 = vadd.f32 0.0, %v3357
        %3359 = vmatprep.mubr.bf16.mxu0 0
        %3360 = vmatmul.mubr.bf16.gmra.mxu0 %v2396
        %v3361 = vpop.f32.mrf.mxu0
        %v3362 = vadd.f32 0.0, %v3361
        %v3363 = vpop.f32.mrf.mxu0
        %v3364 = vadd.f32 0.0, %v3363
        %v3365 = vpop.f32.mrf.mxu0
        %v3366 = vadd.f32 0.0, %v3365
        %v3367 = vpop.f32.mrf.mxu0
        %v3368 = vadd.f32 0.0, %v3367
        %3369 = vmatprep.mubr.bf16.mxu0 0
        %3370 = vmatmul.mubr.bf16.gmra.mxu0 %v2397
        %v3371 = vpop.f32.mrf.mxu0
        %v3372 = vadd.f32 0.0, %v3371
        %v3373 = vpop.f32.mrf.mxu0
        %v3374 = vadd.f32 0.0, %v3373
        %v3375 = vpop.f32.mrf.mxu0
        %v3376 = vadd.f32 0.0, %v3375
        %v3377 = vpop.f32.mrf.mxu0
        %v3378 = vadd.f32 0.0, %v3377
        %3379 = vmatprep.mubr.bf16.mxu0 0
        %3380 = vmatmul.mubr.bf16.gmra.mxu0 %v2398
        %v3381 = vpop.f32.mrf.mxu0
        %v3382 = vadd.f32 0.0, %v3381
        %v3383 = vpop.f32.mrf.mxu0
        %v3384 = vadd.f32 0.0, %v3383
        %v3385 = vpop.f32.mrf.mxu0
        %v3386 = vadd.f32 0.0, %v3385
        %v3387 = vpop.f32.mrf.mxu0
        %v3388 = vadd.f32 0.0, %v3387
        %3389 = vmatprep.mubr.bf16.mxu0 0
        %3390 = vmatmul.mubr.bf16.gmra.mxu0 %v2399
        %v3391 = vpop.f32.mrf.mxu0
        %v3392 = vadd.f32 0.0, %v3391
        %v3393 = vpop.f32.mrf.mxu0
        %v3394 = vadd.f32 0.0, %v3393
        %v3395 = vpop.f32.mrf.mxu0
        %v3396 = vadd.f32 0.0, %v3395
        %v3397 = vpop.f32.mrf.mxu0
        %v3398 = vadd.f32 0.0, %v3397
        %3399 = vmatprep.mubr.bf16.mxu0 0
        %3400 = vmatmul.mubr.bf16.gmra.mxu0 %v2400
        %v3401 = vpop.f32.mrf.mxu0
        %v3402 = vadd.f32 0.0, %v3401
        %v3403 = vpop.f32.mrf.mxu0
        %v3404 = vadd.f32 0.0, %v3403
        %v3405 = vpop.f32.mrf.mxu0
        %v3406 = vadd.f32 0.0, %v3405
        %v3407 = vpop.f32.mrf.mxu0
        %v3408 = vadd.f32 0.0, %v3407
        %3409 = vmatprep.mubr.bf16.mxu0 0
        %3410 = vmatmul.mubr.bf16.gmra.mxu0 %v2401
        %v3411 = vpop.f32.mrf.mxu0
        %v3412 = vadd.f32 0.0, %v3411
        %v3413 = vpop.f32.mrf.mxu0
        %v3414 = vadd.f32 0.0, %v3413
        %v3415 = vpop.f32.mrf.mxu0
        %v3416 = vadd.f32 0.0, %v3415
        %v3417 = vpop.f32.mrf.mxu0
        %v3418 = vadd.f32 0.0, %v3417
        %3419 = vmatprep.mubr.bf16.mxu0 0
        %3420 = vmatmul.mubr.bf16.gmra.mxu0 %v2402
        %v3421 = vpop.f32.mrf.mxu0
        %v3422 = vadd.f32 0.0, %v3421
        %v3423 = vpop.f32.mrf.mxu0
        %v3424 = vadd.f32 0.0, %v3423
        %v3425 = vpop.f32.mrf.mxu0
        %v3426 = vadd.f32 0.0, %v3425
        %v3427 = vpop.f32.mrf.mxu0
        %v3428 = vadd.f32 0.0, %v3427
        %3429 = vmatprep.mubr.bf16.mxu0 0
        %3430 = vmatmul.mubr.bf16.gmra.mxu0 %v2403
        %v3431 = vpop.f32.mrf.mxu0
        %v3432 = vadd.f32 0.0, %v3431
        %v3433 = vpop.f32.mrf.mxu0
        %v3434 = vadd.f32 0.0, %v3433
        %v3435 = vpop.f32.mrf.mxu0
        %v3436 = vadd.f32 0.0, %v3435
        %v3437 = vpop.f32.mrf.mxu0
        %v3438 = vadd.f32 0.0, %v3437
        %3439 = vmatprep.mubr.bf16.mxu0 0
        %3440 = vmatmul.mubr.bf16.gmra.mxu0 %v2404
        %v3441 = vpop.f32.mrf.mxu0
        %v3442 = vadd.f32 0.0, %v3441
        %v3443 = vpop.f32.mrf.mxu0
        %v3444 = vadd.f32 0.0, %v3443
        %v3445 = vpop.f32.mrf.mxu0
        %v3446 = vadd.f32 0.0, %v3445
        %v3447 = vpop.f32.mrf.mxu0
        %v3448 = vadd.f32 0.0, %v3447
        %3449 = vmatprep.mubr.bf16.mxu0 0
        %3450 = vmatmul.mubr.bf16.gmra.mxu0 %v2405
        %v3451 = vpop.f32.mrf.mxu0
        %v3452 = vadd.f32 0.0, %v3451
        %v3453 = vpop.f32.mrf.mxu0
        %v3454 = vadd.f32 0.0, %v3453
        %v3455 = vpop.f32.mrf.mxu0
        %v3456 = vadd.f32 0.0, %v3455
        %v3457 = vpop.f32.mrf.mxu0
        %v3458 = vadd.f32 0.0, %v3457
        %3459 = vmatprep.mubr.bf16.mxu0 0
        %3460 = vmatmul.mubr.bf16.gmra.mxu0 %v2406
        %v3461 = vpop.f32.mrf.mxu0
        %v3462 = vadd.f32 0.0, %v3461
        %v3463 = vpop.f32.mrf.mxu0
        %v3464 = vadd.f32 0.0, %v3463
        %v3465 = vpop.f32.mrf.mxu0
        %v3466 = vadd.f32 0.0, %v3465
        %v3467 = vpop.f32.mrf.mxu0
        %v3468 = vadd.f32 0.0, %v3467
        %3469 = vmatprep.mubr.bf16.mxu0 0
        %3470 = vmatmul.mubr.bf16.gmra.mxu0 %v2407
        %v3471 = vpop.f32.mrf.mxu0
        %v3472 = vadd.f32 0.0, %v3471
        %v3473 = vpop.f32.mrf.mxu0
        %v3474 = vadd.f32 0.0, %v3473
        %v3475 = vpop.f32.mrf.mxu0
        %v3476 = vadd.f32 0.0, %v3475
        %v3477 = vpop.f32.mrf.mxu0
        %v3478 = vadd.f32 0.0, %v3477
        %3479 = vmatprep.mubr.bf16.mxu0 0
        %3480 = vmatmul.mubr.bf16.gmra.mxu0 %v2408
        %v3481 = vpop.f32.mrf.mxu0
        %v3482 = vadd.f32 0.0, %v3481
        %v3483 = vpop.f32.mrf.mxu0
        %v3484 = vadd.f32 0.0, %v3483
        %v3485 = vpop.f32.mrf.mxu0
        %v3486 = vadd.f32 0.0, %v3485
        %v3487 = vpop.f32.mrf.mxu0
        %v3488 = vadd.f32 0.0, %v3487
        %3489 = vmatprep.mubr.bf16.mxu0 0
        %3490 = vmatmul.mubr.bf16.gmra.mxu0 %v2409
        %v3491 = vpop.f32.mrf.mxu0
        %v3492 = vadd.f32 0.0, %v3491
        %v3493 = vpop.f32.mrf.mxu0
        %v3494 = vadd.f32 0.0, %v3493
        %v3495 = vpop.f32.mrf.mxu0
        %v3496 = vadd.f32 0.0, %v3495
        %v3497 = vpop.f32.mrf.mxu0
        %v3498 = vadd.f32 0.0, %v3497
        %3499 = vdwg.mxu0
        %3500 = vmatprep.subr.bf16.mxu0 %v2727
        %3501 = vmatpush1.bf16.msra.mxu0 %v2726
        %3502 = vmatprep.subr.bf16.mxu0 %v2719
        %3503 = vmatpush1.bf16.msra.mxu0 %v2718
        %3504 = vmatprep.subr.bf16.mxu0 %v2711
        %3505 = vmatpush1.bf16.msra.mxu0 %v2710
        %3506 = vmatprep.subr.bf16.mxu0 %v2703
        %3507 = vmatpush1.bf16.msra.mxu0 %v2702
        %3508 = vmatprep.subr.bf16.mxu0 %v2695
        %3509 = vmatpush1.bf16.msra.mxu0 %v2694
        %3510 = vmatprep.subr.bf16.mxu0 %v2687
        %3511 = vmatpush1.bf16.msra.mxu0 %v2686
        %3512 = vmatprep.subr.bf16.mxu0 %v2679
        %3513 = vmatpush1.bf16.msra.mxu0 %v2678
        %3514 = vmatprep.subr.bf16.mxu0 %v2671
        %3515 = vmatpush1.bf16.msra.mxu0 %v2670
        %3516 = vmatprep.subr.bf16.mxu0 0
        %3517 = vmatpush2.bf16.msra.mxu0 0
        %3518 = vmatprep.subr.bf16.mxu0 0
        %3519 = vmatpush2.bf16.msra.mxu0 0
        %3520 = vmatprep.subr.bf16.mxu0 0
        %3521 = vmatpush2.bf16.msra.mxu0 0
        %3522 = vmatprep.subr.bf16.mxu0 0
        %3523 = vmatpush2.bf16.msra.mxu0 0
        %3524 = vmatprep.subr.bf16.mxu0 0
        %3525 = vmatpush2.bf16.msra.mxu0 0
        %3526 = vmatprep.subr.bf16.mxu0 0
        %3527 = vmatpush2.bf16.msra.mxu0 0
        %3528 = vmatprep.subr.bf16.mxu0 0
        %3529 = vmatpush2.bf16.msra.mxu0 0
        %3530 = vmatprep.subr.bf16.mxu0 0
        %3531 = vmatpush2.bf16.msra.mxu0 0
        %3532 = vmatprep.mubr.bf16.mxu0 0
        %3533 = vmatmul.mubr.bf16.gmra.mxu0 %v2378
        %v3534 = vpop.f32.mrf.mxu0
        %v3535 = vadd.f32 0.0, %v3534
        %v3536 = vpop.f32.mrf.mxu0
        %v3537 = vadd.f32 0.0, %v3536
        %v3538 = vpop.f32.mrf.mxu0
        %v3539 = vadd.f32 0.0, %v3538
        %v3540 = vpop.f32.mrf.mxu0
        %v3541 = vadd.f32 0.0, %v3540
        %3542 = vmatprep.mubr.bf16.mxu0 0
        %3543 = vmatmul.mubr.bf16.gmra.mxu0 %v2379
        %v3544 = vpop.f32.mrf.mxu0
        %v3545 = vadd.f32 0.0, %v3544
        %v3546 = vpop.f32.mrf.mxu0
        %v3547 = vadd.f32 0.0, %v3546
        %v3548 = vpop.f32.mrf.mxu0
        %v3549 = vadd.f32 0.0, %v3548
        %v3550 = vpop.f32.mrf.mxu0
        %v3551 = vadd.f32 0.0, %v3550
        %3552 = vmatprep.mubr.bf16.mxu0 0
        %3553 = vmatmul.mubr.bf16.gmra.mxu0 %v2380
        %v3554 = vpop.f32.mrf.mxu0
        %v3555 = vadd.f32 0.0, %v3554
        %v3556 = vpop.f32.mrf.mxu0
        %v3557 = vadd.f32 0.0, %v3556
        %v3558 = vpop.f32.mrf.mxu0
        %v3559 = vadd.f32 0.0, %v3558
        %v3560 = vpop.f32.mrf.mxu0
        %v3561 = vadd.f32 0.0, %v3560
        %3562 = vmatprep.mubr.bf16.mxu0 0
        %3563 = vmatmul.mubr.bf16.gmra.mxu0 %v2381
        %v3564 = vpop.f32.mrf.mxu0
        %v3565 = vadd.f32 0.0, %v3564
        %v3566 = vpop.f32.mrf.mxu0
        %v3567 = vadd.f32 0.0, %v3566
        %v3568 = vpop.f32.mrf.mxu0
        %v3569 = vadd.f32 0.0, %v3568
        %v3570 = vpop.f32.mrf.mxu0
        %v3571 = vadd.f32 0.0, %v3570
        %3572 = vmatprep.mubr.bf16.mxu0 0
        %3573 = vmatmul.mubr.bf16.gmra.mxu0 %v2382
        %v3574 = vpop.f32.mrf.mxu0
        %v3575 = vadd.f32 0.0, %v3574
        %v3576 = vpop.f32.mrf.mxu0
        %v3577 = vadd.f32 0.0, %v3576
        %v3578 = vpop.f32.mrf.mxu0
        %v3579 = vadd.f32 0.0, %v3578
        %v3580 = vpop.f32.mrf.mxu0
        %v3581 = vadd.f32 0.0, %v3580
        %3582 = vmatprep.mubr.bf16.mxu0 0
        %3583 = vmatmul.mubr.bf16.gmra.mxu0 %v2383
        %v3584 = vpop.f32.mrf.mxu0
        %v3585 = vadd.f32 0.0, %v3584
        %v3586 = vpop.f32.mrf.mxu0
        %v3587 = vadd.f32 0.0, %v3586
        %v3588 = vpop.f32.mrf.mxu0
        %v3589 = vadd.f32 0.0, %v3588
        %v3590 = vpop.f32.mrf.mxu0
        %v3591 = vadd.f32 0.0, %v3590
        %3592 = vmatprep.mubr.bf16.mxu0 0
        %3593 = vmatmul.mubr.bf16.gmra.mxu0 %v2384
        %v3594 = vpop.f32.mrf.mxu0
        %v3595 = vadd.f32 0.0, %v3594
        %v3596 = vpop.f32.mrf.mxu0
        %v3597 = vadd.f32 0.0, %v3596
        %v3598 = vpop.f32.mrf.mxu0
        %v3599 = vadd.f32 0.0, %v3598
        %v3600 = vpop.f32.mrf.mxu0
        %v3601 = vadd.f32 0.0, %v3600
        %3602 = vmatprep.mubr.bf16.mxu0 0
        %3603 = vmatmul.mubr.bf16.gmra.mxu0 %v2385
        %v3604 = vpop.f32.mrf.mxu0
        %v3605 = vadd.f32 0.0, %v3604
        %v3606 = vpop.f32.mrf.mxu0
        %v3607 = vadd.f32 0.0, %v3606
        %v3608 = vpop.f32.mrf.mxu0
        %v3609 = vadd.f32 0.0, %v3608
        %v3610 = vpop.f32.mrf.mxu0
        %v3611 = vadd.f32 0.0, %v3610
        %3612 = vmatprep.mubr.bf16.mxu0 0
        %3613 = vmatmul.mubr.bf16.gmra.mxu0 %v2386
        %v3614 = vpop.f32.mrf.mxu0
        %v3615 = vadd.f32 0.0, %v3614
        %v3616 = vpop.f32.mrf.mxu0
        %v3617 = vadd.f32 0.0, %v3616
        %v3618 = vpop.f32.mrf.mxu0
        %v3619 = vadd.f32 0.0, %v3618
        %v3620 = vpop.f32.mrf.mxu0
        %v3621 = vadd.f32 0.0, %v3620
        %3622 = vmatprep.mubr.bf16.mxu0 0
        %3623 = vmatmul.mubr.bf16.gmra.mxu0 %v2387
        %v3624 = vpop.f32.mrf.mxu0
        %v3625 = vadd.f32 0.0, %v3624
        %v3626 = vpop.f32.mrf.mxu0
        %v3627 = vadd.f32 0.0, %v3626
        %v3628 = vpop.f32.mrf.mxu0
        %v3629 = vadd.f32 0.0, %v3628
        %v3630 = vpop.f32.mrf.mxu0
        %v3631 = vadd.f32 0.0, %v3630
        %3632 = vmatprep.mubr.bf16.mxu0 0
        %3633 = vmatmul.mubr.bf16.gmra.mxu0 %v2388
        %v3634 = vpop.f32.mrf.mxu0
        %v3635 = vadd.f32 0.0, %v3634
        %v3636 = vpop.f32.mrf.mxu0
        %v3637 = vadd.f32 0.0, %v3636
        %v3638 = vpop.f32.mrf.mxu0
        %v3639 = vadd.f32 0.0, %v3638
        %v3640 = vpop.f32.mrf.mxu0
        %v3641 = vadd.f32 0.0, %v3640
        %3642 = vmatprep.mubr.bf16.mxu0 0
        %3643 = vmatmul.mubr.bf16.gmra.mxu0 %v2389
        %v3644 = vpop.f32.mrf.mxu0
        %v3645 = vadd.f32 0.0, %v3644
        %v3646 = vpop.f32.mrf.mxu0
        %v3647 = vadd.f32 0.0, %v3646
        %v3648 = vpop.f32.mrf.mxu0
        %v3649 = vadd.f32 0.0, %v3648
        %v3650 = vpop.f32.mrf.mxu0
        %v3651 = vadd.f32 0.0, %v3650
        %3652 = vmatprep.mubr.bf16.mxu0 0
        %3653 = vmatmul.mubr.bf16.gmra.mxu0 %v2390
        %v3654 = vpop.f32.mrf.mxu0
        %v3655 = vadd.f32 0.0, %v3654
        %v3656 = vpop.f32.mrf.mxu0
        %v3657 = vadd.f32 0.0, %v3656
        %v3658 = vpop.f32.mrf.mxu0
        %v3659 = vadd.f32 0.0, %v3658
        %v3660 = vpop.f32.mrf.mxu0
        %v3661 = vadd.f32 0.0, %v3660
        %3662 = vmatprep.mubr.bf16.mxu0 0
        %3663 = vmatmul.mubr.bf16.gmra.mxu0 %v2391
        %v3664 = vpop.f32.mrf.mxu0
        %v3665 = vadd.f32 0.0, %v3664
        %v3666 = vpop.f32.mrf.mxu0
        %v3667 = vadd.f32 0.0, %v3666
        %v3668 = vpop.f32.mrf.mxu0
        %v3669 = vadd.f32 0.0, %v3668
        %v3670 = vpop.f32.mrf.mxu0
        %v3671 = vadd.f32 0.0, %v3670
        %3672 = vmatprep.mubr.bf16.mxu0 0
        %3673 = vmatmul.mubr.bf16.gmra.mxu0 %v2392
        %v3674 = vpop.f32.mrf.mxu0
        %v3675 = vadd.f32 0.0, %v3674
        %v3676 = vpop.f32.mrf.mxu0
        %v3677 = vadd.f32 0.0, %v3676
        %v3678 = vpop.f32.mrf.mxu0
        %v3679 = vadd.f32 0.0, %v3678
        %v3680 = vpop.f32.mrf.mxu0
        %v3681 = vadd.f32 0.0, %v3680
        %3682 = vmatprep.mubr.bf16.mxu0 0
        %3683 = vmatmul.mubr.bf16.gmra.mxu0 %v2393
        %v3684 = vpop.f32.mrf.mxu0
        %v3685 = vadd.f32 0.0, %v3684
        %v3686 = vpop.f32.mrf.mxu0
        %v3687 = vadd.f32 0.0, %v3686
        %v3688 = vpop.f32.mrf.mxu0
        %v3689 = vadd.f32 0.0, %v3688
        %v3690 = vpop.f32.mrf.mxu0
        %v3691 = vadd.f32 0.0, %v3690
        %3692 = vmatprep.mubr.bf16.mxu0 0
        %3693 = vmatmul.mubr.bf16.gmra.mxu0 %v2394
        %v3694 = vpop.f32.mrf.mxu0
        %v3695 = vadd.f32 0.0, %v3694
        %v3696 = vpop.f32.mrf.mxu0
        %v3697 = vadd.f32 0.0, %v3696
        %v3698 = vpop.f32.mrf.mxu0
        %v3699 = vadd.f32 0.0, %v3698
        %v3700 = vpop.f32.mrf.mxu0
        %v3701 = vadd.f32 0.0, %v3700
        %3702 = vmatprep.mubr.bf16.mxu0 0
        %3703 = vmatmul.mubr.bf16.gmra.mxu0 %v2395
        %v3704 = vpop.f32.mrf.mxu0
        %v3705 = vadd.f32 0.0, %v3704
        %v3706 = vpop.f32.mrf.mxu0
        %v3707 = vadd.f32 0.0, %v3706
        %v3708 = vpop.f32.mrf.mxu0
        %v3709 = vadd.f32 0.0, %v3708
        %v3710 = vpop.f32.mrf.mxu0
        %v3711 = vadd.f32 0.0, %v3710
        %3712 = vmatprep.mubr.bf16.mxu0 0
        %3713 = vmatmul.mubr.bf16.gmra.mxu0 %v2396
        %v3714 = vpop.f32.mrf.mxu0
        %v3715 = vadd.f32 0.0, %v3714
        %v3716 = vpop.f32.mrf.mxu0
        %v3717 = vadd.f32 0.0, %v3716
        %v3718 = vpop.f32.mrf.mxu0
        %v3719 = vadd.f32 0.0, %v3718
        %v3720 = vpop.f32.mrf.mxu0
        %v3721 = vadd.f32 0.0, %v3720
        %3722 = vmatprep.mubr.bf16.mxu0 0
        %3723 = vmatmul.mubr.bf16.gmra.mxu0 %v2397
        %v3724 = vpop.f32.mrf.mxu0
        %v3725 = vadd.f32 0.0, %v3724
        %v3726 = vpop.f32.mrf.mxu0
        %v3727 = vadd.f32 0.0, %v3726
        %v3728 = vpop.f32.mrf.mxu0
        %v3729 = vadd.f32 0.0, %v3728
        %v3730 = vpop.f32.mrf.mxu0
        %v3731 = vadd.f32 0.0, %v3730
        %3732 = vmatprep.mubr.bf16.mxu0 0
        %3733 = vmatmul.mubr.bf16.gmra.mxu0 %v2398
        %v3734 = vpop.f32.mrf.mxu0
        %v3735 = vadd.f32 0.0, %v3734
        %v3736 = vpop.f32.mrf.mxu0
        %v3737 = vadd.f32 0.0, %v3736
        %v3738 = vpop.f32.mrf.mxu0
        %v3739 = vadd.f32 0.0, %v3738
        %v3740 = vpop.f32.mrf.mxu0
        %v3741 = vadd.f32 0.0, %v3740
        %3742 = vmatprep.mubr.bf16.mxu0 0
        %3743 = vmatmul.mubr.bf16.gmra.mxu0 %v2399
        %v3744 = vpop.f32.mrf.mxu0
        %v3745 = vadd.f32 0.0, %v3744
        %v3746 = vpop.f32.mrf.mxu0
        %v3747 = vadd.f32 0.0, %v3746
        %v3748 = vpop.f32.mrf.mxu0
        %v3749 = vadd.f32 0.0, %v3748
        %v3750 = vpop.f32.mrf.mxu0
        %v3751 = vadd.f32 0.0, %v3750
        %3752 = vmatprep.mubr.bf16.mxu0 0
        %3753 = vmatmul.mubr.bf16.gmra.mxu0 %v2400
        %v3754 = vpop.f32.mrf.mxu0
        %v3755 = vadd.f32 0.0, %v3754
        %v3756 = vpop.f32.mrf.mxu0
        %v3757 = vadd.f32 0.0, %v3756
        %v3758 = vpop.f32.mrf.mxu0
        %v3759 = vadd.f32 0.0, %v3758
        %v3760 = vpop.f32.mrf.mxu0
        %v3761 = vadd.f32 0.0, %v3760
        %3762 = vmatprep.mubr.bf16.mxu0 0
        %3763 = vmatmul.mubr.bf16.gmra.mxu0 %v2401
        %v3764 = vpop.f32.mrf.mxu0
        %v3765 = vadd.f32 0.0, %v3764
        %v3766 = vpop.f32.mrf.mxu0
        %v3767 = vadd.f32 0.0, %v3766
        %v3768 = vpop.f32.mrf.mxu0
        %v3769 = vadd.f32 0.0, %v3768
        %v3770 = vpop.f32.mrf.mxu0
        %v3771 = vadd.f32 0.0, %v3770
        %3772 = vmatprep.mubr.bf16.mxu0 0
        %3773 = vmatmul.mubr.bf16.gmra.mxu0 %v2402
        %v3774 = vpop.f32.mrf.mxu0
        %v3775 = vadd.f32 0.0, %v3774
        %v3776 = vpop.f32.mrf.mxu0
        %v3777 = vadd.f32 0.0, %v3776
        %v3778 = vpop.f32.mrf.mxu0
        %v3779 = vadd.f32 0.0, %v3778
        %v3780 = vpop.f32.mrf.mxu0
        %v3781 = vadd.f32 0.0, %v3780
        %3782 = vmatprep.mubr.bf16.mxu0 0
        %3783 = vmatmul.mubr.bf16.gmra.mxu0 %v2403
        %v3784 = vpop.f32.mrf.mxu0
        %v3785 = vadd.f32 0.0, %v3784
        %v3786 = vpop.f32.mrf.mxu0
        %v3787 = vadd.f32 0.0, %v3786
        %v3788 = vpop.f32.mrf.mxu0
        %v3789 = vadd.f32 0.0, %v3788
        %v3790 = vpop.f32.mrf.mxu0
        %v3791 = vadd.f32 0.0, %v3790
        %3792 = vmatprep.mubr.bf16.mxu0 0
        %3793 = vmatmul.mubr.bf16.gmra.mxu0 %v2404
        %v3794 = vpop.f32.mrf.mxu0
        %v3795 = vadd.f32 0.0, %v3794
        %v3796 = vpop.f32.mrf.mxu0
        %v3797 = vadd.f32 0.0, %v3796
        %v3798 = vpop.f32.mrf.mxu0
        %v3799 = vadd.f32 0.0, %v3798
        %v3800 = vpop.f32.mrf.mxu0
        %v3801 = vadd.f32 0.0, %v3800
        %3802 = vmatprep.mubr.bf16.mxu0 0
        %3803 = vmatmul.mubr.bf16.gmra.mxu0 %v2405
        %v3804 = vpop.f32.mrf.mxu0
        %v3805 = vadd.f32 0.0, %v3804
        %v3806 = vpop.f32.mrf.mxu0
        %v3807 = vadd.f32 0.0, %v3806
        %v3808 = vpop.f32.mrf.mxu0
        %v3809 = vadd.f32 0.0, %v3808
        %v3810 = vpop.f32.mrf.mxu0
        %v3811 = vadd.f32 0.0, %v3810
        %3812 = vmatprep.mubr.bf16.mxu0 0
        %3813 = vmatmul.mubr.bf16.gmra.mxu0 %v2406
        %v3814 = vpop.f32.mrf.mxu0
        %v3815 = vadd.f32 0.0, %v3814
        %v3816 = vpop.f32.mrf.mxu0
        %v3817 = vadd.f32 0.0, %v3816
        %v3818 = vpop.f32.mrf.mxu0
        %v3819 = vadd.f32 0.0, %v3818
        %v3820 = vpop.f32.mrf.mxu0
        %v3821 = vadd.f32 0.0, %v3820
        %3822 = vmatprep.mubr.bf16.mxu0 0
        %3823 = vmatmul.mubr.bf16.gmra.mxu0 %v2407
        %v3824 = vpop.f32.mrf.mxu0
        %v3825 = vadd.f32 0.0, %v3824
        %v3826 = vpop.f32.mrf.mxu0
        %v3827 = vadd.f32 0.0, %v3826
        %v3828 = vpop.f32.mrf.mxu0
        %v3829 = vadd.f32 0.0, %v3828
        %v3830 = vpop.f32.mrf.mxu0
        %v3831 = vadd.f32 0.0, %v3830
        %3832 = vmatprep.mubr.bf16.mxu0 0
        %3833 = vmatmul.mubr.bf16.gmra.mxu0 %v2408
        %v3834 = vpop.f32.mrf.mxu0
        %v3835 = vadd.f32 0.0, %v3834
        %v3836 = vpop.f32.mrf.mxu0
        %v3837 = vadd.f32 0.0, %v3836
        %v3838 = vpop.f32.mrf.mxu0
        %v3839 = vadd.f32 0.0, %v3838
        %v3840 = vpop.f32.mrf.mxu0
        %v3841 = vadd.f32 0.0, %v3840
        %3842 = vmatprep.mubr.bf16.mxu0 0
        %3843 = vmatmul.mubr.bf16.gmra.mxu0 %v2409
        %v3844 = vpop.f32.mrf.mxu0
        %v3845 = vadd.f32 0.0, %v3844
        %v3846 = vpop.f32.mrf.mxu0
        %v3847 = vadd.f32 0.0, %v3846
        %v3848 = vpop.f32.mrf.mxu0
        %v3849 = vadd.f32 0.0, %v3848
        %v3850 = vpop.f32.mrf.mxu0
        %v3851 = vadd.f32 0.0, %v3850
        %3852 = vdwg.mxu0
        %3853 = vmatprep.subr.bf16.mxu0 %v2729
        %3854 = vmatpush1.bf16.msra.mxu0 %v2728
        %3855 = vmatprep.subr.bf16.mxu0 %v2721
        %3856 = vmatpush1.bf16.msra.mxu0 %v2720
        %3857 = vmatprep.subr.bf16.mxu0 %v2713
        %3858 = vmatpush1.bf16.msra.mxu0 %v2712
        %3859 = vmatprep.subr.bf16.mxu0 %v2705
        %3860 = vmatpush1.bf16.msra.mxu0 %v2704
        %3861 = vmatprep.subr.bf16.mxu0 %v2697
        %3862 = vmatpush1.bf16.msra.mxu0 %v2696
        %3863 = vmatprep.subr.bf16.mxu0 %v2689
        %3864 = vmatpush1.bf16.msra.mxu0 %v2688
        %3865 = vmatprep.subr.bf16.mxu0 %v2681
        %3866 = vmatpush1.bf16.msra.mxu0 %v2680
        %3867 = vmatprep.subr.bf16.mxu0 %v2673
        %3868 = vmatpush1.bf16.msra.mxu0 %v2672
        %3869 = vmatprep.subr.bf16.mxu0 0
        %3870 = vmatpush2.bf16.msra.mxu0 0
        %3871 = vmatprep.subr.bf16.mxu0 0
        %3872 = vmatpush2.bf16.msra.mxu0 0
        %3873 = vmatprep.subr.bf16.mxu0 0
        %3874 = vmatpush2.bf16.msra.mxu0 0
        %3875 = vmatprep.subr.bf16.mxu0 0
        %3876 = vmatpush2.bf16.msra.mxu0 0
        %3877 = vmatprep.subr.bf16.mxu0 0
        %3878 = vmatpush2.bf16.msra.mxu0 0
        %3879 = vmatprep.subr.bf16.mxu0 0
        %3880 = vmatpush2.bf16.msra.mxu0 0
        %3881 = vmatprep.subr.bf16.mxu0 0
        %3882 = vmatpush2.bf16.msra.mxu0 0
        %3883 = vmatprep.subr.bf16.mxu0 0
        %3884 = vmatpush2.bf16.msra.mxu0 0
        %3885 = vmatprep.mubr.bf16.mxu0 0
        %3886 = vmatmul.mubr.bf16.gmra.mxu0 %v2378
        %v3887 = vpop.f32.mrf.mxu0
        %v3888 = vadd.f32 0.0, %v3887
        %v3889 = vpop.f32.mrf.mxu0
        %v3890 = vadd.f32 0.0, %v3889
        %v3891 = vpop.f32.mrf.mxu0
        %v3892 = vadd.f32 0.0, %v3891
        %v3893 = vpop.f32.mrf.mxu0
        %v3894 = vadd.f32 0.0, %v3893
        %3895 = vmatprep.mubr.bf16.mxu0 0
        %3896 = vmatmul.mubr.bf16.gmra.mxu0 %v2379
        %v3897 = vpop.f32.mrf.mxu0
        %v3898 = vadd.f32 0.0, %v3897
        %v3899 = vpop.f32.mrf.mxu0
        %v3900 = vadd.f32 0.0, %v3899
        %v3901 = vpop.f32.mrf.mxu0
        %v3902 = vadd.f32 0.0, %v3901
        %v3903 = vpop.f32.mrf.mxu0
        %v3904 = vadd.f32 0.0, %v3903
        %3905 = vmatprep.mubr.bf16.mxu0 0
        %3906 = vmatmul.mubr.bf16.gmra.mxu0 %v2380
        %v3907 = vpop.f32.mrf.mxu0
        %v3908 = vadd.f32 0.0, %v3907
        %v3909 = vpop.f32.mrf.mxu0
        %v3910 = vadd.f32 0.0, %v3909
        %v3911 = vpop.f32.mrf.mxu0
        %v3912 = vadd.f32 0.0, %v3911
        %v3913 = vpop.f32.mrf.mxu0
        %v3914 = vadd.f32 0.0, %v3913
        %3915 = vmatprep.mubr.bf16.mxu0 0
        %3916 = vmatmul.mubr.bf16.gmra.mxu0 %v2381
        %v3917 = vpop.f32.mrf.mxu0
        %v3918 = vadd.f32 0.0, %v3917
        %v3919 = vpop.f32.mrf.mxu0
        %v3920 = vadd.f32 0.0, %v3919
        %v3921 = vpop.f32.mrf.mxu0
        %v3922 = vadd.f32 0.0, %v3921
        %v3923 = vpop.f32.mrf.mxu0
        %v3924 = vadd.f32 0.0, %v3923
        %3925 = vmatprep.mubr.bf16.mxu0 0
        %3926 = vmatmul.mubr.bf16.gmra.mxu0 %v2382
        %v3927 = vpop.f32.mrf.mxu0
        %v3928 = vadd.f32 0.0, %v3927
        %v3929 = vpop.f32.mrf.mxu0
        %v3930 = vadd.f32 0.0, %v3929
        %v3931 = vpop.f32.mrf.mxu0
        %v3932 = vadd.f32 0.0, %v3931
        %v3933 = vpop.f32.mrf.mxu0
        %v3934 = vadd.f32 0.0, %v3933
        %3935 = vmatprep.mubr.bf16.mxu0 0
        %3936 = vmatmul.mubr.bf16.gmra.mxu0 %v2383
        %v3937 = vpop.f32.mrf.mxu0
        %v3938 = vadd.f32 0.0, %v3937
        %v3939 = vpop.f32.mrf.mxu0
        %v3940 = vadd.f32 0.0, %v3939
        %v3941 = vpop.f32.mrf.mxu0
        %v3942 = vadd.f32 0.0, %v3941
        %v3943 = vpop.f32.mrf.mxu0
        %v3944 = vadd.f32 0.0, %v3943
        %3945 = vmatprep.mubr.bf16.mxu0 0
        %3946 = vmatmul.mubr.bf16.gmra.mxu0 %v2384
        %v3947 = vpop.f32.mrf.mxu0
        %v3948 = vadd.f32 0.0, %v3947
        %v3949 = vpop.f32.mrf.mxu0
        %v3950 = vadd.f32 0.0, %v3949
        %v3951 = vpop.f32.mrf.mxu0
        %v3952 = vadd.f32 0.0, %v3951
        %v3953 = vpop.f32.mrf.mxu0
        %v3954 = vadd.f32 0.0, %v3953
        %3955 = vmatprep.mubr.bf16.mxu0 0
        %3956 = vmatmul.mubr.bf16.gmra.mxu0 %v2385
        %v3957 = vpop.f32.mrf.mxu0
        %v3958 = vadd.f32 0.0, %v3957
        %v3959 = vpop.f32.mrf.mxu0
        %v3960 = vadd.f32 0.0, %v3959
        %v3961 = vpop.f32.mrf.mxu0
        %v3962 = vadd.f32 0.0, %v3961
        %v3963 = vpop.f32.mrf.mxu0
        %v3964 = vadd.f32 0.0, %v3963
        %3965 = vmatprep.mubr.bf16.mxu0 0
        %3966 = vmatmul.mubr.bf16.gmra.mxu0 %v2386
        %v3967 = vpop.f32.mrf.mxu0
        %v3968 = vadd.f32 0.0, %v3967
        %v3969 = vpop.f32.mrf.mxu0
        %v3970 = vadd.f32 0.0, %v3969
        %v3971 = vpop.f32.mrf.mxu0
        %v3972 = vadd.f32 0.0, %v3971
        %v3973 = vpop.f32.mrf.mxu0
        %v3974 = vadd.f32 0.0, %v3973
        %3975 = vmatprep.mubr.bf16.mxu0 0
        %3976 = vmatmul.mubr.bf16.gmra.mxu0 %v2387
        %v3977 = vpop.f32.mrf.mxu0
        %v3978 = vadd.f32 0.0, %v3977
        %v3979 = vpop.f32.mrf.mxu0
        %v3980 = vadd.f32 0.0, %v3979
        %v3981 = vpop.f32.mrf.mxu0
        %v3982 = vadd.f32 0.0, %v3981
        %v3983 = vpop.f32.mrf.mxu0
        %v3984 = vadd.f32 0.0, %v3983
        %3985 = vmatprep.mubr.bf16.mxu0 0
        %3986 = vmatmul.mubr.bf16.gmra.mxu0 %v2388
        %v3987 = vpop.f32.mrf.mxu0
        %v3988 = vadd.f32 0.0, %v3987
        %v3989 = vpop.f32.mrf.mxu0
        %v3990 = vadd.f32 0.0, %v3989
        %v3991 = vpop.f32.mrf.mxu0
        %v3992 = vadd.f32 0.0, %v3991
        %v3993 = vpop.f32.mrf.mxu0
        %v3994 = vadd.f32 0.0, %v3993
        %3995 = vmatprep.mubr.bf16.mxu0 0
        %3996 = vmatmul.mubr.bf16.gmra.mxu0 %v2389
        %v3997 = vpop.f32.mrf.mxu0
        %v3998 = vadd.f32 0.0, %v3997
        %v3999 = vpop.f32.mrf.mxu0
        %v4000 = vadd.f32 0.0, %v3999
        %v4001 = vpop.f32.mrf.mxu0
        %v4002 = vadd.f32 0.0, %v4001
        %v4003 = vpop.f32.mrf.mxu0
        %v4004 = vadd.f32 0.0, %v4003
        %4005 = vmatprep.mubr.bf16.mxu0 0
        %4006 = vmatmul.mubr.bf16.gmra.mxu0 %v2390
        %v4007 = vpop.f32.mrf.mxu0
        %v4008 = vadd.f32 0.0, %v4007
        %v4009 = vpop.f32.mrf.mxu0
        %v4010 = vadd.f32 0.0, %v4009
        %v4011 = vpop.f32.mrf.mxu0
        %v4012 = vadd.f32 0.0, %v4011
        %v4013 = vpop.f32.mrf.mxu0
        %v4014 = vadd.f32 0.0, %v4013
        %4015 = vmatprep.mubr.bf16.mxu0 0
        %4016 = vmatmul.mubr.bf16.gmra.mxu0 %v2391
        %v4017 = vpop.f32.mrf.mxu0
        %v4018 = vadd.f32 0.0, %v4017
        %v4019 = vpop.f32.mrf.mxu0
        %v4020 = vadd.f32 0.0, %v4019
        %v4021 = vpop.f32.mrf.mxu0
        %v4022 = vadd.f32 0.0, %v4021
        %v4023 = vpop.f32.mrf.mxu0
        %v4024 = vadd.f32 0.0, %v4023
        %4025 = vmatprep.mubr.bf16.mxu0 0
        %4026 = vmatmul.mubr.bf16.gmra.mxu0 %v2392
        %v4027 = vpop.f32.mrf.mxu0
        %v4028 = vadd.f32 0.0, %v4027
        %v4029 = vpop.f32.mrf.mxu0
        %v4030 = vadd.f32 0.0, %v4029
        %v4031 = vpop.f32.mrf.mxu0
        %v4032 = vadd.f32 0.0, %v4031
        %v4033 = vpop.f32.mrf.mxu0
        %v4034 = vadd.f32 0.0, %v4033
        %4035 = vmatprep.mubr.bf16.mxu0 0
        %4036 = vmatmul.mubr.bf16.gmra.mxu0 %v2393
        %v4037 = vpop.f32.mrf.mxu0
        %v4038 = vadd.f32 0.0, %v4037
        %v4039 = vpop.f32.mrf.mxu0
        %v4040 = vadd.f32 0.0, %v4039
        %v4041 = vpop.f32.mrf.mxu0
        %v4042 = vadd.f32 0.0, %v4041
        %v4043 = vpop.f32.mrf.mxu0
        %v4044 = vadd.f32 0.0, %v4043
        %4045 = vmatprep.mubr.bf16.mxu0 0
        %4046 = vmatmul.mubr.bf16.gmra.mxu0 %v2394
        %v4047 = vpop.f32.mrf.mxu0
        %v4048 = vadd.f32 0.0, %v4047
        %v4049 = vpop.f32.mrf.mxu0
        %v4050 = vadd.f32 0.0, %v4049
        %v4051 = vpop.f32.mrf.mxu0
        %v4052 = vadd.f32 0.0, %v4051
        %v4053 = vpop.f32.mrf.mxu0
        %v4054 = vadd.f32 0.0, %v4053
        %4055 = vmatprep.mubr.bf16.mxu0 0
        %4056 = vmatmul.mubr.bf16.gmra.mxu0 %v2395
        %v4057 = vpop.f32.mrf.mxu0
        %v4058 = vadd.f32 0.0, %v4057
        %v4059 = vpop.f32.mrf.mxu0
        %v4060 = vadd.f32 0.0, %v4059
        %v4061 = vpop.f32.mrf.mxu0
        %v4062 = vadd.f32 0.0, %v4061
        %v4063 = vpop.f32.mrf.mxu0
        %v4064 = vadd.f32 0.0, %v4063
        %4065 = vmatprep.mubr.bf16.mxu0 0
        %4066 = vmatmul.mubr.bf16.gmra.mxu0 %v2396
        %v4067 = vpop.f32.mrf.mxu0
        %v4068 = vadd.f32 0.0, %v4067
        %v4069 = vpop.f32.mrf.mxu0
        %v4070 = vadd.f32 0.0, %v4069
        %v4071 = vpop.f32.mrf.mxu0
        %v4072 = vadd.f32 0.0, %v4071
        %v4073 = vpop.f32.mrf.mxu0
        %v4074 = vadd.f32 0.0, %v4073
        %4075 = vmatprep.mubr.bf16.mxu0 0
        %4076 = vmatmul.mubr.bf16.gmra.mxu0 %v2397
        %v4077 = vpop.f32.mrf.mxu0
        %v4078 = vadd.f32 0.0, %v4077
        %v4079 = vpop.f32.mrf.mxu0
        %v4080 = vadd.f32 0.0, %v4079
        %v4081 = vpop.f32.mrf.mxu0
        %v4082 = vadd.f32 0.0, %v4081
        %v4083 = vpop.f32.mrf.mxu0
        %v4084 = vadd.f32 0.0, %v4083
        %4085 = vmatprep.mubr.bf16.mxu0 0
        %4086 = vmatmul.mubr.bf16.gmra.mxu0 %v2398
        %v4087 = vpop.f32.mrf.mxu0
        %v4088 = vadd.f32 0.0, %v4087
        %v4089 = vpop.f32.mrf.mxu0
        %v4090 = vadd.f32 0.0, %v4089
        %v4091 = vpop.f32.mrf.mxu0
        %v4092 = vadd.f32 0.0, %v4091
        %v4093 = vpop.f32.mrf.mxu0
        %v4094 = vadd.f32 0.0, %v4093
        %4095 = vmatprep.mubr.bf16.mxu0 0
        %4096 = vmatmul.mubr.bf16.gmra.mxu0 %v2399
        %v4097 = vpop.f32.mrf.mxu0
        %v4098 = vadd.f32 0.0, %v4097
        %v4099 = vpop.f32.mrf.mxu0
        %v4100 = vadd.f32 0.0, %v4099
        %v4101 = vpop.f32.mrf.mxu0
        %v4102 = vadd.f32 0.0, %v4101
        %v4103 = vpop.f32.mrf.mxu0
        %v4104 = vadd.f32 0.0, %v4103
        %4105 = vmatprep.mubr.bf16.mxu0 0
        %4106 = vmatmul.mubr.bf16.gmra.mxu0 %v2400
        %v4107 = vpop.f32.mrf.mxu0
        %v4108 = vadd.f32 0.0, %v4107
        %v4109 = vpop.f32.mrf.mxu0
        %v4110 = vadd.f32 0.0, %v4109
        %v4111 = vpop.f32.mrf.mxu0
        %v4112 = vadd.f32 0.0, %v4111
        %v4113 = vpop.f32.mrf.mxu0
        %v4114 = vadd.f32 0.0, %v4113
        %4115 = vmatprep.mubr.bf16.mxu0 0
        %4116 = vmatmul.mubr.bf16.gmra.mxu0 %v2401
        %v4117 = vpop.f32.mrf.mxu0
        %v4118 = vadd.f32 0.0, %v4117
        %v4119 = vpop.f32.mrf.mxu0
        %v4120 = vadd.f32 0.0, %v4119
        %v4121 = vpop.f32.mrf.mxu0
        %v4122 = vadd.f32 0.0, %v4121
        %v4123 = vpop.f32.mrf.mxu0
        %v4124 = vadd.f32 0.0, %v4123
        %4125 = vmatprep.mubr.bf16.mxu0 0
        %4126 = vmatmul.mubr.bf16.gmra.mxu0 %v2402
        %v4127 = vpop.f32.mrf.mxu0
        %v4128 = vadd.f32 0.0, %v4127
        %v4129 = vpop.f32.mrf.mxu0
        %v4130 = vadd.f32 0.0, %v4129
        %v4131 = vpop.f32.mrf.mxu0
        %v4132 = vadd.f32 0.0, %v4131
        %v4133 = vpop.f32.mrf.mxu0
        %v4134 = vadd.f32 0.0, %v4133
        %4135 = vmatprep.mubr.bf16.mxu0 0
        %4136 = vmatmul.mubr.bf16.gmra.mxu0 %v2403
        %v4137 = vpop.f32.mrf.mxu0
        %v4138 = vadd.f32 0.0, %v4137
        %v4139 = vpop.f32.mrf.mxu0
        %v4140 = vadd.f32 0.0, %v4139
        %v4141 = vpop.f32.mrf.mxu0
        %v4142 = vadd.f32 0.0, %v4141
        %v4143 = vpop.f32.mrf.mxu0
        %v4144 = vadd.f32 0.0, %v4143
        %4145 = vmatprep.mubr.bf16.mxu0 0
        %4146 = vmatmul.mubr.bf16.gmra.mxu0 %v2404
        %v4147 = vpop.f32.mrf.mxu0
        %v4148 = vadd.f32 0.0, %v4147
        %v4149 = vpop.f32.mrf.mxu0
        %v4150 = vadd.f32 0.0, %v4149
        %v4151 = vpop.f32.mrf.mxu0
        %v4152 = vadd.f32 0.0, %v4151
        %v4153 = vpop.f32.mrf.mxu0
        %v4154 = vadd.f32 0.0, %v4153
        %4155 = vmatprep.mubr.bf16.mxu0 0
        %4156 = vmatmul.mubr.bf16.gmra.mxu0 %v2405
        %v4157 = vpop.f32.mrf.mxu0
        %v4158 = vadd.f32 0.0, %v4157
        %v4159 = vpop.f32.mrf.mxu0
        %v4160 = vadd.f32 0.0, %v4159
        %v4161 = vpop.f32.mrf.mxu0
        %v4162 = vadd.f32 0.0, %v4161
        %v4163 = vpop.f32.mrf.mxu0
        %v4164 = vadd.f32 0.0, %v4163
        %4165 = vmatprep.mubr.bf16.mxu0 0
        %4166 = vmatmul.mubr.bf16.gmra.mxu0 %v2406
        %v4167 = vpop.f32.mrf.mxu0
        %v4168 = vadd.f32 0.0, %v4167
        %v4169 = vpop.f32.mrf.mxu0
        %v4170 = vadd.f32 0.0, %v4169
        %v4171 = vpop.f32.mrf.mxu0
        %v4172 = vadd.f32 0.0, %v4171
        %v4173 = vpop.f32.mrf.mxu0
        %v4174 = vadd.f32 0.0, %v4173
        %4175 = vmatprep.mubr.bf16.mxu0 0
        %4176 = vmatmul.mubr.bf16.gmra.mxu0 %v2407
        %v4177 = vpop.f32.mrf.mxu0
        %v4178 = vadd.f32 0.0, %v4177
        %v4179 = vpop.f32.mrf.mxu0
        %v4180 = vadd.f32 0.0, %v4179
        %v4181 = vpop.f32.mrf.mxu0
        %v4182 = vadd.f32 0.0, %v4181
        %v4183 = vpop.f32.mrf.mxu0
        %v4184 = vadd.f32 0.0, %v4183
        %4185 = vmatprep.mubr.bf16.mxu0 0
        %4186 = vmatmul.mubr.bf16.gmra.mxu0 %v2408
        %v4187 = vpop.f32.mrf.mxu0
        %v4188 = vadd.f32 0.0, %v4187
        %v4189 = vpop.f32.mrf.mxu0
        %v4190 = vadd.f32 0.0, %v4189
        %v4191 = vpop.f32.mrf.mxu0
        %v4192 = vadd.f32 0.0, %v4191
        %v4193 = vpop.f32.mrf.mxu0
        %v4194 = vadd.f32 0.0, %v4193
        %4195 = vmatprep.mubr.bf16.mxu0 0
        %4196 = vmatmul.mubr.bf16.gmra.mxu0 %v2409
        %v4197 = vpop.f32.mrf.mxu0
        %v4198 = vadd.f32 0.0, %v4197
        %v4199 = vpop.f32.mrf.mxu0
        %v4200 = vadd.f32 0.0, %v4199
        %v4201 = vpop.f32.mrf.mxu0
        %v4202 = vadd.f32 0.0, %v4201
        %v4203 = vpop.f32.mrf.mxu0
        %v4204 = vadd.f32 0.0, %v4203
        %4205 = vdwg.mxu0
        %v4206 = vld [vmem:[%s8] sm:$0xff]
        %v4208 = vlaneseq
        %v4209 = vshrl.u32 %v4208, 7
        %v4210 = vsub.s32 0, %v4209
        %v4211 = vrot.slane %v4206, %v4210
        %v4212 = vlaneseq
        %v4213 = vshrl.u32 %v4212, 7
        %v4214 = vsub.s32 1, %v4213
        %v4215 = vrot.slane %v4206, %v4214
        %v4216 = vlaneseq
        %v4217 = vshrl.u32 %v4216, 7
        %v4218 = vsub.s32 2, %v4217
        %v4219 = vrot.slane %v4206, %v4218
        %v4220 = vlaneseq
        %v4221 = vshrl.u32 %v4220, 7
        %v4222 = vsub.s32 3, %v4221
        %v4223 = vrot.slane %v4206, %v4222
        %v4224 = vlaneseq
        %v4225 = vshrl.u32 %v4224, 7
        %v4226 = vsub.s32 4, %v4225
        %v4227 = vrot.slane %v4206, %v4226
        %v4228 = vlaneseq
        %v4229 = vshrl.u32 %v4228, 7
        %v4230 = vsub.s32 5, %v4229
        %v4231 = vrot.slane %v4206, %v4230
        %v4232 = vlaneseq
        %v4233 = vshrl.u32 %v4232, 7
        %v4234 = vsub.s32 6, %v4233
        %v4235 = vrot.slane %v4206, %v4234
        %v4236 = vlaneseq
        %v4237 = vshrl.u32 %v4236, 7
        %v4238 = vsub.s32 7, %v4237
        %v4239 = vrot.slane %v4206, %v4238
        %v4248 = vmul.f32 %v2829, %v4211
        %v4249 = vmul.f32 %v2831, %v4215
        %v4250 = vmul.f32 %v3182, %v4219
        %v4251 = vmul.f32 %v3184, %v4223
        %v4252 = vmul.f32 %v3535, %v4227
        %v4253 = vmul.f32 %v3537, %v4231
        %v4254 = vmul.f32 %v3888, %v4235
        %v4255 = vmul.f32 %v3890, %v4239
        %v4256 = vmul.f32 %v2833, %v4211
        %v4257 = vmul.f32 %v2835, %v4215
        %v4258 = vmul.f32 %v3186, %v4219
        %v4259 = vmul.f32 %v3188, %v4223
        %v4260 = vmul.f32 %v3539, %v4227
        %v4261 = vmul.f32 %v3541, %v4231
        %v4262 = vmul.f32 %v3892, %v4235
        %v4263 = vmul.f32 %v3894, %v4239
        %v4264 = vmul.f32 %v2839, %v4211
        %v4265 = vmul.f32 %v2841, %v4215
        %v4266 = vmul.f32 %v3192, %v4219
        %v4267 = vmul.f32 %v3194, %v4223
        %v4268 = vmul.f32 %v3545, %v4227
        %v4269 = vmul.f32 %v3547, %v4231
        %v4270 = vmul.f32 %v3898, %v4235
        %v4271 = vmul.f32 %v3900, %v4239
        %v4272 = vmul.f32 %v2843, %v4211
        %v4273 = vmul.f32 %v2845, %v4215
        %v4274 = vmul.f32 %v3196, %v4219
        %v4275 = vmul.f32 %v3198, %v4223
        %v4276 = vmul.f32 %v3549, %v4227
        %v4277 = vmul.f32 %v3551, %v4231
        %v4278 = vmul.f32 %v3902, %v4235
        %v4279 = vmul.f32 %v3904, %v4239
        %v4280 = vmul.f32 %v2849, %v4211
        %v4281 = vmul.f32 %v2851, %v4215
        %v4282 = vmul.f32 %v3202, %v4219
        %v4283 = vmul.f32 %v3204, %v4223
        %v4284 = vmul.f32 %v3555, %v4227
        %v4285 = vmul.f32 %v3557, %v4231
        %v4286 = vmul.f32 %v3908, %v4235
        %v4287 = vmul.f32 %v3910, %v4239
        %v4288 = vmul.f32 %v2853, %v4211
        %v4289 = vmul.f32 %v2855, %v4215
        %v4290 = vmul.f32 %v3206, %v4219
        %v4291 = vmul.f32 %v3208, %v4223
        %v4292 = vmul.f32 %v3559, %v4227
        %v4293 = vmul.f32 %v3561, %v4231
        %v4294 = vmul.f32 %v3912, %v4235
        %v4295 = vmul.f32 %v3914, %v4239
        %v4296 = vmul.f32 %v2859, %v4211
        %v4297 = vmul.f32 %v2861, %v4215
        %v4298 = vmul.f32 %v3212, %v4219
        %v4299 = vmul.f32 %v3214, %v4223
        %v4300 = vmul.f32 %v3565, %v4227
        %v4301 = vmul.f32 %v3567, %v4231
        %v4302 = vmul.f32 %v3918, %v4235
        %v4303 = vmul.f32 %v3920, %v4239
        %v4304 = vmul.f32 %v2863, %v4211
        %v4305 = vmul.f32 %v2865, %v4215
        %v4306 = vmul.f32 %v3216, %v4219
        %v4307 = vmul.f32 %v3218, %v4223
        %v4308 = vmul.f32 %v3569, %v4227
        %v4309 = vmul.f32 %v3571, %v4231
        %v4310 = vmul.f32 %v3922, %v4235
        %v4311 = vmul.f32 %v3924, %v4239
        %v4312 = vmul.f32 %v2869, %v4211
        %v4313 = vmul.f32 %v2871, %v4215
        %v4314 = vmul.f32 %v3222, %v4219
        %v4315 = vmul.f32 %v3224, %v4223
        %v4316 = vmul.f32 %v3575, %v4227
        %v4317 = vmul.f32 %v3577, %v4231
        %v4318 = vmul.f32 %v3928, %v4235
        %v4319 = vmul.f32 %v3930, %v4239
        %v4320 = vmul.f32 %v2873, %v4211
        %v4321 = vmul.f32 %v2875, %v4215
        %v4322 = vmul.f32 %v3226, %v4219
        %v4323 = vmul.f32 %v3228, %v4223
        %v4324 = vmul.f32 %v3579, %v4227
        %v4325 = vmul.f32 %v3581, %v4231
        %v4326 = vmul.f32 %v3932, %v4235
        %v4327 = vmul.f32 %v3934, %v4239
        %v4328 = vmul.f32 %v2879, %v4211
        %v4329 = vmul.f32 %v2881, %v4215
        %v4330 = vmul.f32 %v3232, %v4219
        %v4331 = vmul.f32 %v3234, %v4223
        %v4332 = vmul.f32 %v3585, %v4227
        %v4333 = vmul.f32 %v3587, %v4231
        %v4334 = vmul.f32 %v3938, %v4235
        %v4335 = vmul.f32 %v3940, %v4239
        %v4336 = vmul.f32 %v2883, %v4211
        %v4337 = vmul.f32 %v2885, %v4215
        %v4338 = vmul.f32 %v3236, %v4219
        %v4339 = vmul.f32 %v3238, %v4223
        %v4340 = vmul.f32 %v3589, %v4227
        %v4341 = vmul.f32 %v3591, %v4231
        %v4342 = vmul.f32 %v3942, %v4235
        %v4343 = vmul.f32 %v3944, %v4239
        %v4344 = vmul.f32 %v2889, %v4211
        %v4345 = vmul.f32 %v2891, %v4215
        %v4346 = vmul.f32 %v3242, %v4219
        %v4347 = vmul.f32 %v3244, %v4223
        %v4348 = vmul.f32 %v3595, %v4227
        %v4349 = vmul.f32 %v3597, %v4231
        %v4350 = vmul.f32 %v3948, %v4235
        %v4351 = vmul.f32 %v3950, %v4239
        %v4352 = vmul.f32 %v2893, %v4211
        %v4353 = vmul.f32 %v2895, %v4215
        %v4354 = vmul.f32 %v3246, %v4219
        %v4355 = vmul.f32 %v3248, %v4223
        %v4356 = vmul.f32 %v3599, %v4227
        %v4357 = vmul.f32 %v3601, %v4231
        %v4358 = vmul.f32 %v3952, %v4235
        %v4359 = vmul.f32 %v3954, %v4239
        %v4360 = vmul.f32 %v2899, %v4211
        %v4361 = vmul.f32 %v2901, %v4215
        %v4362 = vmul.f32 %v3252, %v4219
        %v4363 = vmul.f32 %v3254, %v4223
        %v4364 = vmul.f32 %v3605, %v4227
        %v4365 = vmul.f32 %v3607, %v4231
        %v4366 = vmul.f32 %v3958, %v4235
        %v4367 = vmul.f32 %v3960, %v4239
        %v4368 = vmul.f32 %v2903, %v4211
        %v4369 = vmul.f32 %v2905, %v4215
        %v4370 = vmul.f32 %v3256, %v4219
        %v4371 = vmul.f32 %v3258, %v4223
        %v4372 = vmul.f32 %v3609, %v4227
        %v4373 = vmul.f32 %v3611, %v4231
        %v4374 = vmul.f32 %v3962, %v4235
        %v4375 = vmul.f32 %v3964, %v4239
        %v4376 = vmul.f32 %v2909, %v4211
        %v4377 = vmul.f32 %v2911, %v4215
        %v4378 = vmul.f32 %v3262, %v4219
        %v4379 = vmul.f32 %v3264, %v4223
        %v4380 = vmul.f32 %v3615, %v4227
        %v4381 = vmul.f32 %v3617, %v4231
        %v4382 = vmul.f32 %v3968, %v4235
        %v4383 = vmul.f32 %v3970, %v4239
        %v4384 = vmul.f32 %v2913, %v4211
        %v4385 = vmul.f32 %v2915, %v4215
        %v4386 = vmul.f32 %v3266, %v4219
        %v4387 = vmul.f32 %v3268, %v4223
        %v4388 = vmul.f32 %v3619, %v4227
        %v4389 = vmul.f32 %v3621, %v4231
        %v4390 = vmul.f32 %v3972, %v4235
        %v4391 = vmul.f32 %v3974, %v4239
        %v4392 = vmul.f32 %v2919, %v4211
        %v4393 = vmul.f32 %v2921, %v4215
        %v4394 = vmul.f32 %v3272, %v4219
        %v4395 = vmul.f32 %v3274, %v4223
        %v4396 = vmul.f32 %v3625, %v4227
        %v4397 = vmul.f32 %v3627, %v4231
        %v4398 = vmul.f32 %v3978, %v4235
        %v4399 = vmul.f32 %v3980, %v4239
        %v4400 = vmul.f32 %v2923, %v4211
        %v4401 = vmul.f32 %v2925, %v4215
        %v4402 = vmul.f32 %v3276, %v4219
        %v4403 = vmul.f32 %v3278, %v4223
        %v4404 = vmul.f32 %v3629, %v4227
        %v4405 = vmul.f32 %v3631, %v4231
        %v4406 = vmul.f32 %v3982, %v4235
        %v4407 = vmul.f32 %v3984, %v4239
        %v4408 = vmul.f32 %v2929, %v4211
        %v4409 = vmul.f32 %v2931, %v4215
        %v4410 = vmul.f32 %v3282, %v4219
        %v4411 = vmul.f32 %v3284, %v4223
        %v4412 = vmul.f32 %v3635, %v4227
        %v4413 = vmul.f32 %v3637, %v4231
        %v4414 = vmul.f32 %v3988, %v4235
        %v4415 = vmul.f32 %v3990, %v4239
        %v4416 = vmul.f32 %v2933, %v4211
        %v4417 = vmul.f32 %v2935, %v4215
        %v4418 = vmul.f32 %v3286, %v4219
        %v4419 = vmul.f32 %v3288, %v4223
        %v4420 = vmul.f32 %v3639, %v4227
        %v4421 = vmul.f32 %v3641, %v4231
        %v4422 = vmul.f32 %v3992, %v4235
        %v4423 = vmul.f32 %v3994, %v4239
        %v4424 = vmul.f32 %v2939, %v4211
        %v4425 = vmul.f32 %v2941, %v4215
        %v4426 = vmul.f32 %v3292, %v4219
        %v4427 = vmul.f32 %v3294, %v4223
        %v4428 = vmul.f32 %v3645, %v4227
        %v4429 = vmul.f32 %v3647, %v4231
        %v4430 = vmul.f32 %v3998, %v4235
        %v4431 = vmul.f32 %v4000, %v4239
        %v4432 = vmul.f32 %v2943, %v4211
        %v4433 = vmul.f32 %v2945, %v4215
        %v4434 = vmul.f32 %v3296, %v4219
        %v4435 = vmul.f32 %v3298, %v4223
        %v4436 = vmul.f32 %v3649, %v4227
        %v4437 = vmul.f32 %v3651, %v4231
        %v4438 = vmul.f32 %v4002, %v4235
        %v4439 = vmul.f32 %v4004, %v4239
        %v4440 = vmul.f32 %v2949, %v4211
        %v4441 = vmul.f32 %v2951, %v4215
        %v4442 = vmul.f32 %v3302, %v4219
        %v4443 = vmul.f32 %v3304, %v4223
        %v4444 = vmul.f32 %v3655, %v4227
        %v4445 = vmul.f32 %v3657, %v4231
        %v4446 = vmul.f32 %v4008, %v4235
        %v4447 = vmul.f32 %v4010, %v4239
        %v4448 = vmul.f32 %v2953, %v4211
        %v4449 = vmul.f32 %v2955, %v4215
        %v4450 = vmul.f32 %v3306, %v4219
        %v4451 = vmul.f32 %v3308, %v4223
        %v4452 = vmul.f32 %v3659, %v4227
        %v4453 = vmul.f32 %v3661, %v4231
        %v4454 = vmul.f32 %v4012, %v4235
        %v4455 = vmul.f32 %v4014, %v4239
        %v4456 = vmul.f32 %v2959, %v4211
        %v4457 = vmul.f32 %v2961, %v4215
        %v4458 = vmul.f32 %v3312, %v4219
        %v4459 = vmul.f32 %v3314, %v4223
        %v4460 = vmul.f32 %v3665, %v4227
        %v4461 = vmul.f32 %v3667, %v4231
        %v4462 = vmul.f32 %v4018, %v4235
        %v4463 = vmul.f32 %v4020, %v4239
        %v4464 = vmul.f32 %v2963, %v4211
        %v4465 = vmul.f32 %v2965, %v4215
        %v4466 = vmul.f32 %v3316, %v4219
        %v4467 = vmul.f32 %v3318, %v4223
        %v4468 = vmul.f32 %v3669, %v4227
        %v4469 = vmul.f32 %v3671, %v4231
        %v4470 = vmul.f32 %v4022, %v4235
        %v4471 = vmul.f32 %v4024, %v4239
        %v4472 = vmul.f32 %v2969, %v4211
        %v4473 = vmul.f32 %v2971, %v4215
        %v4474 = vmul.f32 %v3322, %v4219
        %v4475 = vmul.f32 %v3324, %v4223
        %v4476 = vmul.f32 %v3675, %v4227
        %v4477 = vmul.f32 %v3677, %v4231
        %v4478 = vmul.f32 %v4028, %v4235
        %v4479 = vmul.f32 %v4030, %v4239
        %v4480 = vmul.f32 %v2973, %v4211
        %v4481 = vmul.f32 %v2975, %v4215
        %v4482 = vmul.f32 %v3326, %v4219
        %v4483 = vmul.f32 %v3328, %v4223
        %v4484 = vmul.f32 %v3679, %v4227
        %v4485 = vmul.f32 %v3681, %v4231
        %v4486 = vmul.f32 %v4032, %v4235
        %v4487 = vmul.f32 %v4034, %v4239
        %v4488 = vmul.f32 %v2979, %v4211
        %v4489 = vmul.f32 %v2981, %v4215
        %v4490 = vmul.f32 %v3332, %v4219
        %v4491 = vmul.f32 %v3334, %v4223
        %v4492 = vmul.f32 %v3685, %v4227
        %v4493 = vmul.f32 %v3687, %v4231
        %v4494 = vmul.f32 %v4038, %v4235
        %v4495 = vmul.f32 %v4040, %v4239
        %v4496 = vmul.f32 %v2983, %v4211
        %v4497 = vmul.f32 %v2985, %v4215
        %v4498 = vmul.f32 %v3336, %v4219
        %v4499 = vmul.f32 %v3338, %v4223
        %v4500 = vmul.f32 %v3689, %v4227
        %v4501 = vmul.f32 %v3691, %v4231
        %v4502 = vmul.f32 %v4042, %v4235
        %v4503 = vmul.f32 %v4044, %v4239
        %v4504 = vmul.f32 %v2989, %v4211
        %v4505 = vmul.f32 %v2991, %v4215
        %v4506 = vmul.f32 %v3342, %v4219
        %v4507 = vmul.f32 %v3344, %v4223
        %v4508 = vmul.f32 %v3695, %v4227
        %v4509 = vmul.f32 %v3697, %v4231
        %v4510 = vmul.f32 %v4048, %v4235
        %v4511 = vmul.f32 %v4050, %v4239
        %v4512 = vmul.f32 %v2993, %v4211
        %v4513 = vmul.f32 %v2995, %v4215
        %v4514 = vmul.f32 %v3346, %v4219
        %v4515 = vmul.f32 %v3348, %v4223
        %v4516 = vmul.f32 %v3699, %v4227
        %v4517 = vmul.f32 %v3701, %v4231
        %v4518 = vmul.f32 %v4052, %v4235
        %v4519 = vmul.f32 %v4054, %v4239
        %v4520 = vmul.f32 %v2999, %v4211
        %v4521 = vmul.f32 %v3001, %v4215
        %v4522 = vmul.f32 %v3352, %v4219
        %v4523 = vmul.f32 %v3354, %v4223
        %v4524 = vmul.f32 %v3705, %v4227
        %v4525 = vmul.f32 %v3707, %v4231
        %v4526 = vmul.f32 %v4058, %v4235
        %v4527 = vmul.f32 %v4060, %v4239
        %v4528 = vmul.f32 %v3003, %v4211
        %v4529 = vmul.f32 %v3005, %v4215
        %v4530 = vmul.f32 %v3356, %v4219
        %v4531 = vmul.f32 %v3358, %v4223
        %v4532 = vmul.f32 %v3709, %v4227
        %v4533 = vmul.f32 %v3711, %v4231
        %v4534 = vmul.f32 %v4062, %v4235
        %v4535 = vmul.f32 %v4064, %v4239
        %v4536 = vmul.f32 %v3009, %v4211
        %v4537 = vmul.f32 %v3011, %v4215
        %v4538 = vmul.f32 %v3362, %v4219
        %v4539 = vmul.f32 %v3364, %v4223
        %v4540 = vmul.f32 %v3715, %v4227
        %v4541 = vmul.f32 %v3717, %v4231
        %v4542 = vmul.f32 %v4068, %v4235
        %v4543 = vmul.f32 %v4070, %v4239
        %v4544 = vmul.f32 %v3013, %v4211
        %v4545 = vmul.f32 %v3015, %v4215
        %v4546 = vmul.f32 %v3366, %v4219
        %v4547 = vmul.f32 %v3368, %v4223
        %v4548 = vmul.f32 %v3719, %v4227
        %v4549 = vmul.f32 %v3721, %v4231
        %v4550 = vmul.f32 %v4072, %v4235
        %v4551 = vmul.f32 %v4074, %v4239
        %v4552 = vmul.f32 %v3019, %v4211
        %v4553 = vmul.f32 %v3021, %v4215
        %v4554 = vmul.f32 %v3372, %v4219
        %v4555 = vmul.f32 %v3374, %v4223
        %v4556 = vmul.f32 %v3725, %v4227
        %v4557 = vmul.f32 %v3727, %v4231
        %v4558 = vmul.f32 %v4078, %v4235
        %v4559 = vmul.f32 %v4080, %v4239
        %v4560 = vmul.f32 %v3023, %v4211
        %v4561 = vmul.f32 %v3025, %v4215
        %v4562 = vmul.f32 %v3376, %v4219
        %v4563 = vmul.f32 %v3378, %v4223
        %v4564 = vmul.f32 %v3729, %v4227
        %v4565 = vmul.f32 %v3731, %v4231
        %v4566 = vmul.f32 %v4082, %v4235
        %v4567 = vmul.f32 %v4084, %v4239
        %v4568 = vmul.f32 %v3029, %v4211
        %v4569 = vmul.f32 %v3031, %v4215
        %v4570 = vmul.f32 %v3382, %v4219
        %v4571 = vmul.f32 %v3384, %v4223
        %v4572 = vmul.f32 %v3735, %v4227
        %v4573 = vmul.f32 %v3737, %v4231
        %v4574 = vmul.f32 %v4088, %v4235
        %v4575 = vmul.f32 %v4090, %v4239
        %v4576 = vmul.f32 %v3033, %v4211
        %v4577 = vmul.f32 %v3035, %v4215
        %v4578 = vmul.f32 %v3386, %v4219
        %v4579 = vmul.f32 %v3388, %v4223
        %v4580 = vmul.f32 %v3739, %v4227
        %v4581 = vmul.f32 %v3741, %v4231
        %v4582 = vmul.f32 %v4092, %v4235
        %v4583 = vmul.f32 %v4094, %v4239
        %v4584 = vmul.f32 %v3039, %v4211
        %v4585 = vmul.f32 %v3041, %v4215
        %v4586 = vmul.f32 %v3392, %v4219
        %v4587 = vmul.f32 %v3394, %v4223
        %v4588 = vmul.f32 %v3745, %v4227
        %v4589 = vmul.f32 %v3747, %v4231
        %v4590 = vmul.f32 %v4098, %v4235
        %v4591 = vmul.f32 %v4100, %v4239
        %v4592 = vmul.f32 %v3043, %v4211
        %v4593 = vmul.f32 %v3045, %v4215
        %v4594 = vmul.f32 %v3396, %v4219
        %v4595 = vmul.f32 %v3398, %v4223
        %v4596 = vmul.f32 %v3749, %v4227
        %v4597 = vmul.f32 %v3751, %v4231
        %v4598 = vmul.f32 %v4102, %v4235
        %v4599 = vmul.f32 %v4104, %v4239
        %v4600 = vmul.f32 %v3049, %v4211
        %v4601 = vmul.f32 %v3051, %v4215
        %v4602 = vmul.f32 %v3402, %v4219
        %v4603 = vmul.f32 %v3404, %v4223
        %v4604 = vmul.f32 %v3755, %v4227
        %v4605 = vmul.f32 %v3757, %v4231
        %v4606 = vmul.f32 %v4108, %v4235
        %v4607 = vmul.f32 %v4110, %v4239
        %v4608 = vmul.f32 %v3053, %v4211
        %v4609 = vmul.f32 %v3055, %v4215
        %v4610 = vmul.f32 %v3406, %v4219
        %v4611 = vmul.f32 %v3408, %v4223
        %v4612 = vmul.f32 %v3759, %v4227
        %v4613 = vmul.f32 %v3761, %v4231
        %v4614 = vmul.f32 %v4112, %v4235
        %v4615 = vmul.f32 %v4114, %v4239
        %v4616 = vmul.f32 %v3059, %v4211
        %v4617 = vmul.f32 %v3061, %v4215
        %v4618 = vmul.f32 %v3412, %v4219
        %v4619 = vmul.f32 %v3414, %v4223
        %v4620 = vmul.f32 %v3765, %v4227
        %v4621 = vmul.f32 %v3767, %v4231
        %v4622 = vmul.f32 %v4118, %v4235
        %v4623 = vmul.f32 %v4120, %v4239
        %v4624 = vmul.f32 %v3063, %v4211
        %v4625 = vmul.f32 %v3065, %v4215
        %v4626 = vmul.f32 %v3416, %v4219
        %v4627 = vmul.f32 %v3418, %v4223
        %v4628 = vmul.f32 %v3769, %v4227
        %v4629 = vmul.f32 %v3771, %v4231
        %v4630 = vmul.f32 %v4122, %v4235
        %v4631 = vmul.f32 %v4124, %v4239
        %v4632 = vmul.f32 %v3069, %v4211
        %v4633 = vmul.f32 %v3071, %v4215
        %v4634 = vmul.f32 %v3422, %v4219
        %v4635 = vmul.f32 %v3424, %v4223
        %v4636 = vmul.f32 %v3775, %v4227
        %v4637 = vmul.f32 %v3777, %v4231
        %v4638 = vmul.f32 %v4128, %v4235
        %v4639 = vmul.f32 %v4130, %v4239
        %v4640 = vmul.f32 %v3073, %v4211
        %v4641 = vmul.f32 %v3075, %v4215
        %v4642 = vmul.f32 %v3426, %v4219
        %v4643 = vmul.f32 %v3428, %v4223
        %v4644 = vmul.f32 %v3779, %v4227
        %v4645 = vmul.f32 %v3781, %v4231
        %v4646 = vmul.f32 %v4132, %v4235
        %v4647 = vmul.f32 %v4134, %v4239
        %v4648 = vmul.f32 %v3079, %v4211
        %v4649 = vmul.f32 %v3081, %v4215
        %v4650 = vmul.f32 %v3432, %v4219
        %v4651 = vmul.f32 %v3434, %v4223
        %v4652 = vmul.f32 %v3785, %v4227
        %v4653 = vmul.f32 %v3787, %v4231
        %v4654 = vmul.f32 %v4138, %v4235
        %v4655 = vmul.f32 %v4140, %v4239
        %v4656 = vmul.f32 %v3083, %v4211
        %v4657 = vmul.f32 %v3085, %v4215
        %v4658 = vmul.f32 %v3436, %v4219
        %v4659 = vmul.f32 %v3438, %v4223
        %v4660 = vmul.f32 %v3789, %v4227
        %v4661 = vmul.f32 %v3791, %v4231
        %v4662 = vmul.f32 %v4142, %v4235
        %v4663 = vmul.f32 %v4144, %v4239
        %v4664 = vmul.f32 %v3089, %v4211
        %v4665 = vmul.f32 %v3091, %v4215
        %v4666 = vmul.f32 %v3442, %v4219
        %v4667 = vmul.f32 %v3444, %v4223
        %v4668 = vmul.f32 %v3795, %v4227
        %v4669 = vmul.f32 %v3797, %v4231
        %v4670 = vmul.f32 %v4148, %v4235
        %v4671 = vmul.f32 %v4150, %v4239
        %v4672 = vmul.f32 %v3093, %v4211
        %v4673 = vmul.f32 %v3095, %v4215
        %v4674 = vmul.f32 %v3446, %v4219
        %v4675 = vmul.f32 %v3448, %v4223
        %v4676 = vmul.f32 %v3799, %v4227
        %v4677 = vmul.f32 %v3801, %v4231
        %v4678 = vmul.f32 %v4152, %v4235
        %v4679 = vmul.f32 %v4154, %v4239
        %v4680 = vmul.f32 %v3099, %v4211
        %v4681 = vmul.f32 %v3101, %v4215
        %v4682 = vmul.f32 %v3452, %v4219
        %v4683 = vmul.f32 %v3454, %v4223
        %v4684 = vmul.f32 %v3805, %v4227
        %v4685 = vmul.f32 %v3807, %v4231
        %v4686 = vmul.f32 %v4158, %v4235
        %v4687 = vmul.f32 %v4160, %v4239
        %v4688 = vmul.f32 %v3103, %v4211
        %v4689 = vmul.f32 %v3105, %v4215
        %v4690 = vmul.f32 %v3456, %v4219
        %v4691 = vmul.f32 %v3458, %v4223
        %v4692 = vmul.f32 %v3809, %v4227
        %v4693 = vmul.f32 %v3811, %v4231
        %v4694 = vmul.f32 %v4162, %v4235
        %v4695 = vmul.f32 %v4164, %v4239
        %v4696 = vmul.f32 %v3109, %v4211
        %v4697 = vmul.f32 %v3111, %v4215
        %v4698 = vmul.f32 %v3462, %v4219
        %v4699 = vmul.f32 %v3464, %v4223
        %v4700 = vmul.f32 %v3815, %v4227
        %v4701 = vmul.f32 %v3817, %v4231
        %v4702 = vmul.f32 %v4168, %v4235
        %v4703 = vmul.f32 %v4170, %v4239
        %v4704 = vmul.f32 %v3113, %v4211
        %v4705 = vmul.f32 %v3115, %v4215
        %v4706 = vmul.f32 %v3466, %v4219
        %v4707 = vmul.f32 %v3468, %v4223
        %v4708 = vmul.f32 %v3819, %v4227
        %v4709 = vmul.f32 %v3821, %v4231
        %v4710 = vmul.f32 %v4172, %v4235
        %v4711 = vmul.f32 %v4174, %v4239
        %v4712 = vmul.f32 %v3119, %v4211
        %v4713 = vmul.f32 %v3121, %v4215
        %v4714 = vmul.f32 %v3472, %v4219
        %v4715 = vmul.f32 %v3474, %v4223
        %v4716 = vmul.f32 %v3825, %v4227
        %v4717 = vmul.f32 %v3827, %v4231
        %v4718 = vmul.f32 %v4178, %v4235
        %v4719 = vmul.f32 %v4180, %v4239
        %v4720 = vmul.f32 %v3123, %v4211
        %v4721 = vmul.f32 %v3125, %v4215
        %v4722 = vmul.f32 %v3476, %v4219
        %v4723 = vmul.f32 %v3478, %v4223
        %v4724 = vmul.f32 %v3829, %v4227
        %v4725 = vmul.f32 %v3831, %v4231
        %v4726 = vmul.f32 %v4182, %v4235
        %v4727 = vmul.f32 %v4184, %v4239
        %v4728 = vmul.f32 %v3129, %v4211
        %v4729 = vmul.f32 %v3131, %v4215
        %v4730 = vmul.f32 %v3482, %v4219
        %v4731 = vmul.f32 %v3484, %v4223
        %v4732 = vmul.f32 %v3835, %v4227
        %v4733 = vmul.f32 %v3837, %v4231
        %v4734 = vmul.f32 %v4188, %v4235
        %v4735 = vmul.f32 %v4190, %v4239
        %v4736 = vmul.f32 %v3133, %v4211
        %v4737 = vmul.f32 %v3135, %v4215
        %v4738 = vmul.f32 %v3486, %v4219
        %v4739 = vmul.f32 %v3488, %v4223
        %v4740 = vmul.f32 %v3839, %v4227
        %v4741 = vmul.f32 %v3841, %v4231
        %v4742 = vmul.f32 %v4192, %v4235
        %v4743 = vmul.f32 %v4194, %v4239
        %v4744 = vmul.f32 %v3139, %v4211
        %v4745 = vmul.f32 %v3141, %v4215
        %v4746 = vmul.f32 %v3492, %v4219
        %v4747 = vmul.f32 %v3494, %v4223
        %v4748 = vmul.f32 %v3845, %v4227
        %v4749 = vmul.f32 %v3847, %v4231
        %v4750 = vmul.f32 %v4198, %v4235
        %v4751 = vmul.f32 %v4200, %v4239
        %v4752 = vmul.f32 %v3143, %v4211
        %v4753 = vmul.f32 %v3145, %v4215
        %v4754 = vmul.f32 %v3496, %v4219
        %v4755 = vmul.f32 %v3498, %v4223
        %v4756 = vmul.f32 %v3849, %v4227
        %v4757 = vmul.f32 %v3851, %v4231
        %v4758 = vmul.f32 %v4202, %v4235
        %v4759 = vmul.f32 %v4204, %v4239
        %v4760 = vld [vmem:[#allocation15] sm:$0xff]
        %v4762 = vlaneseq
        %v4763 = vshrl.u32 %v4762, 7
        %v4764 = vsub.s32 0, %v4763
        %v4765 = vrot.slane %v4760, %v4764
        %v4766 = vlaneseq
        %v4767 = vshrl.u32 %v4766, 7
        %v4768 = vsub.s32 1, %v4767
        %v4769 = vrot.slane %v4760, %v4768
        %v4770 = vlaneseq
        %v4771 = vshrl.u32 %v4770, 7
        %v4772 = vsub.s32 2, %v4771
        %v4773 = vrot.slane %v4760, %v4772
        %v4774 = vlaneseq
        %v4775 = vshrl.u32 %v4774, 7
        %v4776 = vsub.s32 3, %v4775
        %v4777 = vrot.slane %v4760, %v4776
        %v4778 = vlaneseq
        %v4779 = vshrl.u32 %v4778, 7
        %v4780 = vsub.s32 4, %v4779
        %v4781 = vrot.slane %v4760, %v4780
        %v4782 = vlaneseq
        %v4783 = vshrl.u32 %v4782, 7
        %v4784 = vsub.s32 5, %v4783
        %v4785 = vrot.slane %v4760, %v4784
        %v4786 = vlaneseq
        %v4787 = vshrl.u32 %v4786, 7
        %v4788 = vsub.s32 6, %v4787
        %v4789 = vrot.slane %v4760, %v4788
        %v4790 = vlaneseq
        %v4791 = vshrl.u32 %v4790, 7
        %v4792 = vsub.s32 7, %v4791
        %v4793 = vrot.slane %v4760, %v4792
        %v4802 = vadd.f32 %v4248, %v4765
        %v4803 = vadd.f32 %v4249, %v4769
        %v4804 = vadd.f32 %v4250, %v4773
        %v4805 = vadd.f32 %v4251, %v4777
        %v4806 = vadd.f32 %v4252, %v4781
        %v4807 = vadd.f32 %v4253, %v4785
        %v4808 = vadd.f32 %v4254, %v4789
        %v4809 = vadd.f32 %v4255, %v4793
        %v4810 = vadd.f32 %v4256, %v4765
        %v4811 = vadd.f32 %v4257, %v4769
        %v4812 = vadd.f32 %v4258, %v4773
        %v4813 = vadd.f32 %v4259, %v4777
        %v4814 = vadd.f32 %v4260, %v4781
        %v4815 = vadd.f32 %v4261, %v4785
        %v4816 = vadd.f32 %v4262, %v4789
        %v4817 = vadd.f32 %v4263, %v4793
        %v4818 = vadd.f32 %v4264, %v4765
        %v4819 = vadd.f32 %v4265, %v4769
        %v4820 = vadd.f32 %v4266, %v4773
        %v4821 = vadd.f32 %v4267, %v4777
        %v4822 = vadd.f32 %v4268, %v4781
        %v4823 = vadd.f32 %v4269, %v4785
        %v4824 = vadd.f32 %v4270, %v4789
        %v4825 = vadd.f32 %v4271, %v4793
        %v4826 = vadd.f32 %v4272, %v4765
        %v4827 = vadd.f32 %v4273, %v4769
        %v4828 = vadd.f32 %v4274, %v4773
        %v4829 = vadd.f32 %v4275, %v4777
        %v4830 = vadd.f32 %v4276, %v4781
        %v4831 = vadd.f32 %v4277, %v4785
        %v4832 = vadd.f32 %v4278, %v4789
        %v4833 = vadd.f32 %v4279, %v4793
        %v4834 = vadd.f32 %v4280, %v4765
        %v4835 = vadd.f32 %v4281, %v4769
        %v4836 = vadd.f32 %v4282, %v4773
        %v4837 = vadd.f32 %v4283, %v4777
        %v4838 = vadd.f32 %v4284, %v4781
        %v4839 = vadd.f32 %v4285, %v4785
        %v4840 = vadd.f32 %v4286, %v4789
        %v4841 = vadd.f32 %v4287, %v4793
        %v4842 = vadd.f32 %v4288, %v4765
        %v4843 = vadd.f32 %v4289, %v4769
        %v4844 = vadd.f32 %v4290, %v4773
        %v4845 = vadd.f32 %v4291, %v4777
        %v4846 = vadd.f32 %v4292, %v4781
        %v4847 = vadd.f32 %v4293, %v4785
        %v4848 = vadd.f32 %v4294, %v4789
        %v4849 = vadd.f32 %v4295, %v4793
        %v4850 = vadd.f32 %v4296, %v4765
        %v4851 = vadd.f32 %v4297, %v4769
        %v4852 = vadd.f32 %v4298, %v4773
        %v4853 = vadd.f32 %v4299, %v4777
        %v4854 = vadd.f32 %v4300, %v4781
        %v4855 = vadd.f32 %v4301, %v4785
        %v4856 = vadd.f32 %v4302, %v4789
        %v4857 = vadd.f32 %v4303, %v4793
        %v4858 = vadd.f32 %v4304, %v4765
        %v4859 = vadd.f32 %v4305, %v4769
        %v4860 = vadd.f32 %v4306, %v4773
        %v4861 = vadd.f32 %v4307, %v4777
        %v4862 = vadd.f32 %v4308, %v4781
        %v4863 = vadd.f32 %v4309, %v4785
        %v4864 = vadd.f32 %v4310, %v4789
        %v4865 = vadd.f32 %v4311, %v4793
        %v4866 = vadd.f32 %v4312, %v4765
        %v4867 = vadd.f32 %v4313, %v4769
        %v4868 = vadd.f32 %v4314, %v4773
        %v4869 = vadd.f32 %v4315, %v4777
        %v4870 = vadd.f32 %v4316, %v4781
        %v4871 = vadd.f32 %v4317, %v4785
        %v4872 = vadd.f32 %v4318, %v4789
        %v4873 = vadd.f32 %v4319, %v4793
        %v4874 = vadd.f32 %v4320, %v4765
        %v4875 = vadd.f32 %v4321, %v4769
        %v4876 = vadd.f32 %v4322, %v4773
        %v4877 = vadd.f32 %v4323, %v4777
        %v4878 = vadd.f32 %v4324, %v4781
        %v4879 = vadd.f32 %v4325, %v4785
        %v4880 = vadd.f32 %v4326, %v4789
        %v4881 = vadd.f32 %v4327, %v4793
        %v4882 = vadd.f32 %v4328, %v4765
        %v4883 = vadd.f32 %v4329, %v4769
        %v4884 = vadd.f32 %v4330, %v4773
        %v4885 = vadd.f32 %v4331, %v4777
        %v4886 = vadd.f32 %v4332, %v4781
        %v4887 = vadd.f32 %v4333, %v4785
        %v4888 = vadd.f32 %v4334, %v4789
        %v4889 = vadd.f32 %v4335, %v4793
        %v4890 = vadd.f32 %v4336, %v4765
        %v4891 = vadd.f32 %v4337, %v4769
        %v4892 = vadd.f32 %v4338, %v4773
        %v4893 = vadd.f32 %v4339, %v4777
        %v4894 = vadd.f32 %v4340, %v4781
        %v4895 = vadd.f32 %v4341, %v4785
        %v4896 = vadd.f32 %v4342, %v4789
        %v4897 = vadd.f32 %v4343, %v4793
        %v4898 = vadd.f32 %v4344, %v4765
        %v4899 = vadd.f32 %v4345, %v4769
        %v4900 = vadd.f32 %v4346, %v4773
        %v4901 = vadd.f32 %v4347, %v4777
        %v4902 = vadd.f32 %v4348, %v4781
        %v4903 = vadd.f32 %v4349, %v4785
        %v4904 = vadd.f32 %v4350, %v4789
        %v4905 = vadd.f32 %v4351, %v4793
        %v4906 = vadd.f32 %v4352, %v4765
        %v4907 = vadd.f32 %v4353, %v4769
        %v4908 = vadd.f32 %v4354, %v4773
        %v4909 = vadd.f32 %v4355, %v4777
        %v4910 = vadd.f32 %v4356, %v4781
        %v4911 = vadd.f32 %v4357, %v4785
        %v4912 = vadd.f32 %v4358, %v4789
        %v4913 = vadd.f32 %v4359, %v4793
        %v4914 = vadd.f32 %v4360, %v4765
        %v4915 = vadd.f32 %v4361, %v4769
        %v4916 = vadd.f32 %v4362, %v4773
        %v4917 = vadd.f32 %v4363, %v4777
        %v4918 = vadd.f32 %v4364, %v4781
        %v4919 = vadd.f32 %v4365, %v4785
        %v4920 = vadd.f32 %v4366, %v4789
        %v4921 = vadd.f32 %v4367, %v4793
        %v4922 = vadd.f32 %v4368, %v4765
        %v4923 = vadd.f32 %v4369, %v4769
        %v4924 = vadd.f32 %v4370, %v4773
        %v4925 = vadd.f32 %v4371, %v4777
        %v4926 = vadd.f32 %v4372, %v4781
        %v4927 = vadd.f32 %v4373, %v4785
        %v4928 = vadd.f32 %v4374, %v4789
        %v4929 = vadd.f32 %v4375, %v4793
        %v4930 = vadd.f32 %v4376, %v4765
        %v4931 = vadd.f32 %v4377, %v4769
        %v4932 = vadd.f32 %v4378, %v4773
        %v4933 = vadd.f32 %v4379, %v4777
        %v4934 = vadd.f32 %v4380, %v4781
        %v4935 = vadd.f32 %v4381, %v4785
        %v4936 = vadd.f32 %v4382, %v4789
        %v4937 = vadd.f32 %v4383, %v4793
        %v4938 = vadd.f32 %v4384, %v4765
        %v4939 = vadd.f32 %v4385, %v4769
        %v4940 = vadd.f32 %v4386, %v4773
        %v4941 = vadd.f32 %v4387, %v4777
        %v4942 = vadd.f32 %v4388, %v4781
        %v4943 = vadd.f32 %v4389, %v4785
        %v4944 = vadd.f32 %v4390, %v4789
        %v4945 = vadd.f32 %v4391, %v4793
        %v4946 = vadd.f32 %v4392, %v4765
        %v4947 = vadd.f32 %v4393, %v4769
        %v4948 = vadd.f32 %v4394, %v4773
        %v4949 = vadd.f32 %v4395, %v4777
        %v4950 = vadd.f32 %v4396, %v4781
        %v4951 = vadd.f32 %v4397, %v4785
        %v4952 = vadd.f32 %v4398, %v4789
        %v4953 = vadd.f32 %v4399, %v4793
        %v4954 = vadd.f32 %v4400, %v4765
        %v4955 = vadd.f32 %v4401, %v4769
        %v4956 = vadd.f32 %v4402, %v4773
        %v4957 = vadd.f32 %v4403, %v4777
        %v4958 = vadd.f32 %v4404, %v4781
        %v4959 = vadd.f32 %v4405, %v4785
        %v4960 = vadd.f32 %v4406, %v4789
        %v4961 = vadd.f32 %v4407, %v4793
        %v4962 = vadd.f32 %v4408, %v4765
        %v4963 = vadd.f32 %v4409, %v4769
        %v4964 = vadd.f32 %v4410, %v4773
        %v4965 = vadd.f32 %v4411, %v4777
        %v4966 = vadd.f32 %v4412, %v4781
        %v4967 = vadd.f32 %v4413, %v4785
        %v4968 = vadd.f32 %v4414, %v4789
        %v4969 = vadd.f32 %v4415, %v4793
        %v4970 = vadd.f32 %v4416, %v4765
        %v4971 = vadd.f32 %v4417, %v4769
        %v4972 = vadd.f32 %v4418, %v4773
        %v4973 = vadd.f32 %v4419, %v4777
        %v4974 = vadd.f32 %v4420, %v4781
        %v4975 = vadd.f32 %v4421, %v4785
        %v4976 = vadd.f32 %v4422, %v4789
        %v4977 = vadd.f32 %v4423, %v4793
        %v4978 = vadd.f32 %v4424, %v4765
        %v4979 = vadd.f32 %v4425, %v4769
        %v4980 = vadd.f32 %v4426, %v4773
        %v4981 = vadd.f32 %v4427, %v4777
        %v4982 = vadd.f32 %v4428, %v4781
        %v4983 = vadd.f32 %v4429, %v4785
        %v4984 = vadd.f32 %v4430, %v4789
        %v4985 = vadd.f32 %v4431, %v4793
        %v4986 = vadd.f32 %v4432, %v4765
        %v4987 = vadd.f32 %v4433, %v4769
        %v4988 = vadd.f32 %v4434, %v4773
        %v4989 = vadd.f32 %v4435, %v4777
        %v4990 = vadd.f32 %v4436, %v4781
        %v4991 = vadd.f32 %v4437, %v4785
        %v4992 = vadd.f32 %v4438, %v4789
        %v4993 = vadd.f32 %v4439, %v4793
        %v4994 = vadd.f32 %v4440, %v4765
        %v4995 = vadd.f32 %v4441, %v4769
        %v4996 = vadd.f32 %v4442, %v4773
        %v4997 = vadd.f32 %v4443, %v4777
        %v4998 = vadd.f32 %v4444, %v4781
        %v4999 = vadd.f32 %v4445, %v4785
        %v5000 = vadd.f32 %v4446, %v4789
        %v5001 = vadd.f32 %v4447, %v4793
        %v5002 = vadd.f32 %v4448, %v4765
        %v5003 = vadd.f32 %v4449, %v4769
        %v5004 = vadd.f32 %v4450, %v4773
        %v5005 = vadd.f32 %v4451, %v4777
        %v5006 = vadd.f32 %v4452, %v4781
        %v5007 = vadd.f32 %v4453, %v4785
        %v5008 = vadd.f32 %v4454, %v4789
        %v5009 = vadd.f32 %v4455, %v4793
        %v5010 = vadd.f32 %v4456, %v4765
        %v5011 = vadd.f32 %v4457, %v4769
        %v5012 = vadd.f32 %v4458, %v4773
        %v5013 = vadd.f32 %v4459, %v4777
        %v5014 = vadd.f32 %v4460, %v4781
        %v5015 = vadd.f32 %v4461, %v4785
        %v5016 = vadd.f32 %v4462, %v4789
        %v5017 = vadd.f32 %v4463, %v4793
        %v5018 = vadd.f32 %v4464, %v4765
        %v5019 = vadd.f32 %v4465, %v4769
        %v5020 = vadd.f32 %v4466, %v4773
        %v5021 = vadd.f32 %v4467, %v4777
        %v5022 = vadd.f32 %v4468, %v4781
        %v5023 = vadd.f32 %v4469, %v4785
        %v5024 = vadd.f32 %v4470, %v4789
        %v5025 = vadd.f32 %v4471, %v4793
        %v5026 = vadd.f32 %v4472, %v4765
        %v5027 = vadd.f32 %v4473, %v4769
        %v5028 = vadd.f32 %v4474, %v4773
        %v5029 = vadd.f32 %v4475, %v4777
        %v5030 = vadd.f32 %v4476, %v4781
        %v5031 = vadd.f32 %v4477, %v4785
        %v5032 = vadd.f32 %v4478, %v4789
        %v5033 = vadd.f32 %v4479, %v4793
        %v5034 = vadd.f32 %v4480, %v4765
        %v5035 = vadd.f32 %v4481, %v4769
        %v5036 = vadd.f32 %v4482, %v4773
        %v5037 = vadd.f32 %v4483, %v4777
        %v5038 = vadd.f32 %v4484, %v4781
        %v5039 = vadd.f32 %v4485, %v4785
        %v5040 = vadd.f32 %v4486, %v4789
        %v5041 = vadd.f32 %v4487, %v4793
        %v5042 = vadd.f32 %v4488, %v4765
        %v5043 = vadd.f32 %v4489, %v4769
        %v5044 = vadd.f32 %v4490, %v4773
        %v5045 = vadd.f32 %v4491, %v4777
        %v5046 = vadd.f32 %v4492, %v4781
        %v5047 = vadd.f32 %v4493, %v4785
        %v5048 = vadd.f32 %v4494, %v4789
        %v5049 = vadd.f32 %v4495, %v4793
        %v5050 = vadd.f32 %v4496, %v4765
        %v5051 = vadd.f32 %v4497, %v4769
        %v5052 = vadd.f32 %v4498, %v4773
        %v5053 = vadd.f32 %v4499, %v4777
        %v5054 = vadd.f32 %v4500, %v4781
        %v5055 = vadd.f32 %v4501, %v4785
        %v5056 = vadd.f32 %v4502, %v4789
        %v5057 = vadd.f32 %v4503, %v4793
        %v5058 = vadd.f32 %v4504, %v4765
        %v5059 = vadd.f32 %v4505, %v4769
        %v5060 = vadd.f32 %v4506, %v4773
        %v5061 = vadd.f32 %v4507, %v4777
        %v5062 = vadd.f32 %v4508, %v4781
        %v5063 = vadd.f32 %v4509, %v4785
        %v5064 = vadd.f32 %v4510, %v4789
        %v5065 = vadd.f32 %v4511, %v4793
        %v5066 = vadd.f32 %v4512, %v4765
        %v5067 = vadd.f32 %v4513, %v4769
        %v5068 = vadd.f32 %v4514, %v4773
        %v5069 = vadd.f32 %v4515, %v4777
        %v5070 = vadd.f32 %v4516, %v4781
        %v5071 = vadd.f32 %v4517, %v4785
        %v5072 = vadd.f32 %v4518, %v4789
        %v5073 = vadd.f32 %v4519, %v4793
        %v5074 = vadd.f32 %v4520, %v4765
        %v5075 = vadd.f32 %v4521, %v4769
        %v5076 = vadd.f32 %v4522, %v4773
        %v5077 = vadd.f32 %v4523, %v4777
        %v5078 = vadd.f32 %v4524, %v4781
        %v5079 = vadd.f32 %v4525, %v4785
        %v5080 = vadd.f32 %v4526, %v4789
        %v5081 = vadd.f32 %v4527, %v4793
        %v5082 = vadd.f32 %v4528, %v4765
        %v5083 = vadd.f32 %v4529, %v4769
        %v5084 = vadd.f32 %v4530, %v4773
        %v5085 = vadd.f32 %v4531, %v4777
        %v5086 = vadd.f32 %v4532, %v4781
        %v5087 = vadd.f32 %v4533, %v4785
        %v5088 = vadd.f32 %v4534, %v4789
        %v5089 = vadd.f32 %v4535, %v4793
        %v5090 = vadd.f32 %v4536, %v4765
        %v5091 = vadd.f32 %v4537, %v4769
        %v5092 = vadd.f32 %v4538, %v4773
        %v5093 = vadd.f32 %v4539, %v4777
        %v5094 = vadd.f32 %v4540, %v4781
        %v5095 = vadd.f32 %v4541, %v4785
        %v5096 = vadd.f32 %v4542, %v4789
        %v5097 = vadd.f32 %v4543, %v4793
        %v5098 = vadd.f32 %v4544, %v4765
        %v5099 = vadd.f32 %v4545, %v4769
        %v5100 = vadd.f32 %v4546, %v4773
        %v5101 = vadd.f32 %v4547, %v4777
        %v5102 = vadd.f32 %v4548, %v4781
        %v5103 = vadd.f32 %v4549, %v4785
        %v5104 = vadd.f32 %v4550, %v4789
        %v5105 = vadd.f32 %v4551, %v4793
        %v5106 = vadd.f32 %v4552, %v4765
        %v5107 = vadd.f32 %v4553, %v4769
        %v5108 = vadd.f32 %v4554, %v4773
        %v5109 = vadd.f32 %v4555, %v4777
        %v5110 = vadd.f32 %v4556, %v4781
        %v5111 = vadd.f32 %v4557, %v4785
        %v5112 = vadd.f32 %v4558, %v4789
        %v5113 = vadd.f32 %v4559, %v4793
        %v5114 = vadd.f32 %v4560, %v4765
        %v5115 = vadd.f32 %v4561, %v4769
        %v5116 = vadd.f32 %v4562, %v4773
        %v5117 = vadd.f32 %v4563, %v4777
        %v5118 = vadd.f32 %v4564, %v4781
        %v5119 = vadd.f32 %v4565, %v4785
        %v5120 = vadd.f32 %v4566, %v4789
        %v5121 = vadd.f32 %v4567, %v4793
        %v5122 = vadd.f32 %v4568, %v4765
        %v5123 = vadd.f32 %v4569, %v4769
        %v5124 = vadd.f32 %v4570, %v4773
        %v5125 = vadd.f32 %v4571, %v4777
        %v5126 = vadd.f32 %v4572, %v4781
        %v5127 = vadd.f32 %v4573, %v4785
        %v5128 = vadd.f32 %v4574, %v4789
        %v5129 = vadd.f32 %v4575, %v4793
        %v5130 = vadd.f32 %v4576, %v4765
        %v5131 = vadd.f32 %v4577, %v4769
        %v5132 = vadd.f32 %v4578, %v4773
        %v5133 = vadd.f32 %v4579, %v4777
        %v5134 = vadd.f32 %v4580, %v4781
        %v5135 = vadd.f32 %v4581, %v4785
        %v5136 = vadd.f32 %v4582, %v4789
        %v5137 = vadd.f32 %v4583, %v4793
        %v5138 = vadd.f32 %v4584, %v4765
        %v5139 = vadd.f32 %v4585, %v4769
        %v5140 = vadd.f32 %v4586, %v4773
        %v5141 = vadd.f32 %v4587, %v4777
        %v5142 = vadd.f32 %v4588, %v4781
        %v5143 = vadd.f32 %v4589, %v4785
        %v5144 = vadd.f32 %v4590, %v4789
        %v5145 = vadd.f32 %v4591, %v4793
        %v5146 = vadd.f32 %v4592, %v4765
        %v5147 = vadd.f32 %v4593, %v4769
        %v5148 = vadd.f32 %v4594, %v4773
        %v5149 = vadd.f32 %v4595, %v4777
        %v5150 = vadd.f32 %v4596, %v4781
        %v5151 = vadd.f32 %v4597, %v4785
        %v5152 = vadd.f32 %v4598, %v4789
        %v5153 = vadd.f32 %v4599, %v4793
        %v5154 = vadd.f32 %v4600, %v4765
        %v5155 = vadd.f32 %v4601, %v4769
        %v5156 = vadd.f32 %v4602, %v4773
        %v5157 = vadd.f32 %v4603, %v4777
        %v5158 = vadd.f32 %v4604, %v4781
        %v5159 = vadd.f32 %v4605, %v4785
        %v5160 = vadd.f32 %v4606, %v4789
        %v5161 = vadd.f32 %v4607, %v4793
        %v5162 = vadd.f32 %v4608, %v4765
        %v5163 = vadd.f32 %v4609, %v4769
        %v5164 = vadd.f32 %v4610, %v4773
        %v5165 = vadd.f32 %v4611, %v4777
        %v5166 = vadd.f32 %v4612, %v4781
        %v5167 = vadd.f32 %v4613, %v4785
        %v5168 = vadd.f32 %v4614, %v4789
        %v5169 = vadd.f32 %v4615, %v4793
        %v5170 = vadd.f32 %v4616, %v4765
        %v5171 = vadd.f32 %v4617, %v4769
        %v5172 = vadd.f32 %v4618, %v4773
        %v5173 = vadd.f32 %v4619, %v4777
        %v5174 = vadd.f32 %v4620, %v4781
        %v5175 = vadd.f32 %v4621, %v4785
        %v5176 = vadd.f32 %v4622, %v4789
        %v5177 = vadd.f32 %v4623, %v4793
        %v5178 = vadd.f32 %v4624, %v4765
        %v5179 = vadd.f32 %v4625, %v4769
        %v5180 = vadd.f32 %v4626, %v4773
        %v5181 = vadd.f32 %v4627, %v4777
        %v5182 = vadd.f32 %v4628, %v4781
        %v5183 = vadd.f32 %v4629, %v4785
        %v5184 = vadd.f32 %v4630, %v4789
        %v5185 = vadd.f32 %v4631, %v4793
        %v5186 = vadd.f32 %v4632, %v4765
        %v5187 = vadd.f32 %v4633, %v4769
        %v5188 = vadd.f32 %v4634, %v4773
        %v5189 = vadd.f32 %v4635, %v4777
        %v5190 = vadd.f32 %v4636, %v4781
        %v5191 = vadd.f32 %v4637, %v4785
        %v5192 = vadd.f32 %v4638, %v4789
        %v5193 = vadd.f32 %v4639, %v4793
        %v5194 = vadd.f32 %v4640, %v4765
        %v5195 = vadd.f32 %v4641, %v4769
        %v5196 = vadd.f32 %v4642, %v4773
        %v5197 = vadd.f32 %v4643, %v4777
        %v5198 = vadd.f32 %v4644, %v4781
        %v5199 = vadd.f32 %v4645, %v4785
        %v5200 = vadd.f32 %v4646, %v4789
        %v5201 = vadd.f32 %v4647, %v4793
        %v5202 = vadd.f32 %v4648, %v4765
        %v5203 = vadd.f32 %v4649, %v4769
        %v5204 = vadd.f32 %v4650, %v4773
        %v5205 = vadd.f32 %v4651, %v4777
        %v5206 = vadd.f32 %v4652, %v4781
        %v5207 = vadd.f32 %v4653, %v4785
        %v5208 = vadd.f32 %v4654, %v4789
        %v5209 = vadd.f32 %v4655, %v4793
        %v5210 = vadd.f32 %v4656, %v4765
        %v5211 = vadd.f32 %v4657, %v4769
        %v5212 = vadd.f32 %v4658, %v4773
        %v5213 = vadd.f32 %v4659, %v4777
        %v5214 = vadd.f32 %v4660, %v4781
        %v5215 = vadd.f32 %v4661, %v4785
        %v5216 = vadd.f32 %v4662, %v4789
        %v5217 = vadd.f32 %v4663, %v4793
        %v5218 = vadd.f32 %v4664, %v4765
        %v5219 = vadd.f32 %v4665, %v4769
        %v5220 = vadd.f32 %v4666, %v4773
        %v5221 = vadd.f32 %v4667, %v4777
        %v5222 = vadd.f32 %v4668, %v4781
        %v5223 = vadd.f32 %v4669, %v4785
        %v5224 = vadd.f32 %v4670, %v4789
        %v5225 = vadd.f32 %v4671, %v4793
        %v5226 = vadd.f32 %v4672, %v4765
        %v5227 = vadd.f32 %v4673, %v4769
        %v5228 = vadd.f32 %v4674, %v4773
        %v5229 = vadd.f32 %v4675, %v4777
        %v5230 = vadd.f32 %v4676, %v4781
        %v5231 = vadd.f32 %v4677, %v4785
        %v5232 = vadd.f32 %v4678, %v4789
        %v5233 = vadd.f32 %v4679, %v4793
        %v5234 = vadd.f32 %v4680, %v4765
        %v5235 = vadd.f32 %v4681, %v4769
        %v5236 = vadd.f32 %v4682, %v4773
        %v5237 = vadd.f32 %v4683, %v4777
        %v5238 = vadd.f32 %v4684, %v4781
        %v5239 = vadd.f32 %v4685, %v4785
        %v5240 = vadd.f32 %v4686, %v4789
        %v5241 = vadd.f32 %v4687, %v4793
        %v5242 = vadd.f32 %v4688, %v4765
        %v5243 = vadd.f32 %v4689, %v4769
        %v5244 = vadd.f32 %v4690, %v4773
        %v5245 = vadd.f32 %v4691, %v4777
        %v5246 = vadd.f32 %v4692, %v4781
        %v5247 = vadd.f32 %v4693, %v4785
        %v5248 = vadd.f32 %v4694, %v4789
        %v5249 = vadd.f32 %v4695, %v4793
        %v5250 = vadd.f32 %v4696, %v4765
        %v5251 = vadd.f32 %v4697, %v4769
        %v5252 = vadd.f32 %v4698, %v4773
        %v5253 = vadd.f32 %v4699, %v4777
        %v5254 = vadd.f32 %v4700, %v4781
        %v5255 = vadd.f32 %v4701, %v4785
        %v5256 = vadd.f32 %v4702, %v4789
        %v5257 = vadd.f32 %v4703, %v4793
        %v5258 = vadd.f32 %v4704, %v4765
        %v5259 = vadd.f32 %v4705, %v4769
        %v5260 = vadd.f32 %v4706, %v4773
        %v5261 = vadd.f32 %v4707, %v4777
        %v5262 = vadd.f32 %v4708, %v4781
        %v5263 = vadd.f32 %v4709, %v4785
        %v5264 = vadd.f32 %v4710, %v4789
        %v5265 = vadd.f32 %v4711, %v4793
        %v5266 = vadd.f32 %v4712, %v4765
        %v5267 = vadd.f32 %v4713, %v4769
        %v5268 = vadd.f32 %v4714, %v4773
        %v5269 = vadd.f32 %v4715, %v4777
        %v5270 = vadd.f32 %v4716, %v4781
        %v5271 = vadd.f32 %v4717, %v4785
        %v5272 = vadd.f32 %v4718, %v4789
        %v5273 = vadd.f32 %v4719, %v4793
        %v5274 = vadd.f32 %v4720, %v4765
        %v5275 = vadd.f32 %v4721, %v4769
        %v5276 = vadd.f32 %v4722, %v4773
        %v5277 = vadd.f32 %v4723, %v4777
        %v5278 = vadd.f32 %v4724, %v4781
        %v5279 = vadd.f32 %v4725, %v4785
        %v5280 = vadd.f32 %v4726, %v4789
        %v5281 = vadd.f32 %v4727, %v4793
        %v5282 = vadd.f32 %v4728, %v4765
        %v5283 = vadd.f32 %v4729, %v4769
        %v5284 = vadd.f32 %v4730, %v4773
        %v5285 = vadd.f32 %v4731, %v4777
        %v5286 = vadd.f32 %v4732, %v4781
        %v5287 = vadd.f32 %v4733, %v4785
        %v5288 = vadd.f32 %v4734, %v4789
        %v5289 = vadd.f32 %v4735, %v4793
        %v5290 = vadd.f32 %v4736, %v4765
        %v5291 = vadd.f32 %v4737, %v4769
        %v5292 = vadd.f32 %v4738, %v4773
        %v5293 = vadd.f32 %v4739, %v4777
        %v5294 = vadd.f32 %v4740, %v4781
        %v5295 = vadd.f32 %v4741, %v4785
        %v5296 = vadd.f32 %v4742, %v4789
        %v5297 = vadd.f32 %v4743, %v4793
        %v5298 = vadd.f32 %v4744, %v4765
        %v5299 = vadd.f32 %v4745, %v4769
        %v5300 = vadd.f32 %v4746, %v4773
        %v5301 = vadd.f32 %v4747, %v4777
        %v5302 = vadd.f32 %v4748, %v4781
        %v5303 = vadd.f32 %v4749, %v4785
        %v5304 = vadd.f32 %v4750, %v4789
        %v5305 = vadd.f32 %v4751, %v4793
        %v5306 = vadd.f32 %v4752, %v4765
        %v5307 = vadd.f32 %v4753, %v4769
        %v5308 = vadd.f32 %v4754, %v4773
        %v5309 = vadd.f32 %v4755, %v4777
        %v5310 = vadd.f32 %v4756, %v4781
        %v5311 = vadd.f32 %v4757, %v4785
        %v5312 = vadd.f32 %v4758, %v4789
        %v5313 = vadd.f32 %v4759, %v4793
        %v5314 = vmax.f32 %v4802, 0.0
        %v5315 = vmax.f32 %v4803, 0.0
        %v5316 = vmax.f32 %v4804, 0.0
        %v5317 = vmax.f32 %v4805, 0.0
        %v5318 = vmax.f32 %v4806, 0.0
        %v5319 = vmax.f32 %v4807, 0.0
        %v5320 = vmax.f32 %v4808, 0.0
        %v5321 = vmax.f32 %v4809, 0.0
        %v5322 = vmax.f32 %v4810, 0.0
        %v5323 = vmax.f32 %v4811, 0.0
        %v5324 = vmax.f32 %v4812, 0.0
        %v5325 = vmax.f32 %v4813, 0.0
        %v5326 = vmax.f32 %v4814, 0.0
        %v5327 = vmax.f32 %v4815, 0.0
        %v5328 = vmax.f32 %v4816, 0.0
        %v5329 = vmax.f32 %v4817, 0.0
        %v5330 = vmax.f32 %v4818, 0.0
        %v5331 = vmax.f32 %v4819, 0.0
        %v5332 = vmax.f32 %v4820, 0.0
        %v5333 = vmax.f32 %v4821, 0.0
        %v5334 = vmax.f32 %v4822, 0.0
        %v5335 = vmax.f32 %v4823, 0.0
        %v5336 = vmax.f32 %v4824, 0.0
        %v5337 = vmax.f32 %v4825, 0.0
        %v5338 = vmax.f32 %v4826, 0.0
        %v5339 = vmax.f32 %v4827, 0.0
        %v5340 = vmax.f32 %v4828, 0.0
        %v5341 = vmax.f32 %v4829, 0.0
        %v5342 = vmax.f32 %v4830, 0.0
        %v5343 = vmax.f32 %v4831, 0.0
        %v5344 = vmax.f32 %v4832, 0.0
        %v5345 = vmax.f32 %v4833, 0.0
        %v5346 = vmax.f32 %v4834, 0.0
        %v5347 = vmax.f32 %v4835, 0.0
        %v5348 = vmax.f32 %v4836, 0.0
        %v5349 = vmax.f32 %v4837, 0.0
        %v5350 = vmax.f32 %v4838, 0.0
        %v5351 = vmax.f32 %v4839, 0.0
        %v5352 = vmax.f32 %v4840, 0.0
        %v5353 = vmax.f32 %v4841, 0.0
        %v5354 = vmax.f32 %v4842, 0.0
        %v5355 = vmax.f32 %v4843, 0.0
        %v5356 = vmax.f32 %v4844, 0.0
        %v5357 = vmax.f32 %v4845, 0.0
        %v5358 = vmax.f32 %v4846, 0.0
        %v5359 = vmax.f32 %v4847, 0.0
        %v5360 = vmax.f32 %v4848, 0.0
        %v5361 = vmax.f32 %v4849, 0.0
        %v5362 = vmax.f32 %v4850, 0.0
        %v5363 = vmax.f32 %v4851, 0.0
        %v5364 = vmax.f32 %v4852, 0.0
        %v5365 = vmax.f32 %v4853, 0.0
        %v5366 = vmax.f32 %v4854, 0.0
        %v5367 = vmax.f32 %v4855, 0.0
        %v5368 = vmax.f32 %v4856, 0.0
        %v5369 = vmax.f32 %v4857, 0.0
        %v5370 = vmax.f32 %v4858, 0.0
        %v5371 = vmax.f32 %v4859, 0.0
        %v5372 = vmax.f32 %v4860, 0.0
        %v5373 = vmax.f32 %v4861, 0.0
        %v5374 = vmax.f32 %v4862, 0.0
        %v5375 = vmax.f32 %v4863, 0.0
        %v5376 = vmax.f32 %v4864, 0.0
        %v5377 = vmax.f32 %v4865, 0.0
        %v5378 = vmax.f32 %v4866, 0.0
        %v5379 = vmax.f32 %v4867, 0.0
        %v5380 = vmax.f32 %v4868, 0.0
        %v5381 = vmax.f32 %v4869, 0.0
        %v5382 = vmax.f32 %v4870, 0.0
        %v5383 = vmax.f32 %v4871, 0.0
        %v5384 = vmax.f32 %v4872, 0.0
        %v5385 = vmax.f32 %v4873, 0.0
        %v5386 = vmax.f32 %v4874, 0.0
        %v5387 = vmax.f32 %v4875, 0.0
        %v5388 = vmax.f32 %v4876, 0.0
        %v5389 = vmax.f32 %v4877, 0.0
        %v5390 = vmax.f32 %v4878, 0.0
        %v5391 = vmax.f32 %v4879, 0.0
        %v5392 = vmax.f32 %v4880, 0.0
        %v5393 = vmax.f32 %v4881, 0.0
        %v5394 = vmax.f32 %v4882, 0.0
        %v5395 = vmax.f32 %v4883, 0.0
        %v5396 = vmax.f32 %v4884, 0.0
        %v5397 = vmax.f32 %v4885, 0.0
        %v5398 = vmax.f32 %v4886, 0.0
        %v5399 = vmax.f32 %v4887, 0.0
        %v5400 = vmax.f32 %v4888, 0.0
        %v5401 = vmax.f32 %v4889, 0.0
        %v5402 = vmax.f32 %v4890, 0.0
        %v5403 = vmax.f32 %v4891, 0.0
        %v5404 = vmax.f32 %v4892, 0.0
        %v5405 = vmax.f32 %v4893, 0.0
        %v5406 = vmax.f32 %v4894, 0.0
        %v5407 = vmax.f32 %v4895, 0.0
        %v5408 = vmax.f32 %v4896, 0.0
        %v5409 = vmax.f32 %v4897, 0.0
        %v5410 = vmax.f32 %v4898, 0.0
        %v5411 = vmax.f32 %v4899, 0.0
        %v5412 = vmax.f32 %v4900, 0.0
        %v5413 = vmax.f32 %v4901, 0.0
        %v5414 = vmax.f32 %v4902, 0.0
        %v5415 = vmax.f32 %v4903, 0.0
        %v5416 = vmax.f32 %v4904, 0.0
        %v5417 = vmax.f32 %v4905, 0.0
        %v5418 = vmax.f32 %v4906, 0.0
        %v5419 = vmax.f32 %v4907, 0.0
        %v5420 = vmax.f32 %v4908, 0.0
        %v5421 = vmax.f32 %v4909, 0.0
        %v5422 = vmax.f32 %v4910, 0.0
        %v5423 = vmax.f32 %v4911, 0.0
        %v5424 = vmax.f32 %v4912, 0.0
        %v5425 = vmax.f32 %v4913, 0.0
        %v5426 = vmax.f32 %v4914, 0.0
        %v5427 = vmax.f32 %v4915, 0.0
        %v5428 = vmax.f32 %v4916, 0.0
        %v5429 = vmax.f32 %v4917, 0.0
        %v5430 = vmax.f32 %v4918, 0.0
        %v5431 = vmax.f32 %v4919, 0.0
        %v5432 = vmax.f32 %v4920, 0.0
        %v5433 = vmax.f32 %v4921, 0.0
        %v5434 = vmax.f32 %v4922, 0.0
        %v5435 = vmax.f32 %v4923, 0.0
        %v5436 = vmax.f32 %v4924, 0.0
        %v5437 = vmax.f32 %v4925, 0.0
        %v5438 = vmax.f32 %v4926, 0.0
        %v5439 = vmax.f32 %v4927, 0.0
        %v5440 = vmax.f32 %v4928, 0.0
        %v5441 = vmax.f32 %v4929, 0.0
        %v5442 = vmax.f32 %v4930, 0.0
        %v5443 = vmax.f32 %v4931, 0.0
        %v5444 = vmax.f32 %v4932, 0.0
        %v5445 = vmax.f32 %v4933, 0.0
        %v5446 = vmax.f32 %v4934, 0.0
        %v5447 = vmax.f32 %v4935, 0.0
        %v5448 = vmax.f32 %v4936, 0.0
        %v5449 = vmax.f32 %v4937, 0.0
        %v5450 = vmax.f32 %v4938, 0.0
        %v5451 = vmax.f32 %v4939, 0.0
        %v5452 = vmax.f32 %v4940, 0.0
        %v5453 = vmax.f32 %v4941, 0.0
        %v5454 = vmax.f32 %v4942, 0.0
        %v5455 = vmax.f32 %v4943, 0.0
        %v5456 = vmax.f32 %v4944, 0.0
        %v5457 = vmax.f32 %v4945, 0.0
        %v5458 = vmax.f32 %v4946, 0.0
        %v5459 = vmax.f32 %v4947, 0.0
        %v5460 = vmax.f32 %v4948, 0.0
        %v5461 = vmax.f32 %v4949, 0.0
        %v5462 = vmax.f32 %v4950, 0.0
        %v5463 = vmax.f32 %v4951, 0.0
        %v5464 = vmax.f32 %v4952, 0.0
        %v5465 = vmax.f32 %v4953, 0.0
        %v5466 = vmax.f32 %v4954, 0.0
        %v5467 = vmax.f32 %v4955, 0.0
        %v5468 = vmax.f32 %v4956, 0.0
        %v5469 = vmax.f32 %v4957, 0.0
        %v5470 = vmax.f32 %v4958, 0.0
        %v5471 = vmax.f32 %v4959, 0.0
        %v5472 = vmax.f32 %v4960, 0.0
        %v5473 = vmax.f32 %v4961, 0.0
        %v5474 = vmax.f32 %v4962, 0.0
        %v5475 = vmax.f32 %v4963, 0.0
        %v5476 = vmax.f32 %v4964, 0.0
        %v5477 = vmax.f32 %v4965, 0.0
        %v5478 = vmax.f32 %v4966, 0.0
        %v5479 = vmax.f32 %v4967, 0.0
        %v5480 = vmax.f32 %v4968, 0.0
        %v5481 = vmax.f32 %v4969, 0.0
        %v5482 = vmax.f32 %v4970, 0.0
        %v5483 = vmax.f32 %v4971, 0.0
        %v5484 = vmax.f32 %v4972, 0.0
        %v5485 = vmax.f32 %v4973, 0.0
        %v5486 = vmax.f32 %v4974, 0.0
        %v5487 = vmax.f32 %v4975, 0.0
        %v5488 = vmax.f32 %v4976, 0.0
        %v5489 = vmax.f32 %v4977, 0.0
        %v5490 = vmax.f32 %v4978, 0.0
        %v5491 = vmax.f32 %v4979, 0.0
        %v5492 = vmax.f32 %v4980, 0.0
        %v5493 = vmax.f32 %v4981, 0.0
        %v5494 = vmax.f32 %v4982, 0.0
        %v5495 = vmax.f32 %v4983, 0.0
        %v5496 = vmax.f32 %v4984, 0.0
        %v5497 = vmax.f32 %v4985, 0.0
        %v5498 = vmax.f32 %v4986, 0.0
        %v5499 = vmax.f32 %v4987, 0.0
        %v5500 = vmax.f32 %v4988, 0.0
        %v5501 = vmax.f32 %v4989, 0.0
        %v5502 = vmax.f32 %v4990, 0.0
        %v5503 = vmax.f32 %v4991, 0.0
        %v5504 = vmax.f32 %v4992, 0.0
        %v5505 = vmax.f32 %v4993, 0.0
        %v5506 = vmax.f32 %v4994, 0.0
        %v5507 = vmax.f32 %v4995, 0.0
        %v5508 = vmax.f32 %v4996, 0.0
        %v5509 = vmax.f32 %v4997, 0.0
        %v5510 = vmax.f32 %v4998, 0.0
        %v5511 = vmax.f32 %v4999, 0.0
        %v5512 = vmax.f32 %v5000, 0.0
        %v5513 = vmax.f32 %v5001, 0.0
        %v5514 = vmax.f32 %v5002, 0.0
        %v5515 = vmax.f32 %v5003, 0.0
        %v5516 = vmax.f32 %v5004, 0.0
        %v5517 = vmax.f32 %v5005, 0.0
        %v5518 = vmax.f32 %v5006, 0.0
        %v5519 = vmax.f32 %v5007, 0.0
        %v5520 = vmax.f32 %v5008, 0.0
        %v5521 = vmax.f32 %v5009, 0.0
        %v5522 = vmax.f32 %v5010, 0.0
        %v5523 = vmax.f32 %v5011, 0.0
        %v5524 = vmax.f32 %v5012, 0.0
        %v5525 = vmax.f32 %v5013, 0.0
        %v5526 = vmax.f32 %v5014, 0.0
        %v5527 = vmax.f32 %v5015, 0.0
        %v5528 = vmax.f32 %v5016, 0.0
        %v5529 = vmax.f32 %v5017, 0.0
        %v5530 = vmax.f32 %v5018, 0.0
        %v5531 = vmax.f32 %v5019, 0.0
        %v5532 = vmax.f32 %v5020, 0.0
        %v5533 = vmax.f32 %v5021, 0.0
        %v5534 = vmax.f32 %v5022, 0.0
        %v5535 = vmax.f32 %v5023, 0.0
        %v5536 = vmax.f32 %v5024, 0.0
        %v5537 = vmax.f32 %v5025, 0.0
        %v5538 = vmax.f32 %v5026, 0.0
        %v5539 = vmax.f32 %v5027, 0.0
        %v5540 = vmax.f32 %v5028, 0.0
        %v5541 = vmax.f32 %v5029, 0.0
        %v5542 = vmax.f32 %v5030, 0.0
        %v5543 = vmax.f32 %v5031, 0.0
        %v5544 = vmax.f32 %v5032, 0.0
        %v5545 = vmax.f32 %v5033, 0.0
        %v5546 = vmax.f32 %v5034, 0.0
        %v5547 = vmax.f32 %v5035, 0.0
        %v5548 = vmax.f32 %v5036, 0.0
        %v5549 = vmax.f32 %v5037, 0.0
        %v5550 = vmax.f32 %v5038, 0.0
        %v5551 = vmax.f32 %v5039, 0.0
        %v5552 = vmax.f32 %v5040, 0.0
        %v5553 = vmax.f32 %v5041, 0.0
        %v5554 = vmax.f32 %v5042, 0.0
        %v5555 = vmax.f32 %v5043, 0.0
        %v5556 = vmax.f32 %v5044, 0.0
        %v5557 = vmax.f32 %v5045, 0.0
        %v5558 = vmax.f32 %v5046, 0.0
        %v5559 = vmax.f32 %v5047, 0.0
        %v5560 = vmax.f32 %v5048, 0.0
        %v5561 = vmax.f32 %v5049, 0.0
        %v5562 = vmax.f32 %v5050, 0.0
        %v5563 = vmax.f32 %v5051, 0.0
        %v5564 = vmax.f32 %v5052, 0.0
        %v5565 = vmax.f32 %v5053, 0.0
        %v5566 = vmax.f32 %v5054, 0.0
        %v5567 = vmax.f32 %v5055, 0.0
        %v5568 = vmax.f32 %v5056, 0.0
        %v5569 = vmax.f32 %v5057, 0.0
        %v5570 = vmax.f32 %v5058, 0.0
        %v5571 = vmax.f32 %v5059, 0.0
        %v5572 = vmax.f32 %v5060, 0.0
        %v5573 = vmax.f32 %v5061, 0.0
        %v5574 = vmax.f32 %v5062, 0.0
        %v5575 = vmax.f32 %v5063, 0.0
        %v5576 = vmax.f32 %v5064, 0.0
        %v5577 = vmax.f32 %v5065, 0.0
        %v5578 = vmax.f32 %v5066, 0.0
        %v5579 = vmax.f32 %v5067, 0.0
        %v5580 = vmax.f32 %v5068, 0.0
        %v5581 = vmax.f32 %v5069, 0.0
        %v5582 = vmax.f32 %v5070, 0.0
        %v5583 = vmax.f32 %v5071, 0.0
        %v5584 = vmax.f32 %v5072, 0.0
        %v5585 = vmax.f32 %v5073, 0.0
        %v5586 = vmax.f32 %v5074, 0.0
        %v5587 = vmax.f32 %v5075, 0.0
        %v5588 = vmax.f32 %v5076, 0.0
        %v5589 = vmax.f32 %v5077, 0.0
        %v5590 = vmax.f32 %v5078, 0.0
        %v5591 = vmax.f32 %v5079, 0.0
        %v5592 = vmax.f32 %v5080, 0.0
        %v5593 = vmax.f32 %v5081, 0.0
        %v5594 = vmax.f32 %v5082, 0.0
        %v5595 = vmax.f32 %v5083, 0.0
        %v5596 = vmax.f32 %v5084, 0.0
        %v5597 = vmax.f32 %v5085, 0.0
        %v5598 = vmax.f32 %v5086, 0.0
        %v5599 = vmax.f32 %v5087, 0.0
        %v5600 = vmax.f32 %v5088, 0.0
        %v5601 = vmax.f32 %v5089, 0.0
        %v5602 = vmax.f32 %v5090, 0.0
        %v5603 = vmax.f32 %v5091, 0.0
        %v5604 = vmax.f32 %v5092, 0.0
        %v5605 = vmax.f32 %v5093, 0.0
        %v5606 = vmax.f32 %v5094, 0.0
        %v5607 = vmax.f32 %v5095, 0.0
        %v5608 = vmax.f32 %v5096, 0.0
        %v5609 = vmax.f32 %v5097, 0.0
        %v5610 = vmax.f32 %v5098, 0.0
        %v5611 = vmax.f32 %v5099, 0.0
        %v5612 = vmax.f32 %v5100, 0.0
        %v5613 = vmax.f32 %v5101, 0.0
        %v5614 = vmax.f32 %v5102, 0.0
        %v5615 = vmax.f32 %v5103, 0.0
        %v5616 = vmax.f32 %v5104, 0.0
        %v5617 = vmax.f32 %v5105, 0.0
        %v5618 = vmax.f32 %v5106, 0.0
        %v5619 = vmax.f32 %v5107, 0.0
        %v5620 = vmax.f32 %v5108, 0.0
        %v5621 = vmax.f32 %v5109, 0.0
        %v5622 = vmax.f32 %v5110, 0.0
        %v5623 = vmax.f32 %v5111, 0.0
        %v5624 = vmax.f32 %v5112, 0.0
        %v5625 = vmax.f32 %v5113, 0.0
        %v5626 = vmax.f32 %v5114, 0.0
        %v5627 = vmax.f32 %v5115, 0.0
        %v5628 = vmax.f32 %v5116, 0.0
        %v5629 = vmax.f32 %v5117, 0.0
        %v5630 = vmax.f32 %v5118, 0.0
        %v5631 = vmax.f32 %v5119, 0.0
        %v5632 = vmax.f32 %v5120, 0.0
        %v5633 = vmax.f32 %v5121, 0.0
        %v5634 = vmax.f32 %v5122, 0.0
        %v5635 = vmax.f32 %v5123, 0.0
        %v5636 = vmax.f32 %v5124, 0.0
        %v5637 = vmax.f32 %v5125, 0.0
        %v5638 = vmax.f32 %v5126, 0.0
        %v5639 = vmax.f32 %v5127, 0.0
        %v5640 = vmax.f32 %v5128, 0.0
        %v5641 = vmax.f32 %v5129, 0.0
        %v5642 = vmax.f32 %v5130, 0.0
        %v5643 = vmax.f32 %v5131, 0.0
        %v5644 = vmax.f32 %v5132, 0.0
        %v5645 = vmax.f32 %v5133, 0.0
        %v5646 = vmax.f32 %v5134, 0.0
        %v5647 = vmax.f32 %v5135, 0.0
        %v5648 = vmax.f32 %v5136, 0.0
        %v5649 = vmax.f32 %v5137, 0.0
        %v5650 = vmax.f32 %v5138, 0.0
        %v5651 = vmax.f32 %v5139, 0.0
        %v5652 = vmax.f32 %v5140, 0.0
        %v5653 = vmax.f32 %v5141, 0.0
        %v5654 = vmax.f32 %v5142, 0.0
        %v5655 = vmax.f32 %v5143, 0.0
        %v5656 = vmax.f32 %v5144, 0.0
        %v5657 = vmax.f32 %v5145, 0.0
        %v5658 = vmax.f32 %v5146, 0.0
        %v5659 = vmax.f32 %v5147, 0.0
        %v5660 = vmax.f32 %v5148, 0.0
        %v5661 = vmax.f32 %v5149, 0.0
        %v5662 = vmax.f32 %v5150, 0.0
        %v5663 = vmax.f32 %v5151, 0.0
        %v5664 = vmax.f32 %v5152, 0.0
        %v5665 = vmax.f32 %v5153, 0.0
        %v5666 = vmax.f32 %v5154, 0.0
        %v5667 = vmax.f32 %v5155, 0.0
        %v5668 = vmax.f32 %v5156, 0.0
        %v5669 = vmax.f32 %v5157, 0.0
        %v5670 = vmax.f32 %v5158, 0.0
        %v5671 = vmax.f32 %v5159, 0.0
        %v5672 = vmax.f32 %v5160, 0.0
        %v5673 = vmax.f32 %v5161, 0.0
        %v5674 = vmax.f32 %v5162, 0.0
        %v5675 = vmax.f32 %v5163, 0.0
        %v5676 = vmax.f32 %v5164, 0.0
        %v5677 = vmax.f32 %v5165, 0.0
        %v5678 = vmax.f32 %v5166, 0.0
        %v5679 = vmax.f32 %v5167, 0.0
        %v5680 = vmax.f32 %v5168, 0.0
        %v5681 = vmax.f32 %v5169, 0.0
        %v5682 = vmax.f32 %v5170, 0.0
        %v5683 = vmax.f32 %v5171, 0.0
        %v5684 = vmax.f32 %v5172, 0.0
        %v5685 = vmax.f32 %v5173, 0.0
        %v5686 = vmax.f32 %v5174, 0.0
        %v5687 = vmax.f32 %v5175, 0.0
        %v5688 = vmax.f32 %v5176, 0.0
        %v5689 = vmax.f32 %v5177, 0.0
        %v5690 = vmax.f32 %v5178, 0.0
        %v5691 = vmax.f32 %v5179, 0.0
        %v5692 = vmax.f32 %v5180, 0.0
        %v5693 = vmax.f32 %v5181, 0.0
        %v5694 = vmax.f32 %v5182, 0.0
        %v5695 = vmax.f32 %v5183, 0.0
        %v5696 = vmax.f32 %v5184, 0.0
        %v5697 = vmax.f32 %v5185, 0.0
        %v5698 = vmax.f32 %v5186, 0.0
        %v5699 = vmax.f32 %v5187, 0.0
        %v5700 = vmax.f32 %v5188, 0.0
        %v5701 = vmax.f32 %v5189, 0.0
        %v5702 = vmax.f32 %v5190, 0.0
        %v5703 = vmax.f32 %v5191, 0.0
        %v5704 = vmax.f32 %v5192, 0.0
        %v5705 = vmax.f32 %v5193, 0.0
        %v5706 = vmax.f32 %v5194, 0.0
        %v5707 = vmax.f32 %v5195, 0.0
        %v5708 = vmax.f32 %v5196, 0.0
        %v5709 = vmax.f32 %v5197, 0.0
        %v5710 = vmax.f32 %v5198, 0.0
        %v5711 = vmax.f32 %v5199, 0.0
        %v5712 = vmax.f32 %v5200, 0.0
        %v5713 = vmax.f32 %v5201, 0.0
        %v5714 = vmax.f32 %v5202, 0.0
        %v5715 = vmax.f32 %v5203, 0.0
        %v5716 = vmax.f32 %v5204, 0.0
        %v5717 = vmax.f32 %v5205, 0.0
        %v5718 = vmax.f32 %v5206, 0.0
        %v5719 = vmax.f32 %v5207, 0.0
        %v5720 = vmax.f32 %v5208, 0.0
        %v5721 = vmax.f32 %v5209, 0.0
        %v5722 = vmax.f32 %v5210, 0.0
        %v5723 = vmax.f32 %v5211, 0.0
        %v5724 = vmax.f32 %v5212, 0.0
        %v5725 = vmax.f32 %v5213, 0.0
        %v5726 = vmax.f32 %v5214, 0.0
        %v5727 = vmax.f32 %v5215, 0.0
        %v5728 = vmax.f32 %v5216, 0.0
        %v5729 = vmax.f32 %v5217, 0.0
        %v5730 = vmax.f32 %v5218, 0.0
        %v5731 = vmax.f32 %v5219, 0.0
        %v5732 = vmax.f32 %v5220, 0.0
        %v5733 = vmax.f32 %v5221, 0.0
        %v5734 = vmax.f32 %v5222, 0.0
        %v5735 = vmax.f32 %v5223, 0.0
        %v5736 = vmax.f32 %v5224, 0.0
        %v5737 = vmax.f32 %v5225, 0.0
        %v5738 = vmax.f32 %v5226, 0.0
        %v5739 = vmax.f32 %v5227, 0.0
        %v5740 = vmax.f32 %v5228, 0.0
        %v5741 = vmax.f32 %v5229, 0.0
        %v5742 = vmax.f32 %v5230, 0.0
        %v5743 = vmax.f32 %v5231, 0.0
        %v5744 = vmax.f32 %v5232, 0.0
        %v5745 = vmax.f32 %v5233, 0.0
        %v5746 = vmax.f32 %v5234, 0.0
        %v5747 = vmax.f32 %v5235, 0.0
        %v5748 = vmax.f32 %v5236, 0.0
        %v5749 = vmax.f32 %v5237, 0.0
        %v5750 = vmax.f32 %v5238, 0.0
        %v5751 = vmax.f32 %v5239, 0.0
        %v5752 = vmax.f32 %v5240, 0.0
        %v5753 = vmax.f32 %v5241, 0.0
        %v5754 = vmax.f32 %v5242, 0.0
        %v5755 = vmax.f32 %v5243, 0.0
        %v5756 = vmax.f32 %v5244, 0.0
        %v5757 = vmax.f32 %v5245, 0.0
        %v5758 = vmax.f32 %v5246, 0.0
        %v5759 = vmax.f32 %v5247, 0.0
        %v5760 = vmax.f32 %v5248, 0.0
        %v5761 = vmax.f32 %v5249, 0.0
        %v5762 = vmax.f32 %v5250, 0.0
        %v5763 = vmax.f32 %v5251, 0.0
        %v5764 = vmax.f32 %v5252, 0.0
        %v5765 = vmax.f32 %v5253, 0.0
        %v5766 = vmax.f32 %v5254, 0.0
        %v5767 = vmax.f32 %v5255, 0.0
        %v5768 = vmax.f32 %v5256, 0.0
        %v5769 = vmax.f32 %v5257, 0.0
        %v5770 = vmax.f32 %v5258, 0.0
        %v5771 = vmax.f32 %v5259, 0.0
        %v5772 = vmax.f32 %v5260, 0.0
        %v5773 = vmax.f32 %v5261, 0.0
        %v5774 = vmax.f32 %v5262, 0.0
        %v5775 = vmax.f32 %v5263, 0.0
        %v5776 = vmax.f32 %v5264, 0.0
        %v5777 = vmax.f32 %v5265, 0.0
        %v5778 = vmax.f32 %v5266, 0.0
        %v5779 = vmax.f32 %v5267, 0.0
        %v5780 = vmax.f32 %v5268, 0.0
        %v5781 = vmax.f32 %v5269, 0.0
        %v5782 = vmax.f32 %v5270, 0.0
        %v5783 = vmax.f32 %v5271, 0.0
        %v5784 = vmax.f32 %v5272, 0.0
        %v5785 = vmax.f32 %v5273, 0.0
        %v5786 = vmax.f32 %v5274, 0.0
        %v5787 = vmax.f32 %v5275, 0.0
        %v5788 = vmax.f32 %v5276, 0.0
        %v5789 = vmax.f32 %v5277, 0.0
        %v5790 = vmax.f32 %v5278, 0.0
        %v5791 = vmax.f32 %v5279, 0.0
        %v5792 = vmax.f32 %v5280, 0.0
        %v5793 = vmax.f32 %v5281, 0.0
        %v5794 = vmax.f32 %v5282, 0.0
        %v5795 = vmax.f32 %v5283, 0.0
        %v5796 = vmax.f32 %v5284, 0.0
        %v5797 = vmax.f32 %v5285, 0.0
        %v5798 = vmax.f32 %v5286, 0.0
        %v5799 = vmax.f32 %v5287, 0.0
        %v5800 = vmax.f32 %v5288, 0.0
        %v5801 = vmax.f32 %v5289, 0.0
        %v5802 = vmax.f32 %v5290, 0.0
        %v5803 = vmax.f32 %v5291, 0.0
        %v5804 = vmax.f32 %v5292, 0.0
        %v5805 = vmax.f32 %v5293, 0.0
        %v5806 = vmax.f32 %v5294, 0.0
        %v5807 = vmax.f32 %v5295, 0.0
        %v5808 = vmax.f32 %v5296, 0.0
        %v5809 = vmax.f32 %v5297, 0.0
        %v5810 = vmax.f32 %v5298, 0.0
        %v5811 = vmax.f32 %v5299, 0.0
        %v5812 = vmax.f32 %v5300, 0.0
        %v5813 = vmax.f32 %v5301, 0.0
        %v5814 = vmax.f32 %v5302, 0.0
        %v5815 = vmax.f32 %v5303, 0.0
        %v5816 = vmax.f32 %v5304, 0.0
        %v5817 = vmax.f32 %v5305, 0.0
        %v5818 = vmax.f32 %v5306, 0.0
        %v5819 = vmax.f32 %v5307, 0.0
        %v5820 = vmax.f32 %v5308, 0.0
        %v5821 = vmax.f32 %v5309, 0.0
        %v5822 = vmax.f32 %v5310, 0.0
        %v5823 = vmax.f32 %v5311, 0.0
        %v5824 = vmax.f32 %v5312, 0.0
        %v5825 = vmax.f32 %v5313, 0.0
        %v5826 = vmax.f32 %v5314, %v5322
        %v5827 = vmax.f32 %v5826, %v5330
        %v5828 = vmax.f32 %v5827, %v5338
        %v5829 = vmax.f32 %v5828, %v5346
        %v5830 = vmax.f32 %v5829, %v5354
        %v5831 = vmax.f32 %v5830, %v5362
        %v5832 = vmax.f32 %v5831, %v5370
        %v5833 = vrot.slane %v5832, 4
        %v5834 = vmax.f32 %v5832, %v5833
        %v5835 = vrot.slane %v5834, 2
        %v5836 = vmax.f32 %v5834, %v5835
        %v5837 = vrot.slane %v5836, 1
        %v5838 = vmax.f32 %v5836, %v5837
        %v5839 = vmax.f32 %v5315, %v5323
        %v5840 = vmax.f32 %v5839, %v5331
        %v5841 = vmax.f32 %v5840, %v5339
        %v5842 = vmax.f32 %v5841, %v5347
        %v5843 = vmax.f32 %v5842, %v5355
        %v5844 = vmax.f32 %v5843, %v5363
        %v5845 = vmax.f32 %v5844, %v5371
        %v5846 = vrot.slane %v5845, 4
        %v5847 = vmax.f32 %v5845, %v5846
        %v5848 = vrot.slane %v5847, 2
        %v5849 = vmax.f32 %v5847, %v5848
        %v5850 = vrot.slane %v5849, 1
        %v5851 = vmax.f32 %v5849, %v5850
        %v5852 = vmax.f32 %v5316, %v5324
        %v5853 = vmax.f32 %v5852, %v5332
        %v5854 = vmax.f32 %v5853, %v5340
        %v5855 = vmax.f32 %v5854, %v5348
        %v5856 = vmax.f32 %v5855, %v5356
        %v5857 = vmax.f32 %v5856, %v5364
        %v5858 = vmax.f32 %v5857, %v5372
        %v5859 = vrot.slane %v5858, 4
        %v5860 = vmax.f32 %v5858, %v5859
        %v5861 = vrot.slane %v5860, 2
        %v5862 = vmax.f32 %v5860, %v5861
        %v5863 = vrot.slane %v5862, 1
        %v5864 = vmax.f32 %v5862, %v5863
        %v5865 = vmax.f32 %v5317, %v5325
        %v5866 = vmax.f32 %v5865, %v5333
        %v5867 = vmax.f32 %v5866, %v5341
        %v5868 = vmax.f32 %v5867, %v5349
        %v5869 = vmax.f32 %v5868, %v5357
        %v5870 = vmax.f32 %v5869, %v5365
        %v5871 = vmax.f32 %v5870, %v5373
        %v5872 = vrot.slane %v5871, 4
        %v5873 = vmax.f32 %v5871, %v5872
        %v5874 = vrot.slane %v5873, 2
        %v5875 = vmax.f32 %v5873, %v5874
        %v5876 = vrot.slane %v5875, 1
        %v5877 = vmax.f32 %v5875, %v5876
        %v5878 = vmax.f32 %v5318, %v5326
        %v5879 = vmax.f32 %v5878, %v5334
        %v5880 = vmax.f32 %v5879, %v5342
        %v5881 = vmax.f32 %v5880, %v5350
        %v5882 = vmax.f32 %v5881, %v5358
        %v5883 = vmax.f32 %v5882, %v5366
        %v5884 = vmax.f32 %v5883, %v5374
        %v5885 = vrot.slane %v5884, 4
        %v5886 = vmax.f32 %v5884, %v5885
        %v5887 = vrot.slane %v5886, 2
        %v5888 = vmax.f32 %v5886, %v5887
        %v5889 = vrot.slane %v5888, 1
        %v5890 = vmax.f32 %v5888, %v5889
        %v5891 = vmax.f32 %v5319, %v5327
        %v5892 = vmax.f32 %v5891, %v5335
        %v5893 = vmax.f32 %v5892, %v5343
        %v5894 = vmax.f32 %v5893, %v5351
        %v5895 = vmax.f32 %v5894, %v5359
        %v5896 = vmax.f32 %v5895, %v5367
        %v5897 = vmax.f32 %v5896, %v5375
        %v5898 = vrot.slane %v5897, 4
        %v5899 = vmax.f32 %v5897, %v5898
        %v5900 = vrot.slane %v5899, 2
        %v5901 = vmax.f32 %v5899, %v5900
        %v5902 = vrot.slane %v5901, 1
        %v5903 = vmax.f32 %v5901, %v5902
        %v5904 = vmax.f32 %v5320, %v5328
        %v5905 = vmax.f32 %v5904, %v5336
        %v5906 = vmax.f32 %v5905, %v5344
        %v5907 = vmax.f32 %v5906, %v5352
        %v5908 = vmax.f32 %v5907, %v5360
        %v5909 = vmax.f32 %v5908, %v5368
        %v5910 = vmax.f32 %v5909, %v5376
        %v5911 = vrot.slane %v5910, 4
        %v5912 = vmax.f32 %v5910, %v5911
        %v5913 = vrot.slane %v5912, 2
        %v5914 = vmax.f32 %v5912, %v5913
        %v5915 = vrot.slane %v5914, 1
        %v5916 = vmax.f32 %v5914, %v5915
        %v5917 = vmax.f32 %v5321, %v5329
        %v5918 = vmax.f32 %v5917, %v5337
        %v5919 = vmax.f32 %v5918, %v5345
        %v5920 = vmax.f32 %v5919, %v5353
        %v5921 = vmax.f32 %v5920, %v5361
        %v5922 = vmax.f32 %v5921, %v5369
        %v5923 = vmax.f32 %v5922, %v5377
        %v5924 = vrot.slane %v5923, 4
        %v5925 = vmax.f32 %v5923, %v5924
        %v5926 = vrot.slane %v5925, 2
        %v5927 = vmax.f32 %v5925, %v5926
        %v5928 = vrot.slane %v5927, 1
        %v5929 = vmax.f32 %v5927, %v5928
        %v5930 = vmax.f32 %v5378, %v5386
        %v5931 = vmax.f32 %v5930, %v5394
        %v5932 = vmax.f32 %v5931, %v5402
        %v5933 = vmax.f32 %v5932, %v5410
        %v5934 = vmax.f32 %v5933, %v5418
        %v5935 = vmax.f32 %v5934, %v5426
        %v5936 = vmax.f32 %v5935, %v5434
        %v5937 = vrot.slane %v5936, 4
        %v5938 = vmax.f32 %v5936, %v5937
        %v5939 = vrot.slane %v5938, 2
        %v5940 = vmax.f32 %v5938, %v5939
        %v5941 = vrot.slane %v5940, 1
        %v5942 = vmax.f32 %v5940, %v5941
        %v5943 = vmax.f32 %v5379, %v5387
        %v5944 = vmax.f32 %v5943, %v5395
        %v5945 = vmax.f32 %v5944, %v5403
        %v5946 = vmax.f32 %v5945, %v5411
        %v5947 = vmax.f32 %v5946, %v5419
        %v5948 = vmax.f32 %v5947, %v5427
        %v5949 = vmax.f32 %v5948, %v5435
        %v5950 = vrot.slane %v5949, 4
        %v5951 = vmax.f32 %v5949, %v5950
        %v5952 = vrot.slane %v5951, 2
        %v5953 = vmax.f32 %v5951, %v5952
        %v5954 = vrot.slane %v5953, 1
        %v5955 = vmax.f32 %v5953, %v5954
        %v5956 = vmax.f32 %v5380, %v5388
        %v5957 = vmax.f32 %v5956, %v5396
        %v5958 = vmax.f32 %v5957, %v5404
        %v5959 = vmax.f32 %v5958, %v5412
        %v5960 = vmax.f32 %v5959, %v5420
        %v5961 = vmax.f32 %v5960, %v5428
        %v5962 = vmax.f32 %v5961, %v5436
        %v5963 = vrot.slane %v5962, 4
        %v5964 = vmax.f32 %v5962, %v5963
        %v5965 = vrot.slane %v5964, 2
        %v5966 = vmax.f32 %v5964, %v5965
        %v5967 = vrot.slane %v5966, 1
        %v5968 = vmax.f32 %v5966, %v5967
        %v5969 = vmax.f32 %v5381, %v5389
        %v5970 = vmax.f32 %v5969, %v5397
        %v5971 = vmax.f32 %v5970, %v5405
        %v5972 = vmax.f32 %v5971, %v5413
        %v5973 = vmax.f32 %v5972, %v5421
        %v5974 = vmax.f32 %v5973, %v5429
        %v5975 = vmax.f32 %v5974, %v5437
        %v5976 = vrot.slane %v5975, 4
        %v5977 = vmax.f32 %v5975, %v5976
        %v5978 = vrot.slane %v5977, 2
        %v5979 = vmax.f32 %v5977, %v5978
        %v5980 = vrot.slane %v5979, 1
        %v5981 = vmax.f32 %v5979, %v5980
        %v5982 = vmax.f32 %v5382, %v5390
        %v5983 = vmax.f32 %v5982, %v5398
        %v5984 = vmax.f32 %v5983, %v5406
        %v5985 = vmax.f32 %v5984, %v5414
        %v5986 = vmax.f32 %v5985, %v5422
        %v5987 = vmax.f32 %v5986, %v5430
        %v5988 = vmax.f32 %v5987, %v5438
        %v5989 = vrot.slane %v5988, 4
        %v5990 = vmax.f32 %v5988, %v5989
        %v5991 = vrot.slane %v5990, 2
        %v5992 = vmax.f32 %v5990, %v5991
        %v5993 = vrot.slane %v5992, 1
        %v5994 = vmax.f32 %v5992, %v5993
        %v5995 = vmax.f32 %v5383, %v5391
        %v5996 = vmax.f32 %v5995, %v5399
        %v5997 = vmax.f32 %v5996, %v5407
        %v5998 = vmax.f32 %v5997, %v5415
        %v5999 = vmax.f32 %v5998, %v5423
        %v6000 = vmax.f32 %v5999, %v5431
        %v6001 = vmax.f32 %v6000, %v5439
        %v6002 = vrot.slane %v6001, 4
        %v6003 = vmax.f32 %v6001, %v6002
        %v6004 = vrot.slane %v6003, 2
        %v6005 = vmax.f32 %v6003, %v6004
        %v6006 = vrot.slane %v6005, 1
        %v6007 = vmax.f32 %v6005, %v6006
        %v6008 = vmax.f32 %v5384, %v5392
        %v6009 = vmax.f32 %v6008, %v5400
        %v6010 = vmax.f32 %v6009, %v5408
        %v6011 = vmax.f32 %v6010, %v5416
        %v6012 = vmax.f32 %v6011, %v5424
        %v6013 = vmax.f32 %v6012, %v5432
        %v6014 = vmax.f32 %v6013, %v5440
        %v6015 = vrot.slane %v6014, 4
        %v6016 = vmax.f32 %v6014, %v6015
        %v6017 = vrot.slane %v6016, 2
        %v6018 = vmax.f32 %v6016, %v6017
        %v6019 = vrot.slane %v6018, 1
        %v6020 = vmax.f32 %v6018, %v6019
        %v6021 = vmax.f32 %v5385, %v5393
        %v6022 = vmax.f32 %v6021, %v5401
        %v6023 = vmax.f32 %v6022, %v5409
        %v6024 = vmax.f32 %v6023, %v5417
        %v6025 = vmax.f32 %v6024, %v5425
        %v6026 = vmax.f32 %v6025, %v5433
        %v6027 = vmax.f32 %v6026, %v5441
        %v6028 = vrot.slane %v6027, 4
        %v6029 = vmax.f32 %v6027, %v6028
        %v6030 = vrot.slane %v6029, 2
        %v6031 = vmax.f32 %v6029, %v6030
        %v6032 = vrot.slane %v6031, 1
        %v6033 = vmax.f32 %v6031, %v6032
        %v6034 = vmax.f32 %v5442, %v5450
        %v6035 = vmax.f32 %v6034, %v5458
        %v6036 = vmax.f32 %v6035, %v5466
        %v6037 = vmax.f32 %v6036, %v5474
        %v6038 = vmax.f32 %v6037, %v5482
        %v6039 = vmax.f32 %v6038, %v5490
        %v6040 = vmax.f32 %v6039, %v5498
        %v6041 = vrot.slane %v6040, 4
        %v6042 = vmax.f32 %v6040, %v6041
        %v6043 = vrot.slane %v6042, 2
        %v6044 = vmax.f32 %v6042, %v6043
        %v6045 = vrot.slane %v6044, 1
        %v6046 = vmax.f32 %v6044, %v6045
        %v6047 = vmax.f32 %v5443, %v5451
        %v6048 = vmax.f32 %v6047, %v5459
        %v6049 = vmax.f32 %v6048, %v5467
        %v6050 = vmax.f32 %v6049, %v5475
        %v6051 = vmax.f32 %v6050, %v5483
        %v6052 = vmax.f32 %v6051, %v5491
        %v6053 = vmax.f32 %v6052, %v5499
        %v6054 = vrot.slane %v6053, 4
        %v6055 = vmax.f32 %v6053, %v6054
        %v6056 = vrot.slane %v6055, 2
        %v6057 = vmax.f32 %v6055, %v6056
        %v6058 = vrot.slane %v6057, 1
        %v6059 = vmax.f32 %v6057, %v6058
        %v6060 = vmax.f32 %v5444, %v5452
        %v6061 = vmax.f32 %v6060, %v5460
        %v6062 = vmax.f32 %v6061, %v5468
        %v6063 = vmax.f32 %v6062, %v5476
        %v6064 = vmax.f32 %v6063, %v5484
        %v6065 = vmax.f32 %v6064, %v5492
        %v6066 = vmax.f32 %v6065, %v5500
        %v6067 = vrot.slane %v6066, 4
        %v6068 = vmax.f32 %v6066, %v6067
        %v6069 = vrot.slane %v6068, 2
        %v6070 = vmax.f32 %v6068, %v6069
        %v6071 = vrot.slane %v6070, 1
        %v6072 = vmax.f32 %v6070, %v6071
        %v6073 = vmax.f32 %v5445, %v5453
        %v6074 = vmax.f32 %v6073, %v5461
        %v6075 = vmax.f32 %v6074, %v5469
        %v6076 = vmax.f32 %v6075, %v5477
        %v6077 = vmax.f32 %v6076, %v5485
        %v6078 = vmax.f32 %v6077, %v5493
        %v6079 = vmax.f32 %v6078, %v5501
        %v6080 = vrot.slane %v6079, 4
        %v6081 = vmax.f32 %v6079, %v6080
        %v6082 = vrot.slane %v6081, 2
        %v6083 = vmax.f32 %v6081, %v6082
        %v6084 = vrot.slane %v6083, 1
        %v6085 = vmax.f32 %v6083, %v6084
        %v6086 = vmax.f32 %v5446, %v5454
        %v6087 = vmax.f32 %v6086, %v5462
        %v6088 = vmax.f32 %v6087, %v5470
        %v6089 = vmax.f32 %v6088, %v5478
        %v6090 = vmax.f32 %v6089, %v5486
        %v6091 = vmax.f32 %v6090, %v5494
        %v6092 = vmax.f32 %v6091, %v5502
        %v6093 = vrot.slane %v6092, 4
        %v6094 = vmax.f32 %v6092, %v6093
        %v6095 = vrot.slane %v6094, 2
        %v6096 = vmax.f32 %v6094, %v6095
        %v6097 = vrot.slane %v6096, 1
        %v6098 = vmax.f32 %v6096, %v6097
        %v6099 = vmax.f32 %v5447, %v5455
        %v6100 = vmax.f32 %v6099, %v5463
        %v6101 = vmax.f32 %v6100, %v5471
        %v6102 = vmax.f32 %v6101, %v5479
        %v6103 = vmax.f32 %v6102, %v5487
        %v6104 = vmax.f32 %v6103, %v5495
        %v6105 = vmax.f32 %v6104, %v5503
        %v6106 = vrot.slane %v6105, 4
        %v6107 = vmax.f32 %v6105, %v6106
        %v6108 = vrot.slane %v6107, 2
        %v6109 = vmax.f32 %v6107, %v6108
        %v6110 = vrot.slane %v6109, 1
        %v6111 = vmax.f32 %v6109, %v6110
        %v6112 = vmax.f32 %v5448, %v5456
        %v6113 = vmax.f32 %v6112, %v5464
        %v6114 = vmax.f32 %v6113, %v5472
        %v6115 = vmax.f32 %v6114, %v5480
        %v6116 = vmax.f32 %v6115, %v5488
        %v6117 = vmax.f32 %v6116, %v5496
        %v6118 = vmax.f32 %v6117, %v5504
        %v6119 = vrot.slane %v6118, 4
        %v6120 = vmax.f32 %v6118, %v6119
        %v6121 = vrot.slane %v6120, 2
        %v6122 = vmax.f32 %v6120, %v6121
        %v6123 = vrot.slane %v6122, 1
        %v6124 = vmax.f32 %v6122, %v6123
        %v6125 = vmax.f32 %v5449, %v5457
        %v6126 = vmax.f32 %v6125, %v5465
        %v6127 = vmax.f32 %v6126, %v5473
        %v6128 = vmax.f32 %v6127, %v5481
        %v6129 = vmax.f32 %v6128, %v5489
        %v6130 = vmax.f32 %v6129, %v5497
        %v6131 = vmax.f32 %v6130, %v5505
        %v6132 = vrot.slane %v6131, 4
        %v6133 = vmax.f32 %v6131, %v6132
        %v6134 = vrot.slane %v6133, 2
        %v6135 = vmax.f32 %v6133, %v6134
        %v6136 = vrot.slane %v6135, 1
        %v6137 = vmax.f32 %v6135, %v6136
        %v6138 = vmax.f32 %v5506, %v5514
        %v6139 = vmax.f32 %v6138, %v5522
        %v6140 = vmax.f32 %v6139, %v5530
        %v6141 = vmax.f32 %v6140, %v5538
        %v6142 = vmax.f32 %v6141, %v5546
        %v6143 = vmax.f32 %v6142, %v5554
        %v6144 = vmax.f32 %v6143, %v5562
        %v6145 = vrot.slane %v6144, 4
        %v6146 = vmax.f32 %v6144, %v6145
        %v6147 = vrot.slane %v6146, 2
        %v6148 = vmax.f32 %v6146, %v6147
        %v6149 = vrot.slane %v6148, 1
        %v6150 = vmax.f32 %v6148, %v6149
        %v6151 = vmax.f32 %v5507, %v5515
        %v6152 = vmax.f32 %v6151, %v5523
        %v6153 = vmax.f32 %v6152, %v5531
        %v6154 = vmax.f32 %v6153, %v5539
        %v6155 = vmax.f32 %v6154, %v5547
        %v6156 = vmax.f32 %v6155, %v5555
        %v6157 = vmax.f32 %v6156, %v5563
        %v6158 = vrot.slane %v6157, 4
        %v6159 = vmax.f32 %v6157, %v6158
        %v6160 = vrot.slane %v6159, 2
        %v6161 = vmax.f32 %v6159, %v6160
        %v6162 = vrot.slane %v6161, 1
        %v6163 = vmax.f32 %v6161, %v6162
        %v6164 = vmax.f32 %v5508, %v5516
        %v6165 = vmax.f32 %v6164, %v5524
        %v6166 = vmax.f32 %v6165, %v5532
        %v6167 = vmax.f32 %v6166, %v5540
        %v6168 = vmax.f32 %v6167, %v5548
        %v6169 = vmax.f32 %v6168, %v5556
        %v6170 = vmax.f32 %v6169, %v5564
        %v6171 = vrot.slane %v6170, 4
        %v6172 = vmax.f32 %v6170, %v6171
        %v6173 = vrot.slane %v6172, 2
        %v6174 = vmax.f32 %v6172, %v6173
        %v6175 = vrot.slane %v6174, 1
        %v6176 = vmax.f32 %v6174, %v6175
        %v6177 = vmax.f32 %v5509, %v5517
        %v6178 = vmax.f32 %v6177, %v5525
        %v6179 = vmax.f32 %v6178, %v5533
        %v6180 = vmax.f32 %v6179, %v5541
        %v6181 = vmax.f32 %v6180, %v5549
        %v6182 = vmax.f32 %v6181, %v5557
        %v6183 = vmax.f32 %v6182, %v5565
        %v6184 = vrot.slane %v6183, 4
        %v6185 = vmax.f32 %v6183, %v6184
        %v6186 = vrot.slane %v6185, 2
        %v6187 = vmax.f32 %v6185, %v6186
        %v6188 = vrot.slane %v6187, 1
        %v6189 = vmax.f32 %v6187, %v6188
        %v6190 = vmax.f32 %v5510, %v5518
        %v6191 = vmax.f32 %v6190, %v5526
        %v6192 = vmax.f32 %v6191, %v5534
        %v6193 = vmax.f32 %v6192, %v5542
        %v6194 = vmax.f32 %v6193, %v5550
        %v6195 = vmax.f32 %v6194, %v5558
        %v6196 = vmax.f32 %v6195, %v5566
        %v6197 = vrot.slane %v6196, 4
        %v6198 = vmax.f32 %v6196, %v6197
        %v6199 = vrot.slane %v6198, 2
        %v6200 = vmax.f32 %v6198, %v6199
        %v6201 = vrot.slane %v6200, 1
        %v6202 = vmax.f32 %v6200, %v6201
        %v6203 = vmax.f32 %v5511, %v5519
        %v6204 = vmax.f32 %v6203, %v5527
        %v6205 = vmax.f32 %v6204, %v5535
        %v6206 = vmax.f32 %v6205, %v5543
        %v6207 = vmax.f32 %v6206, %v5551
        %v6208 = vmax.f32 %v6207, %v5559
        %v6209 = vmax.f32 %v6208, %v5567
        %v6210 = vrot.slane %v6209, 4
        %v6211 = vmax.f32 %v6209, %v6210
        %v6212 = vrot.slane %v6211, 2
        %v6213 = vmax.f32 %v6211, %v6212
        %v6214 = vrot.slane %v6213, 1
        %v6215 = vmax.f32 %v6213, %v6214
        %v6216 = vmax.f32 %v5512, %v5520
        %v6217 = vmax.f32 %v6216, %v5528
        %v6218 = vmax.f32 %v6217, %v5536
        %v6219 = vmax.f32 %v6218, %v5544
        %v6220 = vmax.f32 %v6219, %v5552
        %v6221 = vmax.f32 %v6220, %v5560
        %v6222 = vmax.f32 %v6221, %v5568
        %v6223 = vrot.slane %v6222, 4
        %v6224 = vmax.f32 %v6222, %v6223
        %v6225 = vrot.slane %v6224, 2
        %v6226 = vmax.f32 %v6224, %v6225
        %v6227 = vrot.slane %v6226, 1
        %v6228 = vmax.f32 %v6226, %v6227
        %v6229 = vmax.f32 %v5513, %v5521
        %v6230 = vmax.f32 %v6229, %v5529
        %v6231 = vmax.f32 %v6230, %v5537
        %v6232 = vmax.f32 %v6231, %v5545
        %v6233 = vmax.f32 %v6232, %v5553
        %v6234 = vmax.f32 %v6233, %v5561
        %v6235 = vmax.f32 %v6234, %v5569
        %v6236 = vrot.slane %v6235, 4
        %v6237 = vmax.f32 %v6235, %v6236
        %v6238 = vrot.slane %v6237, 2
        %v6239 = vmax.f32 %v6237, %v6238
        %v6240 = vrot.slane %v6239, 1
        %v6241 = vmax.f32 %v6239, %v6240
        %v6242 = vmax.f32 %v5570, %v5578
        %v6243 = vmax.f32 %v6242, %v5586
        %v6244 = vmax.f32 %v6243, %v5594
        %v6245 = vmax.f32 %v6244, %v5602
        %v6246 = vmax.f32 %v6245, %v5610
        %v6247 = vmax.f32 %v6246, %v5618
        %v6248 = vmax.f32 %v6247, %v5626
        %v6249 = vrot.slane %v6248, 4
        %v6250 = vmax.f32 %v6248, %v6249
        %v6251 = vrot.slane %v6250, 2
        %v6252 = vmax.f32 %v6250, %v6251
        %v6253 = vrot.slane %v6252, 1
        %v6254 = vmax.f32 %v6252, %v6253
        %v6255 = vmax.f32 %v5571, %v5579
        %v6256 = vmax.f32 %v6255, %v5587
        %v6257 = vmax.f32 %v6256, %v5595
        %v6258 = vmax.f32 %v6257, %v5603
        %v6259 = vmax.f32 %v6258, %v5611
        %v6260 = vmax.f32 %v6259, %v5619
        %v6261 = vmax.f32 %v6260, %v5627
        %v6262 = vrot.slane %v6261, 4
        %v6263 = vmax.f32 %v6261, %v6262
        %v6264 = vrot.slane %v6263, 2
        %v6265 = vmax.f32 %v6263, %v6264
        %v6266 = vrot.slane %v6265, 1
        %v6267 = vmax.f32 %v6265, %v6266
        %v6268 = vmax.f32 %v5572, %v5580
        %v6269 = vmax.f32 %v6268, %v5588
        %v6270 = vmax.f32 %v6269, %v5596
        %v6271 = vmax.f32 %v6270, %v5604
        %v6272 = vmax.f32 %v6271, %v5612
        %v6273 = vmax.f32 %v6272, %v5620
        %v6274 = vmax.f32 %v6273, %v5628
        %v6275 = vrot.slane %v6274, 4
        %v6276 = vmax.f32 %v6274, %v6275
        %v6277 = vrot.slane %v6276, 2
        %v6278 = vmax.f32 %v6276, %v6277
        %v6279 = vrot.slane %v6278, 1
        %v6280 = vmax.f32 %v6278, %v6279
        %v6281 = vmax.f32 %v5573, %v5581
        %v6282 = vmax.f32 %v6281, %v5589
        %v6283 = vmax.f32 %v6282, %v5597
        %v6284 = vmax.f32 %v6283, %v5605
        %v6285 = vmax.f32 %v6284, %v5613
        %v6286 = vmax.f32 %v6285, %v5621
        %v6287 = vmax.f32 %v6286, %v5629
        %v6288 = vrot.slane %v6287, 4
        %v6289 = vmax.f32 %v6287, %v6288
        %v6290 = vrot.slane %v6289, 2
        %v6291 = vmax.f32 %v6289, %v6290
        %v6292 = vrot.slane %v6291, 1
        %v6293 = vmax.f32 %v6291, %v6292
        %v6294 = vmax.f32 %v5574, %v5582
        %v6295 = vmax.f32 %v6294, %v5590
        %v6296 = vmax.f32 %v6295, %v5598
        %v6297 = vmax.f32 %v6296, %v5606
        %v6298 = vmax.f32 %v6297, %v5614
        %v6299 = vmax.f32 %v6298, %v5622
        %v6300 = vmax.f32 %v6299, %v5630
        %v6301 = vrot.slane %v6300, 4
        %v6302 = vmax.f32 %v6300, %v6301
        %v6303 = vrot.slane %v6302, 2
        %v6304 = vmax.f32 %v6302, %v6303
        %v6305 = vrot.slane %v6304, 1
        %v6306 = vmax.f32 %v6304, %v6305
        %v6307 = vmax.f32 %v5575, %v5583
        %v6308 = vmax.f32 %v6307, %v5591
        %v6309 = vmax.f32 %v6308, %v5599
        %v6310 = vmax.f32 %v6309, %v5607
        %v6311 = vmax.f32 %v6310, %v5615
        %v6312 = vmax.f32 %v6311, %v5623
        %v6313 = vmax.f32 %v6312, %v5631
        %v6314 = vrot.slane %v6313, 4
        %v6315 = vmax.f32 %v6313, %v6314
        %v6316 = vrot.slane %v6315, 2
        %v6317 = vmax.f32 %v6315, %v6316
        %v6318 = vrot.slane %v6317, 1
        %v6319 = vmax.f32 %v6317, %v6318
        %v6320 = vmax.f32 %v5576, %v5584
        %v6321 = vmax.f32 %v6320, %v5592
        %v6322 = vmax.f32 %v6321, %v5600
        %v6323 = vmax.f32 %v6322, %v5608
        %v6324 = vmax.f32 %v6323, %v5616
        %v6325 = vmax.f32 %v6324, %v5624
        %v6326 = vmax.f32 %v6325, %v5632
        %v6327 = vrot.slane %v6326, 4
        %v6328 = vmax.f32 %v6326, %v6327
        %v6329 = vrot.slane %v6328, 2
        %v6330 = vmax.f32 %v6328, %v6329
        %v6331 = vrot.slane %v6330, 1
        %v6332 = vmax.f32 %v6330, %v6331
        %v6333 = vmax.f32 %v5577, %v5585
        %v6334 = vmax.f32 %v6333, %v5593
        %v6335 = vmax.f32 %v6334, %v5601
        %v6336 = vmax.f32 %v6335, %v5609
        %v6337 = vmax.f32 %v6336, %v5617
        %v6338 = vmax.f32 %v6337, %v5625
        %v6339 = vmax.f32 %v6338, %v5633
        %v6340 = vrot.slane %v6339, 4
        %v6341 = vmax.f32 %v6339, %v6340
        %v6342 = vrot.slane %v6341, 2
        %v6343 = vmax.f32 %v6341, %v6342
        %v6344 = vrot.slane %v6343, 1
        %v6345 = vmax.f32 %v6343, %v6344
        %v6346 = vmax.f32 %v5634, %v5642
        %v6347 = vmax.f32 %v6346, %v5650
        %v6348 = vmax.f32 %v6347, %v5658
        %v6349 = vmax.f32 %v6348, %v5666
        %v6350 = vmax.f32 %v6349, %v5674
        %v6351 = vmax.f32 %v6350, %v5682
        %v6352 = vmax.f32 %v6351, %v5690
        %v6353 = vrot.slane %v6352, 4
        %v6354 = vmax.f32 %v6352, %v6353
        %v6355 = vrot.slane %v6354, 2
        %v6356 = vmax.f32 %v6354, %v6355
        %v6357 = vrot.slane %v6356, 1
        %v6358 = vmax.f32 %v6356, %v6357
        %v6359 = vmax.f32 %v5635, %v5643
        %v6360 = vmax.f32 %v6359, %v5651
        %v6361 = vmax.f32 %v6360, %v5659
        %v6362 = vmax.f32 %v6361, %v5667
        %v6363 = vmax.f32 %v6362, %v5675
        %v6364 = vmax.f32 %v6363, %v5683
        %v6365 = vmax.f32 %v6364, %v5691
        %v6366 = vrot.slane %v6365, 4
        %v6367 = vmax.f32 %v6365, %v6366
        %v6368 = vrot.slane %v6367, 2
        %v6369 = vmax.f32 %v6367, %v6368
        %v6370 = vrot.slane %v6369, 1
        %v6371 = vmax.f32 %v6369, %v6370
        %v6372 = vmax.f32 %v5636, %v5644
        %v6373 = vmax.f32 %v6372, %v5652
        %v6374 = vmax.f32 %v6373, %v5660
        %v6375 = vmax.f32 %v6374, %v5668
        %v6376 = vmax.f32 %v6375, %v5676
        %v6377 = vmax.f32 %v6376, %v5684
        %v6378 = vmax.f32 %v6377, %v5692
        %v6379 = vrot.slane %v6378, 4
        %v6380 = vmax.f32 %v6378, %v6379
        %v6381 = vrot.slane %v6380, 2
        %v6382 = vmax.f32 %v6380, %v6381
        %v6383 = vrot.slane %v6382, 1
        %v6384 = vmax.f32 %v6382, %v6383
        %v6385 = vmax.f32 %v5637, %v5645
        %v6386 = vmax.f32 %v6385, %v5653
        %v6387 = vmax.f32 %v6386, %v5661
        %v6388 = vmax.f32 %v6387, %v5669
        %v6389 = vmax.f32 %v6388, %v5677
        %v6390 = vmax.f32 %v6389, %v5685
        %v6391 = vmax.f32 %v6390, %v5693
        %v6392 = vrot.slane %v6391, 4
        %v6393 = vmax.f32 %v6391, %v6392
        %v6394 = vrot.slane %v6393, 2
        %v6395 = vmax.f32 %v6393, %v6394
        %v6396 = vrot.slane %v6395, 1
        %v6397 = vmax.f32 %v6395, %v6396
        %v6398 = vmax.f32 %v5638, %v5646
        %v6399 = vmax.f32 %v6398, %v5654
        %v6400 = vmax.f32 %v6399, %v5662
        %v6401 = vmax.f32 %v6400, %v5670
        %v6402 = vmax.f32 %v6401, %v5678
        %v6403 = vmax.f32 %v6402, %v5686
        %v6404 = vmax.f32 %v6403, %v5694
        %v6405 = vrot.slane %v6404, 4
        %v6406 = vmax.f32 %v6404, %v6405
        %v6407 = vrot.slane %v6406, 2
        %v6408 = vmax.f32 %v6406, %v6407
        %v6409 = vrot.slane %v6408, 1
        %v6410 = vmax.f32 %v6408, %v6409
        %v6411 = vmax.f32 %v5639, %v5647
        %v6412 = vmax.f32 %v6411, %v5655
        %v6413 = vmax.f32 %v6412, %v5663
        %v6414 = vmax.f32 %v6413, %v5671
        %v6415 = vmax.f32 %v6414, %v5679
        %v6416 = vmax.f32 %v6415, %v5687
        %v6417 = vmax.f32 %v6416, %v5695
        %v6418 = vrot.slane %v6417, 4
        %v6419 = vmax.f32 %v6417, %v6418
        %v6420 = vrot.slane %v6419, 2
        %v6421 = vmax.f32 %v6419, %v6420
        %v6422 = vrot.slane %v6421, 1
        %v6423 = vmax.f32 %v6421, %v6422
        %v6424 = vmax.f32 %v5640, %v5648
        %v6425 = vmax.f32 %v6424, %v5656
        %v6426 = vmax.f32 %v6425, %v5664
        %v6427 = vmax.f32 %v6426, %v5672
        %v6428 = vmax.f32 %v6427, %v5680
        %v6429 = vmax.f32 %v6428, %v5688
        %v6430 = vmax.f32 %v6429, %v5696
        %v6431 = vrot.slane %v6430, 4
        %v6432 = vmax.f32 %v6430, %v6431
        %v6433 = vrot.slane %v6432, 2
        %v6434 = vmax.f32 %v6432, %v6433
        %v6435 = vrot.slane %v6434, 1
        %v6436 = vmax.f32 %v6434, %v6435
        %v6437 = vmax.f32 %v5641, %v5649
        %v6438 = vmax.f32 %v6437, %v5657
        %v6439 = vmax.f32 %v6438, %v5665
        %v6440 = vmax.f32 %v6439, %v5673
        %v6441 = vmax.f32 %v6440, %v5681
        %v6442 = vmax.f32 %v6441, %v5689
        %v6443 = vmax.f32 %v6442, %v5697
        %v6444 = vrot.slane %v6443, 4
        %v6445 = vmax.f32 %v6443, %v6444
        %v6446 = vrot.slane %v6445, 2
        %v6447 = vmax.f32 %v6445, %v6446
        %v6448 = vrot.slane %v6447, 1
        %v6449 = vmax.f32 %v6447, %v6448
        %v6450 = vmax.f32 %v5698, %v5706
        %v6451 = vmax.f32 %v6450, %v5714
        %v6452 = vmax.f32 %v6451, %v5722
        %v6453 = vmax.f32 %v6452, %v5730
        %v6454 = vmax.f32 %v6453, %v5738
        %v6455 = vmax.f32 %v6454, %v5746
        %v6456 = vmax.f32 %v6455, %v5754
        %v6457 = vrot.slane %v6456, 4
        %v6458 = vmax.f32 %v6456, %v6457
        %v6459 = vrot.slane %v6458, 2
        %v6460 = vmax.f32 %v6458, %v6459
        %v6461 = vrot.slane %v6460, 1
        %v6462 = vmax.f32 %v6460, %v6461
        %v6463 = vmax.f32 %v5699, %v5707
        %v6464 = vmax.f32 %v6463, %v5715
        %v6465 = vmax.f32 %v6464, %v5723
        %v6466 = vmax.f32 %v6465, %v5731
        %v6467 = vmax.f32 %v6466, %v5739
        %v6468 = vmax.f32 %v6467, %v5747
        %v6469 = vmax.f32 %v6468, %v5755
        %v6470 = vrot.slane %v6469, 4
        %v6471 = vmax.f32 %v6469, %v6470
        %v6472 = vrot.slane %v6471, 2
        %v6473 = vmax.f32 %v6471, %v6472
        %v6474 = vrot.slane %v6473, 1
        %v6475 = vmax.f32 %v6473, %v6474
        %v6476 = vmax.f32 %v5700, %v5708
        %v6477 = vmax.f32 %v6476, %v5716
        %v6478 = vmax.f32 %v6477, %v5724
        %v6479 = vmax.f32 %v6478, %v5732
        %v6480 = vmax.f32 %v6479, %v5740
        %v6481 = vmax.f32 %v6480, %v5748
        %v6482 = vmax.f32 %v6481, %v5756
        %v6483 = vrot.slane %v6482, 4
        %v6484 = vmax.f32 %v6482, %v6483
        %v6485 = vrot.slane %v6484, 2
        %v6486 = vmax.f32 %v6484, %v6485
        %v6487 = vrot.slane %v6486, 1
        %v6488 = vmax.f32 %v6486, %v6487
        %v6489 = vmax.f32 %v5701, %v5709
        %v6490 = vmax.f32 %v6489, %v5717
        %v6491 = vmax.f32 %v6490, %v5725
        %v6492 = vmax.f32 %v6491, %v5733
        %v6493 = vmax.f32 %v6492, %v5741
        %v6494 = vmax.f32 %v6493, %v5749
        %v6495 = vmax.f32 %v6494, %v5757
        %v6496 = vrot.slane %v6495, 4
        %v6497 = vmax.f32 %v6495, %v6496
        %v6498 = vrot.slane %v6497, 2
        %v6499 = vmax.f32 %v6497, %v6498
        %v6500 = vrot.slane %v6499, 1
        %v6501 = vmax.f32 %v6499, %v6500
        %v6502 = vmax.f32 %v5702, %v5710
        %v6503 = vmax.f32 %v6502, %v5718
        %v6504 = vmax.f32 %v6503, %v5726
        %v6505 = vmax.f32 %v6504, %v5734
        %v6506 = vmax.f32 %v6505, %v5742
        %v6507 = vmax.f32 %v6506, %v5750
        %v6508 = vmax.f32 %v6507, %v5758
        %v6509 = vrot.slane %v6508, 4
        %v6510 = vmax.f32 %v6508, %v6509
        %v6511 = vrot.slane %v6510, 2
        %v6512 = vmax.f32 %v6510, %v6511
        %v6513 = vrot.slane %v6512, 1
        %v6514 = vmax.f32 %v6512, %v6513
        %v6515 = vmax.f32 %v5703, %v5711
        %v6516 = vmax.f32 %v6515, %v5719
        %v6517 = vmax.f32 %v6516, %v5727
        %v6518 = vmax.f32 %v6517, %v5735
        %v6519 = vmax.f32 %v6518, %v5743
        %v6520 = vmax.f32 %v6519, %v5751
        %v6521 = vmax.f32 %v6520, %v5759
        %v6522 = vrot.slane %v6521, 4
        %v6523 = vmax.f32 %v6521, %v6522
        %v6524 = vrot.slane %v6523, 2
        %v6525 = vmax.f32 %v6523, %v6524
        %v6526 = vrot.slane %v6525, 1
        %v6527 = vmax.f32 %v6525, %v6526
        %v6528 = vmax.f32 %v5704, %v5712
        %v6529 = vmax.f32 %v6528, %v5720
        %v6530 = vmax.f32 %v6529, %v5728
        %v6531 = vmax.f32 %v6530, %v5736
        %v6532 = vmax.f32 %v6531, %v5744
        %v6533 = vmax.f32 %v6532, %v5752
        %v6534 = vmax.f32 %v6533, %v5760
        %v6535 = vrot.slane %v6534, 4
        %v6536 = vmax.f32 %v6534, %v6535
        %v6537 = vrot.slane %v6536, 2
        %v6538 = vmax.f32 %v6536, %v6537
        %v6539 = vrot.slane %v6538, 1
        %v6540 = vmax.f32 %v6538, %v6539
        %v6541 = vmax.f32 %v5705, %v5713
        %v6542 = vmax.f32 %v6541, %v5721
        %v6543 = vmax.f32 %v6542, %v5729
        %v6544 = vmax.f32 %v6543, %v5737
        %v6545 = vmax.f32 %v6544, %v5745
        %v6546 = vmax.f32 %v6545, %v5753
        %v6547 = vmax.f32 %v6546, %v5761
        %v6548 = vrot.slane %v6547, 4
        %v6549 = vmax.f32 %v6547, %v6548
        %v6550 = vrot.slane %v6549, 2
        %v6551 = vmax.f32 %v6549, %v6550
        %v6552 = vrot.slane %v6551, 1
        %v6553 = vmax.f32 %v6551, %v6552
        %v6554 = vmax.f32 %v5762, %v5770
        %v6555 = vmax.f32 %v6554, %v5778
        %v6556 = vmax.f32 %v6555, %v5786
        %v6557 = vmax.f32 %v6556, %v5794
        %v6558 = vmax.f32 %v6557, %v5802
        %v6559 = vmax.f32 %v6558, %v5810
        %v6560 = vmax.f32 %v6559, %v5818
        %v6561 = vrot.slane %v6560, 4
        %v6562 = vmax.f32 %v6560, %v6561
        %v6563 = vrot.slane %v6562, 2
        %v6564 = vmax.f32 %v6562, %v6563
        %v6565 = vrot.slane %v6564, 1
        %v6566 = vmax.f32 %v6564, %v6565
        %v6567 = vmax.f32 %v5763, %v5771
        %v6568 = vmax.f32 %v6567, %v5779
        %v6569 = vmax.f32 %v6568, %v5787
        %v6570 = vmax.f32 %v6569, %v5795
        %v6571 = vmax.f32 %v6570, %v5803
        %v6572 = vmax.f32 %v6571, %v5811
        %v6573 = vmax.f32 %v6572, %v5819
        %v6574 = vrot.slane %v6573, 4
        %v6575 = vmax.f32 %v6573, %v6574
        %v6576 = vrot.slane %v6575, 2
        %v6577 = vmax.f32 %v6575, %v6576
        %v6578 = vrot.slane %v6577, 1
        %v6579 = vmax.f32 %v6577, %v6578
        %v6580 = vmax.f32 %v5764, %v5772
        %v6581 = vmax.f32 %v6580, %v5780
        %v6582 = vmax.f32 %v6581, %v5788
        %v6583 = vmax.f32 %v6582, %v5796
        %v6584 = vmax.f32 %v6583, %v5804
        %v6585 = vmax.f32 %v6584, %v5812
        %v6586 = vmax.f32 %v6585, %v5820
        %v6587 = vrot.slane %v6586, 4
        %v6588 = vmax.f32 %v6586, %v6587
        %v6589 = vrot.slane %v6588, 2
        %v6590 = vmax.f32 %v6588, %v6589
        %v6591 = vrot.slane %v6590, 1
        %v6592 = vmax.f32 %v6590, %v6591
        %v6593 = vmax.f32 %v5765, %v5773
        %v6594 = vmax.f32 %v6593, %v5781
        %v6595 = vmax.f32 %v6594, %v5789
        %v6596 = vmax.f32 %v6595, %v5797
        %v6597 = vmax.f32 %v6596, %v5805
        %v6598 = vmax.f32 %v6597, %v5813
        %v6599 = vmax.f32 %v6598, %v5821
        %v6600 = vrot.slane %v6599, 4
        %v6601 = vmax.f32 %v6599, %v6600
        %v6602 = vrot.slane %v6601, 2
        %v6603 = vmax.f32 %v6601, %v6602
        %v6604 = vrot.slane %v6603, 1
        %v6605 = vmax.f32 %v6603, %v6604
        %v6606 = vmax.f32 %v5766, %v5774
        %v6607 = vmax.f32 %v6606, %v5782
        %v6608 = vmax.f32 %v6607, %v5790
        %v6609 = vmax.f32 %v6608, %v5798
        %v6610 = vmax.f32 %v6609, %v5806
        %v6611 = vmax.f32 %v6610, %v5814
        %v6612 = vmax.f32 %v6611, %v5822
        %v6613 = vrot.slane %v6612, 4
        %v6614 = vmax.f32 %v6612, %v6613
        %v6615 = vrot.slane %v6614, 2
        %v6616 = vmax.f32 %v6614, %v6615
        %v6617 = vrot.slane %v6616, 1
        %v6618 = vmax.f32 %v6616, %v6617
        %v6619 = vmax.f32 %v5767, %v5775
        %v6620 = vmax.f32 %v6619, %v5783
        %v6621 = vmax.f32 %v6620, %v5791
        %v6622 = vmax.f32 %v6621, %v5799
        %v6623 = vmax.f32 %v6622, %v5807
        %v6624 = vmax.f32 %v6623, %v5815
        %v6625 = vmax.f32 %v6624, %v5823
        %v6626 = vrot.slane %v6625, 4
        %v6627 = vmax.f32 %v6625, %v6626
        %v6628 = vrot.slane %v6627, 2
        %v6629 = vmax.f32 %v6627, %v6628
        %v6630 = vrot.slane %v6629, 1
        %v6631 = vmax.f32 %v6629, %v6630
        %v6632 = vmax.f32 %v5768, %v5776
        %v6633 = vmax.f32 %v6632, %v5784
        %v6634 = vmax.f32 %v6633, %v5792
        %v6635 = vmax.f32 %v6634, %v5800
        %v6636 = vmax.f32 %v6635, %v5808
        %v6637 = vmax.f32 %v6636, %v5816
        %v6638 = vmax.f32 %v6637, %v5824
        %v6639 = vrot.slane %v6638, 4
        %v6640 = vmax.f32 %v6638, %v6639
        %v6641 = vrot.slane %v6640, 2
        %v6642 = vmax.f32 %v6640, %v6641
        %v6643 = vrot.slane %v6642, 1
        %v6644 = vmax.f32 %v6642, %v6643
        %v6645 = vmax.f32 %v5769, %v5777
        %v6646 = vmax.f32 %v6645, %v5785
        %v6647 = vmax.f32 %v6646, %v5793
        %v6648 = vmax.f32 %v6647, %v5801
        %v6649 = vmax.f32 %v6648, %v5809
        %v6650 = vmax.f32 %v6649, %v5817
        %v6651 = vmax.f32 %v6650, %v5825
        %v6652 = vrot.slane %v6651, 4
        %v6653 = vmax.f32 %v6651, %v6652
        %v6654 = vrot.slane %v6653, 2
        %v6655 = vmax.f32 %v6653, %v6654
        %v6656 = vrot.slane %v6655, 1
        %v6657 = vmax.f32 %v6655, %v6656
        %v6658 = vld [vmem:[#allocation2] sm:$0xff]
        %v6659 = vld [vmem:[#allocation2 + $0x8] sm:$0xff]
        %v6660 = vld [vmem:[#allocation2 + $0x10] sm:$0xff]
        %v6661 = vld [vmem:[#allocation2 + $0x18] sm:$0xff]
        %v6662 = vld [vmem:[#allocation2 + $0x20] sm:$0xff]
        %v6663 = vld [vmem:[#allocation2 + $0x28] sm:$0xff]
        %v6664 = vld [vmem:[#allocation2 + $0x30] sm:$0xff]
        %v6665 = vld [vmem:[#allocation2 + $0x38] sm:$0xff]
        %vm6730 = vcmask 1041409
        %v6731 = vsel %vm6730, %v5942, %v5838
        %vm6732 = vcmask 1042434
        %v6733 = vsel %vm6732, %v6046, %v6731
        %vm6734 = vcmask 1043459
        %v6735 = vsel %vm6734, %v6150, %v6733
        %vm6736 = vcmask 1044484
        %v6737 = vsel %vm6736, %v6254, %v6735
        %vm6738 = vcmask 1045509
        %v6739 = vsel %vm6738, %v6358, %v6737
        %vm6740 = vcmask 1046534
        %v6741 = vsel %vm6740, %v6462, %v6739
        %vm6742 = vcmask 1047559
        %v6743 = vsel %vm6742, %v6566, %v6741
        %v6744 = vsel %vm6730, %v5955, %v5851
        %v6745 = vsel %vm6732, %v6059, %v6744
        %v6746 = vsel %vm6734, %v6163, %v6745
        %v6747 = vsel %vm6736, %v6267, %v6746
        %v6748 = vsel %vm6738, %v6371, %v6747
        %v6749 = vsel %vm6740, %v6475, %v6748
        %v6750 = vsel %vm6742, %v6579, %v6749
        %v6751 = vsel %vm6730, %v5968, %v5864
        %v6752 = vsel %vm6732, %v6072, %v6751
        %v6753 = vsel %vm6734, %v6176, %v6752
        %v6754 = vsel %vm6736, %v6280, %v6753
        %v6755 = vsel %vm6738, %v6384, %v6754
        %v6756 = vsel %vm6740, %v6488, %v6755
        %v6757 = vsel %vm6742, %v6592, %v6756
        %v6758 = vsel %vm6730, %v5981, %v5877
        %v6759 = vsel %vm6732, %v6085, %v6758
        %v6760 = vsel %vm6734, %v6189, %v6759
        %v6761 = vsel %vm6736, %v6293, %v6760
        %v6762 = vsel %vm6738, %v6397, %v6761
        %v6763 = vsel %vm6740, %v6501, %v6762
        %v6764 = vsel %vm6742, %v6605, %v6763
        %v6765 = vsel %vm6730, %v5994, %v5890
        %v6766 = vsel %vm6732, %v6098, %v6765
        %v6767 = vsel %vm6734, %v6202, %v6766
        %v6768 = vsel %vm6736, %v6306, %v6767
        %v6769 = vsel %vm6738, %v6410, %v6768
        %v6770 = vsel %vm6740, %v6514, %v6769
        %v6771 = vsel %vm6742, %v6618, %v6770
        %v6772 = vsel %vm6730, %v6007, %v5903
        %v6773 = vsel %vm6732, %v6111, %v6772
        %v6774 = vsel %vm6734, %v6215, %v6773
        %v6775 = vsel %vm6736, %v6319, %v6774
        %v6776 = vsel %vm6738, %v6423, %v6775
        %v6777 = vsel %vm6740, %v6527, %v6776
        %v6778 = vsel %vm6742, %v6631, %v6777
        %v6779 = vsel %vm6730, %v6020, %v5916
        %v6780 = vsel %vm6732, %v6124, %v6779
        %v6781 = vsel %vm6734, %v6228, %v6780
        %v6782 = vsel %vm6736, %v6332, %v6781
        %v6783 = vsel %vm6738, %v6436, %v6782
        %v6784 = vsel %vm6740, %v6540, %v6783
        %v6785 = vsel %vm6742, %v6644, %v6784
        %v6786 = vsel %vm6730, %v6033, %v5929
        %v6787 = vsel %vm6732, %v6137, %v6786
        %v6788 = vsel %vm6734, %v6241, %v6787
        %v6789 = vsel %vm6736, %v6345, %v6788
        %v6790 = vsel %vm6738, %v6449, %v6789
        %v6791 = vsel %vm6740, %v6553, %v6790
        %v6792 = vsel %vm6742, %v6657, %v6791
        %v6801 = vmax.f32 %v6658, %v6743
        %v6802 = vmax.f32 %v6659, %v6750
        %v6803 = vmax.f32 %v6660, %v6757
        %v6804 = vmax.f32 %v6661, %v6764
        %v6805 = vmax.f32 %v6662, %v6771
        %v6806 = vmax.f32 %v6663, %v6778
        %v6807 = vmax.f32 %v6664, %v6785
        %v6808 = vmax.f32 %v6665, %v6792
        %6809 = vst [vmem:[#allocation2] sm:$0xff] %v6801
        %6810 = vst [vmem:[#allocation2 + $0x8] sm:$0xff] %v6802
        %6811 = vst [vmem:[#allocation2 + $0x10] sm:$0xff] %v6803
        %6812 = vst [vmem:[#allocation2 + $0x18] sm:$0xff] %v6804
        %6813 = vst [vmem:[#allocation2 + $0x20] sm:$0xff] %v6805
        %6814 = vst [vmem:[#allocation2 + $0x28] sm:$0xff] %v6806
        %6815 = vst [vmem:[#allocation2 + $0x30] sm:$0xff] %v6807
        %6816 = vst [vmem:[#allocation2 + $0x38] sm:$0xff] %v6808
        %p6817 = scmp.eq.s32.totalorder %s43, 1
        // Predicated region
        $region175: #{tpu_custom_call.1} parent=125 // pred_check
          %p6818 = pneg %p6817
        $region176: #{tpu_custom_call.1} parent=125 // pred_check_branch
          %6820 = sbr.rel (%p6818) target = $region178
        $region177: #{tpu_custom_call.1} parent=125 // pred_region
          %v6821 = vld [vmem:[#allocation2] sm:$0xff]
          %v6822 = vld [vmem:[#allocation2 + $0x8] sm:$0xff]
          %v6823 = vld [vmem:[#allocation2 + $0x10] sm:$0xff]
          %v6824 = vld [vmem:[#allocation2 + $0x18] sm:$0xff]
          %v6825 = vld [vmem:[#allocation2 + $0x20] sm:$0xff]
          %v6826 = vld [vmem:[#allocation2 + $0x28] sm:$0xff]
          %v6827 = vld [vmem:[#allocation2 + $0x30] sm:$0xff]
          %v6828 = vld [vmem:[#allocation2 + $0x38] sm:$0xff]
          %v6829 = vpack.c.bf16 %v6821, %v6821
          %v6830 = vpack.c.bf16 %v6822, %v6822
          %v6831 = vpack.c.bf16 %v6823, %v6823
          %v6832 = vpack.c.bf16 %v6824, %v6824
          %v6833 = vpack.c.bf16 %v6825, %v6825
          %v6834 = vpack.c.bf16 %v6826, %v6826
          %v6835 = vpack.c.bf16 %v6827, %v6827
          %v6836 = vpack.c.bf16 %v6828, %v6828
          %v6837 = vld [vmem:[%s10] sm:$0xff]
          %v6838 = vld [vmem:[%s10 + $0x8] sm:$0xff]
          %v6839 = vld [vmem:[%s10 + $0x10] sm:$0xff]
          %v6840 = vld [vmem:[%s10 + $0x18] sm:$0xff]
          %v6841 = vld [vmem:[%s10 + $0x20] sm:$0xff]
          %v6842 = vld [vmem:[%s10 + $0x28] sm:$0xff]
          %v6843 = vld [vmem:[%s10 + $0x30] sm:$0xff]
          %v6844 = vld [vmem:[%s10 + $0x38] sm:$0xff]
          %v6845 = vld [vmem:[%s10 + $0x40] sm:$0xff]
          %v6846 = vld [vmem:[%s10 + $0x48] sm:$0xff]
          %v6847 = vld [vmem:[%s10 + $0x50] sm:$0xff]
          %v6848 = vld [vmem:[%s10 + $0x58] sm:$0xff]
          %v6849 = vld [vmem:[%s10 + $0x60] sm:$0xff]
          %v6850 = vld [vmem:[%s10 + $0x68] sm:$0xff]
          %v6851 = vld [vmem:[%s10 + $0x70] sm:$0xff]
          %v6852 = vld [vmem:[%s10 + $0x78] sm:$0xff]
          %v6853 = vld [vmem:[%s10 + $0x80] sm:$0xff]
          %v6854 = vld [vmem:[%s10 + $0x88] sm:$0xff]
          %v6855 = vld [vmem:[%s10 + $0x90] sm:$0xff]
          %v6856 = vld [vmem:[%s10 + $0x98] sm:$0xff]
          %v6857 = vld [vmem:[%s10 + $0xa0] sm:$0xff]
          %v6858 = vld [vmem:[%s10 + $0xa8] sm:$0xff]
          %v6859 = vld [vmem:[%s10 + $0xb0] sm:$0xff]
          %v6860 = vld [vmem:[%s10 + $0xb8] sm:$0xff]
          %v6861 = vld [vmem:[%s10 + $0xc0] sm:$0xff]
          %v6862 = vld [vmem:[%s10 + $0xc8] sm:$0xff]
          %v6863 = vld [vmem:[%s10 + $0xd0] sm:$0xff]
          %v6864 = vld [vmem:[%s10 + $0xd8] sm:$0xff]
          %v6865 = vld [vmem:[%s10 + $0xe0] sm:$0xff]
          %v6866 = vld [vmem:[%s10 + $0xe8] sm:$0xff]
          %v6867 = vld [vmem:[%s10 + $0xf0] sm:$0xff]
          %v6868 = vld [vmem:[%s10 + $0xf8] sm:$0xff]
          %v6869 = vld [vmem:[%s10 + $0x100] sm:$0xff]
          %v6870 = vld [vmem:[%s10 + $0x108] sm:$0xff]
          %v6871 = vld [vmem:[%s10 + $0x110] sm:$0xff]
          %v6872 = vld [vmem:[%s10 + $0x118] sm:$0xff]
          %v6873 = vld [vmem:[%s10 + $0x120] sm:$0xff]
          %v6874 = vld [vmem:[%s10 + $0x128] sm:$0xff]
          %v6875 = vld [vmem:[%s10 + $0x130] sm:$0xff]
          %v6876 = vld [vmem:[%s10 + $0x138] sm:$0xff]
          %v6877 = vld [vmem:[%s10 + $0x140] sm:$0xff]
          %v6878 = vld [vmem:[%s10 + $0x148] sm:$0xff]
          %v6879 = vld [vmem:[%s10 + $0x150] sm:$0xff]
          %v6880 = vld [vmem:[%s10 + $0x158] sm:$0xff]
          %v6881 = vld [vmem:[%s10 + $0x160] sm:$0xff]
          %v6882 = vld [vmem:[%s10 + $0x168] sm:$0xff]
          %v6883 = vld [vmem:[%s10 + $0x170] sm:$0xff]
          %v6884 = vld [vmem:[%s10 + $0x178] sm:$0xff]
          %v6885 = vld [vmem:[%s10 + $0x180] sm:$0xff]
          %v6886 = vld [vmem:[%s10 + $0x188] sm:$0xff]
          %v6887 = vld [vmem:[%s10 + $0x190] sm:$0xff]
          %v6888 = vld [vmem:[%s10 + $0x198] sm:$0xff]
          %v6889 = vld [vmem:[%s10 + $0x1a0] sm:$0xff]
          %v6890 = vld [vmem:[%s10 + $0x1a8] sm:$0xff]
          %v6891 = vld [vmem:[%s10 + $0x1b0] sm:$0xff]
          %v6892 = vld [vmem:[%s10 + $0x1b8] sm:$0xff]
          %v6893 = vld [vmem:[%s10 + $0x1c0] sm:$0xff]
          %v6894 = vld [vmem:[%s10 + $0x1c8] sm:$0xff]
          %v6895 = vld [vmem:[%s10 + $0x1d0] sm:$0xff]
          %v6896 = vld [vmem:[%s10 + $0x1d8] sm:$0xff]
          %v6897 = vld [vmem:[%s10 + $0x1e0] sm:$0xff]
          %v6898 = vld [vmem:[%s10 + $0x1e8] sm:$0xff]
          %v6899 = vld [vmem:[%s10 + $0x1f0] sm:$0xff]
          %v6900 = vld [vmem:[%s10 + $0x1f8] sm:$0xff]
          %v6901 = vld [vmem:[%s10 + $0x200] sm:$0xff]
          %v6902 = vld [vmem:[%s10 + $0x208] sm:$0xff]
          %v6903 = vld [vmem:[%s10 + $0x210] sm:$0xff]
          %v6904 = vld [vmem:[%s10 + $0x218] sm:$0xff]
          %v6905 = vld [vmem:[%s10 + $0x220] sm:$0xff]
          %v6906 = vld [vmem:[%s10 + $0x228] sm:$0xff]
          %v6907 = vld [vmem:[%s10 + $0x230] sm:$0xff]
          %v6908 = vld [vmem:[%s10 + $0x238] sm:$0xff]
          %v6909 = vld [vmem:[%s10 + $0x240] sm:$0xff]
          %v6910 = vld [vmem:[%s10 + $0x248] sm:$0xff]
          %v6911 = vld [vmem:[%s10 + $0x250] sm:$0xff]
          %v6912 = vld [vmem:[%s10 + $0x258] sm:$0xff]
          %v6913 = vld [vmem:[%s10 + $0x260] sm:$0xff]
          %v6914 = vld [vmem:[%s10 + $0x268] sm:$0xff]
          %v6915 = vld [vmem:[%s10 + $0x270] sm:$0xff]
          %v6916 = vld [vmem:[%s10 + $0x278] sm:$0xff]
          %v6917 = vld [vmem:[%s10 + $0x280] sm:$0xff]
          %v6918 = vld [vmem:[%s10 + $0x288] sm:$0xff]
          %v6919 = vld [vmem:[%s10 + $0x290] sm:$0xff]
          %v6920 = vld [vmem:[%s10 + $0x298] sm:$0xff]
          %v6921 = vld [vmem:[%s10 + $0x2a0] sm:$0xff]
          %v6922 = vld [vmem:[%s10 + $0x2a8] sm:$0xff]
          %v6923 = vld [vmem:[%s10 + $0x2b0] sm:$0xff]
          %v6924 = vld [vmem:[%s10 + $0x2b8] sm:$0xff]
          %v6925 = vld [vmem:[%s10 + $0x2c0] sm:$0xff]
          %v6926 = vld [vmem:[%s10 + $0x2c8] sm:$0xff]
          %v6927 = vld [vmem:[%s10 + $0x2d0] sm:$0xff]
          %v6928 = vld [vmem:[%s10 + $0x2d8] sm:$0xff]
          %v6929 = vld [vmem:[%s10 + $0x2e0] sm:$0xff]
          %v6930 = vld [vmem:[%s10 + $0x2e8] sm:$0xff]
          %v6931 = vld [vmem:[%s10 + $0x2f0] sm:$0xff]
          %v6932 = vld [vmem:[%s10 + $0x2f8] sm:$0xff]
          %v6933 = vld [vmem:[%s10 + $0x300] sm:$0xff]
          %v6934 = vld [vmem:[%s10 + $0x308] sm:$0xff]
          %v6935 = vld [vmem:[%s10 + $0x310] sm:$0xff]
          %v6936 = vld [vmem:[%s10 + $0x318] sm:$0xff]
          %v6937 = vld [vmem:[%s10 + $0x320] sm:$0xff]
          %v6938 = vld [vmem:[%s10 + $0x328] sm:$0xff]
          %v6939 = vld [vmem:[%s10 + $0x330] sm:$0xff]
          %v6940 = vld [vmem:[%s10 + $0x338] sm:$0xff]
          %v6941 = vld [vmem:[%s10 + $0x340] sm:$0xff]
          %v6942 = vld [vmem:[%s10 + $0x348] sm:$0xff]
          %v6943 = vld [vmem:[%s10 + $0x350] sm:$0xff]
          %v6944 = vld [vmem:[%s10 + $0x358] sm:$0xff]
          %v6945 = vld [vmem:[%s10 + $0x360] sm:$0xff]
          %v6946 = vld [vmem:[%s10 + $0x368] sm:$0xff]
          %v6947 = vld [vmem:[%s10 + $0x370] sm:$0xff]
          %v6948 = vld [vmem:[%s10 + $0x378] sm:$0xff]
          %v6949 = vld [vmem:[%s10 + $0x380] sm:$0xff]
          %v6950 = vld [vmem:[%s10 + $0x388] sm:$0xff]
          %v6951 = vld [vmem:[%s10 + $0x390] sm:$0xff]
          %v6952 = vld [vmem:[%s10 + $0x398] sm:$0xff]
          %v6953 = vld [vmem:[%s10 + $0x3a0] sm:$0xff]
          %v6954 = vld [vmem:[%s10 + $0x3a8] sm:$0xff]
          %v6955 = vld [vmem:[%s10 + $0x3b0] sm:$0xff]
          %v6956 = vld [vmem:[%s10 + $0x3b8] sm:$0xff]
          %v6957 = vld [vmem:[%s10 + $0x3c0] sm:$0xff]
          %v6958 = vld [vmem:[%s10 + $0x3c8] sm:$0xff]
          %v6959 = vld [vmem:[%s10 + $0x3d0] sm:$0xff]
          %v6960 = vld [vmem:[%s10 + $0x3d8] sm:$0xff]
          %v6961 = vld [vmem:[%s10 + $0x3e0] sm:$0xff]
          %v6962 = vld [vmem:[%s10 + $0x3e8] sm:$0xff]
          %v6963 = vld [vmem:[%s10 + $0x3f0] sm:$0xff]
          %v6964 = vld [vmem:[%s10 + $0x3f8] sm:$0xff]
          %v6965 = vld [vmem:[%s10 + $0x400] sm:$0xff]
          %v6966 = vld [vmem:[%s10 + $0x408] sm:$0xff]
          %v6967 = vld [vmem:[%s10 + $0x410] sm:$0xff]
          %v6968 = vld [vmem:[%s10 + $0x418] sm:$0xff]
          %v6969 = vld [vmem:[%s10 + $0x420] sm:$0xff]
          %v6970 = vld [vmem:[%s10 + $0x428] sm:$0xff]
          %v6971 = vld [vmem:[%s10 + $0x430] sm:$0xff]
          %v6972 = vld [vmem:[%s10 + $0x438] sm:$0xff]
          %v6973 = vld [vmem:[%s10 + $0x440] sm:$0xff]
          %v6974 = vld [vmem:[%s10 + $0x448] sm:$0xff]
          %v6975 = vld [vmem:[%s10 + $0x450] sm:$0xff]
          %v6976 = vld [vmem:[%s10 + $0x458] sm:$0xff]
          %v6977 = vld [vmem:[%s10 + $0x460] sm:$0xff]
          %v6978 = vld [vmem:[%s10 + $0x468] sm:$0xff]
          %v6979 = vld [vmem:[%s10 + $0x470] sm:$0xff]
          %v6980 = vld [vmem:[%s10 + $0x478] sm:$0xff]
          %v6981 = vld [vmem:[%s10 + $0x480] sm:$0xff]
          %v6982 = vld [vmem:[%s10 + $0x488] sm:$0xff]
          %v6983 = vld [vmem:[%s10 + $0x490] sm:$0xff]
          %v6984 = vld [vmem:[%s10 + $0x498] sm:$0xff]
          %v6985 = vld [vmem:[%s10 + $0x4a0] sm:$0xff]
          %v6986 = vld [vmem:[%s10 + $0x4a8] sm:$0xff]
          %v6987 = vld [vmem:[%s10 + $0x4b0] sm:$0xff]
          %v6988 = vld [vmem:[%s10 + $0x4b8] sm:$0xff]
          %v6989 = vld [vmem:[%s10 + $0x4c0] sm:$0xff]
          %v6990 = vld [vmem:[%s10 + $0x4c8] sm:$0xff]
          %v6991 = vld [vmem:[%s10 + $0x4d0] sm:$0xff]
          %v6992 = vld [vmem:[%s10 + $0x4d8] sm:$0xff]
          %v6993 = vld [vmem:[%s10 + $0x4e0] sm:$0xff]
          %v6994 = vld [vmem:[%s10 + $0x4e8] sm:$0xff]
          %v6995 = vld [vmem:[%s10 + $0x4f0] sm:$0xff]
          %v6996 = vld [vmem:[%s10 + $0x4f8] sm:$0xff]
          %v6997 = vld [vmem:[%s10 + $0x500] sm:$0xff]
          %v6998 = vld [vmem:[%s10 + $0x508] sm:$0xff]
          %v6999 = vld [vmem:[%s10 + $0x510] sm:$0xff]
          %v7000 = vld [vmem:[%s10 + $0x518] sm:$0xff]
          %v7001 = vld [vmem:[%s10 + $0x520] sm:$0xff]
          %v7002 = vld [vmem:[%s10 + $0x528] sm:$0xff]
          %v7003 = vld [vmem:[%s10 + $0x530] sm:$0xff]
          %v7004 = vld [vmem:[%s10 + $0x538] sm:$0xff]
          %v7005 = vld [vmem:[%s10 + $0x540] sm:$0xff]
          %v7006 = vld [vmem:[%s10 + $0x548] sm:$0xff]
          %v7007 = vld [vmem:[%s10 + $0x550] sm:$0xff]
          %v7008 = vld [vmem:[%s10 + $0x558] sm:$0xff]
          %v7009 = vld [vmem:[%s10 + $0x560] sm:$0xff]
          %v7010 = vld [vmem:[%s10 + $0x568] sm:$0xff]
          %v7011 = vld [vmem:[%s10 + $0x570] sm:$0xff]
          %v7012 = vld [vmem:[%s10 + $0x578] sm:$0xff]
          %v7013 = vld [vmem:[%s10 + $0x580] sm:$0xff]
          %v7014 = vld [vmem:[%s10 + $0x588] sm:$0xff]
          %v7015 = vld [vmem:[%s10 + $0x590] sm:$0xff]
          %v7016 = vld [vmem:[%s10 + $0x598] sm:$0xff]
          %v7017 = vld [vmem:[%s10 + $0x5a0] sm:$0xff]
          %v7018 = vld [vmem:[%s10 + $0x5a8] sm:$0xff]
          %v7019 = vld [vmem:[%s10 + $0x5b0] sm:$0xff]
          %v7020 = vld [vmem:[%s10 + $0x5b8] sm:$0xff]
          %v7021 = vld [vmem:[%s10 + $0x5c0] sm:$0xff]
          %v7022 = vld [vmem:[%s10 + $0x5c8] sm:$0xff]
          %v7023 = vld [vmem:[%s10 + $0x5d0] sm:$0xff]
          %v7024 = vld [vmem:[%s10 + $0x5d8] sm:$0xff]
          %v7025 = vld [vmem:[%s10 + $0x5e0] sm:$0xff]
          %v7026 = vld [vmem:[%s10 + $0x5e8] sm:$0xff]
          %v7027 = vld [vmem:[%s10 + $0x5f0] sm:$0xff]
          %v7028 = vld [vmem:[%s10 + $0x5f8] sm:$0xff]
          %v7029 = vld [vmem:[%s10 + $0x600] sm:$0xff]
          %v7030 = vld [vmem:[%s10 + $0x608] sm:$0xff]
          %v7031 = vld [vmem:[%s10 + $0x610] sm:$0xff]
          %v7032 = vld [vmem:[%s10 + $0x618] sm:$0xff]
          %v7033 = vld [vmem:[%s10 + $0x620] sm:$0xff]
          %v7034 = vld [vmem:[%s10 + $0x628] sm:$0xff]
          %v7035 = vld [vmem:[%s10 + $0x630] sm:$0xff]
          %v7036 = vld [vmem:[%s10 + $0x638] sm:$0xff]
          %v7037 = vld [vmem:[%s10 + $0x640] sm:$0xff]
          %v7038 = vld [vmem:[%s10 + $0x648] sm:$0xff]
          %v7039 = vld [vmem:[%s10 + $0x650] sm:$0xff]
          %v7040 = vld [vmem:[%s10 + $0x658] sm:$0xff]
          %v7041 = vld [vmem:[%s10 + $0x660] sm:$0xff]
          %v7042 = vld [vmem:[%s10 + $0x668] sm:$0xff]
          %v7043 = vld [vmem:[%s10 + $0x670] sm:$0xff]
          %v7044 = vld [vmem:[%s10 + $0x678] sm:$0xff]
          %v7045 = vld [vmem:[%s10 + $0x680] sm:$0xff]
          %v7046 = vld [vmem:[%s10 + $0x688] sm:$0xff]
          %v7047 = vld [vmem:[%s10 + $0x690] sm:$0xff]
          %v7048 = vld [vmem:[%s10 + $0x698] sm:$0xff]
          %v7049 = vld [vmem:[%s10 + $0x6a0] sm:$0xff]
          %v7050 = vld [vmem:[%s10 + $0x6a8] sm:$0xff]
          %v7051 = vld [vmem:[%s10 + $0x6b0] sm:$0xff]
          %v7052 = vld [vmem:[%s10 + $0x6b8] sm:$0xff]
          %v7053 = vld [vmem:[%s10 + $0x6c0] sm:$0xff]
          %v7054 = vld [vmem:[%s10 + $0x6c8] sm:$0xff]
          %v7055 = vld [vmem:[%s10 + $0x6d0] sm:$0xff]
          %v7056 = vld [vmem:[%s10 + $0x6d8] sm:$0xff]
          %v7057 = vld [vmem:[%s10 + $0x6e0] sm:$0xff]
          %v7058 = vld [vmem:[%s10 + $0x6e8] sm:$0xff]
          %v7059 = vld [vmem:[%s10 + $0x6f0] sm:$0xff]
          %v7060 = vld [vmem:[%s10 + $0x6f8] sm:$0xff]
          %v7061 = vld [vmem:[%s10 + $0x700] sm:$0xff]
          %v7062 = vld [vmem:[%s10 + $0x708] sm:$0xff]
          %v7063 = vld [vmem:[%s10 + $0x710] sm:$0xff]
          %v7064 = vld [vmem:[%s10 + $0x718] sm:$0xff]
          %v7065 = vld [vmem:[%s10 + $0x720] sm:$0xff]
          %v7066 = vld [vmem:[%s10 + $0x728] sm:$0xff]
          %v7067 = vld [vmem:[%s10 + $0x730] sm:$0xff]
          %v7068 = vld [vmem:[%s10 + $0x738] sm:$0xff]
          %v7069 = vld [vmem:[%s10 + $0x740] sm:$0xff]
          %v7070 = vld [vmem:[%s10 + $0x748] sm:$0xff]
          %v7071 = vld [vmem:[%s10 + $0x750] sm:$0xff]
          %v7072 = vld [vmem:[%s10 + $0x758] sm:$0xff]
          %v7073 = vld [vmem:[%s10 + $0x760] sm:$0xff]
          %v7074 = vld [vmem:[%s10 + $0x768] sm:$0xff]
          %v7075 = vld [vmem:[%s10 + $0x770] sm:$0xff]
          %v7076 = vld [vmem:[%s10 + $0x778] sm:$0xff]
          %v7077 = vld [vmem:[%s10 + $0x780] sm:$0xff]
          %v7078 = vld [vmem:[%s10 + $0x788] sm:$0xff]
          %v7079 = vld [vmem:[%s10 + $0x790] sm:$0xff]
          %v7080 = vld [vmem:[%s10 + $0x798] sm:$0xff]
          %v7081 = vld [vmem:[%s10 + $0x7a0] sm:$0xff]
          %v7082 = vld [vmem:[%s10 + $0x7a8] sm:$0xff]
          %v7083 = vld [vmem:[%s10 + $0x7b0] sm:$0xff]
          %v7084 = vld [vmem:[%s10 + $0x7b8] sm:$0xff]
          %v7085 = vld [vmem:[%s10 + $0x7c0] sm:$0xff]
          %v7086 = vld [vmem:[%s10 + $0x7c8] sm:$0xff]
          %v7087 = vld [vmem:[%s10 + $0x7d0] sm:$0xff]
          %v7088 = vld [vmem:[%s10 + $0x7d8] sm:$0xff]
          %v7089 = vld [vmem:[%s10 + $0x7e0] sm:$0xff]
          %v7090 = vld [vmem:[%s10 + $0x7e8] sm:$0xff]
          %v7091 = vld [vmem:[%s10 + $0x7f0] sm:$0xff]
          %v7092 = vld [vmem:[%s10 + $0x7f8] sm:$0xff]
          %v7349 = vunpack.c.l.b16 %v6837
          %v7350 = vunpack.c.h.b16 %v6837
          %v7351 = vunpack.c.l.b16 %v6838
          %v7352 = vunpack.c.h.b16 %v6838
          %v7353 = vunpack.c.l.b16 %v6839
          %v7354 = vunpack.c.h.b16 %v6839
          %v7355 = vunpack.c.l.b16 %v6840
          %v7356 = vunpack.c.h.b16 %v6840
          %v7357 = vunpack.c.l.b16 %v6841
          %v7358 = vunpack.c.h.b16 %v6841
          %v7359 = vunpack.c.l.b16 %v6842
          %v7360 = vunpack.c.h.b16 %v6842
          %v7361 = vunpack.c.l.b16 %v6843
          %v7362 = vunpack.c.h.b16 %v6843
          %v7363 = vunpack.c.l.b16 %v6844
          %v7364 = vunpack.c.h.b16 %v6844
          %v7365 = vunpack.c.l.b16 %v6845
          %v7366 = vunpack.c.h.b16 %v6845
          %v7367 = vunpack.c.l.b16 %v6846
          %v7368 = vunpack.c.h.b16 %v6846
          %v7369 = vunpack.c.l.b16 %v6847
          %v7370 = vunpack.c.h.b16 %v6847
          %v7371 = vunpack.c.l.b16 %v6848
          %v7372 = vunpack.c.h.b16 %v6848
          %v7373 = vunpack.c.l.b16 %v6849
          %v7374 = vunpack.c.h.b16 %v6849
          %v7375 = vunpack.c.l.b16 %v6850
          %v7376 = vunpack.c.h.b16 %v6850
          %v7377 = vunpack.c.l.b16 %v6851
          %v7378 = vunpack.c.h.b16 %v6851
          %v7379 = vunpack.c.l.b16 %v6852
          %v7380 = vunpack.c.h.b16 %v6852
          %v7381 = vunpack.c.l.b16 %v6853
          %v7382 = vunpack.c.h.b16 %v6853
          %v7383 = vunpack.c.l.b16 %v6854
          %v7384 = vunpack.c.h.b16 %v6854
          %v7385 = vunpack.c.l.b16 %v6855
          %v7386 = vunpack.c.h.b16 %v6855
          %v7387 = vunpack.c.l.b16 %v6856
          %v7388 = vunpack.c.h.b16 %v6856
          %v7389 = vunpack.c.l.b16 %v6857
          %v7390 = vunpack.c.h.b16 %v6857
          %v7391 = vunpack.c.l.b16 %v6858
          %v7392 = vunpack.c.h.b16 %v6858
          %v7393 = vunpack.c.l.b16 %v6859
          %v7394 = vunpack.c.h.b16 %v6859
          %v7395 = vunpack.c.l.b16 %v6860
          %v7396 = vunpack.c.h.b16 %v6860
          %v7397 = vunpack.c.l.b16 %v6861
          %v7398 = vunpack.c.h.b16 %v6861
          %v7399 = vunpack.c.l.b16 %v6862
          %v7400 = vunpack.c.h.b16 %v6862
          %v7401 = vunpack.c.l.b16 %v6863
          %v7402 = vunpack.c.h.b16 %v6863
          %v7403 = vunpack.c.l.b16 %v6864
          %v7404 = vunpack.c.h.b16 %v6864
          %v7405 = vunpack.c.l.b16 %v6865
          %v7406 = vunpack.c.h.b16 %v6865
          %v7407 = vunpack.c.l.b16 %v6866
          %v7408 = vunpack.c.h.b16 %v6866
          %v7409 = vunpack.c.l.b16 %v6867
          %v7410 = vunpack.c.h.b16 %v6867
          %v7411 = vunpack.c.l.b16 %v6868
          %v7412 = vunpack.c.h.b16 %v6868
          %v7413 = vunpack.c.l.b16 %v6869
          %v7414 = vunpack.c.h.b16 %v6869
          %v7415 = vunpack.c.l.b16 %v6870
          %v7416 = vunpack.c.h.b16 %v6870
          %v7417 = vunpack.c.l.b16 %v6871
          %v7418 = vunpack.c.h.b16 %v6871
          %v7419 = vunpack.c.l.b16 %v6872
          %v7420 = vunpack.c.h.b16 %v6872
          %v7421 = vunpack.c.l.b16 %v6873
          %v7422 = vunpack.c.h.b16 %v6873
          %v7423 = vunpack.c.l.b16 %v6874
          %v7424 = vunpack.c.h.b16 %v6874
          %v7425 = vunpack.c.l.b16 %v6875
          %v7426 = vunpack.c.h.b16 %v6875
          %v7427 = vunpack.c.l.b16 %v6876
          %v7428 = vunpack.c.h.b16 %v6876
          %v7429 = vunpack.c.l.b16 %v6877
          %v7430 = vunpack.c.h.b16 %v6877
          %v7431 = vunpack.c.l.b16 %v6878
          %v7432 = vunpack.c.h.b16 %v6878
          %v7433 = vunpack.c.l.b16 %v6879
          %v7434 = vunpack.c.h.b16 %v6879
          %v7435 = vunpack.c.l.b16 %v6880
          %v7436 = vunpack.c.h.b16 %v6880
          %v7437 = vunpack.c.l.b16 %v6881
          %v7438 = vunpack.c.h.b16 %v6881
          %v7439 = vunpack.c.l.b16 %v6882
          %v7440 = vunpack.c.h.b16 %v6882
          %v7441 = vunpack.c.l.b16 %v6883
          %v7442 = vunpack.c.h.b16 %v6883
          %v7443 = vunpack.c.l.b16 %v6884
          %v7444 = vunpack.c.h.b16 %v6884
          %v7445 = vunpack.c.l.b16 %v6885
          %v7446 = vunpack.c.h.b16 %v6885
          %v7447 = vunpack.c.l.b16 %v6886
          %v7448 = vunpack.c.h.b16 %v6886
          %v7449 = vunpack.c.l.b16 %v6887
          %v7450 = vunpack.c.h.b16 %v6887
          %v7451 = vunpack.c.l.b16 %v6888
          %v7452 = vunpack.c.h.b16 %v6888
          %v7453 = vunpack.c.l.b16 %v6889
          %v7454 = vunpack.c.h.b16 %v6889
          %v7455 = vunpack.c.l.b16 %v6890
          %v7456 = vunpack.c.h.b16 %v6890
          %v7457 = vunpack.c.l.b16 %v6891
          %v7458 = vunpack.c.h.b16 %v6891
          %v7459 = vunpack.c.l.b16 %v6892
          %v7460 = vunpack.c.h.b16 %v6892
          %v7461 = vunpack.c.l.b16 %v6893
          %v7462 = vunpack.c.h.b16 %v6893
          %v7463 = vunpack.c.l.b16 %v6894
          %v7464 = vunpack.c.h.b16 %v6894
          %v7465 = vunpack.c.l.b16 %v6895
          %v7466 = vunpack.c.h.b16 %v6895
          %v7467 = vunpack.c.l.b16 %v6896
          %v7468 = vunpack.c.h.b16 %v6896
          %v7469 = vunpack.c.l.b16 %v6897
          %v7470 = vunpack.c.h.b16 %v6897
          %v7471 = vunpack.c.l.b16 %v6898
          %v7472 = vunpack.c.h.b16 %v6898
          %v7473 = vunpack.c.l.b16 %v6899
          %v7474 = vunpack.c.h.b16 %v6899
          %v7475 = vunpack.c.l.b16 %v6900
          %v7476 = vunpack.c.h.b16 %v6900
          %v7477 = vunpack.c.l.b16 %v6901
          %v7478 = vunpack.c.h.b16 %v6901
          %v7479 = vunpack.c.l.b16 %v6902
          %v7480 = vunpack.c.h.b16 %v6902
          %v7481 = vunpack.c.l.b16 %v6903
          %v7482 = vunpack.c.h.b16 %v6903
          %v7483 = vunpack.c.l.b16 %v6904
          %v7484 = vunpack.c.h.b16 %v6904
          %v7485 = vunpack.c.l.b16 %v6905
          %v7486 = vunpack.c.h.b16 %v6905
          %v7487 = vunpack.c.l.b16 %v6906
          %v7488 = vunpack.c.h.b16 %v6906
          %v7489 = vunpack.c.l.b16 %v6907
          %v7490 = vunpack.c.h.b16 %v6907
          %v7491 = vunpack.c.l.b16 %v6908
          %v7492 = vunpack.c.h.b16 %v6908
          %v7493 = vunpack.c.l.b16 %v6909
          %v7494 = vunpack.c.h.b16 %v6909
          %v7495 = vunpack.c.l.b16 %v6910
          %v7496 = vunpack.c.h.b16 %v6910
          %v7497 = vunpack.c.l.b16 %v6911
          %v7498 = vunpack.c.h.b16 %v6911
          %v7499 = vunpack.c.l.b16 %v6912
          %v7500 = vunpack.c.h.b16 %v6912
          %v7501 = vunpack.c.l.b16 %v6913
          %v7502 = vunpack.c.h.b16 %v6913
          %v7503 = vunpack.c.l.b16 %v6914
          %v7504 = vunpack.c.h.b16 %v6914
          %v7505 = vunpack.c.l.b16 %v6915
          %v7506 = vunpack.c.h.b16 %v6915
          %v7507 = vunpack.c.l.b16 %v6916
          %v7508 = vunpack.c.h.b16 %v6916
          %v7509 = vunpack.c.l.b16 %v6917
          %v7510 = vunpack.c.h.b16 %v6917
          %v7511 = vunpack.c.l.b16 %v6918
          %v7512 = vunpack.c.h.b16 %v6918
          %v7513 = vunpack.c.l.b16 %v6919
          %v7514 = vunpack.c.h.b16 %v6919
          %v7515 = vunpack.c.l.b16 %v6920
          %v7516 = vunpack.c.h.b16 %v6920
          %v7517 = vunpack.c.l.b16 %v6921
          %v7518 = vunpack.c.h.b16 %v6921
          %v7519 = vunpack.c.l.b16 %v6922
          %v7520 = vunpack.c.h.b16 %v6922
          %v7521 = vunpack.c.l.b16 %v6923
          %v7522 = vunpack.c.h.b16 %v6923
          %v7523 = vunpack.c.l.b16 %v6924
          %v7524 = vunpack.c.h.b16 %v6924
          %v7525 = vunpack.c.l.b16 %v6925
          %v7526 = vunpack.c.h.b16 %v6925
          %v7527 = vunpack.c.l.b16 %v6926
          %v7528 = vunpack.c.h.b16 %v6926
          %v7529 = vunpack.c.l.b16 %v6927
          %v7530 = vunpack.c.h.b16 %v6927
          %v7531 = vunpack.c.l.b16 %v6928
          %v7532 = vunpack.c.h.b16 %v6928
          %v7533 = vunpack.c.l.b16 %v6929
          %v7534 = vunpack.c.h.b16 %v6929
          %v7535 = vunpack.c.l.b16 %v6930
          %v7536 = vunpack.c.h.b16 %v6930
          %v7537 = vunpack.c.l.b16 %v6931
          %v7538 = vunpack.c.h.b16 %v6931
          %v7539 = vunpack.c.l.b16 %v6932
          %v7540 = vunpack.c.h.b16 %v6932
          %v7541 = vunpack.c.l.b16 %v6933
          %v7542 = vunpack.c.h.b16 %v6933
          %v7543 = vunpack.c.l.b16 %v6934
          %v7544 = vunpack.c.h.b16 %v6934
          %v7545 = vunpack.c.l.b16 %v6935
          %v7546 = vunpack.c.h.b16 %v6935
          %v7547 = vunpack.c.l.b16 %v6936
          %v7548 = vunpack.c.h.b16 %v6936
          %v7549 = vunpack.c.l.b16 %v6937
          %v7550 = vunpack.c.h.b16 %v6937
          %v7551 = vunpack.c.l.b16 %v6938
          %v7552 = vunpack.c.h.b16 %v6938
          %v7553 = vunpack.c.l.b16 %v6939
          %v7554 = vunpack.c.h.b16 %v6939
          %v7555 = vunpack.c.l.b16 %v6940
          %v7556 = vunpack.c.h.b16 %v6940
          %v7557 = vunpack.c.l.b16 %v6941
          %v7558 = vunpack.c.h.b16 %v6941
          %v7559 = vunpack.c.l.b16 %v6942
          %v7560 = vunpack.c.h.b16 %v6942
          %v7561 = vunpack.c.l.b16 %v6943
          %v7562 = vunpack.c.h.b16 %v6943
          %v7563 = vunpack.c.l.b16 %v6944
          %v7564 = vunpack.c.h.b16 %v6944
          %v7565 = vunpack.c.l.b16 %v6945
          %v7566 = vunpack.c.h.b16 %v6945
          %v7567 = vunpack.c.l.b16 %v6946
          %v7568 = vunpack.c.h.b16 %v6946
          %v7569 = vunpack.c.l.b16 %v6947
          %v7570 = vunpack.c.h.b16 %v6947
          %v7571 = vunpack.c.l.b16 %v6948
          %v7572 = vunpack.c.h.b16 %v6948
          %v7573 = vunpack.c.l.b16 %v6949
          %v7574 = vunpack.c.h.b16 %v6949
          %v7575 = vunpack.c.l.b16 %v6950
          %v7576 = vunpack.c.h.b16 %v6950
          %v7577 = vunpack.c.l.b16 %v6951
          %v7578 = vunpack.c.h.b16 %v6951
          %v7579 = vunpack.c.l.b16 %v6952
          %v7580 = vunpack.c.h.b16 %v6952
          %v7581 = vunpack.c.l.b16 %v6953
          %v7582 = vunpack.c.h.b16 %v6953
          %v7583 = vunpack.c.l.b16 %v6954
          %v7584 = vunpack.c.h.b16 %v6954
          %v7585 = vunpack.c.l.b16 %v6955
          %v7586 = vunpack.c.h.b16 %v6955
          %v7587 = vunpack.c.l.b16 %v6956
          %v7588 = vunpack.c.h.b16 %v6956
          %v7589 = vunpack.c.l.b16 %v6957
          %v7590 = vunpack.c.h.b16 %v6957
          %v7591 = vunpack.c.l.b16 %v6958
          %v7592 = vunpack.c.h.b16 %v6958
          %v7593 = vunpack.c.l.b16 %v6959
          %v7594 = vunpack.c.h.b16 %v6959
          %v7595 = vunpack.c.l.b16 %v6960
          %v7596 = vunpack.c.h.b16 %v6960
          %v7597 = vunpack.c.l.b16 %v6961
          %v7598 = vunpack.c.h.b16 %v6961
          %v7599 = vunpack.c.l.b16 %v6962
          %v7600 = vunpack.c.h.b16 %v6962
          %v7601 = vunpack.c.l.b16 %v6963
          %v7602 = vunpack.c.h.b16 %v6963
          %v7603 = vunpack.c.l.b16 %v6964
          %v7604 = vunpack.c.h.b16 %v6964
          %v7605 = vunpack.c.l.b16 %v6965
          %v7606 = vunpack.c.h.b16 %v6965
          %v7607 = vunpack.c.l.b16 %v6966
          %v7608 = vunpack.c.h.b16 %v6966
          %v7609 = vunpack.c.l.b16 %v6967
          %v7610 = vunpack.c.h.b16 %v6967
          %v7611 = vunpack.c.l.b16 %v6968
          %v7612 = vunpack.c.h.b16 %v6968
          %v7613 = vunpack.c.l.b16 %v6969
          %v7614 = vunpack.c.h.b16 %v6969
          %v7615 = vunpack.c.l.b16 %v6970
          %v7616 = vunpack.c.h.b16 %v6970
          %v7617 = vunpack.c.l.b16 %v6971
          %v7618 = vunpack.c.h.b16 %v6971
          %v7619 = vunpack.c.l.b16 %v6972
          %v7620 = vunpack.c.h.b16 %v6972
          %v7621 = vunpack.c.l.b16 %v6973
          %v7622 = vunpack.c.h.b16 %v6973
          %v7623 = vunpack.c.l.b16 %v6974
          %v7624 = vunpack.c.h.b16 %v6974
          %v7625 = vunpack.c.l.b16 %v6975
          %v7626 = vunpack.c.h.b16 %v6975
          %v7627 = vunpack.c.l.b16 %v6976
          %v7628 = vunpack.c.h.b16 %v6976
          %v7629 = vunpack.c.l.b16 %v6977
          %v7630 = vunpack.c.h.b16 %v6977
          %v7631 = vunpack.c.l.b16 %v6978
          %v7632 = vunpack.c.h.b16 %v6978
          %v7633 = vunpack.c.l.b16 %v6979
          %v7634 = vunpack.c.h.b16 %v6979
          %v7635 = vunpack.c.l.b16 %v6980
          %v7636 = vunpack.c.h.b16 %v6980
          %v7637 = vunpack.c.l.b16 %v6981
          %v7638 = vunpack.c.h.b16 %v6981
          %v7639 = vunpack.c.l.b16 %v6982
          %v7640 = vunpack.c.h.b16 %v6982
          %v7641 = vunpack.c.l.b16 %v6983
          %v7642 = vunpack.c.h.b16 %v6983
          %v7643 = vunpack.c.l.b16 %v6984
          %v7644 = vunpack.c.h.b16 %v6984
          %v7645 = vunpack.c.l.b16 %v6985
          %v7646 = vunpack.c.h.b16 %v6985
          %v7647 = vunpack.c.l.b16 %v6986
          %v7648 = vunpack.c.h.b16 %v6986
          %v7649 = vunpack.c.l.b16 %v6987
          %v7650 = vunpack.c.h.b16 %v6987
          %v7651 = vunpack.c.l.b16 %v6988
          %v7652 = vunpack.c.h.b16 %v6988
          %v7653 = vunpack.c.l.b16 %v6989
          %v7654 = vunpack.c.h.b16 %v6989
          %v7655 = vunpack.c.l.b16 %v6990
          %v7656 = vunpack.c.h.b16 %v6990
          %v7657 = vunpack.c.l.b16 %v6991
          %v7658 = vunpack.c.h.b16 %v6991
          %v7659 = vunpack.c.l.b16 %v6992
          %v7660 = vunpack.c.h.b16 %v6992
          %v7661 = vunpack.c.l.b16 %v6993
          %v7662 = vunpack.c.h.b16 %v6993
          %v7663 = vunpack.c.l.b16 %v6994
          %v7664 = vunpack.c.h.b16 %v6994
          %v7665 = vunpack.c.l.b16 %v6995
          %v7666 = vunpack.c.h.b16 %v6995
          %v7667 = vunpack.c.l.b16 %v6996
          %v7668 = vunpack.c.h.b16 %v6996
          %v7669 = vunpack.c.l.b16 %v6997
          %v7670 = vunpack.c.h.b16 %v6997
          %v7671 = vunpack.c.l.b16 %v6998
          %v7672 = vunpack.c.h.b16 %v6998
          %v7673 = vunpack.c.l.b16 %v6999
          %v7674 = vunpack.c.h.b16 %v6999
          %v7675 = vunpack.c.l.b16 %v7000
          %v7676 = vunpack.c.h.b16 %v7000
          %v7677 = vunpack.c.l.b16 %v7001
          %v7678 = vunpack.c.h.b16 %v7001
          %v7679 = vunpack.c.l.b16 %v7002
          %v7680 = vunpack.c.h.b16 %v7002
          %v7681 = vunpack.c.l.b16 %v7003
          %v7682 = vunpack.c.h.b16 %v7003
          %v7683 = vunpack.c.l.b16 %v7004
          %v7684 = vunpack.c.h.b16 %v7004
          %v7685 = vunpack.c.l.b16 %v7005
          %v7686 = vunpack.c.h.b16 %v7005
          %v7687 = vunpack.c.l.b16 %v7006
          %v7688 = vunpack.c.h.b16 %v7006
          %v7689 = vunpack.c.l.b16 %v7007
          %v7690 = vunpack.c.h.b16 %v7007
          %v7691 = vunpack.c.l.b16 %v7008
          %v7692 = vunpack.c.h.b16 %v7008
          %v7693 = vunpack.c.l.b16 %v7009
          %v7694 = vunpack.c.h.b16 %v7009
          %v7695 = vunpack.c.l.b16 %v7010
          %v7696 = vunpack.c.h.b16 %v7010
          %v7697 = vunpack.c.l.b16 %v7011
          %v7698 = vunpack.c.h.b16 %v7011
          %v7699 = vunpack.c.l.b16 %v7012
          %v7700 = vunpack.c.h.b16 %v7012
          %v7701 = vunpack.c.l.b16 %v7013
          %v7702 = vunpack.c.h.b16 %v7013
          %v7703 = vunpack.c.l.b16 %v7014
          %v7704 = vunpack.c.h.b16 %v7014
          %v7705 = vunpack.c.l.b16 %v7015
          %v7706 = vunpack.c.h.b16 %v7015
          %v7707 = vunpack.c.l.b16 %v7016
          %v7708 = vunpack.c.h.b16 %v7016
          %v7709 = vunpack.c.l.b16 %v7017
          %v7710 = vunpack.c.h.b16 %v7017
          %v7711 = vunpack.c.l.b16 %v7018
          %v7712 = vunpack.c.h.b16 %v7018
          %v7713 = vunpack.c.l.b16 %v7019
          %v7714 = vunpack.c.h.b16 %v7019
          %v7715 = vunpack.c.l.b16 %v7020
          %v7716 = vunpack.c.h.b16 %v7020
          %v7717 = vunpack.c.l.b16 %v7021
          %v7718 = vunpack.c.h.b16 %v7021
          %v7719 = vunpack.c.l.b16 %v7022
          %v7720 = vunpack.c.h.b16 %v7022
          %v7721 = vunpack.c.l.b16 %v7023
          %v7722 = vunpack.c.h.b16 %v7023
          %v7723 = vunpack.c.l.b16 %v7024
          %v7724 = vunpack.c.h.b16 %v7024
          %v7725 = vunpack.c.l.b16 %v7025
          %v7726 = vunpack.c.h.b16 %v7025
          %v7727 = vunpack.c.l.b16 %v7026
          %v7728 = vunpack.c.h.b16 %v7026
          %v7729 = vunpack.c.l.b16 %v7027
          %v7730 = vunpack.c.h.b16 %v7027
          %v7731 = vunpack.c.l.b16 %v7028
          %v7732 = vunpack.c.h.b16 %v7028
          %v7733 = vunpack.c.l.b16 %v7029
          %v7734 = vunpack.c.h.b16 %v7029
          %v7735 = vunpack.c.l.b16 %v7030
          %v7736 = vunpack.c.h.b16 %v7030
          %v7737 = vunpack.c.l.b16 %v7031
          %v7738 = vunpack.c.h.b16 %v7031
          %v7739 = vunpack.c.l.b16 %v7032
          %v7740 = vunpack.c.h.b16 %v7032
          %v7741 = vunpack.c.l.b16 %v7033
          %v7742 = vunpack.c.h.b16 %v7033
          %v7743 = vunpack.c.l.b16 %v7034
          %v7744 = vunpack.c.h.b16 %v7034
          %v7745 = vunpack.c.l.b16 %v7035
          %v7746 = vunpack.c.h.b16 %v7035
          %v7747 = vunpack.c.l.b16 %v7036
          %v7748 = vunpack.c.h.b16 %v7036
          %v7749 = vunpack.c.l.b16 %v7037
          %v7750 = vunpack.c.h.b16 %v7037
          %v7751 = vunpack.c.l.b16 %v7038
          %v7752 = vunpack.c.h.b16 %v7038
          %v7753 = vunpack.c.l.b16 %v7039
          %v7754 = vunpack.c.h.b16 %v7039
          %v7755 = vunpack.c.l.b16 %v7040
          %v7756 = vunpack.c.h.b16 %v7040
          %v7757 = vunpack.c.l.b16 %v7041
          %v7758 = vunpack.c.h.b16 %v7041
          %v7759 = vunpack.c.l.b16 %v7042
          %v7760 = vunpack.c.h.b16 %v7042
          %v7761 = vunpack.c.l.b16 %v7043
          %v7762 = vunpack.c.h.b16 %v7043
          %v7763 = vunpack.c.l.b16 %v7044
          %v7764 = vunpack.c.h.b16 %v7044
          %v7765 = vunpack.c.l.b16 %v7045
          %v7766 = vunpack.c.h.b16 %v7045
          %v7767 = vunpack.c.l.b16 %v7046
          %v7768 = vunpack.c.h.b16 %v7046
          %v7769 = vunpack.c.l.b16 %v7047
          %v7770 = vunpack.c.h.b16 %v7047
          %v7771 = vunpack.c.l.b16 %v7048
          %v7772 = vunpack.c.h.b16 %v7048
          %v7773 = vunpack.c.l.b16 %v7049
          %v7774 = vunpack.c.h.b16 %v7049
          %v7775 = vunpack.c.l.b16 %v7050
          %v7776 = vunpack.c.h.b16 %v7050
          %v7777 = vunpack.c.l.b16 %v7051
          %v7778 = vunpack.c.h.b16 %v7051
          %v7779 = vunpack.c.l.b16 %v7052
          %v7780 = vunpack.c.h.b16 %v7052
          %v7781 = vunpack.c.l.b16 %v7053
          %v7782 = vunpack.c.h.b16 %v7053
          %v7783 = vunpack.c.l.b16 %v7054
          %v7784 = vunpack.c.h.b16 %v7054
          %v7785 = vunpack.c.l.b16 %v7055
          %v7786 = vunpack.c.h.b16 %v7055
          %v7787 = vunpack.c.l.b16 %v7056
          %v7788 = vunpack.c.h.b16 %v7056
          %v7789 = vunpack.c.l.b16 %v7057
          %v7790 = vunpack.c.h.b16 %v7057
          %v7791 = vunpack.c.l.b16 %v7058
          %v7792 = vunpack.c.h.b16 %v7058
          %v7793 = vunpack.c.l.b16 %v7059
          %v7794 = vunpack.c.h.b16 %v7059
          %v7795 = vunpack.c.l.b16 %v7060
          %v7796 = vunpack.c.h.b16 %v7060
          %v7797 = vunpack.c.l.b16 %v7061
          %v7798 = vunpack.c.h.b16 %v7061
          %v7799 = vunpack.c.l.b16 %v7062
          %v7800 = vunpack.c.h.b16 %v7062
          %v7801 = vunpack.c.l.b16 %v7063
          %v7802 = vunpack.c.h.b16 %v7063
          %v7803 = vunpack.c.l.b16 %v7064
          %v7804 = vunpack.c.h.b16 %v7064
          %v7805 = vunpack.c.l.b16 %v7065
          %v7806 = vunpack.c.h.b16 %v7065
          %v7807 = vunpack.c.l.b16 %v7066
          %v7808 = vunpack.c.h.b16 %v7066
          %v7809 = vunpack.c.l.b16 %v7067
          %v7810 = vunpack.c.h.b16 %v7067
          %v7811 = vunpack.c.l.b16 %v7068
          %v7812 = vunpack.c.h.b16 %v7068
          %v7813 = vunpack.c.l.b16 %v7069
          %v7814 = vunpack.c.h.b16 %v7069
          %v7815 = vunpack.c.l.b16 %v7070
          %v7816 = vunpack.c.h.b16 %v7070
          %v7817 = vunpack.c.l.b16 %v7071
          %v7818 = vunpack.c.h.b16 %v7071
          %v7819 = vunpack.c.l.b16 %v7072
          %v7820 = vunpack.c.h.b16 %v7072
          %v7821 = vunpack.c.l.b16 %v7073
          %v7822 = vunpack.c.h.b16 %v7073
          %v7823 = vunpack.c.l.b16 %v7074
          %v7824 = vunpack.c.h.b16 %v7074
          %v7825 = vunpack.c.l.b16 %v7075
          %v7826 = vunpack.c.h.b16 %v7075
          %v7827 = vunpack.c.l.b16 %v7076
          %v7828 = vunpack.c.h.b16 %v7076
          %v7829 = vunpack.c.l.b16 %v7077
          %v7830 = vunpack.c.h.b16 %v7077
          %v7831 = vunpack.c.l.b16 %v7078
          %v7832 = vunpack.c.h.b16 %v7078
          %v7833 = vunpack.c.l.b16 %v7079
          %v7834 = vunpack.c.h.b16 %v7079
          %v7835 = vunpack.c.l.b16 %v7080
          %v7836 = vunpack.c.h.b16 %v7080
          %v7837 = vunpack.c.l.b16 %v7081
          %v7838 = vunpack.c.h.b16 %v7081
          %v7839 = vunpack.c.l.b16 %v7082
          %v7840 = vunpack.c.h.b16 %v7082
          %v7841 = vunpack.c.l.b16 %v7083
          %v7842 = vunpack.c.h.b16 %v7083
          %v7843 = vunpack.c.l.b16 %v7084
          %v7844 = vunpack.c.h.b16 %v7084
          %v7845 = vunpack.c.l.b16 %v7085
          %v7846 = vunpack.c.h.b16 %v7085
          %v7847 = vunpack.c.l.b16 %v7086
          %v7848 = vunpack.c.h.b16 %v7086
          %v7849 = vunpack.c.l.b16 %v7087
          %v7850 = vunpack.c.h.b16 %v7087
          %v7851 = vunpack.c.l.b16 %v7088
          %v7852 = vunpack.c.h.b16 %v7088
          %v7853 = vunpack.c.l.b16 %v7089
          %v7854 = vunpack.c.h.b16 %v7089
          %v7855 = vunpack.c.l.b16 %v7090
          %v7856 = vunpack.c.h.b16 %v7090
          %v7857 = vunpack.c.l.b16 %v7091
          %v7858 = vunpack.c.h.b16 %v7091
          %v7859 = vunpack.c.l.b16 %v7092
          %v7860 = vunpack.c.h.b16 %v7092
          %v7861 = vpack.c.b16 %v7353, %v7349
          %v7862 = vpack.c.b16 %v7354, %v7350
          %v7863 = vpack.c.b16 %v7355, %v7351
          %v7864 = vpack.c.b16 %v7356, %v7352
          %v7865 = vpack.c.b16 %v7361, %v7357
          %v7866 = vpack.c.b16 %v7362, %v7358
          %v7867 = vpack.c.b16 %v7363, %v7359
          %v7868 = vpack.c.b16 %v7364, %v7360
          %v7869 = vpack.c.b16 %v7369, %v7365
          %v7870 = vpack.c.b16 %v7370, %v7366
          %v7871 = vpack.c.b16 %v7371, %v7367
          %v7872 = vpack.c.b16 %v7372, %v7368
          %v7873 = vpack.c.b16 %v7377, %v7373
          %v7874 = vpack.c.b16 %v7378, %v7374
          %v7875 = vpack.c.b16 %v7379, %v7375
          %v7876 = vpack.c.b16 %v7380, %v7376
          %v7877 = vpack.c.b16 %v7385, %v7381
          %v7878 = vpack.c.b16 %v7386, %v7382
          %v7879 = vpack.c.b16 %v7387, %v7383
          %v7880 = vpack.c.b16 %v7388, %v7384
          %v7881 = vpack.c.b16 %v7393, %v7389
          %v7882 = vpack.c.b16 %v7394, %v7390
          %v7883 = vpack.c.b16 %v7395, %v7391
          %v7884 = vpack.c.b16 %v7396, %v7392
          %v7885 = vpack.c.b16 %v7401, %v7397
          %v7886 = vpack.c.b16 %v7402, %v7398
          %v7887 = vpack.c.b16 %v7403, %v7399
          %v7888 = vpack.c.b16 %v7404, %v7400
          %v7889 = vpack.c.b16 %v7409, %v7405
          %v7890 = vpack.c.b16 %v7410, %v7406
          %v7891 = vpack.c.b16 %v7411, %v7407
          %v7892 = vpack.c.b16 %v7412, %v7408
          %v7893 = vpack.c.b16 %v7417, %v7413
          %v7894 = vpack.c.b16 %v7418, %v7414
          %v7895 = vpack.c.b16 %v7419, %v7415
          %v7896 = vpack.c.b16 %v7420, %v7416
          %v7897 = vpack.c.b16 %v7425, %v7421
          %v7898 = vpack.c.b16 %v7426, %v7422
          %v7899 = vpack.c.b16 %v7427, %v7423
          %v7900 = vpack.c.b16 %v7428, %v7424
          %v7901 = vpack.c.b16 %v7433, %v7429
          %v7902 = vpack.c.b16 %v7434, %v7430
          %v7903 = vpack.c.b16 %v7435, %v7431
          %v7904 = vpack.c.b16 %v7436, %v7432
          %v7905 = vpack.c.b16 %v7441, %v7437
          %v7906 = vpack.c.b16 %v7442, %v7438
          %v7907 = vpack.c.b16 %v7443, %v7439
          %v7908 = vpack.c.b16 %v7444, %v7440
          %v7909 = vpack.c.b16 %v7449, %v7445
          %v7910 = vpack.c.b16 %v7450, %v7446
          %v7911 = vpack.c.b16 %v7451, %v7447
          %v7912 = vpack.c.b16 %v7452, %v7448
          %v7913 = vpack.c.b16 %v7457, %v7453
          %v7914 = vpack.c.b16 %v7458, %v7454
          %v7915 = vpack.c.b16 %v7459, %v7455
          %v7916 = vpack.c.b16 %v7460, %v7456
          %v7917 = vpack.c.b16 %v7465, %v7461
          %v7918 = vpack.c.b16 %v7466, %v7462
          %v7919 = vpack.c.b16 %v7467, %v7463
          %v7920 = vpack.c.b16 %v7468, %v7464
          %v7921 = vpack.c.b16 %v7473, %v7469
          %v7922 = vpack.c.b16 %v7474, %v7470
          %v7923 = vpack.c.b16 %v7475, %v7471
          %v7924 = vpack.c.b16 %v7476, %v7472
          %v7925 = vpack.c.b16 %v7481, %v7477
          %v7926 = vpack.c.b16 %v7482, %v7478
          %v7927 = vpack.c.b16 %v7483, %v7479
          %v7928 = vpack.c.b16 %v7484, %v7480
          %v7929 = vpack.c.b16 %v7489, %v7485
          %v7930 = vpack.c.b16 %v7490, %v7486
          %v7931 = vpack.c.b16 %v7491, %v7487
          %v7932 = vpack.c.b16 %v7492, %v7488
          %v7933 = vpack.c.b16 %v7497, %v7493
          %v7934 = vpack.c.b16 %v7498, %v7494
          %v7935 = vpack.c.b16 %v7499, %v7495
          %v7936 = vpack.c.b16 %v7500, %v7496
          %v7937 = vpack.c.b16 %v7505, %v7501
          %v7938 = vpack.c.b16 %v7506, %v7502
          %v7939 = vpack.c.b16 %v7507, %v7503
          %v7940 = vpack.c.b16 %v7508, %v7504
          %v7941 = vpack.c.b16 %v7513, %v7509
          %v7942 = vpack.c.b16 %v7514, %v7510
          %v7943 = vpack.c.b16 %v7515, %v7511
          %v7944 = vpack.c.b16 %v7516, %v7512
          %v7945 = vpack.c.b16 %v7521, %v7517
          %v7946 = vpack.c.b16 %v7522, %v7518
          %v7947 = vpack.c.b16 %v7523, %v7519
          %v7948 = vpack.c.b16 %v7524, %v7520
          %v7949 = vpack.c.b16 %v7529, %v7525
          %v7950 = vpack.c.b16 %v7530, %v7526
          %v7951 = vpack.c.b16 %v7531, %v7527
          %v7952 = vpack.c.b16 %v7532, %v7528
          %v7953 = vpack.c.b16 %v7537, %v7533
          %v7954 = vpack.c.b16 %v7538, %v7534
          %v7955 = vpack.c.b16 %v7539, %v7535
          %v7956 = vpack.c.b16 %v7540, %v7536
          %v7957 = vpack.c.b16 %v7545, %v7541
          %v7958 = vpack.c.b16 %v7546, %v7542
          %v7959 = vpack.c.b16 %v7547, %v7543
          %v7960 = vpack.c.b16 %v7548, %v7544
          %v7961 = vpack.c.b16 %v7553, %v7549
          %v7962 = vpack.c.b16 %v7554, %v7550
          %v7963 = vpack.c.b16 %v7555, %v7551
          %v7964 = vpack.c.b16 %v7556, %v7552
          %v7965 = vpack.c.b16 %v7561, %v7557
          %v7966 = vpack.c.b16 %v7562, %v7558
          %v7967 = vpack.c.b16 %v7563, %v7559
          %v7968 = vpack.c.b16 %v7564, %v7560
          %v7969 = vpack.c.b16 %v7569, %v7565
          %v7970 = vpack.c.b16 %v7570, %v7566
          %v7971 = vpack.c.b16 %v7571, %v7567
          %v7972 = vpack.c.b16 %v7572, %v7568
          %v7973 = vpack.c.b16 %v7577, %v7573
          %v7974 = vpack.c.b16 %v7578, %v7574
          %v7975 = vpack.c.b16 %v7579, %v7575
          %v7976 = vpack.c.b16 %v7580, %v7576
          %v7977 = vpack.c.b16 %v7585, %v7581
          %v7978 = vpack.c.b16 %v7586, %v7582
          %v7979 = vpack.c.b16 %v7587, %v7583
          %v7980 = vpack.c.b16 %v7588, %v7584
          %v7981 = vpack.c.b16 %v7593, %v7589
          %v7982 = vpack.c.b16 %v7594, %v7590
          %v7983 = vpack.c.b16 %v7595, %v7591
          %v7984 = vpack.c.b16 %v7596, %v7592
          %v7985 = vpack.c.b16 %v7601, %v7597
          %v7986 = vpack.c.b16 %v7602, %v7598
          %v7987 = vpack.c.b16 %v7603, %v7599
          %v7988 = vpack.c.b16 %v7604, %v7600
          %v7989 = vpack.c.b16 %v7609, %v7605
          %v7990 = vpack.c.b16 %v7610, %v7606
          %v7991 = vpack.c.b16 %v7611, %v7607
          %v7992 = vpack.c.b16 %v7612, %v7608
          %v7993 = vpack.c.b16 %v7617, %v7613
          %v7994 = vpack.c.b16 %v7618, %v7614
          %v7995 = vpack.c.b16 %v7619, %v7615
          %v7996 = vpack.c.b16 %v7620, %v7616
          %v7997 = vpack.c.b16 %v7625, %v7621
          %v7998 = vpack.c.b16 %v7626, %v7622
          %v7999 = vpack.c.b16 %v7627, %v7623
          %v8000 = vpack.c.b16 %v7628, %v7624
          %v8001 = vpack.c.b16 %v7633, %v7629
          %v8002 = vpack.c.b16 %v7634, %v7630
          %v8003 = vpack.c.b16 %v7635, %v7631
          %v8004 = vpack.c.b16 %v7636, %v7632
          %v8005 = vpack.c.b16 %v7641, %v7637
          %v8006 = vpack.c.b16 %v7642, %v7638
          %v8007 = vpack.c.b16 %v7643, %v7639
          %v8008 = vpack.c.b16 %v7644, %v7640
          %v8009 = vpack.c.b16 %v7649, %v7645
          %v8010 = vpack.c.b16 %v7650, %v7646
          %v8011 = vpack.c.b16 %v7651, %v7647
          %v8012 = vpack.c.b16 %v7652, %v7648
          %v8013 = vpack.c.b16 %v7657, %v7653
          %v8014 = vpack.c.b16 %v7658, %v7654
          %v8015 = vpack.c.b16 %v7659, %v7655
          %v8016 = vpack.c.b16 %v7660, %v7656
          %v8017 = vpack.c.b16 %v7665, %v7661
          %v8018 = vpack.c.b16 %v7666, %v7662
          %v8019 = vpack.c.b16 %v7667, %v7663
          %v8020 = vpack.c.b16 %v7668, %v7664
          %v8021 = vpack.c.b16 %v7673, %v7669
          %v8022 = vpack.c.b16 %v7674, %v7670
          %v8023 = vpack.c.b16 %v7675, %v7671
          %v8024 = vpack.c.b16 %v7676, %v7672
          %v8025 = vpack.c.b16 %v7681, %v7677
          %v8026 = vpack.c.b16 %v7682, %v7678
          %v8027 = vpack.c.b16 %v7683, %v7679
          %v8028 = vpack.c.b16 %v7684, %v7680
          %v8029 = vpack.c.b16 %v7689, %v7685
          %v8030 = vpack.c.b16 %v7690, %v7686
          %v8031 = vpack.c.b16 %v7691, %v7687
          %v8032 = vpack.c.b16 %v7692, %v7688
          %v8033 = vpack.c.b16 %v7697, %v7693
          %v8034 = vpack.c.b16 %v7698, %v7694
          %v8035 = vpack.c.b16 %v7699, %v7695
          %v8036 = vpack.c.b16 %v7700, %v7696
          %v8037 = vpack.c.b16 %v7705, %v7701
          %v8038 = vpack.c.b16 %v7706, %v7702
          %v8039 = vpack.c.b16 %v7707, %v7703
          %v8040 = vpack.c.b16 %v7708, %v7704
          %v8041 = vpack.c.b16 %v7713, %v7709
          %v8042 = vpack.c.b16 %v7714, %v7710
          %v8043 = vpack.c.b16 %v7715, %v7711
          %v8044 = vpack.c.b16 %v7716, %v7712
          %v8045 = vpack.c.b16 %v7721, %v7717
          %v8046 = vpack.c.b16 %v7722, %v7718
          %v8047 = vpack.c.b16 %v7723, %v7719
          %v8048 = vpack.c.b16 %v7724, %v7720
          %v8049 = vpack.c.b16 %v7729, %v7725
          %v8050 = vpack.c.b16 %v7730, %v7726
          %v8051 = vpack.c.b16 %v7731, %v7727
          %v8052 = vpack.c.b16 %v7732, %v7728
          %v8053 = vpack.c.b16 %v7737, %v7733
          %v8054 = vpack.c.b16 %v7738, %v7734
          %v8055 = vpack.c.b16 %v7739, %v7735
          %v8056 = vpack.c.b16 %v7740, %v7736
          %v8057 = vpack.c.b16 %v7745, %v7741
          %v8058 = vpack.c.b16 %v7746, %v7742
          %v8059 = vpack.c.b16 %v7747, %v7743
          %v8060 = vpack.c.b16 %v7748, %v7744
          %v8061 = vpack.c.b16 %v7753, %v7749
          %v8062 = vpack.c.b16 %v7754, %v7750
          %v8063 = vpack.c.b16 %v7755, %v7751
          %v8064 = vpack.c.b16 %v7756, %v7752
          %v8065 = vpack.c.b16 %v7761, %v7757
          %v8066 = vpack.c.b16 %v7762, %v7758
          %v8067 = vpack.c.b16 %v7763, %v7759
          %v8068 = vpack.c.b16 %v7764, %v7760
          %v8069 = vpack.c.b16 %v7769, %v7765
          %v8070 = vpack.c.b16 %v7770, %v7766
          %v8071 = vpack.c.b16 %v7771, %v7767
          %v8072 = vpack.c.b16 %v7772, %v7768
          %v8073 = vpack.c.b16 %v7777, %v7773
          %v8074 = vpack.c.b16 %v7778, %v7774
          %v8075 = vpack.c.b16 %v7779, %v7775
          %v8076 = vpack.c.b16 %v7780, %v7776
          %v8077 = vpack.c.b16 %v7785, %v7781
          %v8078 = vpack.c.b16 %v7786, %v7782
          %v8079 = vpack.c.b16 %v7787, %v7783
          %v8080 = vpack.c.b16 %v7788, %v7784
          %v8081 = vpack.c.b16 %v7793, %v7789
          %v8082 = vpack.c.b16 %v7794, %v7790
          %v8083 = vpack.c.b16 %v7795, %v7791
          %v8084 = vpack.c.b16 %v7796, %v7792
          %v8085 = vpack.c.b16 %v7801, %v7797
          %v8086 = vpack.c.b16 %v7802, %v7798
          %v8087 = vpack.c.b16 %v7803, %v7799
          %v8088 = vpack.c.b16 %v7804, %v7800
          %v8089 = vpack.c.b16 %v7809, %v7805
          %v8090 = vpack.c.b16 %v7810, %v7806
          %v8091 = vpack.c.b16 %v7811, %v7807
          %v8092 = vpack.c.b16 %v7812, %v7808
          %v8093 = vpack.c.b16 %v7817, %v7813
          %v8094 = vpack.c.b16 %v7818, %v7814
          %v8095 = vpack.c.b16 %v7819, %v7815
          %v8096 = vpack.c.b16 %v7820, %v7816
          %v8097 = vpack.c.b16 %v7825, %v7821
          %v8098 = vpack.c.b16 %v7826, %v7822
          %v8099 = vpack.c.b16 %v7827, %v7823
          %v8100 = vpack.c.b16 %v7828, %v7824
          %v8101 = vpack.c.b16 %v7833, %v7829
          %v8102 = vpack.c.b16 %v7834, %v7830
          %v8103 = vpack.c.b16 %v7835, %v7831
          %v8104 = vpack.c.b16 %v7836, %v7832
          %v8105 = vpack.c.b16 %v7841, %v7837
          %v8106 = vpack.c.b16 %v7842, %v7838
          %v8107 = vpack.c.b16 %v7843, %v7839
          %v8108 = vpack.c.b16 %v7844, %v7840
          %v8109 = vpack.c.b16 %v7849, %v7845
          %v8110 = vpack.c.b16 %v7850, %v7846
          %v8111 = vpack.c.b16 %v7851, %v7847
          %v8112 = vpack.c.b16 %v7852, %v7848
          %v8113 = vpack.c.b16 %v7857, %v7853
          %v8114 = vpack.c.b16 %v7858, %v7854
          %v8115 = vpack.c.b16 %v7859, %v7855
          %v8116 = vpack.c.b16 %v7860, %v7856
          %8373 = vmatprep.subr.bf16.mxu0 %v7890
          %8374 = vmatpush1.bf16.msra.mxu0 %v7889
          %8375 = vmatprep.subr.bf16.mxu0 %v7886
          %8376 = vmatpush1.bf16.msra.mxu0 %v7885
          %8377 = vmatprep.subr.bf16.mxu0 %v7882
          %8378 = vmatpush1.bf16.msra.mxu0 %v7881
          %8379 = vmatprep.subr.bf16.mxu0 %v7878
          %8380 = vmatpush1.bf16.msra.mxu0 %v7877
          %8381 = vmatprep.subr.bf16.mxu0 %v7874
          %8382 = vmatpush1.bf16.msra.mxu0 %v7873
          %8383 = vmatprep.subr.bf16.mxu0 %v7870
          %8384 = vmatpush1.bf16.msra.mxu0 %v7869
          %8385 = vmatprep.subr.bf16.mxu0 %v7866
          %8386 = vmatpush1.bf16.msra.mxu0 %v7865
          %8387 = vmatprep.subr.bf16.mxu0 %v7862
          %8388 = vmatpush1.bf16.msra.mxu0 %v7861
          %8389 = vmatprep.subr.bf16.mxu0 %v7922
          %8390 = vmatpush2.bf16.msra.mxu0 %v7921
          %8391 = vmatprep.subr.bf16.mxu0 %v7918
          %8392 = vmatpush2.bf16.msra.mxu0 %v7917
          %8393 = vmatprep.subr.bf16.mxu0 %v7914
          %8394 = vmatpush2.bf16.msra.mxu0 %v7913
          %8395 = vmatprep.subr.bf16.mxu0 %v7910
          %8396 = vmatpush2.bf16.msra.mxu0 %v7909
          %8397 = vmatprep.subr.bf16.mxu0 %v7906
          %8398 = vmatpush2.bf16.msra.mxu0 %v7905
          %8399 = vmatprep.subr.bf16.mxu0 %v7902
          %8400 = vmatpush2.bf16.msra.mxu0 %v7901
          %8401 = vmatprep.subr.bf16.mxu0 %v7898
          %8402 = vmatpush2.bf16.msra.mxu0 %v7897
          %8403 = vmatprep.subr.bf16.mxu0 %v7894
          %8404 = vmatpush2.bf16.msra.mxu0 %v7893
          %8405 = vmatprep.mubr.bf16.mxu0 %v6830
          %8406 = vmatmul.mubr.bf16.gmra.mxu0 %v6829
          %v8407 = vpop.f32.mrf.mxu0
          %v8408 = vadd.f32 0.0, %v8407
          %v8409 = vpop.f32.mrf.mxu0
          %v8410 = vadd.f32 0.0, %v8409
          %v8411 = vpop.f32.mrf.mxu0
          %v8412 = vpop.f32.mrf.mxu0
          %8413 = vdwg.mxu0
          %8414 = vmatprep.subr.bf16.mxu0 %v7954
          %8415 = vmatpush1.bf16.msra.mxu0 %v7953
          %8416 = vmatprep.subr.bf16.mxu0 %v7950
          %8417 = vmatpush1.bf16.msra.mxu0 %v7949
          %8418 = vmatprep.subr.bf16.mxu0 %v7946
          %8419 = vmatpush1.bf16.msra.mxu0 %v7945
          %8420 = vmatprep.subr.bf16.mxu0 %v7942
          %8421 = vmatpush1.bf16.msra.mxu0 %v7941
          %8422 = vmatprep.subr.bf16.mxu0 %v7938
          %8423 = vmatpush1.bf16.msra.mxu0 %v7937
          %8424 = vmatprep.subr.bf16.mxu0 %v7934
          %8425 = vmatpush1.bf16.msra.mxu0 %v7933
          %8426 = vmatprep.subr.bf16.mxu0 %v7930
          %8427 = vmatpush1.bf16.msra.mxu0 %v7929
          %8428 = vmatprep.subr.bf16.mxu0 %v7926
          %8429 = vmatpush1.bf16.msra.mxu0 %v7925
          %8430 = vmatprep.subr.bf16.mxu0 %v7986
          %8431 = vmatpush2.bf16.msra.mxu0 %v7985
          %8432 = vmatprep.subr.bf16.mxu0 %v7982
          %8433 = vmatpush2.bf16.msra.mxu0 %v7981
          %8434 = vmatprep.subr.bf16.mxu0 %v7978
          %8435 = vmatpush2.bf16.msra.mxu0 %v7977
          %8436 = vmatprep.subr.bf16.mxu0 %v7974
          %8437 = vmatpush2.bf16.msra.mxu0 %v7973
          %8438 = vmatprep.subr.bf16.mxu0 %v7970
          %8439 = vmatpush2.bf16.msra.mxu0 %v7969
          %8440 = vmatprep.subr.bf16.mxu0 %v7966
          %8441 = vmatpush2.bf16.msra.mxu0 %v7965
          %8442 = vmatprep.subr.bf16.mxu0 %v7962
          %8443 = vmatpush2.bf16.msra.mxu0 %v7961
          %8444 = vmatprep.subr.bf16.mxu0 %v7958
          %8445 = vmatpush2.bf16.msra.mxu0 %v7957
          %8446 = vmatprep.mubr.bf16.mxu0 %v6832
          %8447 = vmatmul.mubr.bf16.gmra.mxu0 %v6831
          %v8448 = vpop.f32.mrf.mxu0
          %v8449 = vadd.f32 %v8408, %v8448
          %v8450 = vpop.f32.mrf.mxu0
          %v8451 = vadd.f32 %v8410, %v8450
          %v8452 = vpop.f32.mrf.mxu0
          %v8453 = vpop.f32.mrf.mxu0
          %8454 = vdwg.mxu0
          %8455 = vmatprep.subr.bf16.mxu0 %v8018
          %8456 = vmatpush1.bf16.msra.mxu0 %v8017
          %8457 = vmatprep.subr.bf16.mxu0 %v8014
          %8458 = vmatpush1.bf16.msra.mxu0 %v8013
          %8459 = vmatprep.subr.bf16.mxu0 %v8010
          %8460 = vmatpush1.bf16.msra.mxu0 %v8009
          %8461 = vmatprep.subr.bf16.mxu0 %v8006
          %8462 = vmatpush1.bf16.msra.mxu0 %v8005
          %8463 = vmatprep.subr.bf16.mxu0 %v8002
          %8464 = vmatpush1.bf16.msra.mxu0 %v8001
          %8465 = vmatprep.subr.bf16.mxu0 %v7998
          %8466 = vmatpush1.bf16.msra.mxu0 %v7997
          %8467 = vmatprep.subr.bf16.mxu0 %v7994
          %8468 = vmatpush1.bf16.msra.mxu0 %v7993
          %8469 = vmatprep.subr.bf16.mxu0 %v7990
          %8470 = vmatpush1.bf16.msra.mxu0 %v7989
          %8471 = vmatprep.subr.bf16.mxu0 %v8050
          %8472 = vmatpush2.bf16.msra.mxu0 %v8049
          %8473 = vmatprep.subr.bf16.mxu0 %v8046
          %8474 = vmatpush2.bf16.msra.mxu0 %v8045
          %8475 = vmatprep.subr.bf16.mxu0 %v8042
          %8476 = vmatpush2.bf16.msra.mxu0 %v8041
          %8477 = vmatprep.subr.bf16.mxu0 %v8038
          %8478 = vmatpush2.bf16.msra.mxu0 %v8037
          %8479 = vmatprep.subr.bf16.mxu0 %v8034
          %8480 = vmatpush2.bf16.msra.mxu0 %v8033
          %8481 = vmatprep.subr.bf16.mxu0 %v8030
          %8482 = vmatpush2.bf16.msra.mxu0 %v8029
          %8483 = vmatprep.subr.bf16.mxu0 %v8026
          %8484 = vmatpush2.bf16.msra.mxu0 %v8025
          %8485 = vmatprep.subr.bf16.mxu0 %v8022
          %8486 = vmatpush2.bf16.msra.mxu0 %v8021
          %8487 = vmatprep.mubr.bf16.mxu0 %v6834
          %8488 = vmatmul.mubr.bf16.gmra.mxu0 %v6833
          %v8489 = vpop.f32.mrf.mxu0
          %v8490 = vadd.f32 %v8449, %v8489
          %v8491 = vpop.f32.mrf.mxu0
          %v8492 = vadd.f32 %v8451, %v8491
          %v8493 = vpop.f32.mrf.mxu0
          %v8494 = vpop.f32.mrf.mxu0
          %8495 = vdwg.mxu0
          %8496 = vmatprep.subr.bf16.mxu0 %v8082
          %8497 = vmatpush1.bf16.msra.mxu0 %v8081
          %8498 = vmatprep.subr.bf16.mxu0 %v8078
          %8499 = vmatpush1.bf16.msra.mxu0 %v8077
          %8500 = vmatprep.subr.bf16.mxu0 %v8074
          %8501 = vmatpush1.bf16.msra.mxu0 %v8073
          %8502 = vmatprep.subr.bf16.mxu0 %v8070
          %8503 = vmatpush1.bf16.msra.mxu0 %v8069
          %8504 = vmatprep.subr.bf16.mxu0 %v8066
          %8505 = vmatpush1.bf16.msra.mxu0 %v8065
          %8506 = vmatprep.subr.bf16.mxu0 %v8062
          %8507 = vmatpush1.bf16.msra.mxu0 %v8061
          %8508 = vmatprep.subr.bf16.mxu0 %v8058
          %8509 = vmatpush1.bf16.msra.mxu0 %v8057
          %8510 = vmatprep.subr.bf16.mxu0 %v8054
          %8511 = vmatpush1.bf16.msra.mxu0 %v8053
          %8512 = vmatprep.subr.bf16.mxu0 %v8114
          %8513 = vmatpush2.bf16.msra.mxu0 %v8113
          %8514 = vmatprep.subr.bf16.mxu0 %v8110
          %8515 = vmatpush2.bf16.msra.mxu0 %v8109
          %8516 = vmatprep.subr.bf16.mxu0 %v8106
          %8517 = vmatpush2.bf16.msra.mxu0 %v8105
          %8518 = vmatprep.subr.bf16.mxu0 %v8102
          %8519 = vmatpush2.bf16.msra.mxu0 %v8101
          %8520 = vmatprep.subr.bf16.mxu0 %v8098
          %8521 = vmatpush2.bf16.msra.mxu0 %v8097
          %8522 = vmatprep.subr.bf16.mxu0 %v8094
          %8523 = vmatpush2.bf16.msra.mxu0 %v8093
          %8524 = vmatprep.subr.bf16.mxu0 %v8090
          %8525 = vmatpush2.bf16.msra.mxu0 %v8089
          %8526 = vmatprep.subr.bf16.mxu0 %v8086
          %8527 = vmatpush2.bf16.msra.mxu0 %v8085
          %8528 = vmatprep.mubr.bf16.mxu0 %v6836
          %8529 = vmatmul.mubr.bf16.gmra.mxu0 %v6835
          %v8530 = vpop.f32.mrf.mxu0
          %v8531 = vadd.f32 %v8490, %v8530
          %v8532 = vpop.f32.mrf.mxu0
          %v8533 = vadd.f32 %v8492, %v8532
          %v8534 = vpop.f32.mrf.mxu0
          %v8535 = vpop.f32.mrf.mxu0
          %8536 = vdwg.mxu0
          %8537 = vmatprep.subr.bf16.mxu0 %v7892
          %8538 = vmatpush1.bf16.msra.mxu0 %v7891
          %8539 = vmatprep.subr.bf16.mxu0 %v7888
          %8540 = vmatpush1.bf16.msra.mxu0 %v7887
          %8541 = vmatprep.subr.bf16.mxu0 %v7884
          %8542 = vmatpush1.bf16.msra.mxu0 %v7883
          %8543 = vmatprep.subr.bf16.mxu0 %v7880
          %8544 = vmatpush1.bf16.msra.mxu0 %v7879
          %8545 = vmatprep.subr.bf16.mxu0 %v7876
          %8546 = vmatpush1.bf16.msra.mxu0 %v7875
          %8547 = vmatprep.subr.bf16.mxu0 %v7872
          %8548 = vmatpush1.bf16.msra.mxu0 %v7871
          %8549 = vmatprep.subr.bf16.mxu0 %v7868
          %8550 = vmatpush1.bf16.msra.mxu0 %v7867
          %8551 = vmatprep.subr.bf16.mxu0 %v7864
          %8552 = vmatpush1.bf16.msra.mxu0 %v7863
          %8553 = vmatprep.subr.bf16.mxu0 %v7924
          %8554 = vmatpush2.bf16.msra.mxu0 %v7923
          %8555 = vmatprep.subr.bf16.mxu0 %v7920
          %8556 = vmatpush2.bf16.msra.mxu0 %v7919
          %8557 = vmatprep.subr.bf16.mxu0 %v7916
          %8558 = vmatpush2.bf16.msra.mxu0 %v7915
          %8559 = vmatprep.subr.bf16.mxu0 %v7912
          %8560 = vmatpush2.bf16.msra.mxu0 %v7911
          %8561 = vmatprep.subr.bf16.mxu0 %v7908
          %8562 = vmatpush2.bf16.msra.mxu0 %v7907
          %8563 = vmatprep.subr.bf16.mxu0 %v7904
          %8564 = vmatpush2.bf16.msra.mxu0 %v7903
          %8565 = vmatprep.subr.bf16.mxu0 %v7900
          %8566 = vmatpush2.bf16.msra.mxu0 %v7899
          %8567 = vmatprep.subr.bf16.mxu0 %v7896
          %8568 = vmatpush2.bf16.msra.mxu0 %v7895
          %8569 = vmatprep.mubr.bf16.mxu0 %v6830
          %8570 = vmatmul.mubr.bf16.gmra.mxu0 %v6829
          %v8571 = vpop.f32.mrf.mxu0
          %v8572 = vadd.f32 0.0, %v8571
          %v8573 = vpop.f32.mrf.mxu0
          %v8574 = vadd.f32 0.0, %v8573
          %v8575 = vpop.f32.mrf.mxu0
          %v8576 = vpop.f32.mrf.mxu0
          %8577 = vdwg.mxu0
          %8578 = vmatprep.subr.bf16.mxu0 %v7956
          %8579 = vmatpush1.bf16.msra.mxu0 %v7955
          %8580 = vmatprep.subr.bf16.mxu0 %v7952
          %8581 = vmatpush1.bf16.msra.mxu0 %v7951
          %8582 = vmatprep.subr.bf16.mxu0 %v7948
          %8583 = vmatpush1.bf16.msra.mxu0 %v7947
          %8584 = vmatprep.subr.bf16.mxu0 %v7944
          %8585 = vmatpush1.bf16.msra.mxu0 %v7943
          %8586 = vmatprep.subr.bf16.mxu0 %v7940
          %8587 = vmatpush1.bf16.msra.mxu0 %v7939
          %8588 = vmatprep.subr.bf16.mxu0 %v7936
          %8589 = vmatpush1.bf16.msra.mxu0 %v7935
          %8590 = vmatprep.subr.bf16.mxu0 %v7932
          %8591 = vmatpush1.bf16.msra.mxu0 %v7931
          %8592 = vmatprep.subr.bf16.mxu0 %v7928
          %8593 = vmatpush1.bf16.msra.mxu0 %v7927
          %8594 = vmatprep.subr.bf16.mxu0 %v7988
          %8595 = vmatpush2.bf16.msra.mxu0 %v7987
          %8596 = vmatprep.subr.bf16.mxu0 %v7984
          %8597 = vmatpush2.bf16.msra.mxu0 %v7983
          %8598 = vmatprep.subr.bf16.mxu0 %v7980
          %8599 = vmatpush2.bf16.msra.mxu0 %v7979
          %8600 = vmatprep.subr.bf16.mxu0 %v7976
          %8601 = vmatpush2.bf16.msra.mxu0 %v7975
          %8602 = vmatprep.subr.bf16.mxu0 %v7972
          %8603 = vmatpush2.bf16.msra.mxu0 %v7971
          %8604 = vmatprep.subr.bf16.mxu0 %v7968
          %8605 = vmatpush2.bf16.msra.mxu0 %v7967
          %8606 = vmatprep.subr.bf16.mxu0 %v7964
          %8607 = vmatpush2.bf16.msra.mxu0 %v7963
          %8608 = vmatprep.subr.bf16.mxu0 %v7960
          %8609 = vmatpush2.bf16.msra.mxu0 %v7959
          %8610 = vmatprep.mubr.bf16.mxu0 %v6832
          %8611 = vmatmul.mubr.bf16.gmra.mxu0 %v6831
          %v8612 = vpop.f32.mrf.mxu0
          %v8613 = vadd.f32 %v8572, %v8612
          %v8614 = vpop.f32.mrf.mxu0
          %v8615 = vadd.f32 %v8574, %v8614
          %v8616 = vpop.f32.mrf.mxu0
          %v8617 = vpop.f32.mrf.mxu0
          %8618 = vdwg.mxu0
          %8619 = vmatprep.subr.bf16.mxu0 %v8020
          %8620 = vmatpush1.bf16.msra.mxu0 %v8019
          %8621 = vmatprep.subr.bf16.mxu0 %v8016
          %8622 = vmatpush1.bf16.msra.mxu0 %v8015
          %8623 = vmatprep.subr.bf16.mxu0 %v8012
          %8624 = vmatpush1.bf16.msra.mxu0 %v8011
          %8625 = vmatprep.subr.bf16.mxu0 %v8008
          %8626 = vmatpush1.bf16.msra.mxu0 %v8007
          %8627 = vmatprep.subr.bf16.mxu0 %v8004
          %8628 = vmatpush1.bf16.msra.mxu0 %v8003
          %8629 = vmatprep.subr.bf16.mxu0 %v8000
          %8630 = vmatpush1.bf16.msra.mxu0 %v7999
          %8631 = vmatprep.subr.bf16.mxu0 %v7996
          %8632 = vmatpush1.bf16.msra.mxu0 %v7995
          %8633 = vmatprep.subr.bf16.mxu0 %v7992
          %8634 = vmatpush1.bf16.msra.mxu0 %v7991
          %8635 = vmatprep.subr.bf16.mxu0 %v8052
          %8636 = vmatpush2.bf16.msra.mxu0 %v8051
          %8637 = vmatprep.subr.bf16.mxu0 %v8048
          %8638 = vmatpush2.bf16.msra.mxu0 %v8047
          %8639 = vmatprep.subr.bf16.mxu0 %v8044
          %8640 = vmatpush2.bf16.msra.mxu0 %v8043
          %8641 = vmatprep.subr.bf16.mxu0 %v8040
          %8642 = vmatpush2.bf16.msra.mxu0 %v8039
          %8643 = vmatprep.subr.bf16.mxu0 %v8036
          %8644 = vmatpush2.bf16.msra.mxu0 %v8035
          %8645 = vmatprep.subr.bf16.mxu0 %v8032
          %8646 = vmatpush2.bf16.msra.mxu0 %v8031
          %8647 = vmatprep.subr.bf16.mxu0 %v8028
          %8648 = vmatpush2.bf16.msra.mxu0 %v8027
          %8649 = vmatprep.subr.bf16.mxu0 %v8024
          %8650 = vmatpush2.bf16.msra.mxu0 %v8023
          %8651 = vmatprep.mubr.bf16.mxu0 %v6834
          %8652 = vmatmul.mubr.bf16.gmra.mxu0 %v6833
          %v8653 = vpop.f32.mrf.mxu0
          %v8654 = vadd.f32 %v8613, %v8653
          %v8655 = vpop.f32.mrf.mxu0
          %v8656 = vadd.f32 %v8615, %v8655
          %v8657 = vpop.f32.mrf.mxu0
          %v8658 = vpop.f32.mrf.mxu0
          %8659 = vdwg.mxu0
          %8660 = vmatprep.subr.bf16.mxu0 %v8084
          %8661 = vmatpush1.bf16.msra.mxu0 %v8083
          %8662 = vmatprep.subr.bf16.mxu0 %v8080
          %8663 = vmatpush1.bf16.msra.mxu0 %v8079
          %8664 = vmatprep.subr.bf16.mxu0 %v8076
          %8665 = vmatpush1.bf16.msra.mxu0 %v8075
          %8666 = vmatprep.subr.bf16.mxu0 %v8072
          %8667 = vmatpush1.bf16.msra.mxu0 %v8071
          %8668 = vmatprep.subr.bf16.mxu0 %v8068
          %8669 = vmatpush1.bf16.msra.mxu0 %v8067
          %8670 = vmatprep.subr.bf16.mxu0 %v8064
          %8671 = vmatpush1.bf16.msra.mxu0 %v8063
          %8672 = vmatprep.subr.bf16.mxu0 %v8060
          %8673 = vmatpush1.bf16.msra.mxu0 %v8059
          %8674 = vmatprep.subr.bf16.mxu0 %v8056
          %8675 = vmatpush1.bf16.msra.mxu0 %v8055
          %8676 = vmatprep.subr.bf16.mxu0 %v8116
          %8677 = vmatpush2.bf16.msra.mxu0 %v8115
          %8678 = vmatprep.subr.bf16.mxu0 %v8112
          %8679 = vmatpush2.bf16.msra.mxu0 %v8111
          %8680 = vmatprep.subr.bf16.mxu0 %v8108
          %8681 = vmatpush2.bf16.msra.mxu0 %v8107
          %8682 = vmatprep.subr.bf16.mxu0 %v8104
          %8683 = vmatpush2.bf16.msra.mxu0 %v8103
          %8684 = vmatprep.subr.bf16.mxu0 %v8100
          %8685 = vmatpush2.bf16.msra.mxu0 %v8099
          %8686 = vmatprep.subr.bf16.mxu0 %v8096
          %8687 = vmatpush2.bf16.msra.mxu0 %v8095
          %8688 = vmatprep.subr.bf16.mxu0 %v8092
          %8689 = vmatpush2.bf16.msra.mxu0 %v8091
          %8690 = vmatprep.subr.bf16.mxu0 %v8088
          %8691 = vmatpush2.bf16.msra.mxu0 %v8087
          %8692 = vmatprep.mubr.bf16.mxu0 %v6836
          %8693 = vmatmul.mubr.bf16.gmra.mxu0 %v6835
          %v8694 = vpop.f32.mrf.mxu0
          %v8695 = vadd.f32 %v8654, %v8694
          %v8696 = vpop.f32.mrf.mxu0
          %v8697 = vadd.f32 %v8656, %v8696
          %v8698 = vpop.f32.mrf.mxu0
          %v8699 = vpop.f32.mrf.mxu0
          %8700 = vdwg.mxu0
          %v8701 = vld [vmem:[#allocation16] sm:$0xf]
          %v8703 = vlaneseq
          %v8704 = vshrl.u32 %v8703, 7
          %v8705 = vsub.s32 0, %v8704
          %v8706 = vrot.slane %v8701, %v8705
          %v8707 = vlaneseq
          %v8708 = vshrl.u32 %v8707, 7
          %v8709 = vsub.s32 1, %v8708
          %v8710 = vrot.slane %v8701, %v8709
          %v8711 = vlaneseq
          %v8712 = vshrl.u32 %v8711, 7
          %v8713 = vsub.s32 2, %v8712
          %v8714 = vrot.slane %v8701, %v8713
          %v8715 = vlaneseq
          %v8716 = vshrl.u32 %v8715, 7
          %v8717 = vsub.s32 3, %v8716
          %v8718 = vrot.slane %v8701, %v8717
          %v8723 = vmul.f32 %v8531, %v8706
          %v8724 = vmul.f32 %v8533, %v8710
          %v8725 = vmul.f32 %v8695, %v8714
          %v8726 = vmul.f32 %v8697, %v8718
          %v8727 = vld [vmem:[#allocation18] sm:$0xf]
          %v8729 = vlaneseq
          %v8730 = vshrl.u32 %v8729, 7
          %v8731 = vsub.s32 0, %v8730
          %v8732 = vrot.slane %v8727, %v8731
          %v8733 = vlaneseq
          %v8734 = vshrl.u32 %v8733, 7
          %v8735 = vsub.s32 1, %v8734
          %v8736 = vrot.slane %v8727, %v8735
          %v8737 = vlaneseq
          %v8738 = vshrl.u32 %v8737, 7
          %v8739 = vsub.s32 2, %v8738
          %v8740 = vrot.slane %v8727, %v8739
          %v8741 = vlaneseq
          %v8742 = vshrl.u32 %v8741, 7
          %v8743 = vsub.s32 3, %v8742
          %v8744 = vrot.slane %v8727, %v8743
          %v8749 = vadd.f32 %v8723, %v8732
          %v8750 = vadd.f32 %v8724, %v8736
          %v8751 = vadd.f32 %v8725, %v8740
          %v8752 = vadd.f32 %v8726, %v8744
          %v8753 = vmax.f32 %v8749, 0.0
          %v8754 = vmax.f32 %v8750, 0.0
          %v8755 = vmax.f32 %v8751, 0.0
          %v8756 = vmax.f32 %v8752, 0.0
          %v8757 = vpack.c.bf16 %v8753, %v8753
          %v8758 = vpack.c.bf16 %v8754, %v8754
          %v8759 = vpack.c.bf16 %v8755, %v8755
          %v8760 = vpack.c.bf16 %v8756, %v8756
          %v8761 = vld [vmem:[#allocation19] sm:$0xff]
          %v8762 = vld [vmem:[#allocation19 + $0x8] sm:$0xff]
          %v8763 = vld [vmem:[#allocation19 + $0x10] sm:$0xff]
          %v8764 = vld [vmem:[#allocation19 + $0x18] sm:$0xff]
          %v8765 = vld [vmem:[#allocation19 + $0x20] sm:$0xff]
          %v8766 = vld [vmem:[#allocation19 + $0x28] sm:$0xff]
          %v8767 = vld [vmem:[#allocation19 + $0x30] sm:$0xff]
          %v8768 = vld [vmem:[#allocation19 + $0x38] sm:$0xff]
          %v8769 = vld [vmem:[#allocation19 + $0x40] sm:$0xff]
          %v8770 = vld [vmem:[#allocation19 + $0x48] sm:$0xff]
          %v8771 = vld [vmem:[#allocation19 + $0x50] sm:$0xff]
          %v8772 = vld [vmem:[#allocation19 + $0x58] sm:$0xff]
          %v8773 = vld [vmem:[#allocation19 + $0x60] sm:$0xff]
          %v8774 = vld [vmem:[#allocation19 + $0x68] sm:$0xff]
          %v8775 = vld [vmem:[#allocation19 + $0x70] sm:$0xff]
          %v8776 = vld [vmem:[#allocation19 + $0x78] sm:$0xff]
          %v8777 = vld [vmem:[#allocation19 + $0x80] sm:$0xff]
          %v8778 = vld [vmem:[#allocation19 + $0x88] sm:$0xff]
          %v8779 = vld [vmem:[#allocation19 + $0x90] sm:$0xff]
          %v8780 = vld [vmem:[#allocation19 + $0x98] sm:$0xff]
          %v8781 = vld [vmem:[#allocation19 + $0xa0] sm:$0xff]
          %v8782 = vld [vmem:[#allocation19 + $0xa8] sm:$0xff]
          %v8783 = vld [vmem:[#allocation19 + $0xb0] sm:$0xff]
          %v8784 = vld [vmem:[#allocation19 + $0xb8] sm:$0xff]
          %v8785 = vld [vmem:[#allocation19 + $0xc0] sm:$0xff]
          %v8786 = vld [vmem:[#allocation19 + $0xc8] sm:$0xff]
          %v8787 = vld [vmem:[#allocation19 + $0xd0] sm:$0xff]
          %v8788 = vld [vmem:[#allocation19 + $0xd8] sm:$0xff]
          %v8789 = vld [vmem:[#allocation19 + $0xe0] sm:$0xff]
          %v8790 = vld [vmem:[#allocation19 + $0xe8] sm:$0xff]
          %v8791 = vld [vmem:[#allocation19 + $0xf0] sm:$0xff]
          %v8792 = vld [vmem:[#allocation19 + $0xf8] sm:$0xff]
          %v8793 = vld [vmem:[#allocation19 + $0x100] sm:$0xff]
          %v8794 = vld [vmem:[#allocation19 + $0x108] sm:$0xff]
          %v8795 = vld [vmem:[#allocation19 + $0x110] sm:$0xff]
          %v8796 = vld [vmem:[#allocation19 + $0x118] sm:$0xff]
          %v8797 = vld [vmem:[#allocation19 + $0x120] sm:$0xff]
          %v8798 = vld [vmem:[#allocation19 + $0x128] sm:$0xff]
          %v8799 = vld [vmem:[#allocation19 + $0x130] sm:$0xff]
          %v8800 = vld [vmem:[#allocation19 + $0x138] sm:$0xff]
          %v8801 = vld [vmem:[#allocation19 + $0x140] sm:$0xff]
          %v8802 = vld [vmem:[#allocation19 + $0x148] sm:$0xff]
          %v8803 = vld [vmem:[#allocation19 + $0x150] sm:$0xff]
          %v8804 = vld [vmem:[#allocation19 + $0x158] sm:$0xff]
          %v8805 = vld [vmem:[#allocation19 + $0x160] sm:$0xff]
          %v8806 = vld [vmem:[#allocation19 + $0x168] sm:$0xff]
          %v8807 = vld [vmem:[#allocation19 + $0x170] sm:$0xff]
          %v8808 = vld [vmem:[#allocation19 + $0x178] sm:$0xff]
          %v8809 = vld [vmem:[#allocation19 + $0x180] sm:$0xff]
          %v8810 = vld [vmem:[#allocation19 + $0x188] sm:$0xff]
          %v8811 = vld [vmem:[#allocation19 + $0x190] sm:$0xff]
          %v8812 = vld [vmem:[#allocation19 + $0x198] sm:$0xff]
          %v8813 = vld [vmem:[#allocation19 + $0x1a0] sm:$0xff]
          %v8814 = vld [vmem:[#allocation19 + $0x1a8] sm:$0xff]
          %v8815 = vld [vmem:[#allocation19 + $0x1b0] sm:$0xff]
          %v8816 = vld [vmem:[#allocation19 + $0x1b8] sm:$0xff]
          %v8817 = vld [vmem:[#allocation19 + $0x1c0] sm:$0xff]
          %v8818 = vld [vmem:[#allocation19 + $0x1c8] sm:$0xff]
          %v8819 = vld [vmem:[#allocation19 + $0x1d0] sm:$0xff]
          %v8820 = vld [vmem:[#allocation19 + $0x1d8] sm:$0xff]
          %v8821 = vld [vmem:[#allocation19 + $0x1e0] sm:$0xff]
          %v8822 = vld [vmem:[#allocation19 + $0x1e8] sm:$0xff]
          %v8823 = vld [vmem:[#allocation19 + $0x1f0] sm:$0xff]
          %v8824 = vld [vmem:[#allocation19 + $0x1f8] sm:$0xff]
          %v8889 = vunpack.c.l.b16 %v8761
          %v8890 = vunpack.c.h.b16 %v8761
          %v8891 = vunpack.c.l.b16 %v8762
          %v8892 = vunpack.c.h.b16 %v8762
          %v8893 = vunpack.c.l.b16 %v8763
          %v8894 = vunpack.c.h.b16 %v8763
          %v8895 = vunpack.c.l.b16 %v8764
          %v8896 = vunpack.c.h.b16 %v8764
          %v8897 = vunpack.c.l.b16 %v8765
          %v8898 = vunpack.c.h.b16 %v8765
          %v8899 = vunpack.c.l.b16 %v8766
          %v8900 = vunpack.c.h.b16 %v8766
          %v8901 = vunpack.c.l.b16 %v8767
          %v8902 = vunpack.c.h.b16 %v8767
          %v8903 = vunpack.c.l.b16 %v8768
          %v8904 = vunpack.c.h.b16 %v8768
          %v8905 = vunpack.c.l.b16 %v8769
          %v8906 = vunpack.c.h.b16 %v8769
          %v8907 = vunpack.c.l.b16 %v8770
          %v8908 = vunpack.c.h.b16 %v8770
          %v8909 = vunpack.c.l.b16 %v8771
          %v8910 = vunpack.c.h.b16 %v8771
          %v8911 = vunpack.c.l.b16 %v8772
          %v8912 = vunpack.c.h.b16 %v8772
          %v8913 = vunpack.c.l.b16 %v8773
          %v8914 = vunpack.c.h.b16 %v8773
          %v8915 = vunpack.c.l.b16 %v8774
          %v8916 = vunpack.c.h.b16 %v8774
          %v8917 = vunpack.c.l.b16 %v8775
          %v8918 = vunpack.c.h.b16 %v8775
          %v8919 = vunpack.c.l.b16 %v8776
          %v8920 = vunpack.c.h.b16 %v8776
          %v8921 = vunpack.c.l.b16 %v8777
          %v8922 = vunpack.c.h.b16 %v8777
          %v8923 = vunpack.c.l.b16 %v8778
          %v8924 = vunpack.c.h.b16 %v8778
          %v8925 = vunpack.c.l.b16 %v8779
          %v8926 = vunpack.c.h.b16 %v8779
          %v8927 = vunpack.c.l.b16 %v8780
          %v8928 = vunpack.c.h.b16 %v8780
          %v8929 = vunpack.c.l.b16 %v8781
          %v8930 = vunpack.c.h.b16 %v8781
          %v8931 = vunpack.c.l.b16 %v8782
          %v8932 = vunpack.c.h.b16 %v8782
          %v8933 = vunpack.c.l.b16 %v8783
          %v8934 = vunpack.c.h.b16 %v8783
          %v8935 = vunpack.c.l.b16 %v8784
          %v8936 = vunpack.c.h.b16 %v8784
          %v8937 = vunpack.c.l.b16 %v8785
          %v8938 = vunpack.c.h.b16 %v8785
          %v8939 = vunpack.c.l.b16 %v8786
          %v8940 = vunpack.c.h.b16 %v8786
          %v8941 = vunpack.c.l.b16 %v8787
          %v8942 = vunpack.c.h.b16 %v8787
          %v8943 = vunpack.c.l.b16 %v8788
          %v8944 = vunpack.c.h.b16 %v8788
          %v8945 = vunpack.c.l.b16 %v8789
          %v8946 = vunpack.c.h.b16 %v8789
          %v8947 = vunpack.c.l.b16 %v8790
          %v8948 = vunpack.c.h.b16 %v8790
          %v8949 = vunpack.c.l.b16 %v8791
          %v8950 = vunpack.c.h.b16 %v8791
          %v8951 = vunpack.c.l.b16 %v8792
          %v8952 = vunpack.c.h.b16 %v8792
          %v8953 = vunpack.c.l.b16 %v8793
          %v8954 = vunpack.c.h.b16 %v8793
          %v8955 = vunpack.c.l.b16 %v8794
          %v8956 = vunpack.c.h.b16 %v8794
          %v8957 = vunpack.c.l.b16 %v8795
          %v8958 = vunpack.c.h.b16 %v8795
          %v8959 = vunpack.c.l.b16 %v8796
          %v8960 = vunpack.c.h.b16 %v8796
          %v8961 = vunpack.c.l.b16 %v8797
          %v8962 = vunpack.c.h.b16 %v8797
          %v8963 = vunpack.c.l.b16 %v8798
          %v8964 = vunpack.c.h.b16 %v8798
          %v8965 = vunpack.c.l.b16 %v8799
          %v8966 = vunpack.c.h.b16 %v8799
          %v8967 = vunpack.c.l.b16 %v8800
          %v8968 = vunpack.c.h.b16 %v8800
          %v8969 = vunpack.c.l.b16 %v8801
          %v8970 = vunpack.c.h.b16 %v8801
          %v8971 = vunpack.c.l.b16 %v8802
          %v8972 = vunpack.c.h.b16 %v8802
          %v8973 = vunpack.c.l.b16 %v8803
          %v8974 = vunpack.c.h.b16 %v8803
          %v8975 = vunpack.c.l.b16 %v8804
          %v8976 = vunpack.c.h.b16 %v8804
          %v8977 = vunpack.c.l.b16 %v8805
          %v8978 = vunpack.c.h.b16 %v8805
          %v8979 = vunpack.c.l.b16 %v8806
          %v8980 = vunpack.c.h.b16 %v8806
          %v8981 = vunpack.c.l.b16 %v8807
          %v8982 = vunpack.c.h.b16 %v8807
          %v8983 = vunpack.c.l.b16 %v8808
          %v8984 = vunpack.c.h.b16 %v8808
          %v8985 = vunpack.c.l.b16 %v8809
          %v8986 = vunpack.c.h.b16 %v8809
          %v8987 = vunpack.c.l.b16 %v8810
          %v8988 = vunpack.c.h.b16 %v8810
          %v8989 = vunpack.c.l.b16 %v8811
          %v8990 = vunpack.c.h.b16 %v8811
          %v8991 = vunpack.c.l.b16 %v8812
          %v8992 = vunpack.c.h.b16 %v8812
          %v8993 = vunpack.c.l.b16 %v8813
          %v8994 = vunpack.c.h.b16 %v8813
          %v8995 = vunpack.c.l.b16 %v8814
          %v8996 = vunpack.c.h.b16 %v8814
          %v8997 = vunpack.c.l.b16 %v8815
          %v8998 = vunpack.c.h.b16 %v8815
          %v8999 = vunpack.c.l.b16 %v8816
          %v9000 = vunpack.c.h.b16 %v8816
          %v9001 = vunpack.c.l.b16 %v8817
          %v9002 = vunpack.c.h.b16 %v8817
          %v9003 = vunpack.c.l.b16 %v8818
          %v9004 = vunpack.c.h.b16 %v8818
          %v9005 = vunpack.c.l.b16 %v8819
          %v9006 = vunpack.c.h.b16 %v8819
          %v9007 = vunpack.c.l.b16 %v8820
          %v9008 = vunpack.c.h.b16 %v8820
          %v9009 = vunpack.c.l.b16 %v8821
          %v9010 = vunpack.c.h.b16 %v8821
          %v9011 = vunpack.c.l.b16 %v8822
          %v9012 = vunpack.c.h.b16 %v8822
          %v9013 = vunpack.c.l.b16 %v8823
          %v9014 = vunpack.c.h.b16 %v8823
          %v9015 = vunpack.c.l.b16 %v8824
          %v9016 = vunpack.c.h.b16 %v8824
          %v9017 = vpack.c.b16 %v8891, %v8889
          %v9018 = vpack.c.b16 %v8892, %v8890
          %v9019 = vpack.c.b16 %v8895, %v8893
          %v9020 = vpack.c.b16 %v8896, %v8894
          %v9021 = vpack.c.b16 %v8899, %v8897
          %v9022 = vpack.c.b16 %v8900, %v8898
          %v9023 = vpack.c.b16 %v8903, %v8901
          %v9024 = vpack.c.b16 %v8904, %v8902
          %v9025 = vpack.c.b16 %v8907, %v8905
          %v9026 = vpack.c.b16 %v8908, %v8906
          %v9027 = vpack.c.b16 %v8911, %v8909
          %v9028 = vpack.c.b16 %v8912, %v8910
          %v9029 = vpack.c.b16 %v8915, %v8913
          %v9030 = vpack.c.b16 %v8916, %v8914
          %v9031 = vpack.c.b16 %v8919, %v8917
          %v9032 = vpack.c.b16 %v8920, %v8918
          %v9033 = vpack.c.b16 %v8923, %v8921
          %v9034 = vpack.c.b16 %v8924, %v8922
          %v9035 = vpack.c.b16 %v8927, %v8925
          %v9036 = vpack.c.b16 %v8928, %v8926
          %v9037 = vpack.c.b16 %v8931, %v8929
          %v9038 = vpack.c.b16 %v8932, %v8930
          %v9039 = vpack.c.b16 %v8935, %v8933
          %v9040 = vpack.c.b16 %v8936, %v8934
          %v9041 = vpack.c.b16 %v8939, %v8937
          %v9042 = vpack.c.b16 %v8940, %v8938
          %v9043 = vpack.c.b16 %v8943, %v8941
          %v9044 = vpack.c.b16 %v8944, %v8942
          %v9045 = vpack.c.b16 %v8947, %v8945
          %v9046 = vpack.c.b16 %v8948, %v8946
          %v9047 = vpack.c.b16 %v8951, %v8949
          %v9048 = vpack.c.b16 %v8952, %v8950
          %v9049 = vpack.c.b16 %v8955, %v8953
          %v9050 = vpack.c.b16 %v8956, %v8954
          %v9051 = vpack.c.b16 %v8959, %v8957
          %v9052 = vpack.c.b16 %v8960, %v8958
          %v9053 = vpack.c.b16 %v8963, %v8961
          %v9054 = vpack.c.b16 %v8964, %v8962
          %v9055 = vpack.c.b16 %v8967, %v8965
          %v9056 = vpack.c.b16 %v8968, %v8966
          %v9057 = vpack.c.b16 %v8971, %v8969
          %v9058 = vpack.c.b16 %v8972, %v8970
          %v9059 = vpack.c.b16 %v8975, %v8973
          %v9060 = vpack.c.b16 %v8976, %v8974
          %v9061 = vpack.c.b16 %v8979, %v8977
          %v9062 = vpack.c.b16 %v8980, %v8978
          %v9063 = vpack.c.b16 %v8983, %v8981
          %v9064 = vpack.c.b16 %v8984, %v8982
          %v9065 = vpack.c.b16 %v8987, %v8985
          %v9066 = vpack.c.b16 %v8988, %v8986
          %v9067 = vpack.c.b16 %v8991, %v8989
          %v9068 = vpack.c.b16 %v8992, %v8990
          %v9069 = vpack.c.b16 %v8995, %v8993
          %v9070 = vpack.c.b16 %v8996, %v8994
          %v9071 = vpack.c.b16 %v8999, %v8997
          %v9072 = vpack.c.b16 %v9000, %v8998
          %v9073 = vpack.c.b16 %v9003, %v9001
          %v9074 = vpack.c.b16 %v9004, %v9002
          %v9075 = vpack.c.b16 %v9007, %v9005
          %v9076 = vpack.c.b16 %v9008, %v9006
          %v9077 = vpack.c.b16 %v9011, %v9009
          %v9078 = vpack.c.b16 %v9012, %v9010
          %v9079 = vpack.c.b16 %v9015, %v9013
          %v9080 = vpack.c.b16 %v9016, %v9014
          %9145 = vmatprep.subr.bf16.mxu0 %v9032
          %9146 = vmatpush1.bf16.msra.mxu0 %v9031
          %9147 = vmatprep.subr.bf16.mxu0 %v9030
          %9148 = vmatpush1.bf16.msra.mxu0 %v9029
          %9149 = vmatprep.subr.bf16.mxu0 %v9028
          %9150 = vmatpush1.bf16.msra.mxu0 %v9027
          %9151 = vmatprep.subr.bf16.mxu0 %v9026
          %9152 = vmatpush1.bf16.msra.mxu0 %v9025
          %9153 = vmatprep.subr.bf16.mxu0 %v9024
          %9154 = vmatpush1.bf16.msra.mxu0 %v9023
          %9155 = vmatprep.subr.bf16.mxu0 %v9022
          %9156 = vmatpush1.bf16.msra.mxu0 %v9021
          %9157 = vmatprep.subr.bf16.mxu0 %v9020
          %9158 = vmatpush1.bf16.msra.mxu0 %v9019
          %9159 = vmatprep.subr.bf16.mxu0 %v9018
          %9160 = vmatpush1.bf16.msra.mxu0 %v9017
          %9161 = vmatprep.subr.bf16.mxu0 %v9048
          %9162 = vmatpush2.bf16.msra.mxu0 %v9047
          %9163 = vmatprep.subr.bf16.mxu0 %v9046
          %9164 = vmatpush2.bf16.msra.mxu0 %v9045
          %9165 = vmatprep.subr.bf16.mxu0 %v9044
          %9166 = vmatpush2.bf16.msra.mxu0 %v9043
          %9167 = vmatprep.subr.bf16.mxu0 %v9042
          %9168 = vmatpush2.bf16.msra.mxu0 %v9041
          %9169 = vmatprep.subr.bf16.mxu0 %v9040
          %9170 = vmatpush2.bf16.msra.mxu0 %v9039
          %9171 = vmatprep.subr.bf16.mxu0 %v9038
          %9172 = vmatpush2.bf16.msra.mxu0 %v9037
          %9173 = vmatprep.subr.bf16.mxu0 %v9036
          %9174 = vmatpush2.bf16.msra.mxu0 %v9035
          %9175 = vmatprep.subr.bf16.mxu0 %v9034
          %9176 = vmatpush2.bf16.msra.mxu0 %v9033
          %9177 = vmatprep.mubr.bf16.mxu0 %v8758
          %9178 = vmatmul.mubr.bf16.gmra.mxu0 %v8757
          %v9179 = vpop.f32.mrf.mxu0
          %v9180 = vadd.f32 0.0, %v9179
          %v9181 = vpop.f32.mrf.mxu0
          %v9182 = vadd.f32 0.0, %v9181
          %v9183 = vpop.f32.mrf.mxu0
          %v9184 = vpop.f32.mrf.mxu0
          %9185 = vdwg.mxu0
          %9186 = vmatprep.subr.bf16.mxu0 %v9064
          %9187 = vmatpush1.bf16.msra.mxu0 %v9063
          %9188 = vmatprep.subr.bf16.mxu0 %v9062
          %9189 = vmatpush1.bf16.msra.mxu0 %v9061
          %9190 = vmatprep.subr.bf16.mxu0 %v9060
          %9191 = vmatpush1.bf16.msra.mxu0 %v9059
          %9192 = vmatprep.subr.bf16.mxu0 %v9058
          %9193 = vmatpush1.bf16.msra.mxu0 %v9057
          %9194 = vmatprep.subr.bf16.mxu0 %v9056
          %9195 = vmatpush1.bf16.msra.mxu0 %v9055
          %9196 = vmatprep.subr.bf16.mxu0 %v9054
          %9197 = vmatpush1.bf16.msra.mxu0 %v9053
          %9198 = vmatprep.subr.bf16.mxu0 %v9052
          %9199 = vmatpush1.bf16.msra.mxu0 %v9051
          %9200 = vmatprep.subr.bf16.mxu0 %v9050
          %9201 = vmatpush1.bf16.msra.mxu0 %v9049
          %9202 = vmatprep.subr.bf16.mxu0 %v9080
          %9203 = vmatpush2.bf16.msra.mxu0 %v9079
          %9204 = vmatprep.subr.bf16.mxu0 %v9078
          %9205 = vmatpush2.bf16.msra.mxu0 %v9077
          %9206 = vmatprep.subr.bf16.mxu0 %v9076
          %9207 = vmatpush2.bf16.msra.mxu0 %v9075
          %9208 = vmatprep.subr.bf16.mxu0 %v9074
          %9209 = vmatpush2.bf16.msra.mxu0 %v9073
          %9210 = vmatprep.subr.bf16.mxu0 %v9072
          %9211 = vmatpush2.bf16.msra.mxu0 %v9071
          %9212 = vmatprep.subr.bf16.mxu0 %v9070
          %9213 = vmatpush2.bf16.msra.mxu0 %v9069
          %9214 = vmatprep.subr.bf16.mxu0 %v9068
          %9215 = vmatpush2.bf16.msra.mxu0 %v9067
          %9216 = vmatprep.subr.bf16.mxu0 %v9066
          %9217 = vmatpush2.bf16.msra.mxu0 %v9065
          %9218 = vmatprep.mubr.bf16.mxu0 %v8760
          %9219 = vmatmul.mubr.bf16.gmra.mxu0 %v8759
          %v9220 = vpop.f32.mrf.mxu0
          %v9221 = vadd.f32 %v9180, %v9220
          %v9222 = vpop.f32.mrf.mxu0
          %v9223 = vadd.f32 %v9182, %v9222
          %v9224 = vpop.f32.mrf.mxu0
          %v9225 = vpop.f32.mrf.mxu0
          %9226 = vdwg.mxu0
          %v9227 = vld [vmem:[%s14] sm:$0x3]
          %v9229 = vlaneseq
          %v9230 = vshrl.u32 %v9229, 7
          %v9231 = vsub.s32 0, %v9230
          %v9232 = vrot.slane %v9227, %v9231
          %v9233 = vlaneseq
          %v9234 = vshrl.u32 %v9233, 7
          %v9235 = vsub.s32 1, %v9234
          %v9236 = vrot.slane %v9227, %v9235
          %v9239 = vmul.f32 %v9221, %v9232
          %v9240 = vmul.f32 %v9223, %v9236
          %v9241 = vld [vmem:[%s15] sm:$0x3]
          %v9243 = vlaneseq
          %v9244 = vshrl.u32 %v9243, 7
          %v9245 = vsub.s32 0, %v9244
          %v9246 = vrot.slane %v9241, %v9245
          %v9247 = vlaneseq
          %v9248 = vshrl.u32 %v9247, 7
          %v9249 = vsub.s32 1, %v9248
          %v9250 = vrot.slane %v9241, %v9249
          %v9253 = vadd.f32 %v9239, %v9246
          %v9254 = vadd.f32 %v9240, %v9250
          %v9255 = vmax.f32 %v9253, 0.0
          %v9256 = vmax.f32 %v9254, 0.0
          %v9257 = vpack.c.bf16 %v9255, %v9255
          %v9258 = vpack.c.bf16 %v9256, %v9256
          %v9259 = vld [vmem:[%s16] sm:$0xff]
          %v9260 = vld [vmem:[%s16 + $0x8] sm:$0xff]
          %v9261 = vld [vmem:[%s16 + $0x10] sm:$0xff]
          %v9262 = vld [vmem:[%s16 + $0x18] sm:$0xff]
          %v9263 = vld [vmem:[%s16 + $0x20] sm:$0xff]
          %v9264 = vld [vmem:[%s16 + $0x28] sm:$0xff]
          %v9265 = vld [vmem:[%s16 + $0x30] sm:$0xff]
          %v9266 = vld [vmem:[%s16 + $0x38] sm:$0xff]
          %v9267 = vld [vmem:[%s16 + $0x40] sm:$0xff]
          %v9268 = vld [vmem:[%s16 + $0x48] sm:$0xff]
          %v9269 = vld [vmem:[%s16 + $0x50] sm:$0xff]
          %v9270 = vld [vmem:[%s16 + $0x58] sm:$0xff]
          %v9271 = vld [vmem:[%s16 + $0x60] sm:$0xff]
          %v9272 = vld [vmem:[%s16 + $0x68] sm:$0xff]
          %v9273 = vld [vmem:[%s16 + $0x70] sm:$0xff]
          %v9274 = vld [vmem:[%s16 + $0x78] sm:$0xff]
          %v9275 = vld [vmem:[%s16 + $0x80] sm:$0xff]
          %v9276 = vld [vmem:[%s16 + $0x88] sm:$0xff]
          %v9277 = vld [vmem:[%s16 + $0x90] sm:$0xff]
          %v9278 = vld [vmem:[%s16 + $0x98] sm:$0xff]
          %v9279 = vld [vmem:[%s16 + $0xa0] sm:$0xff]
          %v9280 = vld [vmem:[%s16 + $0xa8] sm:$0xff]
          %v9281 = vld [vmem:[%s16 + $0xb0] sm:$0xff]
          %v9282 = vld [vmem:[%s16 + $0xb8] sm:$0xff]
          %v9283 = vld [vmem:[%s16 + $0xc0] sm:$0xff]
          %v9284 = vld [vmem:[%s16 + $0xc8] sm:$0xff]
          %v9285 = vld [vmem:[%s16 + $0xd0] sm:$0xff]
          %v9286 = vld [vmem:[%s16 + $0xd8] sm:$0xff]
          %v9287 = vld [vmem:[%s16 + $0xe0] sm:$0xff]
          %v9288 = vld [vmem:[%s16 + $0xe8] sm:$0xff]
          %v9289 = vld [vmem:[%s16 + $0xf0] sm:$0xff]
          %v9290 = vld [vmem:[%s16 + $0xf8] sm:$0xff]
          %v9291 = vld [vmem:[%s17] sm:$0x3]
          %v9293 = vlaneseq
          %v9294 = vshrl.u32 %v9293, 7
          %v9295 = vsub.s32 0, %v9294
          %v9296 = vrot.slane %v9291, %v9295
          %v9297 = vlaneseq
          %v9298 = vshrl.u32 %v9297, 7
          %v9299 = vsub.s32 1, %v9298
          %v9300 = vrot.slane %v9291, %v9299
          %v9335 = vunpack.c.l.b16 %v9259
          %v9336 = vunpack.c.h.b16 %v9259
          %v9337 = vunpack.c.l.b16 %v9260
          %v9338 = vunpack.c.h.b16 %v9260
          %v9339 = vunpack.c.l.b16 %v9261
          %v9340 = vunpack.c.h.b16 %v9261
          %v9341 = vunpack.c.l.b16 %v9262
          %v9342 = vunpack.c.h.b16 %v9262
          %v9343 = vunpack.c.l.b16 %v9263
          %v9344 = vunpack.c.h.b16 %v9263
          %v9345 = vunpack.c.l.b16 %v9264
          %v9346 = vunpack.c.h.b16 %v9264
          %v9347 = vunpack.c.l.b16 %v9265
          %v9348 = vunpack.c.h.b16 %v9265
          %v9349 = vunpack.c.l.b16 %v9266
          %v9350 = vunpack.c.h.b16 %v9266
          %v9351 = vunpack.c.l.b16 %v9267
          %v9352 = vunpack.c.h.b16 %v9267
          %v9353 = vunpack.c.l.b16 %v9268
          %v9354 = vunpack.c.h.b16 %v9268
          %v9355 = vunpack.c.l.b16 %v9269
          %v9356 = vunpack.c.h.b16 %v9269
          %v9357 = vunpack.c.l.b16 %v9270
          %v9358 = vunpack.c.h.b16 %v9270
          %v9359 = vunpack.c.l.b16 %v9271
          %v9360 = vunpack.c.h.b16 %v9271
          %v9361 = vunpack.c.l.b16 %v9272
          %v9362 = vunpack.c.h.b16 %v9272
          %v9363 = vunpack.c.l.b16 %v9273
          %v9364 = vunpack.c.h.b16 %v9273
          %v9365 = vunpack.c.l.b16 %v9274
          %v9366 = vunpack.c.h.b16 %v9274
          %v9367 = vunpack.c.l.b16 %v9275
          %v9368 = vunpack.c.h.b16 %v9275
          %v9369 = vunpack.c.l.b16 %v9276
          %v9370 = vunpack.c.h.b16 %v9276
          %v9371 = vunpack.c.l.b16 %v9277
          %v9372 = vunpack.c.h.b16 %v9277
          %v9373 = vunpack.c.l.b16 %v9278
          %v9374 = vunpack.c.h.b16 %v9278
          %v9375 = vunpack.c.l.b16 %v9279
          %v9376 = vunpack.c.h.b16 %v9279
          %v9377 = vunpack.c.l.b16 %v9280
          %v9378 = vunpack.c.h.b16 %v9280
          %v9379 = vunpack.c.l.b16 %v9281
          %v9380 = vunpack.c.h.b16 %v9281
          %v9381 = vunpack.c.l.b16 %v9282
          %v9382 = vunpack.c.h.b16 %v9282
          %v9383 = vunpack.c.l.b16 %v9283
          %v9384 = vunpack.c.h.b16 %v9283
          %v9385 = vunpack.c.l.b16 %v9284
          %v9386 = vunpack.c.h.b16 %v9284
          %v9387 = vunpack.c.l.b16 %v9285
          %v9388 = vunpack.c.h.b16 %v9285
          %v9389 = vunpack.c.l.b16 %v9286
          %v9390 = vunpack.c.h.b16 %v9286
          %v9391 = vunpack.c.l.b16 %v9287
          %v9392 = vunpack.c.h.b16 %v9287
          %v9393 = vunpack.c.l.b16 %v9288
          %v9394 = vunpack.c.h.b16 %v9288
          %v9395 = vunpack.c.l.b16 %v9289
          %v9396 = vunpack.c.h.b16 %v9289
          %v9397 = vunpack.c.l.b16 %v9290
          %v9398 = vunpack.c.h.b16 %v9290
          %v9399 = vpack.c.b16 %v9337, %v9335
          %v9400 = vpack.c.b16 %v9338, %v9336
          %v9401 = vpack.c.b16 %v9341, %v9339
          %v9402 = vpack.c.b16 %v9342, %v9340
          %v9403 = vpack.c.b16 %v9345, %v9343
          %v9404 = vpack.c.b16 %v9346, %v9344
          %v9405 = vpack.c.b16 %v9349, %v9347
          %v9406 = vpack.c.b16 %v9350, %v9348
          %v9407 = vpack.c.b16 %v9353, %v9351
          %v9408 = vpack.c.b16 %v9354, %v9352
          %v9409 = vpack.c.b16 %v9357, %v9355
          %v9410 = vpack.c.b16 %v9358, %v9356
          %v9411 = vpack.c.b16 %v9361, %v9359
          %v9412 = vpack.c.b16 %v9362, %v9360
          %v9413 = vpack.c.b16 %v9365, %v9363
          %v9414 = vpack.c.b16 %v9366, %v9364
          %v9415 = vpack.c.b16 %v9369, %v9367
          %v9416 = vpack.c.b16 %v9370, %v9368
          %v9417 = vpack.c.b16 %v9373, %v9371
          %v9418 = vpack.c.b16 %v9374, %v9372
          %v9419 = vpack.c.b16 %v9377, %v9375
          %v9420 = vpack.c.b16 %v9378, %v9376
          %v9421 = vpack.c.b16 %v9381, %v9379
          %v9422 = vpack.c.b16 %v9382, %v9380
          %v9423 = vpack.c.b16 %v9385, %v9383
          %v9424 = vpack.c.b16 %v9386, %v9384
          %v9425 = vpack.c.b16 %v9389, %v9387
          %v9426 = vpack.c.b16 %v9390, %v9388
          %v9427 = vpack.c.b16 %v9393, %v9391
          %v9428 = vpack.c.b16 %v9394, %v9392
          %v9429 = vpack.c.b16 %v9397, %v9395
          %v9430 = vpack.c.b16 %v9398, %v9396
          %9463 = vmatprep.subr.bf16.mxu0 %v9414
          %9464 = vmatpush1.bf16.msra.mxu0 %v9413
          %9465 = vmatprep.subr.bf16.mxu0 %v9412
          %9466 = vmatpush1.bf16.msra.mxu0 %v9411
          %9467 = vmatprep.subr.bf16.mxu0 %v9410
          %9468 = vmatpush1.bf16.msra.mxu0 %v9409
          %9469 = vmatprep.subr.bf16.mxu0 %v9408
          %9470 = vmatpush1.bf16.msra.mxu0 %v9407
          %9471 = vmatprep.subr.bf16.mxu0 %v9406
          %9472 = vmatpush1.bf16.msra.mxu0 %v9405
          %9473 = vmatprep.subr.bf16.mxu0 %v9404
          %9474 = vmatpush1.bf16.msra.mxu0 %v9403
          %9475 = vmatprep.subr.bf16.mxu0 %v9402
          %9476 = vmatpush1.bf16.msra.mxu0 %v9401
          %9477 = vmatprep.subr.bf16.mxu0 %v9400
          %9478 = vmatpush1.bf16.msra.mxu0 %v9399
          %9479 = vmatprep.subr.bf16.mxu0 %v9430
          %9480 = vmatpush2.bf16.msra.mxu0 %v9429
          %9481 = vmatprep.subr.bf16.mxu0 %v9428
          %9482 = vmatpush2.bf16.msra.mxu0 %v9427
          %9483 = vmatprep.subr.bf16.mxu0 %v9426
          %9484 = vmatpush2.bf16.msra.mxu0 %v9425
          %9485 = vmatprep.subr.bf16.mxu0 %v9424
          %9486 = vmatpush2.bf16.msra.mxu0 %v9423
          %9487 = vmatprep.subr.bf16.mxu0 %v9422
          %9488 = vmatpush2.bf16.msra.mxu0 %v9421
          %9489 = vmatprep.subr.bf16.mxu0 %v9420
          %9490 = vmatpush2.bf16.msra.mxu0 %v9419
          %9491 = vmatprep.subr.bf16.mxu0 %v9418
          %9492 = vmatpush2.bf16.msra.mxu0 %v9417
          %9493 = vmatprep.subr.bf16.mxu0 %v9416
          %9494 = vmatpush2.bf16.msra.mxu0 %v9415
          %9495 = vmatprep.mubr.bf16.mxu0 %v9258
          %9496 = vmatmul.mubr.bf16.gmra.mxu0 %v9257
          %v9497 = vpop.f32.mrf.mxu0
          %v9498 = vadd.f32 %v9296, %v9497
          %v9499 = vpop.f32.mrf.mxu0
          %v9500 = vadd.f32 %v9300, %v9499
          %v9501 = vpop.f32.mrf.mxu0
          %v9502 = vpop.f32.mrf.mxu0
          %9503 = vdwg.mxu0
          %9504 = vst [vmem:[%s1010] sm:$0xff] %v9498
          %9505 = vst [vmem:[%s1010 + $0x8] sm:$0xff] %v9500
        $region178: #{tpu_custom_call.1} parent=125 // pred_fallthru
          _
        %s9506 = sand.u32 %s443, 1
        %s9507 = scalar_lea.sflag [#allocation6], %s9506
        %s9508 = sand.u32 %s443, 1
        %s9509 = smul.addr %s9508, 16
        %s9510 = scalar_lea.vmem [#allocation21], %s9509
        // Predicated region
        $region179: #{tpu_custom_call.1} parent=125 // pred_check
          %p9511 = pneg %p453
        $region180: #{tpu_custom_call.1} parent=125 // pred_check_branch
          %9513 = sbr.rel (%p9511) target = $region182
        $region181: #{tpu_custom_call.1} parent=125 // pred_region
          %s9515 = ssub.s32 256, 256
          %9516 = vsyncadd %s9507, %s9515
          %s9517 = smul.addr %s42, 2
          %s9518 = smul.addr %s9517, 128
          %s9519 = scalar_lea.hbm %s18, %s9518
          %s9521 = sshll.u32 %s9510, 4
          %s9522 = int_to_ptr.vmem [resolvable:$true] %s9521
          %9524 = dma.vmem_to_hbm [thread:$0]  %s9522, 256, %s9519, %s9507
        $region182: #{tpu_custom_call.1} parent=125 // pred_fallthru
          _
      $region126: #{tpu_custom_call.1} parent=5 // pred_fallthru
        _
      %p9525 = scmp.le.s32.totalorder 2, %s33
      // Predicated region
      $region183: #{tpu_custom_call.1} parent=5 // pred_check
        %p9526 = pneg %p9525
      $region184: #{tpu_custom_call.1} parent=5 // pred_check_branch
        %9528 = sbr.rel (%p9526) target = $region186
      $region185: #{tpu_custom_call.1} parent=5 // pred_region
        %s9529 = ssub.s32 %s33, 2
        // Predicated region
        $region187: #{tpu_custom_call.1} parent=185 // pred_check
          %p9530 = pneg %p459
        $region188: #{tpu_custom_call.1} parent=185 // pred_check_branch
          %9532 = sbr.rel (%p9530) target = $region190
        $region189: #{tpu_custom_call.1} parent=185 // pred_region
          %s9533 = sand.u32 %s444, 1
          %s9534 = scalar_lea.sflag [#allocation6], %s9533
          %s9535 = sand.u32 %s444, 1
          %s9536 = smul.addr %s9535, 16
          %s9537 = scalar_lea.vmem [#allocation21], %s9536
          %9538 = dma.done %s9534, 256
        $region190: #{tpu_custom_call.1} parent=185 // pred_fallthru
          _
      $region186: #{tpu_custom_call.1} parent=5 // pred_fallthru
        _
    $region6: #{tpu_custom_call.1} parent=1 // loop_footer
      %s37 = sadd.s32 1, %s33
    $region7: #{tpu_custom_call.1} parent=1 // loop_footer_branch
      %32 = sbr.rel target = $region3
    $region8: #{tpu_custom_call.1} parent=1 // loop_exit
      _
    %9539 = vsyncpa [#allocation5], 1
    %s9540 = scalar_lea.sflag [#allocation5], 1
    %9541 = vsyncpa %s9540, 1
    %9542 = vsyncpa [#allocation8], 1
    %9543 = vsyncpa [#allocation11], 1
    %9544 = vsyncpa [#allocation14], 1
    %9545 = vsyncpa [#allocation17], 1
    %9546 = vsyncpa [#allocation20], 1
    %9547 = vsyncpa [#allocation6], 1
    %s9548 = scalar_lea.sflag [#allocation6], 1
    %9549 = vsyncpa %s9548, 1

</llo_original>
